<compile_context>
chip_gen: v6e
topology: v6e:2x2x1
jax: 0.10.0
libtpu: 0.0.40
codegen_flags: <defaults>
</compile_context>

<pallas_src>
import functools

import jax
import jax.numpy as jnp
from jax.experimental import pallas as pl
from jax.experimental.pallas import tpu as pltpu


def _round_up(x, m):
    return (x + m - 1) // m * m


# ----------------------------------------------------------------- kernels --

def _bn_relu(y, gamma, beta):
    # Training-mode BatchNorm (nn.Module default): batch stats over rows (N*H*W),
    # biased variance, eps=1e-5; followed by ReLU.  All math in f32.
    mean = jnp.mean(y, axis=0, keepdims=True)
    var = jnp.mean((y - mean) ** 2, axis=0, keepdims=True)
    return jnp.maximum((y - mean) * jax.lax.rsqrt(var + 1e-5) * gamma + beta, 0.0)


def _mm_bias_kernel(x_ref, w_ref, b_ref, o_ref):
    # conv0: o = x @ w + b      (bf16 operands, f32 accumulate)
    o_ref[...] = (
        jnp.dot(x_ref[...], w_ref[...], preferred_element_type=jnp.float32)
        + b_ref[...]
    )


def _mm_kernel(x_ref, w_ref, o_ref):
    # conv2 / conv5 / conv8 (bias=False): o = x @ w
    o_ref[...] = jnp.dot(x_ref[...], w_ref[...], preferred_element_type=jnp.float32)


def _mm_bn_relu_kernel(x_ref, w_ref, g_ref, b_ref, o_ref):
    # conv1 / conv4 / conv7 (bias=False) with fused BN(batch stats)+ReLU epilogue.
    y = jnp.dot(x_ref[...], w_ref[...], preferred_element_type=jnp.float32)
    o_ref[...] = _bn_relu(y, g_ref[...], b_ref[...])


def _mm_bias_res_bn_relu_kernel(x_ref, w_ref, b_ref, r_ref, g_ref, bt_ref,
                                oraw_ref, obn_ref):
    # conv3 / conv6 shortcut: y = x@w + b + residual; emit y and relu(bn(y)).
    y = (jnp.dot(x_ref[...], w_ref[...], preferred_element_type=jnp.float32)
         + b_ref[...] + r_ref[...])
    oraw_ref[...] = y
    obn_ref[...] = _bn_relu(y, g_ref[...], bt_ref[...])


def _mm_bias_res_kernel(x_ref, w_ref, b_ref, r_ref, o_ref):
    # conv9 shortcut: o = x@w + b + residual
    o_ref[...] = (
        jnp.dot(x_ref[...], w_ref[...], preferred_element_type=jnp.float32)
        + b_ref[...] + r_ref[...]
    )


def _pool_bn_relu_kernel(a_ref, b_ref, c_ref, d_ref, g_ref, bt_ref,
                         oraw_ref, obn_ref):
    # 2x2 max-pool fused with bn0+ReLU; emits pooled (raw) and activated tensors.
    pooled = jnp.maximum(jnp.maximum(a_ref[...], b_ref[...]),
                         jnp.maximum(c_ref[...], d_ref[...]))
    oraw_ref[...] = pooled
    obn_ref[...] = _bn_relu(pooled, g_ref[...], bt_ref[...])


def _head_kernel(f_ref, m_ref, w_ref, b_ref, o_ref):
    # relu -> dropout(p=0.5, inverted scaling, mask precomputed) -> fused Linear0|Linear1
    f = jnp.maximum(f_ref[...], 0.0) * m_ref[...] * 2.0
    o_ref[...] = (
        jnp.dot(f.astype(jnp.bfloat16), w_ref[...],
                preferred_element_type=jnp.float32)
        + b_ref[...]
    )


# ----------------------------------------------------- pallas_call wrappers --

def _call_full(kernel, inputs, out_shapes):
    """grid=(1,) call: every (2-D) operand is a single full-array VMEM block."""
    out_shapes = tuple(out_shapes)
    return pl.pallas_call(
        kernel,
        out_shape=out_shapes,
        grid=(1,),
        in_specs=[pl.BlockSpec(a.shape, lambda i: (0, 0)) for a in inputs],
        out_specs=[pl.BlockSpec(s.shape, lambda i: (0, 0)) for s in out_shapes],
    )(*inputs)


def _im2col(x_nhwc, KH, KW, stride, pad):
    B, H, W, Cin = x_nhwc.shape
    xp = jnp.pad(x_nhwc, ((0, 0), (pad, pad), (pad, pad), (0, 0)))
    Ho = (H + 2 * pad - KH) // stride + 1
    Wo = (W + 2 * pad - KW) // stride + 1
    cols = [xp[:, i:i + stride * Ho:stride, j:j + stride * Wo:stride, :]
            for i in range(KH) for j in range(KW)]
    patches = jnp.concatenate(cols, axis=-1).reshape(B * Ho * Wo, KH * KW * Cin)
    return patches, Ho, Wo


def _patches_bf16(patches, k_padded):
    K = patches.shape[1]
    if k_padded != K:
        patches = jnp.pad(patches, ((0, 0), (0, k_padded - K)))
    return patches.astype(jnp.bfloat16)


def conv2d_bias(x_nhwc, wmat, bias, KH, KW, stride, pad, tm=512):
    """conv0: biased conv, M-tiled parallel matmul."""
    B = x_nhwc.shape[0]
    patches, Ho, Wo = _im2col(x_nhwc, KH, KW, stride, pad)
    Kp, N = wmat.shape
    p_bf = _patches_bf16(patches, Kp)
    M = p_bf.shape[0]
    TM = M if M <= tm else tm
    Mp = _round_up(M, TM)
    if Mp != M:
        p_bf = jnp.pad(p_bf, ((0, Mp - M), (0, 0)))
    out = pl.pallas_call(
        _mm_bias_kernel,
        out_shape=jax.ShapeDtypeStruct((Mp, N), jnp.float32),
        grid=(Mp // TM,),
        in_specs=[
            pl.BlockSpec((TM, Kp), lambda i: (i, 0)),
            pl.BlockSpec((Kp, N), lambda i: (0, 0)),
            pl.BlockSpec((1, N), lambda i: (0, 0)),
        ],
        out_specs=pl.BlockSpec((TM, N), lambda i: (i, 0)),
        compiler_params=pltpu.CompilerParams(dimension_semantics=("parallel",)),
    )(p_bf, wmat, bias)
    return out[:M].reshape(B, Ho, Wo, N)


def conv2d_bn_relu(x_nhwc, wmat, gamma, beta, KH, KW, stride, pad):
    B = x_nhwc.shape[0]
    patches, Ho, Wo = _im2col(x_nhwc, KH, KW, stride, pad)
    Kp, N = wmat.shape
    p_bf = _patches_bf16(patches, Kp)
    M = p_bf.shape[0]
    (out,) = _call_full(_mm_bn_relu_kernel, [p_bf, wmat, gamma, beta],
                        (jax.ShapeDtypeStruct((M, N), jnp.float32),))
    return out.reshape(B, Ho, Wo, N)


def conv2d_plain(x_nhwc, wmat, KH, KW, stride, pad):
    B = x_nhwc.shape[0]
    patches, Ho, Wo = _im2col(x_nhwc, KH, KW, stride, pad)
    Kp, N = wmat.shape
    p_bf = _patches_bf16(patches, Kp)
    M = p_bf.shape[0]
    (out,) = _call_full(_mm_kernel, [p_bf, wmat],
                        (jax.ShapeDtypeStruct((M, N), jnp.float32),))
    return out.reshape(B, Ho, Wo, N)


def shortcut_block(x_raw_nhwc, wmat, bias, res_nhwc, gamma=None, beta=None):
    """1x1 stride-2 conv + bias + residual add, optionally fused with BN+ReLU."""
    B = x_raw_nhwc.shape[0]
    s = x_raw_nhwc[:, ::2, ::2, :]
    Ho, Wo, C = s.shape[1], s.shape[2], s.shape[3]
    M = B * Ho * Wo
    N = wmat.shape[1]
    x2 = s.reshape(M, C).astype(jnp.bfloat16)
    res2 = res_nhwc.reshape(M, N)
    if gamma is None:
        (out,) = _call_full(_mm_bias_res_kernel, [x2, wmat, bias, res2],
                            (jax.ShapeDtypeStruct((M, N), jnp.float32),))
        return out.reshape(B, Ho, Wo, N), None
    raw, act = _call_full(
        _mm_bias_res_bn_relu_kernel, [x2, wmat, bias, res2, gamma, beta],
        (jax.ShapeDtypeStruct((M, N), jnp.float32),) * 2)
    return raw.reshape(B, Ho, Wo, N), act.reshape(B, Ho, Wo, N)


def pool_bn_relu(x_nhwc, gamma, beta):
    B, H, W, C = x_nhwc.shape
    Ho, Wo = H // 2, W // 2
    M = B * Ho * Wo
    a = x_nhwc[:, 0::2, 0::2, :].reshape(M, C)
    b = x_nhwc[:, 0::2, 1::2, :].reshape(M, C)
    c = x_nhwc[:, 1::2, 0::2, :].reshape(M, C)
    d = x_nhwc[:, 1::2, 1::2, :].reshape(M, C)
    raw, act = _call_full(_pool_bn_relu_kernel, [a, b, c, d, gamma, beta],
                          (jax.ShapeDtypeStruct((M, C), jnp.float32),) * 2)
    return raw.reshape(B, Ho, Wo, C), act.reshape(B, Ho, Wo, C)


def head(feat, w_cat, b_cat, n_out, dropout_key):
    # TODO(synk): dropout keep-mask comes from jax.random; it cannot reproduce
    # PyTorch's RNG stream bit-for-bit (only the p=0.5 inverted-dropout semantics).
    R, D = feat.shape
    npad = w_cat.shape[1] // 2
    Rp = _round_up(R, 8)
    keep = jax.random.bernoulli(dropout_key, 0.5, (R, D)).astype(jnp.float32)
    fp = jnp.pad(feat, ((0, Rp - R), (0, 0)))
    mp = jnp.pad(keep, ((0, Rp - R), (0, 0)))
    (out,) = _call_full(_head_kernel, [fp, mp, w_cat, b_cat],
                        (jax.ShapeDtypeStruct((Rp, 2 * npad), jnp.float32),))
    return out[:R, :n_out], out[:R, npad:npad + n_out]


# -------------------------------------------------------------- parameters --

def init_params(key, input_dim=64, n_out=10, in_channels=3):
    tmp_dim = int(input_dim / 16 * 128)
    keys = jax.random.split(key, 16)

    def kaiming(k, shape):  # (Cout, Cin, KH, KW)
        fan_in = shape[1] * shape[2] * shape[3]
        return jax.random.normal(k, shape, jnp.float32) * jnp.sqrt(2.0 / fan_in)

    p = {
        "conv0_w": kaiming(keys[0], (32, in_channels, 5, 5)),
        "conv0_b": jax.random.normal(keys[1], (32,), jnp.float32) * 0.01,
        "conv1_w": kaiming(keys[2], (32, 32, 3, 3)),
        "conv2_w": kaiming(keys[3], (32, 32, 3, 3)),
        "conv3_w": kaiming(keys[4], (32, 32, 1, 1)),
        "conv3_b": jax.random.normal(keys[5], (32,), jnp.float32) * 0.01,
        "conv4_w": kaiming(keys[6], (64, 32, 3, 3)),
        "conv5_w": kaiming(keys[7], (64, 64, 3, 3)),
        "conv6_w": kaiming(keys[8], (64, 32, 1, 1)),
        "conv6_b": jax.random.normal(keys[9], (64,), jnp.float32) * 0.01,
        "conv7_w": kaiming(keys[10], (128, 64, 3, 3)),
        "conv8_w": kaiming(keys[11], (128, 128, 3, 3)),
        "conv9_w": kaiming(keys[12], (128, 64, 1, 1)),
        "conv9_b": jax.random.normal(keys[13], (128,), jnp.float32) * 0.01,
        "lin0_w": jax.random.normal(keys[14], (tmp_dim, n_out), jnp.float32)
        / jnp.sqrt(tmp_dim),
        "lin0_b": jnp.zeros((n_out,), jnp.float32),
        "lin1_w": jax.random.normal(keys[15], (tmp_dim, n_out), jnp.float32)
        / jnp.sqrt(tmp_dim),
        "lin1_b": jnp.zeros((n_out,), jnp.float32),
    }
    for i, c in [(0, 32), (1, 32), (2, 32), (3, 64), (4, 64), (5, 128)]:
        p[f"bn{i}_g"] = jnp.ones((c,), jnp.float32)
        p[f"bn{i}_b"] = jnp.zeros((c,), jnp.float32)
    return p, tmp_dim


def prepare_params(p):
    """One-time layout transform (hoisted out of the forward):
    conv weights -> (K, Cout) bf16 matmul operands (K padded to multiple of 16),
    biases / BN params -> (1, C) f32, two head Linears -> one concatenated matmul."""
    def wmat(w):
        Cout, Cin, KH, KW = w.shape
        K = KH * KW * Cin
        m = jnp.transpose(w, (2, 3, 1, 0)).reshape(K, Cout)
        Kp = _round_up(K, 16)
        m = jnp.pad(m, ((0, Kp - K), (0, 0)))
        return m.astype(jnp.bfloat16)

    prep = {}
    for i in range(10):
        prep[f"conv{i}_wm"] = wmat(p[f"conv{i}_w"])
    for i in (0, 3, 6, 9):
        prep[f"conv{i}_b"] = p[f"conv{i}_b"].reshape(1, -1)
    for i in range(6):
        prep[f"bn{i}_g"] = p[f"bn{i}_g"].reshape(1, -1)
        prep[f"bn{i}_b"] = p[f"bn{i}_b"].reshape(1, -1)

    n_out = p["lin0_w"].shape[1]
    npad = _round_up(n_out, 128)
    w0 = jnp.pad(p["lin0_w"], ((0, 0), (0, npad - n_out)))
    w1 = jnp.pad(p["lin1_w"], ((0, 0), (0, npad - n_out)))
    prep["head_w"] = jnp.concatenate([w0, w1], axis=1).astype(jnp.bfloat16)
    b0 = jnp.pad(p["lin0_b"], (0, npad - n_out))
    b1 = jnp.pad(p["lin1_b"], (0, npad - n_out))
    prep["head_b"] = jnp.concatenate([b0, b1]).reshape(1, 2 * npad)
    return prep


# ------------------------------------------------------------ full forward --

def dronet_forward(prep, x_nchw, dropout_key, *, tmp_dim, n_out):
    x = jnp.transpose(x_nchw, (0, 2, 3, 1)).astype(jnp.float32)  # NCHW -> NHWC

    # stem: conv0 (5x5 s2 p2, bias) -> maxpool 2x2 fused with bn0+relu
    x1 = conv2d_bias(x, prep["conv0_wm"], prep["conv0_b"], 5, 5, 2, 2)
    x1, x1_act = pool_bn_relu(x1, prep["bn0_g"], prep["bn0_b"])

    # residual block 1
    x2 = conv2d_bn_relu(x1_act, prep["conv1_wm"], prep["bn1_g"], prep["bn1_b"], 3, 3, 2, 1)
    x2 = conv2d_plain(x2, prep["conv2_wm"], 3, 3, 1, 1)
    x3, x3_act = shortcut_block(x1, prep["conv3_wm"], prep["conv3_b"], x2,
                                prep["bn2_g"], prep["bn2_b"])

    # residual block 2
    x4 = conv2d_bn_relu(x3_act, prep["conv4_wm"], prep["bn3_g"], prep["bn3_b"], 3, 3, 2, 1)
    x4 = conv2d_plain(x4, prep["conv5_wm"], 3, 3, 1, 1)
    x5, x5_act = shortcut_block(x3, prep["conv6_wm"], prep["conv6_b"], x4,
                                prep["bn4_g"], prep["bn4_b"])

    # residual block 3
    x6 = conv2d_bn_relu(x5_act, prep["conv7_wm"], prep["bn5_g"], prep["bn5_b"], 3, 3, 2, 1)
    x6 = conv2d_plain(x6, prep["conv8_wm"], 3, 3, 1, 1)
    x7, _ = shortcut_block(x5, prep["conv9_wm"], prep["conv9_b"], x6)

    # head: torch.flatten on NCHW order, view(-1, tmp_dim), relu, dropout, linears
    feat = jnp.transpose(x7, (0, 3, 1, 2)).reshape(-1).reshape(-1, tmp_dim)
    mu, logvar = head(feat, prep["head_w"], prep["head_b"], n_out, dropout_key)
    return mu, logvar


if __name__ == "__main__":
    key = jax.random.PRNGKey(0)
    pkey, xkey, dkey = jax.random.split(key, 3)

    input_dim = 64   # Dronet's geometry implies a square input_dim x input_dim image
    n_out = 10
    in_channels = 3
    batch = 2

    raw_params, tmp_dim = init_params(pkey, input_dim=input_dim, n_out=n_out,
                                      in_channels=in_channels)
    prep = prepare_params(raw_params)
    x = jax.random.normal(xkey, (batch, in_channels, input_dim, input_dim),
                          jnp.float32)

    fwd = jax.jit(functools.partial(dronet_forward, tmp_dim=tmp_dim, n_out=n_out))
    mu, logvar = fwd(prep, x, dkey)
    jax.block_until_ready((mu, logvar))
    assert mu.shape == (batch, n_out) and logvar.shape == (batch, n_out)
    print("KERNEL_OK")
</pallas_src>

<mosaic_0001>
module attributes {stable_mosaic.version = 11 : i64} {
  func.func @_mm_bias_kernel(%arg0: i32, %arg1: memref<512x80xbf16, #tpu.memory_space<vmem>>, %arg2: memref<80x32xbf16, #tpu.memory_space<vmem>>, %arg3: memref<1x32xf32, #tpu.memory_space<vmem>>, %arg4: memref<512x32xf32, #tpu.memory_space<vmem>>) attributes {dimension_semantics = [#tpu.dimension_semantics<parallel>], iteration_bounds = array<i64: 4>, scalar_prefetch = 0 : i64, scratch_operands = 0 : i64, tpu.core_type = #tpu.core_type<tc>, window_params = [{transform_indices = @transform_0, window_bounds = array<i64: 512, 80>}, {pipeline_mode = #tpu.pipeline_mode<synchronous>, transform_indices = @transform_1, window_bounds = array<i64: 80, 32>}, {pipeline_mode = #tpu.pipeline_mode<synchronous>, transform_indices = @transform_2, window_bounds = array<i64: 1, 32>}, {transform_indices = @transform_3, window_bounds = array<i64: 512, 32>}]} {
    %c0 = arith.constant 0 : index
    %c0_0 = arith.constant 0 : index
    %0 = vector.load %arg1[%c0, %c0_0] : memref<512x80xbf16, #tpu.memory_space<vmem>>, vector<512x80xbf16>
    %c0_1 = arith.constant 0 : index
    %c0_2 = arith.constant 0 : index
    %1 = vector.load %arg2[%c0_1, %c0_2] : memref<80x32xbf16, #tpu.memory_space<vmem>>, vector<80x32xbf16>
    %cst = arith.constant dense<0.000000e+00> : vector<512x32xf32>
    %2 = tpu.matmul %0, %1, %cst {dimension_numbers = #tpu.dot_dimension_numbers<[1], [0], [0], [1], [0, 0, 1, 1], [], []>} : vector<512x80xbf16>, vector<80x32xbf16>, vector<512x32xf32> -> vector<512x32xf32>
    %c0_3 = arith.constant 0 : index
    %c0_4 = arith.constant 0 : index
    %3 = vector.load %arg3[%c0_3, %c0_4] : memref<1x32xf32, #tpu.memory_space<vmem>>, vector<1x32xf32>
    %4 = vector.broadcast %3 : vector<1x32xf32> to vector<512x32xf32>
    %5 = arith.addf %2, %4 : vector<512x32xf32>
    %c0_5 = arith.constant 0 : index
    %c0_6 = arith.constant 0 : index
    %6 = vector.load %arg4[%c0_5, %c0_6] : memref<512x32xf32, #tpu.memory_space<vmem>>, vector<512x32xf32>
    tpu.vector_store %arg4[%c0_5, %c0_6], %5 {strides = array<i32>} : memref<512x32xf32, #tpu.memory_space<vmem>>, vector<512x32xf32>,
    return
  }
  func.func @transform_0(%arg0: i32) -> (i32, i32) {
    %c0_i32 = arith.constant 0 : i32
    %c0_i32_0 = arith.constant 0 : i32
    return %arg0, %c0_i32 : i32, i32
  }
  func.func @transform_1(%arg0: i32) -> (i32, i32) {
    %c0_i32 = arith.constant 0 : i32
    %c0_i32_0 = arith.constant 0 : i32
    %c0_i32_1 = arith.constant 0 : i32
    return %c0_i32, %c0_i32_0 : i32, i32
  }
  func.func @transform_2(%arg0: i32) -> (i32, i32) {
    %c0_i32 = arith.constant 0 : i32
    %c0_i32_0 = arith.constant 0 : i32
    %c0_i32_1 = arith.constant 0 : i32
    return %c0_i32, %c0_i32_0 : i32, i32
  }
  func.func @transform_3(%arg0: i32) -> (i32, i32) {
    %c0_i32 = arith.constant 0 : i32
    %c0_i32_0 = arith.constant 0 : i32
    return %arg0, %c0_i32 : i32, i32
  }
}

module attributes {stable_mosaic.version = 11 : i64} {
  func.func @_pool_bn_relu_kernel(%arg0: i32, %arg1: memref<512x32xf32, #tpu.memory_space<vmem>>, %arg2: memref<512x32xf32, #tpu.memory_space<vmem>>, %arg3: memref<512x32xf32, #tpu.memory_space<vmem>>, %arg4: memref<512x32xf32, #tpu.memory_space<vmem>>, %arg5: memref<1x32xf32, #tpu.memory_space<vmem>>, %arg6: memref<1x32xf32, #tpu.memory_space<vmem>>, %arg7: memref<512x32xf32, #tpu.memory_space<vmem>>, %arg8: memref<512x32xf32, #tpu.memory_space<vmem>>) attributes {dimension_semantics = [#tpu.dimension_semantics<arbitrary>], iteration_bounds = array<i64: 1>, scalar_prefetch = 0 : i64, scratch_operands = 0 : i64, tpu.core_type = #tpu.core_type<tc>, window_params = [{pipeline_mode = #tpu.pipeline_mode<synchronous>, transform_indices = @transform_0, window_bounds = array<i64: 512, 32>}, {pipeline_mode = #tpu.pipeline_mode<synchronous>, transform_indices = @transform_1, window_bounds = array<i64: 512, 32>}, {pipeline_mode = #tpu.pipeline_mode<synchronous>, transform_indices = @transform_2, window_bounds = array<i64: 512, 32>}, {pipeline_mode = #tpu.pipeline_mode<synchronous>, transform_indices = @transform_3, window_bounds = array<i64: 512, 32>}, {pipeline_mode = #tpu.pipeline_mode<synchronous>, transform_indices = @transform_4, window_bounds = array<i64: 1, 32>}, {pipeline_mode = #tpu.pipeline_mode<synchronous>, transform_indices = @transform_5, window_bounds = array<i64: 1, 32>}, {pipeline_mode = #tpu.pipeline_mode<synchronous>, transform_indices = @transform_6, window_bounds = array<i64: 512, 32>}, {pipeline_mode = #tpu.pipeline_mode<synchronous>, transform_indices = @transform_7, window_bounds = array<i64: 512, 32>}]} {
    %c0 = arith.constant 0 : index
    %c0_0 = arith.constant 0 : index
    %0 = vector.load %arg1[%c0, %c0_0] : memref<512x32xf32, #tpu.memory_space<vmem>>, vector<512x32xf32>
    %c0_1 = arith.constant 0 : index
    %c0_2 = arith.constant 0 : index
    %1 = vector.load %arg2[%c0_1, %c0_2] : memref<512x32xf32, #tpu.memory_space<vmem>>, vector<512x32xf32>
    %2 = arith.maximumf %0, %1 : vector<512x32xf32>
    %c0_3 = arith.constant 0 : index
    %c0_4 = arith.constant 0 : index
    %3 = vector.load %arg3[%c0_3, %c0_4] : memref<512x32xf32, #tpu.memory_space<vmem>>, vector<512x32xf32>
    %c0_5 = arith.constant 0 : index
    %c0_6 = arith.constant 0 : index
    %4 = vector.load %arg4[%c0_5, %c0_6] : memref<512x32xf32, #tpu.memory_space<vmem>>, vector<512x32xf32>
    %5 = arith.maximumf %3, %4 : vector<512x32xf32>
    %6 = arith.maximumf %2, %5 : vector<512x32xf32>
    %c0_7 = arith.constant 0 : index
    %c0_8 = arith.constant 0 : index
    %7 = vector.load %arg7[%c0_7, %c0_8] : memref<512x32xf32, #tpu.memory_space<vmem>>, vector<512x32xf32>
    tpu.vector_store %arg7[%c0_7, %c0_8], %6 {strides = array<i32>} : memref<512x32xf32, #tpu.memory_space<vmem>>, vector<512x32xf32>,
    %c0_9 = arith.constant 0 : index
    %c0_10 = arith.constant 0 : index
    %8 = vector.load %arg5[%c0_9, %c0_10] : memref<1x32xf32, #tpu.memory_space<vmem>>, vector<1x32xf32>
    %c0_11 = arith.constant 0 : index
    %c0_12 = arith.constant 0 : index
    %9 = vector.load %arg6[%c0_11, %c0_12] : memref<1x32xf32, #tpu.memory_space<vmem>>, vector<1x32xf32>
    %cst = arith.constant dense<0.000000e+00> : vector<32xf32>
    %10 = vector.multi_reduction <add>, %6, %cst [0] : vector<512x32xf32> to vector<32xf32>
    %11 = vector.shape_cast %10 : vector<32xf32> to vector<1x32xf32>
    %cst_13 = arith.constant 5.120000e+02 : f32
    %12 = vector.broadcast %cst_13 : f32 to vector<1x32xf32>
    %13 = arith.divf %11, %12 : vector<1x32xf32>
    %14 = vector.broadcast %13 : vector<1x32xf32> to vector<512x32xf32>
    %15 = arith.subf %6, %14 : vector<512x32xf32>
    %16 = arith.mulf %15, %15 : vector<512x32xf32>
    %cst_14 = arith.constant dense<0.000000e+00> : vector<32xf32>
    %17 = vector.multi_reduction <add>, %16, %cst_14 [0] : vector<512x32xf32> to vector<32xf32>
    %18 = vector.shape_cast %17 : vector<32xf32> to vector<1x32xf32>
    %cst_15 = arith.constant 5.120000e+02 : f32
    %19 = vector.broadcast %cst_15 : f32 to vector<1x32xf32>
    %20 = arith.divf %18, %19 : vector<1x32xf32>
    %21 = vector.broadcast %13 : vector<1x32xf32> to vector<512x32xf32>
    %22 = arith.subf %6, %21 : vector<512x32xf32>
    %cst_16 = arith.constant 9.99999974E-6 : f32
    %23 = vector.broadcast %cst_16 : f32 to vector<1x32xf32>
    %24 = arith.addf %20, %23 : vector<1x32xf32>
    %25 = math.rsqrt %24 : vector<1x32xf32>
    %26 = vector.broadcast %25 : vector<1x32xf32> to vector<512x32xf32>
    %27 = arith.mulf %22, %26 : vector<512x32xf32>
    %28 = vector.broadcast %8 : vector<1x32xf32> to vector<512x32xf32>
    %29 = arith.mulf %27, %28 : vector<512x32xf32>
    %30 = vector.broadcast %9 : vector<1x32xf32> to vector<512x32xf32>
    %31 = arith.addf %29, %30 : vector<512x32xf32>
    %cst_17 = arith.constant 0.000000e+00 : f32
    %32 = vector.broadcast %cst_17 : f32 to vector<512x32xf32>
    %33 = arith.maximumf %31, %32 : vector<512x32xf32>
    %c0_18 = arith.constant 0 : index
    %c0_19 = arith.constant 0 : index
    %34 = vector.load %arg8[%c0_18, %c0_19] : memref<512x32xf32, #tpu.memory_space<vmem>>, vector<512x32xf32>
    tpu.vector_store %arg8[%c0_18, %c0_19], %33 {strides = array<i32>} : memref<512x32xf32, #tpu.memory_space<vmem>>, vector<512x32xf32>,
    return
  }
  func.func @transform_0(%arg0: i32) -> (i32, i32) {
    %c0_i32 = arith.constant 0 : i32
    %c0_i32_0 = arith.constant 0 : i32
    %c0_i32_1 = arith.constant 0 : i32
    return %c0_i32, %c0_i32_0 : i32, i32
  }
  func.func @transform_1(%arg0: i32) -> (i32, i32) {
    %c0_i32 = arith.constant 0 : i32
    %c0_i32_0 = arith.constant 0 : i32
    %c0_i32_1 = arith.constant 0 : i32
    return %c0_i32, %c0_i32_0 : i32, i32
  }
  func.func @transform_2(%arg0: i32) -> (i32, i32) {
    %c0_i32 = arith.constant 0 : i32
    %c0_i32_0 = arith.constant 0 : i32
    %c0_i32_1 = arith.constant 0 : i32
    return %c0_i32, %c0_i32_0 : i32, i32
  }
  func.func @transform_3(%arg0: i32) -> (i32, i32) {
    %c0_i32 = arith.constant 0 : i32
    %c0_i32_0 = arith.constant 0 : i32
    %c0_i32_1 = arith.constant 0 : i32
    return %c0_i32, %c0_i32_0 : i32, i32
  }
  func.func @transform_4(%arg0: i32) -> (i32, i32) {
    %c0_i32 = arith.constant 0 : i32
    %c0_i32_0 = arith.constant 0 : i32
    %c0_i32_1 = arith.constant 0 : i32
    return %c0_i32, %c0_i32_0 : i32, i32
  }
  func.func @transform_5(%arg0: i32) -> (i32, i32) {
    %c0_i32 = arith.constant 0 : i32
    %c0_i32_0 = arith.constant 0 : i32
    %c0_i32_1 = arith.constant 0 : i32
    return %c0_i32, %c0_i32_0 : i32, i32
  }
  func.func @transform_6(%arg0: i32) -> (i32, i32) {
    %c0_i32 = arith.constant 0 : i32
    %c0_i32_0 = arith.constant 0 : i32
    %c0_i32_1 = arith.constant 0 : i32
    return %c0_i32, %c0_i32_0 : i32, i32
  }
  func.func @transform_7(%arg0: i32) -> (i32, i32) {
    %c0_i32 = arith.constant 0 : i32
    %c0_i32_0 = arith.constant 0 : i32
    %c0_i32_1 = arith.constant 0 : i32
    return %c0_i32, %c0_i32_0 : i32, i32
  }
}

module attributes {stable_mosaic.version = 11 : i64} {
  func.func @_mm_bn_relu_kernel(%arg0: i32, %arg1: memref<128x288xbf16, #tpu.memory_space<vmem>>, %arg2: memref<288x32xbf16, #tpu.memory_space<vmem>>, %arg3: memref<1x32xf32, #tpu.memory_space<vmem>>, %arg4: memref<1x32xf32, #tpu.memory_space<vmem>>, %arg5: memref<128x32xf32, #tpu.memory_space<vmem>>) attributes {dimension_semantics = [#tpu.dimension_semantics<arbitrary>], iteration_bounds = array<i64: 1>, scalar_prefetch = 0 : i64, scratch_operands = 0 : i64, tpu.core_type = #tpu.core_type<tc>, window_params = [{pipeline_mode = #tpu.pipeline_mode<synchronous>, transform_indices = @transform_0, window_bounds = array<i64: 128, 288>}, {pipeline_mode = #tpu.pipeline_mode<synchronous>, transform_indices = @transform_1, window_bounds = array<i64: 288, 32>}, {pipeline_mode = #tpu.pipeline_mode<synchronous>, transform_indices = @transform_2, window_bounds = array<i64: 1, 32>}, {pipeline_mode = #tpu.pipeline_mode<synchronous>, transform_indices = @transform_3, window_bounds = array<i64: 1, 32>}, {pipeline_mode = #tpu.pipeline_mode<synchronous>, transform_indices = @transform_4, window_bounds = array<i64: 128, 32>}]} {
    %c0 = arith.constant 0 : index
    %c0_0 = arith.constant 0 : index
    %0 = vector.load %arg1[%c0, %c0_0] : memref<128x288xbf16, #tpu.memory_space<vmem>>, vector<128x288xbf16>
    %c0_1 = arith.constant 0 : index
    %c0_2 = arith.constant 0 : index
    %1 = vector.load %arg2[%c0_1, %c0_2] : memref<288x32xbf16, #tpu.memory_space<vmem>>, vector<288x32xbf16>
    %cst = arith.constant dense<0.000000e+00> : vector<128x32xf32>
    %2 = tpu.matmul %0, %1, %cst {dimension_numbers = #tpu.dot_dimension_numbers<[1], [0], [0], [1], [0, 0, 1, 1], [], []>} : vector<128x288xbf16>, vector<288x32xbf16>, vector<128x32xf32> -> vector<128x32xf32>
    %c0_3 = arith.constant 0 : index
    %c0_4 = arith.constant 0 : index
    %3 = vector.load %arg3[%c0_3, %c0_4] : memref<1x32xf32, #tpu.memory_space<vmem>>, vector<1x32xf32>
    %c0_5 = arith.constant 0 : index
    %c0_6 = arith.constant 0 : index
    %4 = vector.load %arg4[%c0_5, %c0_6] : memref<1x32xf32, #tpu.memory_space<vmem>>, vector<1x32xf32>
    %cst_7 = arith.constant dense<0.000000e+00> : vector<32xf32>
    %5 = vector.multi_reduction <add>, %2, %cst_7 [0] : vector<128x32xf32> to vector<32xf32>
    %6 = vector.shape_cast %5 : vector<32xf32> to vector<1x32xf32>
    %cst_8 = arith.constant 1.280000e+02 : f32
    %7 = vector.broadcast %cst_8 : f32 to vector<1x32xf32>
    %8 = arith.divf %6, %7 : vector<1x32xf32>
    %9 = vector.broadcast %8 : vector<1x32xf32> to vector<128x32xf32>
    %10 = arith.subf %2, %9 : vector<128x32xf32>
    %11 = arith.mulf %10, %10 : vector<128x32xf32>
    %cst_9 = arith.constant dense<0.000000e+00> : vector<32xf32>
    %12 = vector.multi_reduction <add>, %11, %cst_9 [0] : vector<128x32xf32> to vector<32xf32>
    %13 = vector.shape_cast %12 : vector<32xf32> to vector<1x32xf32>
    %cst_10 = arith.constant 1.280000e+02 : f32
    %14 = vector.broadcast %cst_10 : f32 to vector<1x32xf32>
    %15 = arith.divf %13, %14 : vector<1x32xf32>
    %16 = vector.broadcast %8 : vector<1x32xf32> to vector<128x32xf32>
    %17 = arith.subf %2, %16 : vector<128x32xf32>
    %cst_11 = arith.constant 9.99999974E-6 : f32
    %18 = vector.broadcast %cst_11 : f32 to vector<1x32xf32>
    %19 = arith.addf %15, %18 : vector<1x32xf32>
    %20 = math.rsqrt %19 : vector<1x32xf32>
    %21 = vector.broadcast %20 : vector<1x32xf32> to vector<128x32xf32>
    %22 = arith.mulf %17, %21 : vector<128x32xf32>
    %23 = vector.broadcast %3 : vector<1x32xf32> to vector<128x32xf32>
    %24 = arith.mulf %22, %23 : vector<128x32xf32>
    %25 = vector.broadcast %4 : vector<1x32xf32> to vector<128x32xf32>
    %26 = arith.addf %24, %25 : vector<128x32xf32>
    %cst_12 = arith.constant 0.000000e+00 : f32
    %27 = vector.broadcast %cst_12 : f32 to vector<128x32xf32>
    %28 = arith.maximumf %26, %27 : vector<128x32xf32>
    %c0_13 = arith.constant 0 : index
    %c0_14 = arith.constant 0 : index
    %29 = vector.load %arg5[%c0_13, %c0_14] : memref<128x32xf32, #tpu.memory_space<vmem>>, vector<128x32xf32>
    tpu.vector_store %arg5[%c0_13, %c0_14], %28 {strides = array<i32>} : memref<128x32xf32, #tpu.memory_space<vmem>>, vector<128x32xf32>,
    return
  }
  func.func @transform_0(%arg0: i32) -> (i32, i32) {
    %c0_i32 = arith.constant 0 : i32
    %c0_i32_0 = arith.constant 0 : i32
    %c0_i32_1 = arith.constant 0 : i32
    return %c0_i32, %c0_i32_0 : i32, i32
  }
  func.func @transform_1(%arg0: i32) -> (i32, i32) {
    %c0_i32 = arith.constant 0 : i32
    %c0_i32_0 = arith.constant 0 : i32
    %c0_i32_1 = arith.constant 0 : i32
    return %c0_i32, %c0_i32_0 : i32, i32
  }
  func.func @transform_2(%arg0: i32) -> (i32, i32) {
    %c0_i32 = arith.constant 0 : i32
    %c0_i32_0 = arith.constant 0 : i32
    %c0_i32_1 = arith.constant 0 : i32
    return %c0_i32, %c0_i32_0 : i32, i32
  }
  func.func @transform_3(%arg0: i32) -> (i32, i32) {
    %c0_i32 = arith.constant 0 : i32
    %c0_i32_0 = arith.constant 0 : i32
    %c0_i32_1 = arith.constant 0 : i32
    return %c0_i32, %c0_i32_0 : i32, i32
  }
  func.func @transform_4(%arg0: i32) -> (i32, i32) {
    %c0_i32 = arith.constant 0 : i32
    %c0_i32_0 = arith.constant 0 : i32
    %c0_i32_1 = arith.constant 0 : i32
    return %c0_i32, %c0_i32_0 : i32, i32
  }
}

module attributes {stable_mosaic.version = 11 : i64} {
  func.func @_mm_kernel(%arg0: i32, %arg1: memref<128x288xbf16, #tpu.memory_space<vmem>>, %arg2: memref<288x32xbf16, #tpu.memory_space<vmem>>, %arg3: memref<128x32xf32, #tpu.memory_space<vmem>>) attributes {dimension_semantics = [#tpu.dimension_semantics<arbitrary>], iteration_bounds = array<i64: 1>, scalar_prefetch = 0 : i64, scratch_operands = 0 : i64, tpu.core_type = #tpu.core_type<tc>, window_params = [{pipeline_mode = #tpu.pipeline_mode<synchronous>, transform_indices = @transform_0, window_bounds = array<i64: 128, 288>}, {pipeline_mode = #tpu.pipeline_mode<synchronous>, transform_indices = @transform_1, window_bounds = array<i64: 288, 32>}, {pipeline_mode = #tpu.pipeline_mode<synchronous>, transform_indices = @transform_2, window_bounds = array<i64: 128, 32>}]} {
    %c0 = arith.constant 0 : index
    %c0_0 = arith.constant 0 : index
    %0 = vector.load %arg1[%c0, %c0_0] : memref<128x288xbf16, #tpu.memory_space<vmem>>, vector<128x288xbf16>
    %c0_1 = arith.constant 0 : index
    %c0_2 = arith.constant 0 : index
    %1 = vector.load %arg2[%c0_1, %c0_2] : memref<288x32xbf16, #tpu.memory_space<vmem>>, vector<288x32xbf16>
    %cst = arith.constant dense<0.000000e+00> : vector<128x32xf32>
    %2 = tpu.matmul %0, %1, %cst {dimension_numbers = #tpu.dot_dimension_numbers<[1], [0], [0], [1], [0, 0, 1, 1], [], []>} : vector<128x288xbf16>, vector<288x32xbf16>, vector<128x32xf32> -> vector<128x32xf32>
    %c0_3 = arith.constant 0 : index
    %c0_4 = arith.constant 0 : index
    %3 = vector.load %arg3[%c0_3, %c0_4] : memref<128x32xf32, #tpu.memory_space<vmem>>, vector<128x32xf32>
    tpu.vector_store %arg3[%c0_3, %c0_4], %2 {strides = array<i32>} : memref<128x32xf32, #tpu.memory_space<vmem>>, vector<128x32xf32>,
    return
  }
  func.func @transform_0(%arg0: i32) -> (i32, i32) {
    %c0_i32 = arith.constant 0 : i32
    %c0_i32_0 = arith.constant 0 : i32
    %c0_i32_1 = arith.constant 0 : i32
    return %c0_i32, %c0_i32_0 : i32, i32
  }
  func.func @transform_1(%arg0: i32) -> (i32, i32) {
    %c0_i32 = arith.constant 0 : i32
    %c0_i32_0 = arith.constant 0 : i32
    %c0_i32_1 = arith.constant 0 : i32
    return %c0_i32, %c0_i32_0 : i32, i32
  }
  func.func @transform_2(%arg0: i32) -> (i32, i32) {
    %c0_i32 = arith.constant 0 : i32
    %c0_i32_0 = arith.constant 0 : i32
    %c0_i32_1 = arith.constant 0 : i32
    return %c0_i32, %c0_i32_0 : i32, i32
  }
}

module attributes {stable_mosaic.version = 11 : i64} {
  func.func @_mm_bias_res_bn_relu_kernel(%arg0: i32, %arg1: memref<128x32xbf16, #tpu.memory_space<vmem>>, %arg2: memref<32x32xbf16, #tpu.memory_space<vmem>>, %arg3: memref<1x32xf32, #tpu.memory_space<vmem>>, %arg4: memref<128x32xf32, #tpu.memory_space<vmem>>, %arg5: memref<1x32xf32, #tpu.memory_space<vmem>>, %arg6: memref<1x32xf32, #tpu.memory_space<vmem>>, %arg7: memref<128x32xf32, #tpu.memory_space<vmem>>, %arg8: memref<128x32xf32, #tpu.memory_space<vmem>>) attributes {dimension_semantics = [#tpu.dimension_semantics<arbitrary>], iteration_bounds = array<i64: 1>, scalar_prefetch = 0 : i64, scratch_operands = 0 : i64, tpu.core_type = #tpu.core_type<tc>, window_params = [{pipeline_mode = #tpu.pipeline_mode<synchronous>, transform_indices = @transform_0, window_bounds = array<i64: 128, 32>}, {pipeline_mode = #tpu.pipeline_mode<synchronous>, transform_indices = @transform_1, window_bounds = array<i64: 32, 32>}, {pipeline_mode = #tpu.pipeline_mode<synchronous>, transform_indices = @transform_2, window_bounds = array<i64: 1, 32>}, {pipeline_mode = #tpu.pipeline_mode<synchronous>, transform_indices = @transform_3, window_bounds = array<i64: 128, 32>}, {pipeline_mode = #tpu.pipeline_mode<synchronous>, transform_indices = @transform_4, window_bounds = array<i64: 1, 32>}, {pipeline_mode = #tpu.pipeline_mode<synchronous>, transform_indices = @transform_5, window_bounds = array<i64: 1, 32>}, {pipeline_mode = #tpu.pipeline_mode<synchronous>, transform_indices = @transform_6, window_bounds = array<i64: 128, 32>}, {pipeline_mode = #tpu.pipeline_mode<synchronous>, transform_indices = @transform_7, window_bounds = array<i64: 128, 32>}]} {
    %c0 = arith.constant 0 : index
    %c0_0 = arith.constant 0 : index
    %0 = vector.load %arg1[%c0, %c0_0] : memref<128x32xbf16, #tpu.memory_space<vmem>>, vector<128x32xbf16>
    %c0_1 = arith.constant 0 : index
    %c0_2 = arith.constant 0 : index
    %1 = vector.load %arg2[%c0_1, %c0_2] : memref<32x32xbf16, #tpu.memory_space<vmem>>, vector<32x32xbf16>
    %cst = arith.constant dense<0.000000e+00> : vector<128x32xf32>
    %2 = tpu.matmul %0, %1, %cst {dimension_numbers = #tpu.dot_dimension_numbers<[1], [0], [0], [1], [0, 0, 1, 1], [], []>} : vector<128x32xbf16>, vector<32x32xbf16>, vector<128x32xf32> -> vector<128x32xf32>
    %c0_3 = arith.constant 0 : index
    %c0_4 = arith.constant 0 : index
    %3 = vector.load %arg3[%c0_3, %c0_4] : memref<1x32xf32, #tpu.memory_space<vmem>>, vector<1x32xf32>
    %4 = vector.broadcast %3 : vector<1x32xf32> to vector<128x32xf32>
    %5 = arith.addf %2, %4 : vector<128x32xf32>
    %c0_5 = arith.constant 0 : index
    %c0_6 = arith.constant 0 : index
    %6 = vector.load %arg4[%c0_5, %c0_6] : memref<128x32xf32, #tpu.memory_space<vmem>>, vector<128x32xf32>
    %7 = arith.addf %5, %6 : vector<128x32xf32>
    %c0_7 = arith.constant 0 : index
    %c0_8 = arith.constant 0 : index
    %8 = vector.load %arg7[%c0_7, %c0_8] : memref<128x32xf32, #tpu.memory_space<vmem>>, vector<128x32xf32>
    tpu.vector_store %arg7[%c0_7, %c0_8], %7 {strides = array<i32>} : memref<128x32xf32, #tpu.memory_space<vmem>>, vector<128x32xf32>,
    %c0_9 = arith.constant 0 : index
    %c0_10 = arith.constant 0 : index
    %9 = vector.load %arg5[%c0_9, %c0_10] : memref<1x32xf32, #tpu.memory_space<vmem>>, vector<1x32xf32>
    %c0_11 = arith.constant 0 : index
    %c0_12 = arith.constant 0 : index
    %10 = vector.load %arg6[%c0_11, %c0_12] : memref<1x32xf32, #tpu.memory_space<vmem>>, vector<1x32xf32>
    %cst_13 = arith.constant dense<0.000000e+00> : vector<32xf32>
    %11 = vector.multi_reduction <add>, %7, %cst_13 [0] : vector<128x32xf32> to vector<32xf32>
    %12 = vector.shape_cast %11 : vector<32xf32> to vector<1x32xf32>
    %cst_14 = arith.constant 1.280000e+02 : f32
    %13 = vector.broadcast %cst_14 : f32 to vector<1x32xf32>
    %14 = arith.divf %12, %13 : vector<1x32xf32>
    %15 = vector.broadcast %14 : vector<1x32xf32> to vector<128x32xf32>
    %16 = arith.subf %7, %15 : vector<128x32xf32>
    %17 = arith.mulf %16, %16 : vector<128x32xf32>
    %cst_15 = arith.constant dense<0.000000e+00> : vector<32xf32>
    %18 = vector.multi_reduction <add>, %17, %cst_15 [0] : vector<128x32xf32> to vector<32xf32>
    %19 = vector.shape_cast %18 : vector<32xf32> to vector<1x32xf32>
    %cst_16 = arith.constant 1.280000e+02 : f32
    %20 = vector.broadcast %cst_16 : f32 to vector<1x32xf32>
    %21 = arith.divf %19, %20 : vector<1x32xf32>
    %22 = vector.broadcast %14 : vector<1x32xf32> to vector<128x32xf32>
    %23 = arith.subf %7, %22 : vector<128x32xf32>
    %cst_17 = arith.constant 9.99999974E-6 : f32
    %24 = vector.broadcast %cst_17 : f32 to vector<1x32xf32>
    %25 = arith.addf %21, %24 : vector<1x32xf32>
    %26 = math.rsqrt %25 : vector<1x32xf32>
    %27 = vector.broadcast %26 : vector<1x32xf32> to vector<128x32xf32>
    %28 = arith.mulf %23, %27 : vector<128x32xf32>
    %29 = vector.broadcast %9 : vector<1x32xf32> to vector<128x32xf32>
    %30 = arith.mulf %28, %29 : vector<128x32xf32>
    %31 = vector.broadcast %10 : vector<1x32xf32> to vector<128x32xf32>
    %32 = arith.addf %30, %31 : vector<128x32xf32>
    %cst_18 = arith.constant 0.000000e+00 : f32
    %33 = vector.broadcast %cst_18 : f32 to vector<128x32xf32>
    %34 = arith.maximumf %32, %33 : vector<128x32xf32>
    %c0_19 = arith.constant 0 : index
    %c0_20 = arith.constant 0 : index
    %35 = vector.load %arg8[%c0_19, %c0_20] : memref<128x32xf32, #tpu.memory_space<vmem>>, vector<128x32xf32>
    tpu.vector_store %arg8[%c0_19, %c0_20], %34 {strides = array<i32>} : memref<128x32xf32, #tpu.memory_space<vmem>>, vector<128x32xf32>,
    return
  }
  func.func @transform_0(%arg0: i32) -> (i32, i32) {
    %c0_i32 = arith.constant 0 : i32
    %c0_i32_0 = arith.constant 0 : i32
    %c0_i32_1 = arith.constant 0 : i32
    return %c0_i32, %c0_i32_0 : i32, i32
  }
  func.func @transform_1(%arg0: i32) -> (i32, i32) {
    %c0_i32 = arith.constant 0 : i32
    %c0_i32_0 = arith.constant 0 : i32
    %c0_i32_1 = arith.constant 0 : i32
    return %c0_i32, %c0_i32_0 : i32, i32
  }
  func.func @transform_2(%arg0: i32) -> (i32, i32) {
    %c0_i32 = arith.constant 0 : i32
    %c0_i32_0 = arith.constant 0 : i32
    %c0_i32_1 = arith.constant 0 : i32
    return %c0_i32, %c0_i32_0 : i32, i32
  }
  func.func @transform_3(%arg0: i32) -> (i32, i32) {
    %c0_i32 = arith.constant 0 : i32
    %c0_i32_0 = arith.constant 0 : i32
    %c0_i32_1 = arith.constant 0 : i32
    return %c0_i32, %c0_i32_0 : i32, i32
  }
  func.func @transform_4(%arg0: i32) -> (i32, i32) {
    %c0_i32 = arith.constant 0 : i32
    %c0_i32_0 = arith.constant 0 : i32
    %c0_i32_1 = arith.constant 0 : i32
    return %c0_i32, %c0_i32_0 : i32, i32
  }
  func.func @transform_5(%arg0: i32) -> (i32, i32) {
    %c0_i32 = arith.constant 0 : i32
    %c0_i32_0 = arith.constant 0 : i32
    %c0_i32_1 = arith.constant 0 : i32
    return %c0_i32, %c0_i32_0 : i32, i32
  }
  func.func @transform_6(%arg0: i32) -> (i32, i32) {
    %c0_i32 = arith.constant 0 : i32
    %c0_i32_0 = arith.constant 0 : i32
    %c0_i32_1 = arith.constant 0 : i32
    return %c0_i32, %c0_i32_0 : i32, i32
  }
  func.func @transform_7(%arg0: i32) -> (i32, i32) {
    %c0_i32 = arith.constant 0 : i32
    %c0_i32_0 = arith.constant 0 : i32
    %c0_i32_1 = arith.constant 0 : i32
    return %c0_i32, %c0_i32_0 : i32, i32
  }
}

module attributes {stable_mosaic.version = 11 : i64} {
  func.func @_mm_bn_relu_kernel(%arg0: i32, %arg1: memref<32x288xbf16, #tpu.memory_space<vmem>>, %arg2: memref<288x64xbf16, #tpu.memory_space<vmem>>, %arg3: memref<1x64xf32, #tpu.memory_space<vmem>>, %arg4: memref<1x64xf32, #tpu.memory_space<vmem>>, %arg5: memref<32x64xf32, #tpu.memory_space<vmem>>) attributes {dimension_semantics = [#tpu.dimension_semantics<arbitrary>], iteration_bounds = array<i64: 1>, scalar_prefetch = 0 : i64, scratch_operands = 0 : i64, tpu.core_type = #tpu.core_type<tc>, window_params = [{pipeline_mode = #tpu.pipeline_mode<synchronous>, transform_indices = @transform_0, window_bounds = array<i64: 32, 288>}, {pipeline_mode = #tpu.pipeline_mode<synchronous>, transform_indices = @transform_1, window_bounds = array<i64: 288, 64>}, {pipeline_mode = #tpu.pipeline_mode<synchronous>, transform_indices = @transform_2, window_bounds = array<i64: 1, 64>}, {pipeline_mode = #tpu.pipeline_mode<synchronous>, transform_indices = @transform_3, window_bounds = array<i64: 1, 64>}, {pipeline_mode = #tpu.pipeline_mode<synchronous>, transform_indices = @transform_4, window_bounds = array<i64: 32, 64>}]} {
    %c0 = arith.constant 0 : index
    %c0_0 = arith.constant 0 : index
    %0 = vector.load %arg1[%c0, %c0_0] : memref<32x288xbf16, #tpu.memory_space<vmem>>, vector<32x288xbf16>
    %c0_1 = arith.constant 0 : index
    %c0_2 = arith.constant 0 : index
    %1 = vector.load %arg2[%c0_1, %c0_2] : memref<288x64xbf16, #tpu.memory_space<vmem>>, vector<288x64xbf16>
    %cst = arith.constant dense<0.000000e+00> : vector<32x64xf32>
    %2 = tpu.matmul %0, %1, %cst {dimension_numbers = #tpu.dot_dimension_numbers<[1], [0], [0], [1], [0, 0, 1, 1], [], []>} : vector<32x288xbf16>, vector<288x64xbf16>, vector<32x64xf32> -> vector<32x64xf32>
    %c0_3 = arith.constant 0 : index
    %c0_4 = arith.constant 0 : index
    %3 = vector.load %arg3[%c0_3, %c0_4] : memref<1x64xf32, #tpu.memory_space<vmem>>, vector<1x64xf32>
    %c0_5 = arith.constant 0 : index
    %c0_6 = arith.constant 0 : index
    %4 = vector.load %arg4[%c0_5, %c0_6] : memref<1x64xf32, #tpu.memory_space<vmem>>, vector<1x64xf32>
    %cst_7 = arith.constant dense<0.000000e+00> : vector<64xf32>
    %5 = vector.multi_reduction <add>, %2, %cst_7 [0] : vector<32x64xf32> to vector<64xf32>
    %6 = vector.shape_cast %5 : vector<64xf32> to vector<1x64xf32>
    %cst_8 = arith.constant 3.200000e+01 : f32
    %7 = vector.broadcast %cst_8 : f32 to vector<1x64xf32>
    %8 = arith.divf %6, %7 : vector<1x64xf32>
    %9 = vector.broadcast %8 : vector<1x64xf32> to vector<32x64xf32>
    %10 = arith.subf %2, %9 : vector<32x64xf32>
    %11 = arith.mulf %10, %10 : vector<32x64xf32>
    %cst_9 = arith.constant dense<0.000000e+00> : vector<64xf32>
    %12 = vector.multi_reduction <add>, %11, %cst_9 [0] : vector<32x64xf32> to vector<64xf32>
    %13 = vector.shape_cast %12 : vector<64xf32> to vector<1x64xf32>
    %cst_10 = arith.constant 3.200000e+01 : f32
    %14 = vector.broadcast %cst_10 : f32 to vector<1x64xf32>
    %15 = arith.divf %13, %14 : vector<1x64xf32>
    %16 = vector.broadcast %8 : vector<1x64xf32> to vector<32x64xf32>
    %17 = arith.subf %2, %16 : vector<32x64xf32>
    %cst_11 = arith.constant 9.99999974E-6 : f32
    %18 = vector.broadcast %cst_11 : f32 to vector<1x64xf32>
    %19 = arith.addf %15, %18 : vector<1x64xf32>
    %20 = math.rsqrt %19 : vector<1x64xf32>
    %21 = vector.broadcast %20 : vector<1x64xf32> to vector<32x64xf32>
    %22 = arith.mulf %17, %21 : vector<32x64xf32>
    %23 = vector.broadcast %3 : vector<1x64xf32> to vector<32x64xf32>
    %24 = arith.mulf %22, %23 : vector<32x64xf32>
    %25 = vector.broadcast %4 : vector<1x64xf32> to vector<32x64xf32>
    %26 = arith.addf %24, %25 : vector<32x64xf32>
    %cst_12 = arith.constant 0.000000e+00 : f32
    %27 = vector.broadcast %cst_12 : f32 to vector<32x64xf32>
    %28 = arith.maximumf %26, %27 : vector<32x64xf32>
    %c0_13 = arith.constant 0 : index
    %c0_14 = arith.constant 0 : index
    %29 = vector.load %arg5[%c0_13, %c0_14] : memref<32x64xf32, #tpu.memory_space<vmem>>, vector<32x64xf32>
    tpu.vector_store %arg5[%c0_13, %c0_14], %28 {strides = array<i32>} : memref<32x64xf32, #tpu.memory_space<vmem>>, vector<32x64xf32>,
    return
  }
  func.func @transform_0(%arg0: i32) -> (i32, i32) {
    %c0_i32 = arith.constant 0 : i32
    %c0_i32_0 = arith.constant 0 : i32
    %c0_i32_1 = arith.constant 0 : i32
    return %c0_i32, %c0_i32_0 : i32, i32
  }
  func.func @transform_1(%arg0: i32) -> (i32, i32) {
    %c0_i32 = arith.constant 0 : i32
    %c0_i32_0 = arith.constant 0 : i32
    %c0_i32_1 = arith.constant 0 : i32
    return %c0_i32, %c0_i32_0 : i32, i32
  }
  func.func @transform_2(%arg0: i32) -> (i32, i32) {
    %c0_i32 = arith.constant 0 : i32
    %c0_i32_0 = arith.constant 0 : i32
    %c0_i32_1 = arith.constant 0 : i32
    return %c0_i32, %c0_i32_0 : i32, i32
  }
  func.func @transform_3(%arg0: i32) -> (i32, i32) {
    %c0_i32 = arith.constant 0 : i32
    %c0_i32_0 = arith.constant 0 : i32
    %c0_i32_1 = arith.constant 0 : i32
    return %c0_i32, %c0_i32_0 : i32, i32
  }
  func.func @transform_4(%arg0: i32) -> (i32, i32) {
    %c0_i32 = arith.constant 0 : i32
    %c0_i32_0 = arith.constant 0 : i32
    %c0_i32_1 = arith.constant 0 : i32
    return %c0_i32, %c0_i32_0 : i32, i32
  }
}

module attributes {stable_mosaic.version = 11 : i64} {
  func.func @_mm_kernel(%arg0: i32, %arg1: memref<32x576xbf16, #tpu.memory_space<vmem>>, %arg2: memref<576x64xbf16, #tpu.memory_space<vmem>>, %arg3: memref<32x64xf32, #tpu.memory_space<vmem>>) attributes {dimension_semantics = [#tpu.dimension_semantics<arbitrary>], iteration_bounds = array<i64: 1>, scalar_prefetch = 0 : i64, scratch_operands = 0 : i64, tpu.core_type = #tpu.core_type<tc>, window_params = [{pipeline_mode = #tpu.pipeline_mode<synchronous>, transform_indices = @transform_0, window_bounds = array<i64: 32, 576>}, {pipeline_mode = #tpu.pipeline_mode<synchronous>, transform_indices = @transform_1, window_bounds = array<i64: 576, 64>}, {pipeline_mode = #tpu.pipeline_mode<synchronous>, transform_indices = @transform_2, window_bounds = array<i64: 32, 64>}]} {
    %c0 = arith.constant 0 : index
    %c0_0 = arith.constant 0 : index
    %0 = vector.load %arg1[%c0, %c0_0] : memref<32x576xbf16, #tpu.memory_space<vmem>>, vector<32x576xbf16>
    %c0_1 = arith.constant 0 : index
    %c0_2 = arith.constant 0 : index
    %1 = vector.load %arg2[%c0_1, %c0_2] : memref<576x64xbf16, #tpu.memory_space<vmem>>, vector<576x64xbf16>
    %cst = arith.constant dense<0.000000e+00> : vector<32x64xf32>
    %2 = tpu.matmul %0, %1, %cst {dimension_numbers = #tpu.dot_dimension_numbers<[1], [0], [0], [1], [0, 0, 1, 1], [], []>} : vector<32x576xbf16>, vector<576x64xbf16>, vector<32x64xf32> -> vector<32x64xf32>
    %c0_3 = arith.constant 0 : index
    %c0_4 = arith.constant 0 : index
    %3 = vector.load %arg3[%c0_3, %c0_4] : memref<32x64xf32, #tpu.memory_space<vmem>>, vector<32x64xf32>
    tpu.vector_store %arg3[%c0_3, %c0_4], %2 {strides = array<i32>} : memref<32x64xf32, #tpu.memory_space<vmem>>, vector<32x64xf32>,
    return
  }
  func.func @transform_0(%arg0: i32) -> (i32, i32) {
    %c0_i32 = arith.constant 0 : i32
    %c0_i32_0 = arith.constant 0 : i32
    %c0_i32_1 = arith.constant 0 : i32
    return %c0_i32, %c0_i32_0 : i32, i32
  }
  func.func @transform_1(%arg0: i32) -> (i32, i32) {
    %c0_i32 = arith.constant 0 : i32
    %c0_i32_0 = arith.constant 0 : i32
    %c0_i32_1 = arith.constant 0 : i32
    return %c0_i32, %c0_i32_0 : i32, i32
  }
  func.func @transform_2(%arg0: i32) -> (i32, i32) {
    %c0_i32 = arith.constant 0 : i32
    %c0_i32_0 = arith.constant 0 : i32
    %c0_i32_1 = arith.constant 0 : i32
    return %c0_i32, %c0_i32_0 : i32, i32
  }
}

module attributes {stable_mosaic.version = 11 : i64} {
  func.func @_mm_bias_res_bn_relu_kernel(%arg0: i32, %arg1: memref<32x32xbf16, #tpu.memory_space<vmem>>, %arg2: memref<32x64xbf16, #tpu.memory_space<vmem>>, %arg3: memref<1x64xf32, #tpu.memory_space<vmem>>, %arg4: memref<32x64xf32, #tpu.memory_space<vmem>>, %arg5: memref<1x64xf32, #tpu.memory_space<vmem>>, %arg6: memref<1x64xf32, #tpu.memory_space<vmem>>, %arg7: memref<32x64xf32, #tpu.memory_space<vmem>>, %arg8: memref<32x64xf32, #tpu.memory_space<vmem>>) attributes {dimension_semantics = [#tpu.dimension_semantics<arbitrary>], iteration_bounds = array<i64: 1>, scalar_prefetch = 0 : i64, scratch_operands = 0 : i64, tpu.core_type = #tpu.core_type<tc>, window_params = [{pipeline_mode = #tpu.pipeline_mode<synchronous>, transform_indices = @transform_0, window_bounds = array<i64: 32, 32>}, {pipeline_mode = #tpu.pipeline_mode<synchronous>, transform_indices = @transform_1, window_bounds = array<i64: 32, 64>}, {pipeline_mode = #tpu.pipeline_mode<synchronous>, transform_indices = @transform_2, window_bounds = array<i64: 1, 64>}, {pipeline_mode = #tpu.pipeline_mode<synchronous>, transform_indices = @transform_3, window_bounds = array<i64: 32, 64>}, {pipeline_mode = #tpu.pipeline_mode<synchronous>, transform_indices = @transform_4, window_bounds = array<i64: 1, 64>}, {pipeline_mode = #tpu.pipeline_mode<synchronous>, transform_indices = @transform_5, window_bounds = array<i64: 1, 64>}, {pipeline_mode = #tpu.pipeline_mode<synchronous>, transform_indices = @transform_6, window_bounds = array<i64: 32, 64>}, {pipeline_mode = #tpu.pipeline_mode<synchronous>, transform_indices = @transform_7, window_bounds = array<i64: 32, 64>}]} {
    %c0 = arith.constant 0 : index
    %c0_0 = arith.constant 0 : index
    %0 = vector.load %arg1[%c0, %c0_0] : memref<32x32xbf16, #tpu.memory_space<vmem>>, vector<32x32xbf16>
    %c0_1 = arith.constant 0 : index
    %c0_2 = arith.constant 0 : index
    %1 = vector.load %arg2[%c0_1, %c0_2] : memref<32x64xbf16, #tpu.memory_space<vmem>>, vector<32x64xbf16>
    %cst = arith.constant dense<0.000000e+00> : vector<32x64xf32>
    %2 = tpu.matmul %0, %1, %cst {dimension_numbers = #tpu.dot_dimension_numbers<[1], [0], [0], [1], [0, 0, 1, 1], [], []>} : vector<32x32xbf16>, vector<32x64xbf16>, vector<32x64xf32> -> vector<32x64xf32>
    %c0_3 = arith.constant 0 : index
    %c0_4 = arith.constant 0 : index
    %3 = vector.load %arg3[%c0_3, %c0_4] : memref<1x64xf32, #tpu.memory_space<vmem>>, vector<1x64xf32>
    %4 = vector.broadcast %3 : vector<1x64xf32> to vector<32x64xf32>
    %5 = arith.addf %2, %4 : vector<32x64xf32>
    %c0_5 = arith.constant 0 : index
    %c0_6 = arith.constant 0 : index
    %6 = vector.load %arg4[%c0_5, %c0_6] : memref<32x64xf32, #tpu.memory_space<vmem>>, vector<32x64xf32>
    %7 = arith.addf %5, %6 : vector<32x64xf32>
    %c0_7 = arith.constant 0 : index
    %c0_8 = arith.constant 0 : index
    %8 = vector.load %arg7[%c0_7, %c0_8] : memref<32x64xf32, #tpu.memory_space<vmem>>, vector<32x64xf32>
    tpu.vector_store %arg7[%c0_7, %c0_8], %7 {strides = array<i32>} : memref<32x64xf32, #tpu.memory_space<vmem>>, vector<32x64xf32>,
    %c0_9 = arith.constant 0 : index
    %c0_10 = arith.constant 0 : index
    %9 = vector.load %arg5[%c0_9, %c0_10] : memref<1x64xf32, #tpu.memory_space<vmem>>, vector<1x64xf32>
    %c0_11 = arith.constant 0 : index
    %c0_12 = arith.constant 0 : index
    %10 = vector.load %arg6[%c0_11, %c0_12] : memref<1x64xf32, #tpu.memory_space<vmem>>, vector<1x64xf32>
    %cst_13 = arith.constant dense<0.000000e+00> : vector<64xf32>
    %11 = vector.multi_reduction <add>, %7, %cst_13 [0] : vector<32x64xf32> to vector<64xf32>
    %12 = vector.shape_cast %11 : vector<64xf32> to vector<1x64xf32>
    %cst_14 = arith.constant 3.200000e+01 : f32
    %13 = vector.broadcast %cst_14 : f32 to vector<1x64xf32>
    %14 = arith.divf %12, %13 : vector<1x64xf32>
    %15 = vector.broadcast %14 : vector<1x64xf32> to vector<32x64xf32>
    %16 = arith.subf %7, %15 : vector<32x64xf32>
    %17 = arith.mulf %16, %16 : vector<32x64xf32>
    %cst_15 = arith.constant dense<0.000000e+00> : vector<64xf32>
    %18 = vector.multi_reduction <add>, %17, %cst_15 [0] : vector<32x64xf32> to vector<64xf32>
    %19 = vector.shape_cast %18 : vector<64xf32> to vector<1x64xf32>
    %cst_16 = arith.constant 3.200000e+01 : f32
    %20 = vector.broadcast %cst_16 : f32 to vector<1x64xf32>
    %21 = arith.divf %19, %20 : vector<1x64xf32>
    %22 = vector.broadcast %14 : vector<1x64xf32> to vector<32x64xf32>
    %23 = arith.subf %7, %22 : vector<32x64xf32>
    %cst_17 = arith.constant 9.99999974E-6 : f32
    %24 = vector.broadcast %cst_17 : f32 to vector<1x64xf32>
    %25 = arith.addf %21, %24 : vector<1x64xf32>
    %26 = math.rsqrt %25 : vector<1x64xf32>
    %27 = vector.broadcast %26 : vector<1x64xf32> to vector<32x64xf32>
    %28 = arith.mulf %23, %27 : vector<32x64xf32>
    %29 = vector.broadcast %9 : vector<1x64xf32> to vector<32x64xf32>
    %30 = arith.mulf %28, %29 : vector<32x64xf32>
    %31 = vector.broadcast %10 : vector<1x64xf32> to vector<32x64xf32>
    %32 = arith.addf %30, %31 : vector<32x64xf32>
    %cst_18 = arith.constant 0.000000e+00 : f32
    %33 = vector.broadcast %cst_18 : f32 to vector<32x64xf32>
    %34 = arith.maximumf %32, %33 : vector<32x64xf32>
    %c0_19 = arith.constant 0 : index
    %c0_20 = arith.constant 0 : index
    %35 = vector.load %arg8[%c0_19, %c0_20] : memref<32x64xf32, #tpu.memory_space<vmem>>, vector<32x64xf32>
    tpu.vector_store %arg8[%c0_19, %c0_20], %34 {strides = array<i32>} : memref<32x64xf32, #tpu.memory_space<vmem>>, vector<32x64xf32>,
    return
  }
  func.func @transform_0(%arg0: i32) -> (i32, i32) {
    %c0_i32 = arith.constant 0 : i32
    %c0_i32_0 = arith.constant 0 : i32
    %c0_i32_1 = arith.constant 0 : i32
    return %c0_i32, %c0_i32_0 : i32, i32
  }
  func.func @transform_1(%arg0: i32) -> (i32, i32) {
    %c0_i32 = arith.constant 0 : i32
    %c0_i32_0 = arith.constant 0 : i32
    %c0_i32_1 = arith.constant 0 : i32
    return %c0_i32, %c0_i32_0 : i32, i32
  }
  func.func @transform_2(%arg0: i32) -> (i32, i32) {
    %c0_i32 = arith.constant 0 : i32
    %c0_i32_0 = arith.constant 0 : i32
    %c0_i32_1 = arith.constant 0 : i32
    return %c0_i32, %c0_i32_0 : i32, i32
  }
  func.func @transform_3(%arg0: i32) -> (i32, i32) {
    %c0_i32 = arith.constant 0 : i32
    %c0_i32_0 = arith.constant 0 : i32
    %c0_i32_1 = arith.constant 0 : i32
    return %c0_i32, %c0_i32_0 : i32, i32
  }
  func.func @transform_4(%arg0: i32) -> (i32, i32) {
    %c0_i32 = arith.constant 0 : i32
    %c0_i32_0 = arith.constant 0 : i32
    %c0_i32_1 = arith.constant 0 : i32
    return %c0_i32, %c0_i32_0 : i32, i32
  }
  func.func @transform_5(%arg0: i32) -> (i32, i32) {
    %c0_i32 = arith.constant 0 : i32
    %c0_i32_0 = arith.constant 0 : i32
    %c0_i32_1 = arith.constant 0 : i32
    return %c0_i32, %c0_i32_0 : i32, i32
  }
  func.func @transform_6(%arg0: i32) -> (i32, i32) {
    %c0_i32 = arith.constant 0 : i32
    %c0_i32_0 = arith.constant 0 : i32
    %c0_i32_1 = arith.constant 0 : i32
    return %c0_i32, %c0_i32_0 : i32, i32
  }
  func.func @transform_7(%arg0: i32) -> (i32, i32) {
    %c0_i32 = arith.constant 0 : i32
    %c0_i32_0 = arith.constant 0 : i32
    %c0_i32_1 = arith.constant 0 : i32
    return %c0_i32, %c0_i32_0 : i32, i32
  }
}

module attributes {stable_mosaic.version = 11 : i64} {
  func.func @_mm_bn_relu_kernel(%arg0: i32, %arg1: memref<8x576xbf16, #tpu.memory_space<vmem>>, %arg2: memref<576x128xbf16, #tpu.memory_space<vmem>>, %arg3: memref<1x128xf32, #tpu.memory_space<vmem>>, %arg4: memref<1x128xf32, #tpu.memory_space<vmem>>, %arg5: memref<8x128xf32, #tpu.memory_space<vmem>>) attributes {dimension_semantics = [#tpu.dimension_semantics<arbitrary>], iteration_bounds = array<i64: 1>, scalar_prefetch = 0 : i64, scratch_operands = 0 : i64, tpu.core_type = #tpu.core_type<tc>, window_params = [{pipeline_mode = #tpu.pipeline_mode<synchronous>, transform_indices = @transform_0, window_bounds = array<i64: 8, 576>}, {pipeline_mode = #tpu.pipeline_mode<synchronous>, transform_indices = @transform_1, window_bounds = array<i64: 576, 128>}, {pipeline_mode = #tpu.pipeline_mode<synchronous>, transform_indices = @transform_2, window_bounds = array<i64: 1, 128>}, {pipeline_mode = #tpu.pipeline_mode<synchronous>, transform_indices = @transform_3, window_bounds = array<i64: 1, 128>}, {pipeline_mode = #tpu.pipeline_mode<synchronous>, transform_indices = @transform_4, window_bounds = array<i64: 8, 128>}]} {
    %c0 = arith.constant 0 : index
    %c0_0 = arith.constant 0 : index
    %0 = vector.load %arg1[%c0, %c0_0] : memref<8x576xbf16, #tpu.memory_space<vmem>>, vector<8x576xbf16>
    %c0_1 = arith.constant 0 : index
    %c0_2 = arith.constant 0 : index
    %1 = vector.load %arg2[%c0_1, %c0_2] : memref<576x128xbf16, #tpu.memory_space<vmem>>, vector<576x128xbf16>
    %cst = arith.constant dense<0.000000e+00> : vector<8x128xf32>
    %2 = tpu.matmul %0, %1, %cst {dimension_numbers = #tpu.dot_dimension_numbers<[1], [0], [0], [1], [0, 0, 1, 1], [], []>} : vector<8x576xbf16>, vector<576x128xbf16>, vector<8x128xf32> -> vector<8x128xf32>
    %c0_3 = arith.constant 0 : index
    %c0_4 = arith.constant 0 : index
    %3 = vector.load %arg3[%c0_3, %c0_4] : memref<1x128xf32, #tpu.memory_space<vmem>>, vector<1x128xf32>
    %c0_5 = arith.constant 0 : index
    %c0_6 = arith.constant 0 : index
    %4 = vector.load %arg4[%c0_5, %c0_6] : memref<1x128xf32, #tpu.memory_space<vmem>>, vector<1x128xf32>
    %cst_7 = arith.constant dense<0.000000e+00> : vector<128xf32>
    %5 = vector.multi_reduction <add>, %2, %cst_7 [0] : vector<8x128xf32> to vector<128xf32>
    %6 = vector.shape_cast %5 : vector<128xf32> to vector<1x128xf32>
    %cst_8 = arith.constant 8.000000e+00 : f32
    %7 = vector.broadcast %cst_8 : f32 to vector<1x128xf32>
    %8 = arith.divf %6, %7 : vector<1x128xf32>
    %9 = vector.broadcast %8 : vector<1x128xf32> to vector<8x128xf32>
    %10 = arith.subf %2, %9 : vector<8x128xf32>
    %11 = arith.mulf %10, %10 : vector<8x128xf32>
    %cst_9 = arith.constant dense<0.000000e+00> : vector<128xf32>
    %12 = vector.multi_reduction <add>, %11, %cst_9 [0] : vector<8x128xf32> to vector<128xf32>
    %13 = vector.shape_cast %12 : vector<128xf32> to vector<1x128xf32>
    %cst_10 = arith.constant 8.000000e+00 : f32
    %14 = vector.broadcast %cst_10 : f32 to vector<1x128xf32>
    %15 = arith.divf %13, %14 : vector<1x128xf32>
    %16 = vector.broadcast %8 : vector<1x128xf32> to vector<8x128xf32>
    %17 = arith.subf %2, %16 : vector<8x128xf32>
    %cst_11 = arith.constant 9.99999974E-6 : f32
    %18 = vector.broadcast %cst_11 : f32 to vector<1x128xf32>
    %19 = arith.addf %15, %18 : vector<1x128xf32>
    %20 = math.rsqrt %19 : vector<1x128xf32>
    %21 = vector.broadcast %20 : vector<1x128xf32> to vector<8x128xf32>
    %22 = arith.mulf %17, %21 : vector<8x128xf32>
    %23 = vector.broadcast %3 : vector<1x128xf32> to vector<8x128xf32>
    %24 = arith.mulf %22, %23 : vector<8x128xf32>
    %25 = vector.broadcast %4 : vector<1x128xf32> to vector<8x128xf32>
    %26 = arith.addf %24, %25 : vector<8x128xf32>
    %cst_12 = arith.constant 0.000000e+00 : f32
    %27 = vector.broadcast %cst_12 : f32 to vector<8x128xf32>
    %28 = arith.maximumf %26, %27 : vector<8x128xf32>
    %c0_13 = arith.constant 0 : index
    %c0_14 = arith.constant 0 : index
    %29 = vector.load %arg5[%c0_13, %c0_14] : memref<8x128xf32, #tpu.memory_space<vmem>>, vector<8x128xf32>
    tpu.vector_store %arg5[%c0_13, %c0_14], %28 {strides = array<i32>} : memref<8x128xf32, #tpu.memory_space<vmem>>, vector<8x128xf32>,
    return
  }
  func.func @transform_0(%arg0: i32) -> (i32, i32) {
    %c0_i32 = arith.constant 0 : i32
    %c0_i32_0 = arith.constant 0 : i32
    %c0_i32_1 = arith.constant 0 : i32
    return %c0_i32, %c0_i32_0 : i32, i32
  }
  func.func @transform_1(%arg0: i32) -> (i32, i32) {
    %c0_i32 = arith.constant 0 : i32
    %c0_i32_0 = arith.constant 0 : i32
    %c0_i32_1 = arith.constant 0 : i32
    return %c0_i32, %c0_i32_0 : i32, i32
  }
  func.func @transform_2(%arg0: i32) -> (i32, i32) {
    %c0_i32 = arith.constant 0 : i32
    %c0_i32_0 = arith.constant 0 : i32
    %c0_i32_1 = arith.constant 0 : i32
    return %c0_i32, %c0_i32_0 : i32, i32
  }
  func.func @transform_3(%arg0: i32) -> (i32, i32) {
    %c0_i32 = arith.constant 0 : i32
    %c0_i32_0 = arith.constant 0 : i32
    %c0_i32_1 = arith.constant 0 : i32
    return %c0_i32, %c0_i32_0 : i32, i32
  }
  func.func @transform_4(%arg0: i32) -> (i32, i32) {
    %c0_i32 = arith.constant 0 : i32
    %c0_i32_0 = arith.constant 0 : i32
    %c0_i32_1 = arith.constant 0 : i32
    return %c0_i32, %c0_i32_0 : i32, i32
  }
}

module attributes {stable_mosaic.version = 11 : i64} {
  func.func @_mm_kernel(%arg0: i32, %arg1: memref<8x1152xbf16, #tpu.memory_space<vmem>>, %arg2: memref<1152x128xbf16, #tpu.memory_space<vmem>>, %arg3: memref<8x128xf32, #tpu.memory_space<vmem>>) attributes {dimension_semantics = [#tpu.dimension_semantics<arbitrary>], iteration_bounds = array<i64: 1>, scalar_prefetch = 0 : i64, scratch_operands = 0 : i64, tpu.core_type = #tpu.core_type<tc>, window_params = [{pipeline_mode = #tpu.pipeline_mode<synchronous>, transform_indices = @transform_0, window_bounds = array<i64: 8, 1152>}, {pipeline_mode = #tpu.pipeline_mode<synchronous>, transform_indices = @transform_1, window_bounds = array<i64: 1152, 128>}, {pipeline_mode = #tpu.pipeline_mode<synchronous>, transform_indices = @transform_2, window_bounds = array<i64: 8, 128>}]} {
    %c0 = arith.constant 0 : index
    %c0_0 = arith.constant 0 : index
    %0 = vector.load %arg1[%c0, %c0_0] : memref<8x1152xbf16, #tpu.memory_space<vmem>>, vector<8x1152xbf16>
    %c0_1 = arith.constant 0 : index
    %c0_2 = arith.constant 0 : index
    %1 = vector.load %arg2[%c0_1, %c0_2] : memref<1152x128xbf16, #tpu.memory_space<vmem>>, vector<1152x128xbf16>
    %cst = arith.constant dense<0.000000e+00> : vector<8x128xf32>
    %2 = tpu.matmul %0, %1, %cst {dimension_numbers = #tpu.dot_dimension_numbers<[1], [0], [0], [1], [0, 0, 1, 1], [], []>} : vector<8x1152xbf16>, vector<1152x128xbf16>, vector<8x128xf32> -> vector<8x128xf32>
    %c0_3 = arith.constant 0 : index
    %c0_4 = arith.constant 0 : index
    %3 = vector.load %arg3[%c0_3, %c0_4] : memref<8x128xf32, #tpu.memory_space<vmem>>, vector<8x128xf32>
    tpu.vector_store %arg3[%c0_3, %c0_4], %2 {strides = array<i32>} : memref<8x128xf32, #tpu.memory_space<vmem>>, vector<8x128xf32>,
    return
  }
  func.func @transform_0(%arg0: i32) -> (i32, i32) {
    %c0_i32 = arith.constant 0 : i32
    %c0_i32_0 = arith.constant 0 : i32
    %c0_i32_1 = arith.constant 0 : i32
    return %c0_i32, %c0_i32_0 : i32, i32
  }
  func.func @transform_1(%arg0: i32) -> (i32, i32) {
    %c0_i32 = arith.constant 0 : i32
    %c0_i32_0 = arith.constant 0 : i32
    %c0_i32_1 = arith.constant 0 : i32
    return %c0_i32, %c0_i32_0 : i32, i32
  }
  func.func @transform_2(%arg0: i32) -> (i32, i32) {
    %c0_i32 = arith.constant 0 : i32
    %c0_i32_0 = arith.constant 0 : i32
    %c0_i32_1 = arith.constant 0 : i32
    return %c0_i32, %c0_i32_0 : i32, i32
  }
}

module attributes {stable_mosaic.version = 11 : i64} {
  func.func @_mm_bias_res_kernel(%arg0: i32, %arg1: memref<8x64xbf16, #tpu.memory_space<vmem>>, %arg2: memref<64x128xbf16, #tpu.memory_space<vmem>>, %arg3: memref<1x128xf32, #tpu.memory_space<vmem>>, %arg4: memref<8x128xf32, #tpu.memory_space<vmem>>, %arg5: memref<8x128xf32, #tpu.memory_space<vmem>>) attributes {dimension_semantics = [#tpu.dimension_semantics<arbitrary>], iteration_bounds = array<i64: 1>, scalar_prefetch = 0 : i64, scratch_operands = 0 : i64, tpu.core_type = #tpu.core_type<tc>, window_params = [{pipeline_mode = #tpu.pipeline_mode<synchronous>, transform_indices = @transform_0, window_bounds = array<i64: 8, 64>}, {pipeline_mode = #tpu.pipeline_mode<synchronous>, transform_indices = @transform_1, window_bounds = array<i64: 64, 128>}, {pipeline_mode = #tpu.pipeline_mode<synchronous>, transform_indices = @transform_2, window_bounds = array<i64: 1, 128>}, {pipeline_mode = #tpu.pipeline_mode<synchronous>, transform_indices = @transform_3, window_bounds = array<i64: 8, 128>}, {pipeline_mode = #tpu.pipeline_mode<synchronous>, transform_indices = @transform_4, window_bounds = array<i64: 8, 128>}]} {
    %c0 = arith.constant 0 : index
    %c0_0 = arith.constant 0 : index
    %0 = vector.load %arg1[%c0, %c0_0] : memref<8x64xbf16, #tpu.memory_space<vmem>>, vector<8x64xbf16>
    %c0_1 = arith.constant 0 : index
    %c0_2 = arith.constant 0 : index
    %1 = vector.load %arg2[%c0_1, %c0_2] : memref<64x128xbf16, #tpu.memory_space<vmem>>, vector<64x128xbf16>
    %cst = arith.constant dense<0.000000e+00> : vector<8x128xf32>
    %2 = tpu.matmul %0, %1, %cst {dimension_numbers = #tpu.dot_dimension_numbers<[1], [0], [0], [1], [0, 0, 1, 1], [], []>} : vector<8x64xbf16>, vector<64x128xbf16>, vector<8x128xf32> -> vector<8x128xf32>
    %c0_3 = arith.constant 0 : index
    %c0_4 = arith.constant 0 : index
    %3 = vector.load %arg3[%c0_3, %c0_4] : memref<1x128xf32, #tpu.memory_space<vmem>>, vector<1x128xf32>
    %4 = vector.broadcast %3 : vector<1x128xf32> to vector<8x128xf32>
    %5 = arith.addf %2, %4 : vector<8x128xf32>
    %c0_5 = arith.constant 0 : index
    %c0_6 = arith.constant 0 : index
    %6 = vector.load %arg4[%c0_5, %c0_6] : memref<8x128xf32, #tpu.memory_space<vmem>>, vector<8x128xf32>
    %7 = arith.addf %5, %6 : vector<8x128xf32>
    %c0_7 = arith.constant 0 : index
    %c0_8 = arith.constant 0 : index
    %8 = vector.load %arg5[%c0_7, %c0_8] : memref<8x128xf32, #tpu.memory_space<vmem>>, vector<8x128xf32>
    tpu.vector_store %arg5[%c0_7, %c0_8], %7 {strides = array<i32>} : memref<8x128xf32, #tpu.memory_space<vmem>>, vector<8x128xf32>,
    return
  }
  func.func @transform_0(%arg0: i32) -> (i32, i32) {
    %c0_i32 = arith.constant 0 : i32
    %c0_i32_0 = arith.constant 0 : i32
    %c0_i32_1 = arith.constant 0 : i32
    return %c0_i32, %c0_i32_0 : i32, i32
  }
  func.func @transform_1(%arg0: i32) -> (i32, i32) {
    %c0_i32 = arith.constant 0 : i32
    %c0_i32_0 = arith.constant 0 : i32
    %c0_i32_1 = arith.constant 0 : i32
    return %c0_i32, %c0_i32_0 : i32, i32
  }
  func.func @transform_2(%arg0: i32) -> (i32, i32) {
    %c0_i32 = arith.constant 0 : i32
    %c0_i32_0 = arith.constant 0 : i32
    %c0_i32_1 = arith.constant 0 : i32
    return %c0_i32, %c0_i32_0 : i32, i32
  }
  func.func @transform_3(%arg0: i32) -> (i32, i32) {
    %c0_i32 = arith.constant 0 : i32
    %c0_i32_0 = arith.constant 0 : i32
    %c0_i32_1 = arith.constant 0 : i32
    return %c0_i32, %c0_i32_0 : i32, i32
  }
  func.func @transform_4(%arg0: i32) -> (i32, i32) {
    %c0_i32 = arith.constant 0 : i32
    %c0_i32_0 = arith.constant 0 : i32
    %c0_i32_1 = arith.constant 0 : i32
    return %c0_i32, %c0_i32_0 : i32, i32
  }
}

module attributes {stable_mosaic.version = 11 : i64} {
  func.func @_head_kernel(%arg0: i32, %arg1: memref<8x512xf32, #tpu.memory_space<vmem>>, %arg2: memref<8x512xf32, #tpu.memory_space<vmem>>, %arg3: memref<512x256xbf16, #tpu.memory_space<vmem>>, %arg4: memref<1x256xf32, #tpu.memory_space<vmem>>, %arg5: memref<8x256xf32, #tpu.memory_space<vmem>>) attributes {dimension_semantics = [#tpu.dimension_semantics<arbitrary>], iteration_bounds = array<i64: 1>, scalar_prefetch = 0 : i64, scratch_operands = 0 : i64, tpu.core_type = #tpu.core_type<tc>, window_params = [{pipeline_mode = #tpu.pipeline_mode<synchronous>, transform_indices = @transform_0, window_bounds = array<i64: 8, 512>}, {pipeline_mode = #tpu.pipeline_mode<synchronous>, transform_indices = @transform_1, window_bounds = array<i64: 8, 512>}, {pipeline_mode = #tpu.pipeline_mode<synchronous>, transform_indices = @transform_2, window_bounds = array<i64: 512, 256>}, {pipeline_mode = #tpu.pipeline_mode<synchronous>, transform_indices = @transform_3, window_bounds = array<i64: 1, 256>}, {pipeline_mode = #tpu.pipeline_mode<synchronous>, transform_indices = @transform_4, window_bounds = array<i64: 8, 256>}]} {
    %c0 = arith.constant 0 : index
    %c0_0 = arith.constant 0 : index
    %0 = vector.load %arg1[%c0, %c0_0] : memref<8x512xf32, #tpu.memory_space<vmem>>, vector<8x512xf32>
    %cst = arith.constant 0.000000e+00 : f32
    %1 = vector.broadcast %cst : f32 to vector<8x512xf32>
    %2 = arith.maximumf %0, %1 : vector<8x512xf32>
    %c0_1 = arith.constant 0 : index
    %c0_2 = arith.constant 0 : index
    %3 = vector.load %arg2[%c0_1, %c0_2] : memref<8x512xf32, #tpu.memory_space<vmem>>, vector<8x512xf32>
    %4 = arith.mulf %2, %3 : vector<8x512xf32>
    %cst_3 = arith.constant 2.000000e+00 : f32
    %5 = vector.broadcast %cst_3 : f32 to vector<8x512xf32>
    %6 = arith.mulf %4, %5 : vector<8x512xf32>
    %7 = arith.truncf %6 : vector<8x512xf32> to vector<8x512xbf16>
    %c0_4 = arith.constant 0 : index
    %c0_5 = arith.constant 0 : index
    %8 = vector.load %arg3[%c0_4, %c0_5] : memref<512x256xbf16, #tpu.memory_space<vmem>>, vector<512x256xbf16>
    %cst_6 = arith.constant dense<0.000000e+00> : vector<8x256xf32>
    %9 = tpu.matmul %7, %8, %cst_6 {dimension_numbers = #tpu.dot_dimension_numbers<[1], [0], [0], [1], [0, 0, 1, 1], [], []>} : vector<8x512xbf16>, vector<512x256xbf16>, vector<8x256xf32> -> vector<8x256xf32>
    %c0_7 = arith.constant 0 : index
    %c0_8 = arith.constant 0 : index
    %10 = vector.load %arg4[%c0_7, %c0_8] : memref<1x256xf32, #tpu.memory_space<vmem>>, vector<1x256xf32>
    %11 = vector.broadcast %10 : vector<1x256xf32> to vector<8x256xf32>
    %12 = arith.addf %9, %11 : vector<8x256xf32>
    %c0_9 = arith.constant 0 : index
    %c0_10 = arith.constant 0 : index
    %13 = vector.load %arg5[%c0_9, %c0_10] : memref<8x256xf32, #tpu.memory_space<vmem>>, vector<8x256xf32>
    tpu.vector_store %arg5[%c0_9, %c0_10], %12 {strides = array<i32>} : memref<8x256xf32, #tpu.memory_space<vmem>>, vector<8x256xf32>,
    return
  }
  func.func @transform_0(%arg0: i32) -> (i32, i32) {
    %c0_i32 = arith.constant 0 : i32
    %c0_i32_0 = arith.constant 0 : i32
    %c0_i32_1 = arith.constant 0 : i32
    return %c0_i32, %c0_i32_0 : i32, i32
  }
  func.func @transform_1(%arg0: i32) -> (i32, i32) {
    %c0_i32 = arith.constant 0 : i32
    %c0_i32_0 = arith.constant 0 : i32
    %c0_i32_1 = arith.constant 0 : i32
    return %c0_i32, %c0_i32_0 : i32, i32
  }
  func.func @transform_2(%arg0: i32) -> (i32, i32) {
    %c0_i32 = arith.constant 0 : i32
    %c0_i32_0 = arith.constant 0 : i32
    %c0_i32_1 = arith.constant 0 : i32
    return %c0_i32, %c0_i32_0 : i32, i32
  }
  func.func @transform_3(%arg0: i32) -> (i32, i32) {
    %c0_i32 = arith.constant 0 : i32
    %c0_i32_0 = arith.constant 0 : i32
    %c0_i32_1 = arith.constant 0 : i32
    return %c0_i32, %c0_i32_0 : i32, i32
  }
  func.func @transform_4(%arg0: i32) -> (i32, i32) {
    %c0_i32 = arith.constant 0 : i32
    %c0_i32_0 = arith.constant 0 : i32
    %c0_i32_1 = arith.constant 0 : i32
    return %c0_i32, %c0_i32_0 : i32, i32
  }
}

</mosaic_0001>

<llo_original>
// kernel: dronet_forward.12
$region0: #{dronet_forward.12}
  #allocation0 [shape = 'u32[]', space=smem, size = 0x4, offset = 0x4, fixed_abs, tag = 'smem constant byte address 0x4 - core index']
  #allocation1 [shape = 'u32[144,128]{1,0:T(1,128)}', space=vmem, size = 0x12000, scoped, tag = 'internal scratch']
  %s0 = inlined_call_operand.vmem [shape: bf16[2048,80], index: 0, kind: input, shape index: {}]
  %s1 = inlined_call_operand.vmem [shape: bf16[80,32], index: 1, kind: input, shape index: {}]
  %s2 = inlined_call_operand.vmem [shape: f32[1,32], index: 2, kind: input, shape index: {}]
  %s3 = inlined_call_operand.vmem [shape: f32[2048,32], index: 3, kind: output, shape index: {}]
  %s4 = sld [smem:[#allocation0]]
  $region45: #{dronet_forward.12} parent=0
    _
  %s6 = ssub.s32 1, %s4
  %s7 = scalar_select 0, %s6, %s4
  loop: start=0, step=1, limit=6
  $region2: #{dronet_forward.12} parent=0 // loop_pre_header
    _
  $region3: #{dronet_forward.12} parent=0 // loop_header
    %s9 = sphi 0, %s13
    %p10 = scmp.ge.s32.totalorder %s9, 6
    %s19 = sphi 0, %s21
    %s22 = sphi 0, %s19
    %s23 = sphi 0, %s22
    %s39 = sphi 0, %s23
    %s43 = sphi 0, %s43
    %s45 = sphi 0, %s43
    %s46 = sphi 0, %s45
    %s60 = sphi 0, %s46
    %s64 = sphi 0, %s64
    %s66 = sphi 0, %s64
    %s67 = sphi 0, %s66
    %s81 = sphi 0, %s67
    %s87 = sphi 0, %s89
    %s90 = sphi 0, %s87
    %s91 = sphi 0, %s90
    %s107 = sphi 0, %s91
  $region4: #{dronet_forward.12} parent=0 // loop_header_branch
    %12 = sbr.rel (%p10) target = $region8
  $region5: #{dronet_forward.12} parent=0 // loop_body
    %s14 = ssub.s32 %s9, 1
    %s15 = ssub.s32 %s9, 2
    %s16 = sadd.s32 %s9, 1
    %s17 = ssub.s32 %s9, %s16
    %p18 = scmp.eq.s32.totalorder %s17, 0
    %s20 = sadd.s32 %s19, 1
    %s21 = scalar_select %p18, %s19, %s20
    %p24 = pneg %p18
    %p25 = scmp.eq.s32.totalorder %s9, 3
    %p26 = por %p24, %p25
    %p27 = scmp.ne.s32.totalorder %s19, %s22
    %p28 = scmp.eq.s32.totalorder %s9, 0
    %p29 = por %p27, %p28
    %p30 = scmp.ne.s32.totalorder %s19, %s22
    %p31 = scmp.eq.s32.totalorder %s14, 3
    %p32 = por %p30, %p31
    %p33 = scmp.ne.s32.totalorder %s22, %s23
    %p34 = scmp.eq.s32.totalorder %s14, 0
    %p35 = por %p33, %p34
    %p36 = scmp.ne.s32.totalorder %s22, %s23
    %p37 = scmp.eq.s32.totalorder %s15, 3
    %p38 = por %p36, %p37
    %p40 = scmp.ne.s32.totalorder %s23, %s39
    %p41 = scmp.eq.s32.totalorder %s15, 0
    %p42 = por %p40, %p41
    %s44 = sadd.s32 %s43, 1
    %p47 = scmp.eq.s32.totalorder %s9, 3
    %p48 = scmp.ne.s32.totalorder %s43, %s45
    %p49 = scmp.eq.s32.totalorder %s9, 0
    %p50 = por %p48, %p49
    %p51 = scmp.ne.s32.totalorder %s43, %s45
    %p52 = scmp.eq.s32.totalorder %s14, 3
    %p53 = por %p51, %p52
    %p54 = scmp.ne.s32.totalorder %s45, %s46
    %p55 = scmp.eq.s32.totalorder %s14, 0
    %p56 = por %p54, %p55
    %p57 = scmp.ne.s32.totalorder %s45, %s46
    %p58 = scmp.eq.s32.totalorder %s15, 3
    %p59 = por %p57, %p58
    %p61 = scmp.ne.s32.totalorder %s46, %s60
    %p62 = scmp.eq.s32.totalorder %s15, 0
    %p63 = por %p61, %p62
    %s65 = sadd.s32 %s64, 1
    %p68 = scmp.eq.s32.totalorder %s9, 3
    %p69 = scmp.ne.s32.totalorder %s64, %s66
    %p70 = scmp.eq.s32.totalorder %s9, 0
    %p71 = por %p69, %p70
    %p72 = scmp.ne.s32.totalorder %s64, %s66
    %p73 = scmp.eq.s32.totalorder %s14, 3
    %p74 = por %p72, %p73
    %p75 = scmp.ne.s32.totalorder %s66, %s67
    %p76 = scmp.eq.s32.totalorder %s14, 0
    %p77 = por %p75, %p76
    %p78 = scmp.ne.s32.totalorder %s66, %s67
    %p79 = scmp.eq.s32.totalorder %s15, 3
    %p80 = por %p78, %p79
    %p82 = scmp.ne.s32.totalorder %s67, %s81
    %p83 = scmp.eq.s32.totalorder %s15, 0
    %p84 = por %p82, %p83
    %s85 = ssub.s32 %s9, %s16
    %p86 = scmp.eq.s32.totalorder %s85, 0
    %s88 = sadd.s32 %s87, 1
    %s89 = scalar_select %p86, %s87, %s88
    %p92 = pneg %p86
    %p93 = scmp.eq.s32.totalorder %s9, 3
    %p94 = por %p92, %p93
    %p95 = scmp.ne.s32.totalorder %s87, %s90
    %p96 = scmp.eq.s32.totalorder %s9, 0
    %p97 = por %p95, %p96
    %p98 = scmp.ne.s32.totalorder %s87, %s90
    %p99 = scmp.eq.s32.totalorder %s14, 3
    %p100 = por %p98, %p99
    %p101 = scmp.ne.s32.totalorder %s90, %s91
    %p102 = scmp.eq.s32.totalorder %s14, 0
    %p103 = por %p101, %p102
    %p104 = scmp.ne.s32.totalorder %s90, %s91
    %p105 = scmp.eq.s32.totalorder %s15, 3
    %p106 = por %p104, %p105
    %p108 = scmp.ne.s32.totalorder %s91, %s107
    %p109 = scmp.eq.s32.totalorder %s15, 0
    %p110 = por %p108, %p109
    %p111 = scmp.le.s32.totalorder 1, %s9
    %p112 = scmp.lt.s32.totalorder %s9, 5
    %p113 = pnand %p111, %p112
    %p114 = pneg %p113
    // Predicated region
    $region9: #{dronet_forward.12} parent=5 // pred_check
      _
    $region10: #{dronet_forward.12} parent=5 // pred_check_branch
      %116 = sbr.rel (%p113) target = $region12
    $region11: #{dronet_forward.12} parent=5 // pred_region
      %s117 = ssub.s32 %s9, 1
      // Predicated region
      $region13: #{dronet_forward.12} parent=11 // pred_check
        %p118 = pneg %p56
      $region14: #{dronet_forward.12} parent=11 // pred_check_branch
        %120 = sbr.rel (%p118) target = $region16
      $region15: #{dronet_forward.12} parent=11 // pred_region
        _
      $region16: #{dronet_forward.12} parent=11 // pred_fallthru
        _
      // Predicated region
      $region17: #{dronet_forward.12} parent=11 // pred_check
        %p121 = pneg %p77
      $region18: #{dronet_forward.12} parent=11 // pred_check_branch
        %123 = sbr.rel (%p121) target = $region20
      $region19: #{dronet_forward.12} parent=11 // pred_region
        _
      $region20: #{dronet_forward.12} parent=11 // pred_fallthru
        _
    $region12: #{dronet_forward.12} parent=5 // pred_fallthru
      _
    %p124 = scmp.lt.s32.totalorder %s9, 4
    // Predicated region
    $region21: #{dronet_forward.12} parent=5 // pred_check
      %p125 = pneg %p124
    $region22: #{dronet_forward.12} parent=5 // pred_check_branch
      %127 = sbr.rel (%p125) target = $region24
    $region23: #{dronet_forward.12} parent=5 // pred_region
      // Predicated region
      $region25: #{dronet_forward.12} parent=23 // pred_check
        %p128 = pneg %p29
      $region26: #{dronet_forward.12} parent=23 // pred_check_branch
        %130 = sbr.rel (%p128) target = $region28
      $region27: #{dronet_forward.12} parent=23 // pred_region
        %s131 = smul.u32 64, %s9
        %p132 = scmp.lt.s32.totalorder %s131, 255
        %s133 = scalar_select %p132, %s131, 255
        %s134 = smul.addr %s133, 4
        %s135 = scalar_lea.vmem %s0, %s134
        %s136 = smul.u32 64, %s9
      $region28: #{dronet_forward.12} parent=23 // pred_fallthru
        _
    $region24: #{dronet_forward.12} parent=5 // pred_fallthru
      _
    %p137 = scmp.le.s32.totalorder 1, %s9
    %p138 = scmp.lt.s32.totalorder %s9, 5
    %p139 = pnand %p137, %p138
    %p140 = pneg %p139
    // Predicated region
    $region29: #{dronet_forward.12} parent=5 // pred_check
      _
    $region30: #{dronet_forward.12} parent=5 // pred_check_branch
      %142 = sbr.rel (%p139) target = $region32
    $region31: #{dronet_forward.12} parent=5 // pred_region
      %s143 = ssub.s32 %s9, 1
      %s144 = smul.u32 64, %s14
      %p145 = scmp.lt.s32.totalorder %s144, 255
      %s146 = scalar_select %p145, %s144, 255
      %s147 = smul.addr %s146, 4
      %s148 = scalar_lea.vmem %s0, %s147
      %p149 = pneg %p35
      %p150 = pneg %p32
      %p151 = pneg %p56
      %p152 = pneg %p53
      %p153 = pneg %p77
      %p154 = pneg %p74
      %p155 = pneg %p103
      %p156 = pneg %p100
      %s157 = smul.u32 64, %s14
      %p158 = scmp.lt.s32.totalorder %s157, 255
      %s159 = scalar_select %p158, %s157, 255
      %s160 = smul.addr %s159, 8
      %s161 = scalar_lea.vmem %s3, %s160
      %s162 = smul.u32 64, %s14
      %p163 = scmp.lt.s32.totalorder %s162, 255
      %s164 = scalar_select %p163, %s162, 255
      %s165 = smul.addr %s164, 4
      %s166 = scalar_lea.vmem %s0, %s165
      %s167 = smul.u32 64, %s14
      %s168 = smul.u32 64, %s14
      %p169 = scmp.lt.s32.totalorder %s168, 255
      %s170 = scalar_select %p169, %s168, 255
      %s171 = smul.addr %s170, 8
      %s172 = scalar_lea.vmem %s3, %s171
      %s173 = smul.u32 64, %s14
      %v175 = vld [vmem:[%s166] sm:$0xf]
      %v176 = vld [vmem:[%s166 + $0x4] sm:$0xf]
      %v177 = vld [vmem:[%s166 + $0x8] sm:$0xf]
      %v178 = vld [vmem:[%s166 + $0xc] sm:$0xf]
      %v179 = vld [vmem:[%s166 + $0x10] sm:$0xf]
      %v180 = vld [vmem:[%s166 + $0x14] sm:$0xf]
      %v181 = vld [vmem:[%s166 + $0x18] sm:$0xf]
      %v182 = vld [vmem:[%s166 + $0x1c] sm:$0xf]
      %v183 = vld [vmem:[%s166 + $0x20] sm:$0xf]
      %v184 = vld [vmem:[%s166 + $0x24] sm:$0xf]
      %v185 = vld [vmem:[%s166 + $0x28] sm:$0xf]
      %v186 = vld [vmem:[%s166 + $0x2c] sm:$0xf]
      %v187 = vld [vmem:[%s166 + $0x30] sm:$0xf]
      %v188 = vld [vmem:[%s166 + $0x34] sm:$0xf]
      %v189 = vld [vmem:[%s166 + $0x38] sm:$0xf]
      %v190 = vld [vmem:[%s166 + $0x3c] sm:$0xf]
      %v191 = vld [vmem:[%s166 + $0x40] sm:$0xf]
      %v192 = vld [vmem:[%s166 + $0x44] sm:$0xf]
      %v193 = vld [vmem:[%s166 + $0x48] sm:$0xf]
      %v194 = vld [vmem:[%s166 + $0x4c] sm:$0xf]
      %v195 = vld [vmem:[%s166 + $0x50] sm:$0xf]
      %v196 = vld [vmem:[%s166 + $0x54] sm:$0xf]
      %v197 = vld [vmem:[%s166 + $0x58] sm:$0xf]
      %v198 = vld [vmem:[%s166 + $0x5c] sm:$0xf]
      %v199 = vld [vmem:[%s166 + $0x60] sm:$0xf]
      %v200 = vld [vmem:[%s166 + $0x64] sm:$0xf]
      %v201 = vld [vmem:[%s166 + $0x68] sm:$0xf]
      %v202 = vld [vmem:[%s166 + $0x6c] sm:$0xf]
      %v203 = vld [vmem:[%s166 + $0x70] sm:$0xf]
      %v204 = vld [vmem:[%s166 + $0x74] sm:$0xf]
      %v205 = vld [vmem:[%s166 + $0x78] sm:$0xf]
      %v206 = vld [vmem:[%s166 + $0x7c] sm:$0xf]
      %v207 = vld [vmem:[%s166 + $0x80] sm:$0xf]
      %v208 = vld [vmem:[%s166 + $0x84] sm:$0xf]
      %v209 = vld [vmem:[%s166 + $0x88] sm:$0xf]
      %v210 = vld [vmem:[%s166 + $0x8c] sm:$0xf]
      %v211 = vld [vmem:[%s166 + $0x90] sm:$0xf]
      %v212 = vld [vmem:[%s166 + $0x94] sm:$0xf]
      %v213 = vld [vmem:[%s166 + $0x98] sm:$0xf]
      %v214 = vld [vmem:[%s166 + $0x9c] sm:$0xf]
      %v215 = vld [vmem:[%s166 + $0xa0] sm:$0xf]
      %v216 = vld [vmem:[%s166 + $0xa4] sm:$0xf]
      %v217 = vld [vmem:[%s166 + $0xa8] sm:$0xf]
      %v218 = vld [vmem:[%s166 + $0xac] sm:$0xf]
      %v219 = vld [vmem:[%s166 + $0xb0] sm:$0xf]
      %v220 = vld [vmem:[%s166 + $0xb4] sm:$0xf]
      %v221 = vld [vmem:[%s166 + $0xb8] sm:$0xf]
      %v222 = vld [vmem:[%s166 + $0xbc] sm:$0xf]
      %v223 = vld [vmem:[%s166 + $0xc0] sm:$0xf]
      %v224 = vld [vmem:[%s166 + $0xc4] sm:$0xf]
      %v225 = vld [vmem:[%s166 + $0xc8] sm:$0xf]
      %v226 = vld [vmem:[%s166 + $0xcc] sm:$0xf]
      %v227 = vld [vmem:[%s166 + $0xd0] sm:$0xf]
      %v228 = vld [vmem:[%s166 + $0xd4] sm:$0xf]
      %v229 = vld [vmem:[%s166 + $0xd8] sm:$0xf]
      %v230 = vld [vmem:[%s166 + $0xdc] sm:$0xf]
      %v231 = vld [vmem:[%s166 + $0xe0] sm:$0xf]
      %v232 = vld [vmem:[%s166 + $0xe4] sm:$0xf]
      %v233 = vld [vmem:[%s166 + $0xe8] sm:$0xf]
      %v234 = vld [vmem:[%s166 + $0xec] sm:$0xf]
      %v235 = vld [vmem:[%s166 + $0xf0] sm:$0xf]
      %v236 = vld [vmem:[%s166 + $0xf4] sm:$0xf]
      %v237 = vld [vmem:[%s166 + $0xf8] sm:$0xf]
      %v238 = vld [vmem:[%s166 + $0xfc] sm:$0xf]
      %v239 = vld [vmem:[%s1] sm:$0xf]
      %v240 = vld [vmem:[%s1 + $0x4] sm:$0xf]
      %v241 = vld [vmem:[%s1 + $0x8] sm:$0xf]
      %v242 = vld [vmem:[%s1 + $0xc] sm:$0xf]
      %v243 = vld [vmem:[%s1 + $0x10] sm:$0xf]
      %v244 = vld [vmem:[%s1 + $0x14] sm:$0xf]
      %v245 = vld [vmem:[%s1 + $0x18] sm:$0xf]
      %v246 = vld [vmem:[%s1 + $0x1c] sm:$0xf]
      %v247 = vld [vmem:[%s1 + $0x20] sm:$0xf]
      %v248 = vld [vmem:[%s1 + $0x24] sm:$0xf]
      %v249 = vld [vmem:[%s2] sm:$0x1]
      %v251 = vlaneseq
      %v252 = vshrl.u32 %v251, 7
      %v253 = vsub.s32 0, %v252
      %v254 = vrot.slane %v249, %v253
      %v320 = vunpack.c.l.b16 %v175
      %v321 = vunpack.c.l.b16 %v176
      %v322 = vunpack.c.l.b16 %v177
      %v323 = vunpack.c.l.b16 %v178
      %v324 = vunpack.c.l.b16 %v179
      %v325 = vunpack.c.l.b16 %v180
      %v326 = vunpack.c.l.b16 %v181
      %v327 = vunpack.c.l.b16 %v182
      %v328 = vunpack.c.l.b16 %v183
      %v329 = vunpack.c.l.b16 %v184
      %v330 = vunpack.c.l.b16 %v185
      %v331 = vunpack.c.l.b16 %v186
      %v332 = vunpack.c.l.b16 %v187
      %v333 = vunpack.c.l.b16 %v188
      %v334 = vunpack.c.l.b16 %v189
      %v335 = vunpack.c.l.b16 %v190
      %v336 = vunpack.c.l.b16 %v191
      %v337 = vunpack.c.l.b16 %v192
      %v338 = vunpack.c.l.b16 %v193
      %v339 = vunpack.c.l.b16 %v194
      %v340 = vunpack.c.l.b16 %v195
      %v341 = vunpack.c.l.b16 %v196
      %v342 = vunpack.c.l.b16 %v197
      %v343 = vunpack.c.l.b16 %v198
      %v344 = vunpack.c.l.b16 %v199
      %v345 = vunpack.c.l.b16 %v200
      %v346 = vunpack.c.l.b16 %v201
      %v347 = vunpack.c.l.b16 %v202
      %v348 = vunpack.c.l.b16 %v203
      %v349 = vunpack.c.l.b16 %v204
      %v350 = vunpack.c.l.b16 %v205
      %v351 = vunpack.c.l.b16 %v206
      %v352 = vunpack.c.l.b16 %v207
      %v353 = vunpack.c.l.b16 %v208
      %v354 = vunpack.c.l.b16 %v209
      %v355 = vunpack.c.l.b16 %v210
      %v356 = vunpack.c.l.b16 %v211
      %v357 = vunpack.c.l.b16 %v212
      %v358 = vunpack.c.l.b16 %v213
      %v359 = vunpack.c.l.b16 %v214
      %v360 = vunpack.c.l.b16 %v215
      %v361 = vunpack.c.l.b16 %v216
      %v362 = vunpack.c.l.b16 %v217
      %v363 = vunpack.c.l.b16 %v218
      %v364 = vunpack.c.l.b16 %v219
      %v365 = vunpack.c.l.b16 %v220
      %v366 = vunpack.c.l.b16 %v221
      %v367 = vunpack.c.l.b16 %v222
      %v368 = vunpack.c.l.b16 %v223
      %v369 = vunpack.c.l.b16 %v224
      %v370 = vunpack.c.l.b16 %v225
      %v371 = vunpack.c.l.b16 %v226
      %v372 = vunpack.c.l.b16 %v227
      %v373 = vunpack.c.l.b16 %v228
      %v374 = vunpack.c.l.b16 %v229
      %v375 = vunpack.c.l.b16 %v230
      %v376 = vunpack.c.l.b16 %v231
      %v377 = vunpack.c.l.b16 %v232
      %v378 = vunpack.c.l.b16 %v233
      %v379 = vunpack.c.l.b16 %v234
      %v380 = vunpack.c.l.b16 %v235
      %v381 = vunpack.c.l.b16 %v236
      %v382 = vunpack.c.l.b16 %v237
      %v383 = vunpack.c.l.b16 %v238
      %v384 = vpack.c.b16 %v321, %v320
      %v385 = vpack.c.b16 %v323, %v322
      %v386 = vpack.c.b16 %v325, %v324
      %v387 = vpack.c.b16 %v327, %v326
      %v388 = vpack.c.b16 %v329, %v328
      %v389 = vpack.c.b16 %v331, %v330
      %v390 = vpack.c.b16 %v333, %v332
      %v391 = vpack.c.b16 %v335, %v334
      %v392 = vpack.c.b16 %v337, %v336
      %v393 = vpack.c.b16 %v339, %v338
      %v394 = vpack.c.b16 %v341, %v340
      %v395 = vpack.c.b16 %v343, %v342
      %v396 = vpack.c.b16 %v345, %v344
      %v397 = vpack.c.b16 %v347, %v346
      %v398 = vpack.c.b16 %v349, %v348
      %v399 = vpack.c.b16 %v351, %v350
      %v400 = vpack.c.b16 %v353, %v352
      %v401 = vpack.c.b16 %v355, %v354
      %v402 = vpack.c.b16 %v357, %v356
      %v403 = vpack.c.b16 %v359, %v358
      %v404 = vpack.c.b16 %v361, %v360
      %v405 = vpack.c.b16 %v363, %v362
      %v406 = vpack.c.b16 %v365, %v364
      %v407 = vpack.c.b16 %v367, %v366
      %v408 = vpack.c.b16 %v369, %v368
      %v409 = vpack.c.b16 %v371, %v370
      %v410 = vpack.c.b16 %v373, %v372
      %v411 = vpack.c.b16 %v375, %v374
      %v412 = vpack.c.b16 %v377, %v376
      %v413 = vpack.c.b16 %v379, %v378
      %v414 = vpack.c.b16 %v381, %v380
      %v415 = vpack.c.b16 %v383, %v382
      %v426 = vunpack.c.l.b16 %v239
      %v427 = vunpack.c.l.b16 %v240
      %v428 = vunpack.c.l.b16 %v241
      %v429 = vunpack.c.l.b16 %v242
      %v430 = vunpack.c.l.b16 %v243
      %v431 = vunpack.c.l.b16 %v244
      %v432 = vunpack.c.l.b16 %v245
      %v433 = vunpack.c.l.b16 %v246
      %v434 = vunpack.c.l.b16 %v247
      %v435 = vunpack.c.l.b16 %v248
      %v436 = vpack.c.b16 %v427, %v426
      %v437 = vpack.c.b16 %v429, %v428
      %v438 = vpack.c.b16 %v431, %v430
      %v439 = vpack.c.b16 %v433, %v432
      %v440 = vpack.c.b16 %v435, %v434
      %vm446 = vcmask 654336
      %v448 = vsel %vm446, %v384, 0
      %v451 = vsel %vm446, %v385, 0
      %v454 = vsel %vm446, %v386, 0
      %v457 = vsel %vm446, %v387, 0
      %v460 = vsel %vm446, %v388, 0
      %v463 = vsel %vm446, %v389, 0
      %v466 = vsel %vm446, %v390, 0
      %v469 = vsel %vm446, %v391, 0
      %v472 = vsel %vm446, %v392, 0
      %v475 = vsel %vm446, %v393, 0
      %v478 = vsel %vm446, %v394, 0
      %v481 = vsel %vm446, %v395, 0
      %v484 = vsel %vm446, %v396, 0
      %v487 = vsel %vm446, %v397, 0
      %v490 = vsel %vm446, %v398, 0
      %v493 = vsel %vm446, %v399, 0
      %v496 = vsel %vm446, %v400, 0
      %v499 = vsel %vm446, %v401, 0
      %v502 = vsel %vm446, %v402, 0
      %v505 = vsel %vm446, %v403, 0
      %v508 = vsel %vm446, %v404, 0
      %v511 = vsel %vm446, %v405, 0
      %v514 = vsel %vm446, %v406, 0
      %v517 = vsel %vm446, %v407, 0
      %v520 = vsel %vm446, %v408, 0
      %v523 = vsel %vm446, %v409, 0
      %v526 = vsel %vm446, %v410, 0
      %v529 = vsel %vm446, %v411, 0
      %v532 = vsel %vm446, %v412, 0
      %v535 = vsel %vm446, %v413, 0
      %v538 = vsel %vm446, %v414, 0
      %v541 = vsel %vm446, %v415, 0
      %543 = vmatprep.subr.bf16.mxu0 0
      %544 = vmatpush1.bf16.msra.mxu0 0
      %545 = vmatprep.subr.bf16.mxu0 0
      %546 = vmatpush1.bf16.msra.mxu0 0
      %547 = vmatprep.subr.bf16.mxu0 0
      %548 = vmatpush1.bf16.msra.mxu0 0
      %549 = vmatprep.subr.bf16.mxu0 0
      %550 = vmatpush1.bf16.msra.mxu0 %v440
      %551 = vmatprep.subr.bf16.mxu0 0
      %552 = vmatpush1.bf16.msra.mxu0 %v439
      %553 = vmatprep.subr.bf16.mxu0 0
      %554 = vmatpush1.bf16.msra.mxu0 %v438
      %555 = vmatprep.subr.bf16.mxu0 0
      %556 = vmatpush1.bf16.msra.mxu0 %v437
      %557 = vmatprep.subr.bf16.mxu0 0
      %558 = vmatpush1.bf16.msra.mxu0 %v436
      %559 = vmatprep.subr.bf16.mxu0 0
      %560 = vmatpush2.bf16.msra.mxu0 0
      %561 = vmatprep.subr.bf16.mxu0 0
      %562 = vmatpush2.bf16.msra.mxu0 0
      %563 = vmatprep.subr.bf16.mxu0 0
      %564 = vmatpush2.bf16.msra.mxu0 0
      %565 = vmatprep.subr.bf16.mxu0 0
      %566 = vmatpush2.bf16.msra.mxu0 0
      %567 = vmatprep.subr.bf16.mxu0 0
      %568 = vmatpush2.bf16.msra.mxu0 0
      %569 = vmatprep.subr.bf16.mxu0 0
      %570 = vmatpush2.bf16.msra.mxu0 0
      %571 = vmatprep.subr.bf16.mxu0 0
      %572 = vmatpush2.bf16.msra.mxu0 0
      %573 = vmatprep.subr.bf16.mxu0 0
      %574 = vmatpush2.bf16.msra.mxu0 0
      %575 = vmatprep.mubr.bf16.mxu0 0
      %576 = vmatmul.mubr.bf16.gmra.mxu0 %v448
      %v577 = vpop.f32.mrf.mxu0
      %v578 = vadd.f32 %v254, %v577
      %v579 = vpop.f32.mrf.mxu0
      %v580 = vpop.f32.mrf.mxu0
      %v581 = vadd.f32 %v254, %v580
      %v582 = vpop.f32.mrf.mxu0
      %583 = vmatprep.mubr.bf16.mxu0 0
      %584 = vmatmul.mubr.bf16.gmra.mxu0 %v451
      %v585 = vpop.f32.mrf.mxu0
      %v586 = vadd.f32 %v254, %v585
      %v587 = vpop.f32.mrf.mxu0
      %v588 = vpop.f32.mrf.mxu0
      %v589 = vadd.f32 %v254, %v588
      %v590 = vpop.f32.mrf.mxu0
      %591 = vmatprep.mubr.bf16.mxu0 0
      %592 = vmatmul.mubr.bf16.gmra.mxu0 %v454
      %v593 = vpop.f32.mrf.mxu0
      %v594 = vadd.f32 %v254, %v593
      %v595 = vpop.f32.mrf.mxu0
      %v596 = vpop.f32.mrf.mxu0
      %v597 = vadd.f32 %v254, %v596
      %v598 = vpop.f32.mrf.mxu0
      %599 = vmatprep.mubr.bf16.mxu0 0
      %600 = vmatmul.mubr.bf16.gmra.mxu0 %v457
      %v601 = vpop.f32.mrf.mxu0
      %v602 = vadd.f32 %v254, %v601
      %v603 = vpop.f32.mrf.mxu0
      %v604 = vpop.f32.mrf.mxu0
      %v605 = vadd.f32 %v254, %v604
      %v606 = vpop.f32.mrf.mxu0
      %607 = vmatprep.mubr.bf16.mxu0 0
      %608 = vmatmul.mubr.bf16.gmra.mxu0 %v460
      %v609 = vpop.f32.mrf.mxu0
      %v610 = vadd.f32 %v254, %v609
      %v611 = vpop.f32.mrf.mxu0
      %v612 = vpop.f32.mrf.mxu0
      %v613 = vadd.f32 %v254, %v612
      %v614 = vpop.f32.mrf.mxu0
      %615 = vmatprep.mubr.bf16.mxu0 0
      %616 = vmatmul.mubr.bf16.gmra.mxu0 %v463
      %v617 = vpop.f32.mrf.mxu0
      %v618 = vadd.f32 %v254, %v617
      %v619 = vpop.f32.mrf.mxu0
      %v620 = vpop.f32.mrf.mxu0
      %v621 = vadd.f32 %v254, %v620
      %v622 = vpop.f32.mrf.mxu0
      %623 = vmatprep.mubr.bf16.mxu0 0
      %624 = vmatmul.mubr.bf16.gmra.mxu0 %v466
      %v625 = vpop.f32.mrf.mxu0
      %v626 = vadd.f32 %v254, %v625
      %v627 = vpop.f32.mrf.mxu0
      %v628 = vpop.f32.mrf.mxu0
      %v629 = vadd.f32 %v254, %v628
      %v630 = vpop.f32.mrf.mxu0
      %631 = vmatprep.mubr.bf16.mxu0 0
      %632 = vmatmul.mubr.bf16.gmra.mxu0 %v469
      %v633 = vpop.f32.mrf.mxu0
      %v634 = vadd.f32 %v254, %v633
      %v635 = vpop.f32.mrf.mxu0
      %v636 = vpop.f32.mrf.mxu0
      %v637 = vadd.f32 %v254, %v636
      %v638 = vpop.f32.mrf.mxu0
      %639 = vmatprep.mubr.bf16.mxu0 0
      %640 = vmatmul.mubr.bf16.gmra.mxu0 %v472
      %v641 = vpop.f32.mrf.mxu0
      %v642 = vadd.f32 %v254, %v641
      %v643 = vpop.f32.mrf.mxu0
      %v644 = vpop.f32.mrf.mxu0
      %v645 = vadd.f32 %v254, %v644
      %v646 = vpop.f32.mrf.mxu0
      %647 = vmatprep.mubr.bf16.mxu0 0
      %648 = vmatmul.mubr.bf16.gmra.mxu0 %v475
      %v649 = vpop.f32.mrf.mxu0
      %v650 = vadd.f32 %v254, %v649
      %v651 = vpop.f32.mrf.mxu0
      %v652 = vpop.f32.mrf.mxu0
      %v653 = vadd.f32 %v254, %v652
      %v654 = vpop.f32.mrf.mxu0
      %655 = vmatprep.mubr.bf16.mxu0 0
      %656 = vmatmul.mubr.bf16.gmra.mxu0 %v478
      %v657 = vpop.f32.mrf.mxu0
      %v658 = vadd.f32 %v254, %v657
      %v659 = vpop.f32.mrf.mxu0
      %v660 = vpop.f32.mrf.mxu0
      %v661 = vadd.f32 %v254, %v660
      %v662 = vpop.f32.mrf.mxu0
      %663 = vmatprep.mubr.bf16.mxu0 0
      %664 = vmatmul.mubr.bf16.gmra.mxu0 %v481
      %v665 = vpop.f32.mrf.mxu0
      %v666 = vadd.f32 %v254, %v665
      %v667 = vpop.f32.mrf.mxu0
      %v668 = vpop.f32.mrf.mxu0
      %v669 = vadd.f32 %v254, %v668
      %v670 = vpop.f32.mrf.mxu0
      %671 = vmatprep.mubr.bf16.mxu0 0
      %672 = vmatmul.mubr.bf16.gmra.mxu0 %v484
      %v673 = vpop.f32.mrf.mxu0
      %v674 = vadd.f32 %v254, %v673
      %v675 = vpop.f32.mrf.mxu0
      %v676 = vpop.f32.mrf.mxu0
      %v677 = vadd.f32 %v254, %v676
      %v678 = vpop.f32.mrf.mxu0
      %679 = vmatprep.mubr.bf16.mxu0 0
      %680 = vmatmul.mubr.bf16.gmra.mxu0 %v487
      %v681 = vpop.f32.mrf.mxu0
      %v682 = vadd.f32 %v254, %v681
      %v683 = vpop.f32.mrf.mxu0
      %v684 = vpop.f32.mrf.mxu0
      %v685 = vadd.f32 %v254, %v684
      %v686 = vpop.f32.mrf.mxu0
      %687 = vmatprep.mubr.bf16.mxu0 0
      %688 = vmatmul.mubr.bf16.gmra.mxu0 %v490
      %v689 = vpop.f32.mrf.mxu0
      %v690 = vadd.f32 %v254, %v689
      %v691 = vpop.f32.mrf.mxu0
      %v692 = vpop.f32.mrf.mxu0
      %v693 = vadd.f32 %v254, %v692
      %v694 = vpop.f32.mrf.mxu0
      %695 = vmatprep.mubr.bf16.mxu0 0
      %696 = vmatmul.mubr.bf16.gmra.mxu0 %v493
      %v697 = vpop.f32.mrf.mxu0
      %v698 = vadd.f32 %v254, %v697
      %v699 = vpop.f32.mrf.mxu0
      %v700 = vpop.f32.mrf.mxu0
      %v701 = vadd.f32 %v254, %v700
      %v702 = vpop.f32.mrf.mxu0
      %703 = vmatprep.mubr.bf16.mxu0 0
      %704 = vmatmul.mubr.bf16.gmra.mxu0 %v496
      %v705 = vpop.f32.mrf.mxu0
      %v706 = vadd.f32 %v254, %v705
      %v707 = vpop.f32.mrf.mxu0
      %v708 = vpop.f32.mrf.mxu0
      %v709 = vadd.f32 %v254, %v708
      %v710 = vpop.f32.mrf.mxu0
      %711 = vmatprep.mubr.bf16.mxu0 0
      %712 = vmatmul.mubr.bf16.gmra.mxu0 %v499
      %v713 = vpop.f32.mrf.mxu0
      %v714 = vadd.f32 %v254, %v713
      %v715 = vpop.f32.mrf.mxu0
      %v716 = vpop.f32.mrf.mxu0
      %v717 = vadd.f32 %v254, %v716
      %v718 = vpop.f32.mrf.mxu0
      %719 = vmatprep.mubr.bf16.mxu0 0
      %720 = vmatmul.mubr.bf16.gmra.mxu0 %v502
      %v721 = vpop.f32.mrf.mxu0
      %v722 = vadd.f32 %v254, %v721
      %v723 = vpop.f32.mrf.mxu0
      %v724 = vpop.f32.mrf.mxu0
      %v725 = vadd.f32 %v254, %v724
      %v726 = vpop.f32.mrf.mxu0
      %727 = vmatprep.mubr.bf16.mxu0 0
      %728 = vmatmul.mubr.bf16.gmra.mxu0 %v505
      %v729 = vpop.f32.mrf.mxu0
      %v730 = vadd.f32 %v254, %v729
      %v731 = vpop.f32.mrf.mxu0
      %v732 = vpop.f32.mrf.mxu0
      %v733 = vadd.f32 %v254, %v732
      %v734 = vpop.f32.mrf.mxu0
      %735 = vmatprep.mubr.bf16.mxu0 0
      %736 = vmatmul.mubr.bf16.gmra.mxu0 %v508
      %v737 = vpop.f32.mrf.mxu0
      %v738 = vadd.f32 %v254, %v737
      %v739 = vpop.f32.mrf.mxu0
      %v740 = vpop.f32.mrf.mxu0
      %v741 = vadd.f32 %v254, %v740
      %v742 = vpop.f32.mrf.mxu0
      %743 = vmatprep.mubr.bf16.mxu0 0
      %744 = vmatmul.mubr.bf16.gmra.mxu0 %v511
      %v745 = vpop.f32.mrf.mxu0
      %v746 = vadd.f32 %v254, %v745
      %v747 = vpop.f32.mrf.mxu0
      %v748 = vpop.f32.mrf.mxu0
      %v749 = vadd.f32 %v254, %v748
      %v750 = vpop.f32.mrf.mxu0
      %751 = vmatprep.mubr.bf16.mxu0 0
      %752 = vmatmul.mubr.bf16.gmra.mxu0 %v514
      %v753 = vpop.f32.mrf.mxu0
      %v754 = vadd.f32 %v254, %v753
      %v755 = vpop.f32.mrf.mxu0
      %v756 = vpop.f32.mrf.mxu0
      %v757 = vadd.f32 %v254, %v756
      %v758 = vpop.f32.mrf.mxu0
      %759 = vmatprep.mubr.bf16.mxu0 0
      %760 = vmatmul.mubr.bf16.gmra.mxu0 %v517
      %v761 = vpop.f32.mrf.mxu0
      %v762 = vadd.f32 %v254, %v761
      %v763 = vpop.f32.mrf.mxu0
      %v764 = vpop.f32.mrf.mxu0
      %v765 = vadd.f32 %v254, %v764
      %v766 = vpop.f32.mrf.mxu0
      %767 = vmatprep.mubr.bf16.mxu0 0
      %768 = vmatmul.mubr.bf16.gmra.mxu0 %v520
      %v769 = vpop.f32.mrf.mxu0
      %v770 = vadd.f32 %v254, %v769
      %v771 = vpop.f32.mrf.mxu0
      %v772 = vpop.f32.mrf.mxu0
      %v773 = vadd.f32 %v254, %v772
      %v774 = vpop.f32.mrf.mxu0
      %775 = vmatprep.mubr.bf16.mxu0 0
      %776 = vmatmul.mubr.bf16.gmra.mxu0 %v523
      %v777 = vpop.f32.mrf.mxu0
      %v778 = vadd.f32 %v254, %v777
      %v779 = vpop.f32.mrf.mxu0
      %v780 = vpop.f32.mrf.mxu0
      %v781 = vadd.f32 %v254, %v780
      %v782 = vpop.f32.mrf.mxu0
      %783 = vmatprep.mubr.bf16.mxu0 0
      %784 = vmatmul.mubr.bf16.gmra.mxu0 %v526
      %v785 = vpop.f32.mrf.mxu0
      %v786 = vadd.f32 %v254, %v785
      %v787 = vpop.f32.mrf.mxu0
      %v788 = vpop.f32.mrf.mxu0
      %v789 = vadd.f32 %v254, %v788
      %v790 = vpop.f32.mrf.mxu0
      %791 = vmatprep.mubr.bf16.mxu0 0
      %792 = vmatmul.mubr.bf16.gmra.mxu0 %v529
      %v793 = vpop.f32.mrf.mxu0
      %v794 = vadd.f32 %v254, %v793
      %v795 = vpop.f32.mrf.mxu0
      %v796 = vpop.f32.mrf.mxu0
      %v797 = vadd.f32 %v254, %v796
      %v798 = vpop.f32.mrf.mxu0
      %799 = vmatprep.mubr.bf16.mxu0 0
      %800 = vmatmul.mubr.bf16.gmra.mxu0 %v532
      %v801 = vpop.f32.mrf.mxu0
      %v802 = vadd.f32 %v254, %v801
      %v803 = vpop.f32.mrf.mxu0
      %v804 = vpop.f32.mrf.mxu0
      %v805 = vadd.f32 %v254, %v804
      %v806 = vpop.f32.mrf.mxu0
      %807 = vmatprep.mubr.bf16.mxu0 0
      %808 = vmatmul.mubr.bf16.gmra.mxu0 %v535
      %v809 = vpop.f32.mrf.mxu0
      %v810 = vadd.f32 %v254, %v809
      %v811 = vpop.f32.mrf.mxu0
      %v812 = vpop.f32.mrf.mxu0
      %v813 = vadd.f32 %v254, %v812
      %v814 = vpop.f32.mrf.mxu0
      %815 = vmatprep.mubr.bf16.mxu0 0
      %816 = vmatmul.mubr.bf16.gmra.mxu0 %v538
      %v817 = vpop.f32.mrf.mxu0
      %v818 = vadd.f32 %v254, %v817
      %v819 = vpop.f32.mrf.mxu0
      %v820 = vpop.f32.mrf.mxu0
      %v821 = vadd.f32 %v254, %v820
      %v822 = vpop.f32.mrf.mxu0
      %823 = vmatprep.mubr.bf16.mxu0 0
      %824 = vmatmul.mubr.bf16.gmra.mxu0 %v541
      %v825 = vpop.f32.mrf.mxu0
      %v826 = vadd.f32 %v254, %v825
      %v827 = vpop.f32.mrf.mxu0
      %v828 = vpop.f32.mrf.mxu0
      %v829 = vadd.f32 %v254, %v828
      %v830 = vpop.f32.mrf.mxu0
      %831 = vdwg.mxu0
      %vm832 = vcmask 261120
      %833 = vst.msk [vmem:[%s172] sm:$0xff] %vm832, %v578
      %834 = vst.msk [vmem:[%s172 + $0x8] sm:$0xff] %vm832, %v581
      %835 = vst.msk [vmem:[%s172 + $0x10] sm:$0xff] %vm832, %v586
      %836 = vst.msk [vmem:[%s172 + $0x18] sm:$0xff] %vm832, %v589
      %837 = vst.msk [vmem:[%s172 + $0x20] sm:$0xff] %vm832, %v594
      %838 = vst.msk [vmem:[%s172 + $0x28] sm:$0xff] %vm832, %v597
      %839 = vst.msk [vmem:[%s172 + $0x30] sm:$0xff] %vm832, %v602
      %840 = vst.msk [vmem:[%s172 + $0x38] sm:$0xff] %vm832, %v605
      %841 = vst.msk [vmem:[%s172 + $0x40] sm:$0xff] %vm832, %v610
      %842 = vst.msk [vmem:[%s172 + $0x48] sm:$0xff] %vm832, %v613
      %843 = vst.msk [vmem:[%s172 + $0x50] sm:$0xff] %vm832, %v618
      %844 = vst.msk [vmem:[%s172 + $0x58] sm:$0xff] %vm832, %v621
      %845 = vst.msk [vmem:[%s172 + $0x60] sm:$0xff] %vm832, %v626
      %846 = vst.msk [vmem:[%s172 + $0x68] sm:$0xff] %vm832, %v629
      %847 = vst.msk [vmem:[%s172 + $0x70] sm:$0xff] %vm832, %v634
      %848 = vst.msk [vmem:[%s172 + $0x78] sm:$0xff] %vm832, %v637
      %849 = vst.msk [vmem:[%s172 + $0x80] sm:$0xff] %vm832, %v642
      %850 = vst.msk [vmem:[%s172 + $0x88] sm:$0xff] %vm832, %v645
      %851 = vst.msk [vmem:[%s172 + $0x90] sm:$0xff] %vm832, %v650
      %852 = vst.msk [vmem:[%s172 + $0x98] sm:$0xff] %vm832, %v653
      %853 = vst.msk [vmem:[%s172 + $0xa0] sm:$0xff] %vm832, %v658
      %854 = vst.msk [vmem:[%s172 + $0xa8] sm:$0xff] %vm832, %v661
      %855 = vst.msk [vmem:[%s172 + $0xb0] sm:$0xff] %vm832, %v666
      %856 = vst.msk [vmem:[%s172 + $0xb8] sm:$0xff] %vm832, %v669
      %857 = vst.msk [vmem:[%s172 + $0xc0] sm:$0xff] %vm832, %v674
      %858 = vst.msk [vmem:[%s172 + $0xc8] sm:$0xff] %vm832, %v677
      %859 = vst.msk [vmem:[%s172 + $0xd0] sm:$0xff] %vm832, %v682
      %860 = vst.msk [vmem:[%s172 + $0xd8] sm:$0xff] %vm832, %v685
      %861 = vst.msk [vmem:[%s172 + $0xe0] sm:$0xff] %vm832, %v690
      %862 = vst.msk [vmem:[%s172 + $0xe8] sm:$0xff] %vm832, %v693
      %863 = vst.msk [vmem:[%s172 + $0xf0] sm:$0xff] %vm832, %v698
      %864 = vst.msk [vmem:[%s172 + $0xf8] sm:$0xff] %vm832, %v701
      %865 = vst.msk [vmem:[%s172 + $0x100] sm:$0xff] %vm832, %v706
      %866 = vst.msk [vmem:[%s172 + $0x108] sm:$0xff] %vm832, %v709
      %867 = vst.msk [vmem:[%s172 + $0x110] sm:$0xff] %vm832, %v714
      %868 = vst.msk [vmem:[%s172 + $0x118] sm:$0xff] %vm832, %v717
      %869 = vst.msk [vmem:[%s172 + $0x120] sm:$0xff] %vm832, %v722
      %870 = vst.msk [vmem:[%s172 + $0x128] sm:$0xff] %vm832, %v725
      %871 = vst.msk [vmem:[%s172 + $0x130] sm:$0xff] %vm832, %v730
      %872 = vst.msk [vmem:[%s172 + $0x138] sm:$0xff] %vm832, %v733
      %873 = vst.msk [vmem:[%s172 + $0x140] sm:$0xff] %vm832, %v738
      %874 = vst.msk [vmem:[%s172 + $0x148] sm:$0xff] %vm832, %v741
      %875 = vst.msk [vmem:[%s172 + $0x150] sm:$0xff] %vm832, %v746
      %876 = vst.msk [vmem:[%s172 + $0x158] sm:$0xff] %vm832, %v749
      %877 = vst.msk [vmem:[%s172 + $0x160] sm:$0xff] %vm832, %v754
      %878 = vst.msk [vmem:[%s172 + $0x168] sm:$0xff] %vm832, %v757
      %879 = vst.msk [vmem:[%s172 + $0x170] sm:$0xff] %vm832, %v762
      %880 = vst.msk [vmem:[%s172 + $0x178] sm:$0xff] %vm832, %v765
      %881 = vst.msk [vmem:[%s172 + $0x180] sm:$0xff] %vm832, %v770
      %882 = vst.msk [vmem:[%s172 + $0x188] sm:$0xff] %vm832, %v773
      %883 = vst.msk [vmem:[%s172 + $0x190] sm:$0xff] %vm832, %v778
      %884 = vst.msk [vmem:[%s172 + $0x198] sm:$0xff] %vm832, %v781
      %885 = vst.msk [vmem:[%s172 + $0x1a0] sm:$0xff] %vm832, %v786
      %886 = vst.msk [vmem:[%s172 + $0x1a8] sm:$0xff] %vm832, %v789
      %887 = vst.msk [vmem:[%s172 + $0x1b0] sm:$0xff] %vm832, %v794
      %888 = vst.msk [vmem:[%s172 + $0x1b8] sm:$0xff] %vm832, %v797
      %889 = vst.msk [vmem:[%s172 + $0x1c0] sm:$0xff] %vm832, %v802
      %890 = vst.msk [vmem:[%s172 + $0x1c8] sm:$0xff] %vm832, %v805
      %891 = vst.msk [vmem:[%s172 + $0x1d0] sm:$0xff] %vm832, %v810
      %892 = vst.msk [vmem:[%s172 + $0x1d8] sm:$0xff] %vm832, %v813
      %893 = vst.msk [vmem:[%s172 + $0x1e0] sm:$0xff] %vm832, %v818
      %894 = vst.msk [vmem:[%s172 + $0x1e8] sm:$0xff] %vm832, %v821
      %895 = vst.msk [vmem:[%s172 + $0x1f0] sm:$0xff] %vm832, %v826
      %896 = vst.msk [vmem:[%s172 + $0x1f8] sm:$0xff] %vm832, %v829
      %s897 = smul.u32 64, %s14
      %p898 = scmp.lt.s32.totalorder %s897, 255
      %s899 = scalar_select %p898, %s897, 255
      %s900 = smul.addr %s899, 8
      %s901 = scalar_lea.vmem %s3, %s900
      // Predicated region
      $region33: #{dronet_forward.12} parent=31 // pred_check
        %p902 = pneg %p100
      $region34: #{dronet_forward.12} parent=31 // pred_check_branch
        %904 = sbr.rel (%p902) target = $region36
      $region35: #{dronet_forward.12} parent=31 // pred_region
        %s905 = smul.u32 64, %s14
      $region36: #{dronet_forward.12} parent=31 // pred_fallthru
        _
    $region32: #{dronet_forward.12} parent=5 // pred_fallthru
      _
    %p906 = scmp.le.s32.totalorder 2, %s9
    // Predicated region
    $region37: #{dronet_forward.12} parent=5 // pred_check
      %p907 = pneg %p906
    $region38: #{dronet_forward.12} parent=5 // pred_check_branch
      %909 = sbr.rel (%p907) target = $region40
    $region39: #{dronet_forward.12} parent=5 // pred_region
      %s910 = ssub.s32 %s9, 2
      // Predicated region
      $region41: #{dronet_forward.12} parent=39 // pred_check
        %p911 = pneg %p106
      $region42: #{dronet_forward.12} parent=39 // pred_check_branch
        %913 = sbr.rel (%p911) target = $region44
      $region43: #{dronet_forward.12} parent=39 // pred_region
        %s914 = smul.u32 64, %s15
        %p915 = scmp.lt.s32.totalorder %s914, 255
        %s916 = scalar_select %p915, %s914, 255
        %s917 = smul.addr %s916, 8
        %s918 = scalar_lea.vmem %s3, %s917
      $region44: #{dronet_forward.12} parent=39 // pred_fallthru
        _
    $region40: #{dronet_forward.12} parent=5 // pred_fallthru
      _
  $region6: #{dronet_forward.12} parent=0 // loop_footer
    %s13 = sadd.s32 1, %s9
  $region7: #{dronet_forward.12} parent=0 // loop_footer_branch
    %8 = sbr.rel target = $region3
  $region8: #{dronet_forward.12} parent=0 // loop_exit
    _

// kernel: dronet_forward.13
$region0: #{dronet_forward.13}
  #allocation0 [shape = 'u32[]', space=smem, size = 0x4, offset = 0x4, fixed_abs, tag = 'smem constant byte address 0x4 - core index']
  #allocation1 [shape = 'u32[144,128]{1,0:T(1,128)}', space=vmem, size = 0x12000, scoped, tag = 'internal scratch']
  %s0 = inlined_call_operand.vmem [shape: f32[512,32], index: 0, kind: input, shape index: {}]
  %s1 = inlined_call_operand.vmem [shape: f32[512,32], index: 1, kind: input, shape index: {}]
  %s2 = inlined_call_operand.vmem [shape: f32[512,32], index: 2, kind: input, shape index: {}]
  %s3 = inlined_call_operand.vmem [shape: f32[512,32], index: 3, kind: input, shape index: {}]
  %s4 = inlined_call_operand.vmem [shape: f32[1,32], index: 4, kind: input, shape index: {}]
  %s5 = inlined_call_operand.vmem [shape: f32[1,32], index: 5, kind: input, shape index: {}]
  %s6 = inlined_call_operand.vmem [shape: f32[512,32], index: 6, kind: output, shape index: {0}]
  %s7 = inlined_call_operand.vmem [shape: f32[512,32], index: 7, kind: output, shape index: {1}]
  %8 = xla_tuple %s6, %s7
  %s9 = sld [smem:[#allocation0]]
  $region42: #{dronet_forward.13} parent=0
    _
  %s11 = ssub.s32 1, %s9
  %s12 = scalar_select 0, %s11, %s9
  // Predicated region
  $region2: #{dronet_forward.13} parent=0 // pred_check
    _
  $region3: #{dronet_forward.13} parent=0 // pred_check_branch
    %14 = sbr.rel (0) target = $region5
  $region4: #{dronet_forward.13} parent=0 // pred_region
    _
  $region5: #{dronet_forward.13} parent=0 // pred_fallthru
    _
  // Predicated region
  $region6: #{dronet_forward.13} parent=0 // pred_check
    _
  $region7: #{dronet_forward.13} parent=0 // pred_check_branch
    %16 = sbr.rel (0) target = $region9
  $region8: #{dronet_forward.13} parent=0 // pred_region
    _
  $region9: #{dronet_forward.13} parent=0 // pred_fallthru
    _
  // Predicated region
  $region10: #{dronet_forward.13} parent=0 // pred_check
    _
  $region11: #{dronet_forward.13} parent=0 // pred_check_branch
    %18 = sbr.rel (0) target = $region13
  $region12: #{dronet_forward.13} parent=0 // pred_region
    _
  $region13: #{dronet_forward.13} parent=0 // pred_fallthru
    _
  // Predicated region
  $region14: #{dronet_forward.13} parent=0 // pred_check
    _
  $region15: #{dronet_forward.13} parent=0 // pred_check_branch
    %20 = sbr.rel (0) target = $region17
  $region16: #{dronet_forward.13} parent=0 // pred_region
    _
  $region17: #{dronet_forward.13} parent=0 // pred_fallthru
    _
  // Predicated region
  $region18: #{dronet_forward.13} parent=0 // pred_check
    _
  $region19: #{dronet_forward.13} parent=0 // pred_check_branch
    %22 = sbr.rel (0) target = $region21
  $region20: #{dronet_forward.13} parent=0 // pred_region
    _
  $region21: #{dronet_forward.13} parent=0 // pred_fallthru
    _
  // Predicated region
  $region22: #{dronet_forward.13} parent=0 // pred_check
    _
  $region23: #{dronet_forward.13} parent=0 // pred_check_branch
    %24 = sbr.rel (0) target = $region25
  $region24: #{dronet_forward.13} parent=0 // pred_region
    _
  $region25: #{dronet_forward.13} parent=0 // pred_fallthru
    _
  %v25 = vld [vmem:[%s0] sm:$0xff]
  %v26 = vld [vmem:[%s0 + $0x8] sm:$0xff]
  %v27 = vld [vmem:[%s0 + $0x10] sm:$0xff]
  %v28 = vld [vmem:[%s0 + $0x18] sm:$0xff]
  %v29 = vld [vmem:[%s0 + $0x20] sm:$0xff]
  %v30 = vld [vmem:[%s0 + $0x28] sm:$0xff]
  %v31 = vld [vmem:[%s0 + $0x30] sm:$0xff]
  %v32 = vld [vmem:[%s0 + $0x38] sm:$0xff]
  %v33 = vld [vmem:[%s0 + $0x40] sm:$0xff]
  %v34 = vld [vmem:[%s0 + $0x48] sm:$0xff]
  %v35 = vld [vmem:[%s0 + $0x50] sm:$0xff]
  %v36 = vld [vmem:[%s0 + $0x58] sm:$0xff]
  %v37 = vld [vmem:[%s0 + $0x60] sm:$0xff]
  %v38 = vld [vmem:[%s0 + $0x68] sm:$0xff]
  %v39 = vld [vmem:[%s0 + $0x70] sm:$0xff]
  %v40 = vld [vmem:[%s0 + $0x78] sm:$0xff]
  %v41 = vld [vmem:[%s0 + $0x80] sm:$0xff]
  %v42 = vld [vmem:[%s0 + $0x88] sm:$0xff]
  %v43 = vld [vmem:[%s0 + $0x90] sm:$0xff]
  %v44 = vld [vmem:[%s0 + $0x98] sm:$0xff]
  %v45 = vld [vmem:[%s0 + $0xa0] sm:$0xff]
  %v46 = vld [vmem:[%s0 + $0xa8] sm:$0xff]
  %v47 = vld [vmem:[%s0 + $0xb0] sm:$0xff]
  %v48 = vld [vmem:[%s0 + $0xb8] sm:$0xff]
  %v49 = vld [vmem:[%s0 + $0xc0] sm:$0xff]
  %v50 = vld [vmem:[%s0 + $0xc8] sm:$0xff]
  %v51 = vld [vmem:[%s0 + $0xd0] sm:$0xff]
  %v52 = vld [vmem:[%s0 + $0xd8] sm:$0xff]
  %v53 = vld [vmem:[%s0 + $0xe0] sm:$0xff]
  %v54 = vld [vmem:[%s0 + $0xe8] sm:$0xff]
  %v55 = vld [vmem:[%s0 + $0xf0] sm:$0xff]
  %v56 = vld [vmem:[%s0 + $0xf8] sm:$0xff]
  %v57 = vld [vmem:[%s0 + $0x100] sm:$0xff]
  %v58 = vld [vmem:[%s0 + $0x108] sm:$0xff]
  %v59 = vld [vmem:[%s0 + $0x110] sm:$0xff]
  %v60 = vld [vmem:[%s0 + $0x118] sm:$0xff]
  %v61 = vld [vmem:[%s0 + $0x120] sm:$0xff]
  %v62 = vld [vmem:[%s0 + $0x128] sm:$0xff]
  %v63 = vld [vmem:[%s0 + $0x130] sm:$0xff]
  %v64 = vld [vmem:[%s0 + $0x138] sm:$0xff]
  %v65 = vld [vmem:[%s0 + $0x140] sm:$0xff]
  %v66 = vld [vmem:[%s0 + $0x148] sm:$0xff]
  %v67 = vld [vmem:[%s0 + $0x150] sm:$0xff]
  %v68 = vld [vmem:[%s0 + $0x158] sm:$0xff]
  %v69 = vld [vmem:[%s0 + $0x160] sm:$0xff]
  %v70 = vld [vmem:[%s0 + $0x168] sm:$0xff]
  %v71 = vld [vmem:[%s0 + $0x170] sm:$0xff]
  %v72 = vld [vmem:[%s0 + $0x178] sm:$0xff]
  %v73 = vld [vmem:[%s0 + $0x180] sm:$0xff]
  %v74 = vld [vmem:[%s0 + $0x188] sm:$0xff]
  %v75 = vld [vmem:[%s0 + $0x190] sm:$0xff]
  %v76 = vld [vmem:[%s0 + $0x198] sm:$0xff]
  %v77 = vld [vmem:[%s0 + $0x1a0] sm:$0xff]
  %v78 = vld [vmem:[%s0 + $0x1a8] sm:$0xff]
  %v79 = vld [vmem:[%s0 + $0x1b0] sm:$0xff]
  %v80 = vld [vmem:[%s0 + $0x1b8] sm:$0xff]
  %v81 = vld [vmem:[%s0 + $0x1c0] sm:$0xff]
  %v82 = vld [vmem:[%s0 + $0x1c8] sm:$0xff]
  %v83 = vld [vmem:[%s0 + $0x1d0] sm:$0xff]
  %v84 = vld [vmem:[%s0 + $0x1d8] sm:$0xff]
  %v85 = vld [vmem:[%s0 + $0x1e0] sm:$0xff]
  %v86 = vld [vmem:[%s0 + $0x1e8] sm:$0xff]
  %v87 = vld [vmem:[%s0 + $0x1f0] sm:$0xff]
  %v88 = vld [vmem:[%s0 + $0x1f8] sm:$0xff]
  %v89 = vld [vmem:[%s1] sm:$0xff]
  %v90 = vld [vmem:[%s1 + $0x8] sm:$0xff]
  %v91 = vld [vmem:[%s1 + $0x10] sm:$0xff]
  %v92 = vld [vmem:[%s1 + $0x18] sm:$0xff]
  %v93 = vld [vmem:[%s1 + $0x20] sm:$0xff]
  %v94 = vld [vmem:[%s1 + $0x28] sm:$0xff]
  %v95 = vld [vmem:[%s1 + $0x30] sm:$0xff]
  %v96 = vld [vmem:[%s1 + $0x38] sm:$0xff]
  %v97 = vld [vmem:[%s1 + $0x40] sm:$0xff]
  %v98 = vld [vmem:[%s1 + $0x48] sm:$0xff]
  %v99 = vld [vmem:[%s1 + $0x50] sm:$0xff]
  %v100 = vld [vmem:[%s1 + $0x58] sm:$0xff]
  %v101 = vld [vmem:[%s1 + $0x60] sm:$0xff]
  %v102 = vld [vmem:[%s1 + $0x68] sm:$0xff]
  %v103 = vld [vmem:[%s1 + $0x70] sm:$0xff]
  %v104 = vld [vmem:[%s1 + $0x78] sm:$0xff]
  %v105 = vld [vmem:[%s1 + $0x80] sm:$0xff]
  %v106 = vld [vmem:[%s1 + $0x88] sm:$0xff]
  %v107 = vld [vmem:[%s1 + $0x90] sm:$0xff]
  %v108 = vld [vmem:[%s1 + $0x98] sm:$0xff]
  %v109 = vld [vmem:[%s1 + $0xa0] sm:$0xff]
  %v110 = vld [vmem:[%s1 + $0xa8] sm:$0xff]
  %v111 = vld [vmem:[%s1 + $0xb0] sm:$0xff]
  %v112 = vld [vmem:[%s1 + $0xb8] sm:$0xff]
  %v113 = vld [vmem:[%s1 + $0xc0] sm:$0xff]
  %v114 = vld [vmem:[%s1 + $0xc8] sm:$0xff]
  %v115 = vld [vmem:[%s1 + $0xd0] sm:$0xff]
  %v116 = vld [vmem:[%s1 + $0xd8] sm:$0xff]
  %v117 = vld [vmem:[%s1 + $0xe0] sm:$0xff]
  %v118 = vld [vmem:[%s1 + $0xe8] sm:$0xff]
  %v119 = vld [vmem:[%s1 + $0xf0] sm:$0xff]
  %v120 = vld [vmem:[%s1 + $0xf8] sm:$0xff]
  %v121 = vld [vmem:[%s1 + $0x100] sm:$0xff]
  %v122 = vld [vmem:[%s1 + $0x108] sm:$0xff]
  %v123 = vld [vmem:[%s1 + $0x110] sm:$0xff]
  %v124 = vld [vmem:[%s1 + $0x118] sm:$0xff]
  %v125 = vld [vmem:[%s1 + $0x120] sm:$0xff]
  %v126 = vld [vmem:[%s1 + $0x128] sm:$0xff]
  %v127 = vld [vmem:[%s1 + $0x130] sm:$0xff]
  %v128 = vld [vmem:[%s1 + $0x138] sm:$0xff]
  %v129 = vld [vmem:[%s1 + $0x140] sm:$0xff]
  %v130 = vld [vmem:[%s1 + $0x148] sm:$0xff]
  %v131 = vld [vmem:[%s1 + $0x150] sm:$0xff]
  %v132 = vld [vmem:[%s1 + $0x158] sm:$0xff]
  %v133 = vld [vmem:[%s1 + $0x160] sm:$0xff]
  %v134 = vld [vmem:[%s1 + $0x168] sm:$0xff]
  %v135 = vld [vmem:[%s1 + $0x170] sm:$0xff]
  %v136 = vld [vmem:[%s1 + $0x178] sm:$0xff]
  %v137 = vld [vmem:[%s1 + $0x180] sm:$0xff]
  %v138 = vld [vmem:[%s1 + $0x188] sm:$0xff]
  %v139 = vld [vmem:[%s1 + $0x190] sm:$0xff]
  %v140 = vld [vmem:[%s1 + $0x198] sm:$0xff]
  %v141 = vld [vmem:[%s1 + $0x1a0] sm:$0xff]
  %v142 = vld [vmem:[%s1 + $0x1a8] sm:$0xff]
  %v143 = vld [vmem:[%s1 + $0x1b0] sm:$0xff]
  %v144 = vld [vmem:[%s1 + $0x1b8] sm:$0xff]
  %v145 = vld [vmem:[%s1 + $0x1c0] sm:$0xff]
  %v146 = vld [vmem:[%s1 + $0x1c8] sm:$0xff]
  %v147 = vld [vmem:[%s1 + $0x1d0] sm:$0xff]
  %v148 = vld [vmem:[%s1 + $0x1d8] sm:$0xff]
  %v149 = vld [vmem:[%s1 + $0x1e0] sm:$0xff]
  %v150 = vld [vmem:[%s1 + $0x1e8] sm:$0xff]
  %v151 = vld [vmem:[%s1 + $0x1f0] sm:$0xff]
  %v152 = vld [vmem:[%s1 + $0x1f8] sm:$0xff]
  %v153 = vmax.f32 %v25, %v89
  %v154 = vmax.f32 %v26, %v90
  %v155 = vmax.f32 %v27, %v91
  %v156 = vmax.f32 %v28, %v92
  %v157 = vmax.f32 %v29, %v93
  %v158 = vmax.f32 %v30, %v94
  %v159 = vmax.f32 %v31, %v95
  %v160 = vmax.f32 %v32, %v96
  %v161 = vmax.f32 %v33, %v97
  %v162 = vmax.f32 %v34, %v98
  %v163 = vmax.f32 %v35, %v99
  %v164 = vmax.f32 %v36, %v100
  %v165 = vmax.f32 %v37, %v101
  %v166 = vmax.f32 %v38, %v102
  %v167 = vmax.f32 %v39, %v103
  %v168 = vmax.f32 %v40, %v104
  %v169 = vmax.f32 %v41, %v105
  %v170 = vmax.f32 %v42, %v106
  %v171 = vmax.f32 %v43, %v107
  %v172 = vmax.f32 %v44, %v108
  %v173 = vmax.f32 %v45, %v109
  %v174 = vmax.f32 %v46, %v110
  %v175 = vmax.f32 %v47, %v111
  %v176 = vmax.f32 %v48, %v112
  %v177 = vmax.f32 %v49, %v113
  %v178 = vmax.f32 %v50, %v114
  %v179 = vmax.f32 %v51, %v115
  %v180 = vmax.f32 %v52, %v116
  %v181 = vmax.f32 %v53, %v117
  %v182 = vmax.f32 %v54, %v118
  %v183 = vmax.f32 %v55, %v119
  %v184 = vmax.f32 %v56, %v120
  %v185 = vmax.f32 %v57, %v121
  %v186 = vmax.f32 %v58, %v122
  %v187 = vmax.f32 %v59, %v123
  %v188 = vmax.f32 %v60, %v124
  %v189 = vmax.f32 %v61, %v125
  %v190 = vmax.f32 %v62, %v126
  %v191 = vmax.f32 %v63, %v127
  %v192 = vmax.f32 %v64, %v128
  %v193 = vmax.f32 %v65, %v129
  %v194 = vmax.f32 %v66, %v130
  %v195 = vmax.f32 %v67, %v131
  %v196 = vmax.f32 %v68, %v132
  %v197 = vmax.f32 %v69, %v133
  %v198 = vmax.f32 %v70, %v134
  %v199 = vmax.f32 %v71, %v135
  %v200 = vmax.f32 %v72, %v136
  %v201 = vmax.f32 %v73, %v137
  %v202 = vmax.f32 %v74, %v138
  %v203 = vmax.f32 %v75, %v139
  %v204 = vmax.f32 %v76, %v140
  %v205 = vmax.f32 %v77, %v141
  %v206 = vmax.f32 %v78, %v142
  %v207 = vmax.f32 %v79, %v143
  %v208 = vmax.f32 %v80, %v144
  %v209 = vmax.f32 %v81, %v145
  %v210 = vmax.f32 %v82, %v146
  %v211 = vmax.f32 %v83, %v147
  %v212 = vmax.f32 %v84, %v148
  %v213 = vmax.f32 %v85, %v149
  %v214 = vmax.f32 %v86, %v150
  %v215 = vmax.f32 %v87, %v151
  %v216 = vmax.f32 %v88, %v152
  %v217 = vld [vmem:[%s2] sm:$0xff]
  %v218 = vld [vmem:[%s2 + $0x8] sm:$0xff]
  %v219 = vld [vmem:[%s2 + $0x10] sm:$0xff]
  %v220 = vld [vmem:[%s2 + $0x18] sm:$0xff]
  %v221 = vld [vmem:[%s2 + $0x20] sm:$0xff]
  %v222 = vld [vmem:[%s2 + $0x28] sm:$0xff]
  %v223 = vld [vmem:[%s2 + $0x30] sm:$0xff]
  %v224 = vld [vmem:[%s2 + $0x38] sm:$0xff]
  %v225 = vld [vmem:[%s2 + $0x40] sm:$0xff]
  %v226 = vld [vmem:[%s2 + $0x48] sm:$0xff]
  %v227 = vld [vmem:[%s2 + $0x50] sm:$0xff]
  %v228 = vld [vmem:[%s2 + $0x58] sm:$0xff]
  %v229 = vld [vmem:[%s2 + $0x60] sm:$0xff]
  %v230 = vld [vmem:[%s2 + $0x68] sm:$0xff]
  %v231 = vld [vmem:[%s2 + $0x70] sm:$0xff]
  %v232 = vld [vmem:[%s2 + $0x78] sm:$0xff]
  %v233 = vld [vmem:[%s2 + $0x80] sm:$0xff]
  %v234 = vld [vmem:[%s2 + $0x88] sm:$0xff]
  %v235 = vld [vmem:[%s2 + $0x90] sm:$0xff]
  %v236 = vld [vmem:[%s2 + $0x98] sm:$0xff]
  %v237 = vld [vmem:[%s2 + $0xa0] sm:$0xff]
  %v238 = vld [vmem:[%s2 + $0xa8] sm:$0xff]
  %v239 = vld [vmem:[%s2 + $0xb0] sm:$0xff]
  %v240 = vld [vmem:[%s2 + $0xb8] sm:$0xff]
  %v241 = vld [vmem:[%s2 + $0xc0] sm:$0xff]
  %v242 = vld [vmem:[%s2 + $0xc8] sm:$0xff]
  %v243 = vld [vmem:[%s2 + $0xd0] sm:$0xff]
  %v244 = vld [vmem:[%s2 + $0xd8] sm:$0xff]
  %v245 = vld [vmem:[%s2 + $0xe0] sm:$0xff]
  %v246 = vld [vmem:[%s2 + $0xe8] sm:$0xff]
  %v247 = vld [vmem:[%s2 + $0xf0] sm:$0xff]
  %v248 = vld [vmem:[%s2 + $0xf8] sm:$0xff]
  %v249 = vld [vmem:[%s2 + $0x100] sm:$0xff]
  %v250 = vld [vmem:[%s2 + $0x108] sm:$0xff]
  %v251 = vld [vmem:[%s2 + $0x110] sm:$0xff]
  %v252 = vld [vmem:[%s2 + $0x118] sm:$0xff]
  %v253 = vld [vmem:[%s2 + $0x120] sm:$0xff]
  %v254 = vld [vmem:[%s2 + $0x128] sm:$0xff]
  %v255 = vld [vmem:[%s2 + $0x130] sm:$0xff]
  %v256 = vld [vmem:[%s2 + $0x138] sm:$0xff]
  %v257 = vld [vmem:[%s2 + $0x140] sm:$0xff]
  %v258 = vld [vmem:[%s2 + $0x148] sm:$0xff]
  %v259 = vld [vmem:[%s2 + $0x150] sm:$0xff]
  %v260 = vld [vmem:[%s2 + $0x158] sm:$0xff]
  %v261 = vld [vmem:[%s2 + $0x160] sm:$0xff]
  %v262 = vld [vmem:[%s2 + $0x168] sm:$0xff]
  %v263 = vld [vmem:[%s2 + $0x170] sm:$0xff]
  %v264 = vld [vmem:[%s2 + $0x178] sm:$0xff]
  %v265 = vld [vmem:[%s2 + $0x180] sm:$0xff]
  %v266 = vld [vmem:[%s2 + $0x188] sm:$0xff]
  %v267 = vld [vmem:[%s2 + $0x190] sm:$0xff]
  %v268 = vld [vmem:[%s2 + $0x198] sm:$0xff]
  %v269 = vld [vmem:[%s2 + $0x1a0] sm:$0xff]
  %v270 = vld [vmem:[%s2 + $0x1a8] sm:$0xff]
  %v271 = vld [vmem:[%s2 + $0x1b0] sm:$0xff]
  %v272 = vld [vmem:[%s2 + $0x1b8] sm:$0xff]
  %v273 = vld [vmem:[%s2 + $0x1c0] sm:$0xff]
  %v274 = vld [vmem:[%s2 + $0x1c8] sm:$0xff]
  %v275 = vld [vmem:[%s2 + $0x1d0] sm:$0xff]
  %v276 = vld [vmem:[%s2 + $0x1d8] sm:$0xff]
  %v277 = vld [vmem:[%s2 + $0x1e0] sm:$0xff]
  %v278 = vld [vmem:[%s2 + $0x1e8] sm:$0xff]
  %v279 = vld [vmem:[%s2 + $0x1f0] sm:$0xff]
  %v280 = vld [vmem:[%s2 + $0x1f8] sm:$0xff]
  %v281 = vld [vmem:[%s3] sm:$0xff]
  %v282 = vld [vmem:[%s3 + $0x8] sm:$0xff]
  %v283 = vld [vmem:[%s3 + $0x10] sm:$0xff]
  %v284 = vld [vmem:[%s3 + $0x18] sm:$0xff]
  %v285 = vld [vmem:[%s3 + $0x20] sm:$0xff]
  %v286 = vld [vmem:[%s3 + $0x28] sm:$0xff]
  %v287 = vld [vmem:[%s3 + $0x30] sm:$0xff]
  %v288 = vld [vmem:[%s3 + $0x38] sm:$0xff]
  %v289 = vld [vmem:[%s3 + $0x40] sm:$0xff]
  %v290 = vld [vmem:[%s3 + $0x48] sm:$0xff]
  %v291 = vld [vmem:[%s3 + $0x50] sm:$0xff]
  %v292 = vld [vmem:[%s3 + $0x58] sm:$0xff]
  %v293 = vld [vmem:[%s3 + $0x60] sm:$0xff]
  %v294 = vld [vmem:[%s3 + $0x68] sm:$0xff]
  %v295 = vld [vmem:[%s3 + $0x70] sm:$0xff]
  %v296 = vld [vmem:[%s3 + $0x78] sm:$0xff]
  %v297 = vld [vmem:[%s3 + $0x80] sm:$0xff]
  %v298 = vld [vmem:[%s3 + $0x88] sm:$0xff]
  %v299 = vld [vmem:[%s3 + $0x90] sm:$0xff]
  %v300 = vld [vmem:[%s3 + $0x98] sm:$0xff]
  %v301 = vld [vmem:[%s3 + $0xa0] sm:$0xff]
  %v302 = vld [vmem:[%s3 + $0xa8] sm:$0xff]
  %v303 = vld [vmem:[%s3 + $0xb0] sm:$0xff]
  %v304 = vld [vmem:[%s3 + $0xb8] sm:$0xff]
  %v305 = vld [vmem:[%s3 + $0xc0] sm:$0xff]
  %v306 = vld [vmem:[%s3 + $0xc8] sm:$0xff]
  %v307 = vld [vmem:[%s3 + $0xd0] sm:$0xff]
  %v308 = vld [vmem:[%s3 + $0xd8] sm:$0xff]
  %v309 = vld [vmem:[%s3 + $0xe0] sm:$0xff]
  %v310 = vld [vmem:[%s3 + $0xe8] sm:$0xff]
  %v311 = vld [vmem:[%s3 + $0xf0] sm:$0xff]
  %v312 = vld [vmem:[%s3 + $0xf8] sm:$0xff]
  %v313 = vld [vmem:[%s3 + $0x100] sm:$0xff]
  %v314 = vld [vmem:[%s3 + $0x108] sm:$0xff]
  %v315 = vld [vmem:[%s3 + $0x110] sm:$0xff]
  %v316 = vld [vmem:[%s3 + $0x118] sm:$0xff]
  %v317 = vld [vmem:[%s3 + $0x120] sm:$0xff]
  %v318 = vld [vmem:[%s3 + $0x128] sm:$0xff]
  %v319 = vld [vmem:[%s3 + $0x130] sm:$0xff]
  %v320 = vld [vmem:[%s3 + $0x138] sm:$0xff]
  %v321 = vld [vmem:[%s3 + $0x140] sm:$0xff]
  %v322 = vld [vmem:[%s3 + $0x148] sm:$0xff]
  %v323 = vld [vmem:[%s3 + $0x150] sm:$0xff]
  %v324 = vld [vmem:[%s3 + $0x158] sm:$0xff]
  %v325 = vld [vmem:[%s3 + $0x160] sm:$0xff]
  %v326 = vld [vmem:[%s3 + $0x168] sm:$0xff]
  %v327 = vld [vmem:[%s3 + $0x170] sm:$0xff]
  %v328 = vld [vmem:[%s3 + $0x178] sm:$0xff]
  %v329 = vld [vmem:[%s3 + $0x180] sm:$0xff]
  %v330 = vld [vmem:[%s3 + $0x188] sm:$0xff]
  %v331 = vld [vmem:[%s3 + $0x190] sm:$0xff]
  %v332 = vld [vmem:[%s3 + $0x198] sm:$0xff]
  %v333 = vld [vmem:[%s3 + $0x1a0] sm:$0xff]
  %v334 = vld [vmem:[%s3 + $0x1a8] sm:$0xff]
  %v335 = vld [vmem:[%s3 + $0x1b0] sm:$0xff]
  %v336 = vld [vmem:[%s3 + $0x1b8] sm:$0xff]
  %v337 = vld [vmem:[%s3 + $0x1c0] sm:$0xff]
  %v338 = vld [vmem:[%s3 + $0x1c8] sm:$0xff]
  %v339 = vld [vmem:[%s3 + $0x1d0] sm:$0xff]
  %v340 = vld [vmem:[%s3 + $0x1d8] sm:$0xff]
  %v341 = vld [vmem:[%s3 + $0x1e0] sm:$0xff]
  %v342 = vld [vmem:[%s3 + $0x1e8] sm:$0xff]
  %v343 = vld [vmem:[%s3 + $0x1f0] sm:$0xff]
  %v344 = vld [vmem:[%s3 + $0x1f8] sm:$0xff]
  %v345 = vmax.f32 %v217, %v281
  %v346 = vmax.f32 %v218, %v282
  %v347 = vmax.f32 %v219, %v283
  %v348 = vmax.f32 %v220, %v284
  %v349 = vmax.f32 %v221, %v285
  %v350 = vmax.f32 %v222, %v286
  %v351 = vmax.f32 %v223, %v287
  %v352 = vmax.f32 %v224, %v288
  %v353 = vmax.f32 %v225, %v289
  %v354 = vmax.f32 %v226, %v290
  %v355 = vmax.f32 %v227, %v291
  %v356 = vmax.f32 %v228, %v292
  %v357 = vmax.f32 %v229, %v293
  %v358 = vmax.f32 %v230, %v294
  %v359 = vmax.f32 %v231, %v295
  %v360 = vmax.f32 %v232, %v296
  %v361 = vmax.f32 %v233, %v297
  %v362 = vmax.f32 %v234, %v298
  %v363 = vmax.f32 %v235, %v299
  %v364 = vmax.f32 %v236, %v300
  %v365 = vmax.f32 %v237, %v301
  %v366 = vmax.f32 %v238, %v302
  %v367 = vmax.f32 %v239, %v303
  %v368 = vmax.f32 %v240, %v304
  %v369 = vmax.f32 %v241, %v305
  %v370 = vmax.f32 %v242, %v306
  %v371 = vmax.f32 %v243, %v307
  %v372 = vmax.f32 %v244, %v308
  %v373 = vmax.f32 %v245, %v309
  %v374 = vmax.f32 %v246, %v310
  %v375 = vmax.f32 %v247, %v311
  %v376 = vmax.f32 %v248, %v312
  %v377 = vmax.f32 %v249, %v313
  %v378 = vmax.f32 %v250, %v314
  %v379 = vmax.f32 %v251, %v315
  %v380 = vmax.f32 %v252, %v316
  %v381 = vmax.f32 %v253, %v317
  %v382 = vmax.f32 %v254, %v318
  %v383 = vmax.f32 %v255, %v319
  %v384 = vmax.f32 %v256, %v320
  %v385 = vmax.f32 %v257, %v321
  %v386 = vmax.f32 %v258, %v322
  %v387 = vmax.f32 %v259, %v323
  %v388 = vmax.f32 %v260, %v324
  %v389 = vmax.f32 %v261, %v325
  %v390 = vmax.f32 %v262, %v326
  %v391 = vmax.f32 %v263, %v327
  %v392 = vmax.f32 %v264, %v328
  %v393 = vmax.f32 %v265, %v329
  %v394 = vmax.f32 %v266, %v330
  %v395 = vmax.f32 %v267, %v331
  %v396 = vmax.f32 %v268, %v332
  %v397 = vmax.f32 %v269, %v333
  %v398 = vmax.f32 %v270, %v334
  %v399 = vmax.f32 %v271, %v335
  %v400 = vmax.f32 %v272, %v336
  %v401 = vmax.f32 %v273, %v337
  %v402 = vmax.f32 %v274, %v338
  %v403 = vmax.f32 %v275, %v339
  %v404 = vmax.f32 %v276, %v340
  %v405 = vmax.f32 %v277, %v341
  %v406 = vmax.f32 %v278, %v342
  %v407 = vmax.f32 %v279, %v343
  %v408 = vmax.f32 %v280, %v344
  %v409 = vmax.f32 %v153, %v345
  %v410 = vmax.f32 %v154, %v346
  %v411 = vmax.f32 %v155, %v347
  %v412 = vmax.f32 %v156, %v348
  %v413 = vmax.f32 %v157, %v349
  %v414 = vmax.f32 %v158, %v350
  %v415 = vmax.f32 %v159, %v351
  %v416 = vmax.f32 %v160, %v352
  %v417 = vmax.f32 %v161, %v353
  %v418 = vmax.f32 %v162, %v354
  %v419 = vmax.f32 %v163, %v355
  %v420 = vmax.f32 %v164, %v356
  %v421 = vmax.f32 %v165, %v357
  %v422 = vmax.f32 %v166, %v358
  %v423 = vmax.f32 %v167, %v359
  %v424 = vmax.f32 %v168, %v360
  %v425 = vmax.f32 %v169, %v361
  %v426 = vmax.f32 %v170, %v362
  %v427 = vmax.f32 %v171, %v363
  %v428 = vmax.f32 %v172, %v364
  %v429 = vmax.f32 %v173, %v365
  %v430 = vmax.f32 %v174, %v366
  %v431 = vmax.f32 %v175, %v367
  %v432 = vmax.f32 %v176, %v368
  %v433 = vmax.f32 %v177, %v369
  %v434 = vmax.f32 %v178, %v370
  %v435 = vmax.f32 %v179, %v371
  %v436 = vmax.f32 %v180, %v372
  %v437 = vmax.f32 %v181, %v373
  %v438 = vmax.f32 %v182, %v374
  %v439 = vmax.f32 %v183, %v375
  %v440 = vmax.f32 %v184, %v376
  %v441 = vmax.f32 %v185, %v377
  %v442 = vmax.f32 %v186, %v378
  %v443 = vmax.f32 %v187, %v379
  %v444 = vmax.f32 %v188, %v380
  %v445 = vmax.f32 %v189, %v381
  %v446 = vmax.f32 %v190, %v382
  %v447 = vmax.f32 %v191, %v383
  %v448 = vmax.f32 %v192, %v384
  %v449 = vmax.f32 %v193, %v385
  %v450 = vmax.f32 %v194, %v386
  %v451 = vmax.f32 %v195, %v387
  %v452 = vmax.f32 %v196, %v388
  %v453 = vmax.f32 %v197, %v389
  %v454 = vmax.f32 %v198, %v390
  %v455 = vmax.f32 %v199, %v391
  %v456 = vmax.f32 %v200, %v392
  %v457 = vmax.f32 %v201, %v393
  %v458 = vmax.f32 %v202, %v394
  %v459 = vmax.f32 %v203, %v395
  %v460 = vmax.f32 %v204, %v396
  %v461 = vmax.f32 %v205, %v397
  %v462 = vmax.f32 %v206, %v398
  %v463 = vmax.f32 %v207, %v399
  %v464 = vmax.f32 %v208, %v400
  %v465 = vmax.f32 %v209, %v401
  %v466 = vmax.f32 %v210, %v402
  %v467 = vmax.f32 %v211, %v403
  %v468 = vmax.f32 %v212, %v404
  %v469 = vmax.f32 %v213, %v405
  %v470 = vmax.f32 %v214, %v406
  %v471 = vmax.f32 %v215, %v407
  %v472 = vmax.f32 %v216, %v408
  %vm473 = vcmask 261120
  %474 = vst.msk [vmem:[%s6] sm:$0xff] %vm473, %v409
  %475 = vst.msk [vmem:[%s6 + $0x8] sm:$0xff] %vm473, %v410
  %476 = vst.msk [vmem:[%s6 + $0x10] sm:$0xff] %vm473, %v411
  %477 = vst.msk [vmem:[%s6 + $0x18] sm:$0xff] %vm473, %v412
  %478 = vst.msk [vmem:[%s6 + $0x20] sm:$0xff] %vm473, %v413
  %479 = vst.msk [vmem:[%s6 + $0x28] sm:$0xff] %vm473, %v414
  %480 = vst.msk [vmem:[%s6 + $0x30] sm:$0xff] %vm473, %v415
  %481 = vst.msk [vmem:[%s6 + $0x38] sm:$0xff] %vm473, %v416
  %482 = vst.msk [vmem:[%s6 + $0x40] sm:$0xff] %vm473, %v417
  %483 = vst.msk [vmem:[%s6 + $0x48] sm:$0xff] %vm473, %v418
  %484 = vst.msk [vmem:[%s6 + $0x50] sm:$0xff] %vm473, %v419
  %485 = vst.msk [vmem:[%s6 + $0x58] sm:$0xff] %vm473, %v420
  %486 = vst.msk [vmem:[%s6 + $0x60] sm:$0xff] %vm473, %v421
  %487 = vst.msk [vmem:[%s6 + $0x68] sm:$0xff] %vm473, %v422
  %488 = vst.msk [vmem:[%s6 + $0x70] sm:$0xff] %vm473, %v423
  %489 = vst.msk [vmem:[%s6 + $0x78] sm:$0xff] %vm473, %v424
  %490 = vst.msk [vmem:[%s6 + $0x80] sm:$0xff] %vm473, %v425
  %491 = vst.msk [vmem:[%s6 + $0x88] sm:$0xff] %vm473, %v426
  %492 = vst.msk [vmem:[%s6 + $0x90] sm:$0xff] %vm473, %v427
  %493 = vst.msk [vmem:[%s6 + $0x98] sm:$0xff] %vm473, %v428
  %494 = vst.msk [vmem:[%s6 + $0xa0] sm:$0xff] %vm473, %v429
  %495 = vst.msk [vmem:[%s6 + $0xa8] sm:$0xff] %vm473, %v430
  %496 = vst.msk [vmem:[%s6 + $0xb0] sm:$0xff] %vm473, %v431
  %497 = vst.msk [vmem:[%s6 + $0xb8] sm:$0xff] %vm473, %v432
  %498 = vst.msk [vmem:[%s6 + $0xc0] sm:$0xff] %vm473, %v433
  %499 = vst.msk [vmem:[%s6 + $0xc8] sm:$0xff] %vm473, %v434
  %500 = vst.msk [vmem:[%s6 + $0xd0] sm:$0xff] %vm473, %v435
  %501 = vst.msk [vmem:[%s6 + $0xd8] sm:$0xff] %vm473, %v436
  %502 = vst.msk [vmem:[%s6 + $0xe0] sm:$0xff] %vm473, %v437
  %503 = vst.msk [vmem:[%s6 + $0xe8] sm:$0xff] %vm473, %v438
  %504 = vst.msk [vmem:[%s6 + $0xf0] sm:$0xff] %vm473, %v439
  %505 = vst.msk [vmem:[%s6 + $0xf8] sm:$0xff] %vm473, %v440
  %506 = vst.msk [vmem:[%s6 + $0x100] sm:$0xff] %vm473, %v441
  %507 = vst.msk [vmem:[%s6 + $0x108] sm:$0xff] %vm473, %v442
  %508 = vst.msk [vmem:[%s6 + $0x110] sm:$0xff] %vm473, %v443
  %509 = vst.msk [vmem:[%s6 + $0x118] sm:$0xff] %vm473, %v444
  %510 = vst.msk [vmem:[%s6 + $0x120] sm:$0xff] %vm473, %v445
  %511 = vst.msk [vmem:[%s6 + $0x128] sm:$0xff] %vm473, %v446
  %512 = vst.msk [vmem:[%s6 + $0x130] sm:$0xff] %vm473, %v447
  %513 = vst.msk [vmem:[%s6 + $0x138] sm:$0xff] %vm473, %v448
  %514 = vst.msk [vmem:[%s6 + $0x140] sm:$0xff] %vm473, %v449
  %515 = vst.msk [vmem:[%s6 + $0x148] sm:$0xff] %vm473, %v450
  %516 = vst.msk [vmem:[%s6 + $0x150] sm:$0xff] %vm473, %v451
  %517 = vst.msk [vmem:[%s6 + $0x158] sm:$0xff] %vm473, %v452
  %518 = vst.msk [vmem:[%s6 + $0x160] sm:$0xff] %vm473, %v453
  %519 = vst.msk [vmem:[%s6 + $0x168] sm:$0xff] %vm473, %v454
  %520 = vst.msk [vmem:[%s6 + $0x170] sm:$0xff] %vm473, %v455
  %521 = vst.msk [vmem:[%s6 + $0x178] sm:$0xff] %vm473, %v456
  %522 = vst.msk [vmem:[%s6 + $0x180] sm:$0xff] %vm473, %v457
  %523 = vst.msk [vmem:[%s6 + $0x188] sm:$0xff] %vm473, %v458
  %524 = vst.msk [vmem:[%s6 + $0x190] sm:$0xff] %vm473, %v459
  %525 = vst.msk [vmem:[%s6 + $0x198] sm:$0xff] %vm473, %v460
  %526 = vst.msk [vmem:[%s6 + $0x1a0] sm:$0xff] %vm473, %v461
  %527 = vst.msk [vmem:[%s6 + $0x1a8] sm:$0xff] %vm473, %v462
  %528 = vst.msk [vmem:[%s6 + $0x1b0] sm:$0xff] %vm473, %v463
  %529 = vst.msk [vmem:[%s6 + $0x1b8] sm:$0xff] %vm473, %v464
  %530 = vst.msk [vmem:[%s6 + $0x1c0] sm:$0xff] %vm473, %v465
  %531 = vst.msk [vmem:[%s6 + $0x1c8] sm:$0xff] %vm473, %v466
  %532 = vst.msk [vmem:[%s6 + $0x1d0] sm:$0xff] %vm473, %v467
  %533 = vst.msk [vmem:[%s6 + $0x1d8] sm:$0xff] %vm473, %v468
  %534 = vst.msk [vmem:[%s6 + $0x1e0] sm:$0xff] %vm473, %v469
  %535 = vst.msk [vmem:[%s6 + $0x1e8] sm:$0xff] %vm473, %v470
  %536 = vst.msk [vmem:[%s6 + $0x1f0] sm:$0xff] %vm473, %v471
  %537 = vst.msk [vmem:[%s6 + $0x1f8] sm:$0xff] %vm473, %v472
  %v538 = vld [vmem:[%s4] sm:$0x1]
  %v539 = vld [vmem:[%s5] sm:$0x1]
  %v540 = vsel %vm473, %v409, 0.0
  %v541 = vsel %vm473, %v410, 0.0
  %v542 = vadd.f32 %v540, %v541
  %v543 = vsel %vm473, %v411, 0.0
  %v544 = vadd.f32 %v542, %v543
  %v545 = vsel %vm473, %v412, 0.0
  %v546 = vadd.f32 %v544, %v545
  %v547 = vsel %vm473, %v413, 0.0
  %v548 = vadd.f32 %v546, %v547
  %v549 = vsel %vm473, %v414, 0.0
  %v550 = vadd.f32 %v548, %v549
  %v551 = vsel %vm473, %v415, 0.0
  %v552 = vadd.f32 %v550, %v551
  %v553 = vsel %vm473, %v416, 0.0
  %v554 = vadd.f32 %v552, %v553
  %v555 = vsel %vm473, %v417, 0.0
  %v556 = vadd.f32 %v554, %v555
  %v557 = vsel %vm473, %v418, 0.0
  %v558 = vadd.f32 %v556, %v557
  %v559 = vsel %vm473, %v419, 0.0
  %v560 = vadd.f32 %v558, %v559
  %v561 = vsel %vm473, %v420, 0.0
  %v562 = vadd.f32 %v560, %v561
  %v563 = vsel %vm473, %v421, 0.0
  %v564 = vadd.f32 %v562, %v563
  %v565 = vsel %vm473, %v422, 0.0
  %v566 = vadd.f32 %v564, %v565
  %v567 = vsel %vm473, %v423, 0.0
  %v568 = vadd.f32 %v566, %v567
  %v569 = vsel %vm473, %v424, 0.0
  %v570 = vadd.f32 %v568, %v569
  %v571 = vsel %vm473, %v425, 0.0
  %v572 = vadd.f32 %v570, %v571
  %v573 = vsel %vm473, %v426, 0.0
  %v574 = vadd.f32 %v572, %v573
  %v575 = vsel %vm473, %v427, 0.0
  %v576 = vadd.f32 %v574, %v575
  %v577 = vsel %vm473, %v428, 0.0
  %v578 = vadd.f32 %v576, %v577
  %v579 = vsel %vm473, %v429, 0.0
  %v580 = vadd.f32 %v578, %v579
  %v581 = vsel %vm473, %v430, 0.0
  %v582 = vadd.f32 %v580, %v581
  %v583 = vsel %vm473, %v431, 0.0
  %v584 = vadd.f32 %v582, %v583
  %v585 = vsel %vm473, %v432, 0.0
  %v586 = vadd.f32 %v584, %v585
  %v587 = vsel %vm473, %v433, 0.0
  %v588 = vadd.f32 %v586, %v587
  %v589 = vsel %vm473, %v434, 0.0
  %v590 = vadd.f32 %v588, %v589
  %v591 = vsel %vm473, %v435, 0.0
  %v592 = vadd.f32 %v590, %v591
  %v593 = vsel %vm473, %v436, 0.0
  %v594 = vadd.f32 %v592, %v593
  %v595 = vsel %vm473, %v437, 0.0
  %v596 = vadd.f32 %v594, %v595
  %v597 = vsel %vm473, %v438, 0.0
  %v598 = vadd.f32 %v596, %v597
  %v599 = vsel %vm473, %v439, 0.0
  %v600 = vadd.f32 %v598, %v599
  %v601 = vsel %vm473, %v440, 0.0
  %v602 = vadd.f32 %v600, %v601
  %v603 = vsel %vm473, %v441, 0.0
  %v604 = vadd.f32 %v602, %v603
  %v605 = vsel %vm473, %v442, 0.0
  %v606 = vadd.f32 %v604, %v605
  %v607 = vsel %vm473, %v443, 0.0
  %v608 = vadd.f32 %v606, %v607
  %v609 = vsel %vm473, %v444, 0.0
  %v610 = vadd.f32 %v608, %v609
  %v611 = vsel %vm473, %v445, 0.0
  %v612 = vadd.f32 %v610, %v611
  %v613 = vsel %vm473, %v446, 0.0
  %v614 = vadd.f32 %v612, %v613
  %v615 = vsel %vm473, %v447, 0.0
  %v616 = vadd.f32 %v614, %v615
  %v617 = vsel %vm473, %v448, 0.0
  %v618 = vadd.f32 %v616, %v617
  %v619 = vsel %vm473, %v449, 0.0
  %v620 = vadd.f32 %v618, %v619
  %v621 = vsel %vm473, %v450, 0.0
  %v622 = vadd.f32 %v620, %v621
  %v623 = vsel %vm473, %v451, 0.0
  %v624 = vadd.f32 %v622, %v623
  %v625 = vsel %vm473, %v452, 0.0
  %v626 = vadd.f32 %v624, %v625
  %v627 = vsel %vm473, %v453, 0.0
  %v628 = vadd.f32 %v626, %v627
  %v629 = vsel %vm473, %v454, 0.0
  %v630 = vadd.f32 %v628, %v629
  %v631 = vsel %vm473, %v455, 0.0
  %v632 = vadd.f32 %v630, %v631
  %v633 = vsel %vm473, %v456, 0.0
  %v634 = vadd.f32 %v632, %v633
  %v635 = vsel %vm473, %v457, 0.0
  %v636 = vadd.f32 %v634, %v635
  %v637 = vsel %vm473, %v458, 0.0
  %v638 = vadd.f32 %v636, %v637
  %v639 = vsel %vm473, %v459, 0.0
  %v640 = vadd.f32 %v638, %v639
  %v641 = vsel %vm473, %v460, 0.0
  %v642 = vadd.f32 %v640, %v641
  %v643 = vsel %vm473, %v461, 0.0
  %v644 = vadd.f32 %v642, %v643
  %v645 = vsel %vm473, %v462, 0.0
  %v646 = vadd.f32 %v644, %v645
  %v647 = vsel %vm473, %v463, 0.0
  %v648 = vadd.f32 %v646, %v647
  %v649 = vsel %vm473, %v464, 0.0
  %v650 = vadd.f32 %v648, %v649
  %v651 = vsel %vm473, %v465, 0.0
  %v652 = vadd.f32 %v650, %v651
  %v653 = vsel %vm473, %v466, 0.0
  %v654 = vadd.f32 %v652, %v653
  %v655 = vsel %vm473, %v467, 0.0
  %v656 = vadd.f32 %v654, %v655
  %v657 = vsel %vm473, %v468, 0.0
  %v658 = vadd.f32 %v656, %v657
  %v659 = vsel %vm473, %v469, 0.0
  %v660 = vadd.f32 %v658, %v659
  %v661 = vsel %vm473, %v470, 0.0
  %v662 = vadd.f32 %v660, %v661
  %v663 = vsel %vm473, %v471, 0.0
  %v664 = vadd.f32 %v662, %v663
  %v665 = vsel %vm473, %v472, 0.0
  %v666 = vadd.f32 %v664, %v665
  %v667 = vrot.slane %v666, 4
  %v668 = vadd.f32 %v666, %v667
  %v669 = vrot.slane %v668, 2
  %v670 = vadd.f32 %v668, %v669
  %v671 = vrot.slane %v670, 1
  %v672 = vadd.f32 %v670, %v671
  %v673 = vrcp.pop 512.0
  %v674 = vmul.f32 %v672, %v673
  %v675 = vsub.f32 %v409, %v674
  %v676 = vsub.f32 %v410, %v674
  %v677 = vsub.f32 %v411, %v674
  %v678 = vsub.f32 %v412, %v674
  %v679 = vsub.f32 %v413, %v674
  %v680 = vsub.f32 %v414, %v674
  %v681 = vsub.f32 %v415, %v674
  %v682 = vsub.f32 %v416, %v674
  %v683 = vsub.f32 %v417, %v674
  %v684 = vsub.f32 %v418, %v674
  %v685 = vsub.f32 %v419, %v674
  %v686 = vsub.f32 %v420, %v674
  %v687 = vsub.f32 %v421, %v674
  %v688 = vsub.f32 %v422, %v674
  %v689 = vsub.f32 %v423, %v674
  %v690 = vsub.f32 %v424, %v674
  %v691 = vsub.f32 %v425, %v674
  %v692 = vsub.f32 %v426, %v674
  %v693 = vsub.f32 %v427, %v674
  %v694 = vsub.f32 %v428, %v674
  %v695 = vsub.f32 %v429, %v674
  %v696 = vsub.f32 %v430, %v674
  %v697 = vsub.f32 %v431, %v674
  %v698 = vsub.f32 %v432, %v674
  %v699 = vsub.f32 %v433, %v674
  %v700 = vsub.f32 %v434, %v674
  %v701 = vsub.f32 %v435, %v674
  %v702 = vsub.f32 %v436, %v674
  %v703 = vsub.f32 %v437, %v674
  %v704 = vsub.f32 %v438, %v674
  %v705 = vsub.f32 %v439, %v674
  %v706 = vsub.f32 %v440, %v674
  %v707 = vsub.f32 %v441, %v674
  %v708 = vsub.f32 %v442, %v674
  %v709 = vsub.f32 %v443, %v674
  %v710 = vsub.f32 %v444, %v674
  %v711 = vsub.f32 %v445, %v674
  %v712 = vsub.f32 %v446, %v674
  %v713 = vsub.f32 %v447, %v674
  %v714 = vsub.f32 %v448, %v674
  %v715 = vsub.f32 %v449, %v674
  %v716 = vsub.f32 %v450, %v674
  %v717 = vsub.f32 %v451, %v674
  %v718 = vsub.f32 %v452, %v674
  %v719 = vsub.f32 %v453, %v674
  %v720 = vsub.f32 %v454, %v674
  %v721 = vsub.f32 %v455, %v674
  %v722 = vsub.f32 %v456, %v674
  %v723 = vsub.f32 %v457, %v674
  %v724 = vsub.f32 %v458, %v674
  %v725 = vsub.f32 %v459, %v674
  %v726 = vsub.f32 %v460, %v674
  %v727 = vsub.f32 %v461, %v674
  %v728 = vsub.f32 %v462, %v674
  %v729 = vsub.f32 %v463, %v674
  %v730 = vsub.f32 %v464, %v674
  %v731 = vsub.f32 %v465, %v674
  %v732 = vsub.f32 %v466, %v674
  %v733 = vsub.f32 %v467, %v674
  %v734 = vsub.f32 %v468, %v674
  %v735 = vsub.f32 %v469, %v674
  %v736 = vsub.f32 %v470, %v674
  %v737 = vsub.f32 %v471, %v674
  %v738 = vsub.f32 %v472, %v674
  %v739 = vmul.f32 %v675, %v675
  %v740 = vmul.f32 %v676, %v676
  %v741 = vmul.f32 %v677, %v677
  %v742 = vmul.f32 %v678, %v678
  %v743 = vmul.f32 %v679, %v679
  %v744 = vmul.f32 %v680, %v680
  %v745 = vmul.f32 %v681, %v681
  %v746 = vmul.f32 %v682, %v682
  %v747 = vmul.f32 %v683, %v683
  %v748 = vmul.f32 %v684, %v684
  %v749 = vmul.f32 %v685, %v685
  %v750 = vmul.f32 %v686, %v686
  %v751 = vmul.f32 %v687, %v687
  %v752 = vmul.f32 %v688, %v688
  %v753 = vmul.f32 %v689, %v689
  %v754 = vmul.f32 %v690, %v690
  %v755 = vmul.f32 %v691, %v691
  %v756 = vmul.f32 %v692, %v692
  %v757 = vmul.f32 %v693, %v693
  %v758 = vmul.f32 %v694, %v694
  %v759 = vmul.f32 %v695, %v695
  %v760 = vmul.f32 %v696, %v696
  %v761 = vmul.f32 %v697, %v697
  %v762 = vmul.f32 %v698, %v698
  %v763 = vmul.f32 %v699, %v699
  %v764 = vmul.f32 %v700, %v700
  %v765 = vmul.f32 %v701, %v701
  %v766 = vmul.f32 %v702, %v702
  %v767 = vmul.f32 %v703, %v703
  %v768 = vmul.f32 %v704, %v704
  %v769 = vmul.f32 %v705, %v705
  %v770 = vmul.f32 %v706, %v706
  %v771 = vmul.f32 %v707, %v707
  %v772 = vmul.f32 %v708, %v708
  %v773 = vmul.f32 %v709, %v709
  %v774 = vmul.f32 %v710, %v710
  %v775 = vmul.f32 %v711, %v711
  %v776 = vmul.f32 %v712, %v712
  %v777 = vmul.f32 %v713, %v713
  %v778 = vmul.f32 %v714, %v714
  %v779 = vmul.f32 %v715, %v715
  %v780 = vmul.f32 %v716, %v716
  %v781 = vmul.f32 %v717, %v717
  %v782 = vmul.f32 %v718, %v718
  %v783 = vmul.f32 %v719, %v719
  %v784 = vmul.f32 %v720, %v720
  %v785 = vmul.f32 %v721, %v721
  %v786 = vmul.f32 %v722, %v722
  %v787 = vmul.f32 %v723, %v723
  %v788 = vmul.f32 %v724, %v724
  %v789 = vmul.f32 %v725, %v725
  %v790 = vmul.f32 %v726, %v726
  %v791 = vmul.f32 %v727, %v727
  %v792 = vmul.f32 %v728, %v728
  %v793 = vmul.f32 %v729, %v729
  %v794 = vmul.f32 %v730, %v730
  %v795 = vmul.f32 %v731, %v731
  %v796 = vmul.f32 %v732, %v732
  %v797 = vmul.f32 %v733, %v733
  %v798 = vmul.f32 %v734, %v734
  %v799 = vmul.f32 %v735, %v735
  %v800 = vmul.f32 %v736, %v736
  %v801 = vmul.f32 %v737, %v737
  %v802 = vmul.f32 %v738, %v738
  %v803 = vsel %vm473, %v739, 0.0
  %v804 = vsel %vm473, %v740, 0.0
  %v805 = vadd.f32 %v803, %v804
  %v806 = vsel %vm473, %v741, 0.0
  %v807 = vadd.f32 %v805, %v806
  %v808 = vsel %vm473, %v742, 0.0
  %v809 = vadd.f32 %v807, %v808
  %v810 = vsel %vm473, %v743, 0.0
  %v811 = vadd.f32 %v809, %v810
  %v812 = vsel %vm473, %v744, 0.0
  %v813 = vadd.f32 %v811, %v812
  %v814 = vsel %vm473, %v745, 0.0
  %v815 = vadd.f32 %v813, %v814
  %v816 = vsel %vm473, %v746, 0.0
  %v817 = vadd.f32 %v815, %v816
  %v818 = vsel %vm473, %v747, 0.0
  %v819 = vadd.f32 %v817, %v818
  %v820 = vsel %vm473, %v748, 0.0
  %v821 = vadd.f32 %v819, %v820
  %v822 = vsel %vm473, %v749, 0.0
  %v823 = vadd.f32 %v821, %v822
  %v824 = vsel %vm473, %v750, 0.0
  %v825 = vadd.f32 %v823, %v824
  %v826 = vsel %vm473, %v751, 0.0
  %v827 = vadd.f32 %v825, %v826
  %v828 = vsel %vm473, %v752, 0.0
  %v829 = vadd.f32 %v827, %v828
  %v830 = vsel %vm473, %v753, 0.0
  %v831 = vadd.f32 %v829, %v830
  %v832 = vsel %vm473, %v754, 0.0
  %v833 = vadd.f32 %v831, %v832
  %v834 = vsel %vm473, %v755, 0.0
  %v835 = vadd.f32 %v833, %v834
  %v836 = vsel %vm473, %v756, 0.0
  %v837 = vadd.f32 %v835, %v836
  %v838 = vsel %vm473, %v757, 0.0
  %v839 = vadd.f32 %v837, %v838
  %v840 = vsel %vm473, %v758, 0.0
  %v841 = vadd.f32 %v839, %v840
  %v842 = vsel %vm473, %v759, 0.0
  %v843 = vadd.f32 %v841, %v842
  %v844 = vsel %vm473, %v760, 0.0
  %v845 = vadd.f32 %v843, %v844
  %v846 = vsel %vm473, %v761, 0.0
  %v847 = vadd.f32 %v845, %v846
  %v848 = vsel %vm473, %v762, 0.0
  %v849 = vadd.f32 %v847, %v848
  %v850 = vsel %vm473, %v763, 0.0
  %v851 = vadd.f32 %v849, %v850
  %v852 = vsel %vm473, %v764, 0.0
  %v853 = vadd.f32 %v851, %v852
  %v854 = vsel %vm473, %v765, 0.0
  %v855 = vadd.f32 %v853, %v854
  %v856 = vsel %vm473, %v766, 0.0
  %v857 = vadd.f32 %v855, %v856
  %v858 = vsel %vm473, %v767, 0.0
  %v859 = vadd.f32 %v857, %v858
  %v860 = vsel %vm473, %v768, 0.0
  %v861 = vadd.f32 %v859, %v860
  %v862 = vsel %vm473, %v769, 0.0
  %v863 = vadd.f32 %v861, %v862
  %v864 = vsel %vm473, %v770, 0.0
  %v865 = vadd.f32 %v863, %v864
  %v866 = vsel %vm473, %v771, 0.0
  %v867 = vadd.f32 %v865, %v866
  %v868 = vsel %vm473, %v772, 0.0
  %v869 = vadd.f32 %v867, %v868
  %v870 = vsel %vm473, %v773, 0.0
  %v871 = vadd.f32 %v869, %v870
  %v872 = vsel %vm473, %v774, 0.0
  %v873 = vadd.f32 %v871, %v872
  %v874 = vsel %vm473, %v775, 0.0
  %v875 = vadd.f32 %v873, %v874
  %v876 = vsel %vm473, %v776, 0.0
  %v877 = vadd.f32 %v875, %v876
  %v878 = vsel %vm473, %v777, 0.0
  %v879 = vadd.f32 %v877, %v878
  %v880 = vsel %vm473, %v778, 0.0
  %v881 = vadd.f32 %v879, %v880
  %v882 = vsel %vm473, %v779, 0.0
  %v883 = vadd.f32 %v881, %v882
  %v884 = vsel %vm473, %v780, 0.0
  %v885 = vadd.f32 %v883, %v884
  %v886 = vsel %vm473, %v781, 0.0
  %v887 = vadd.f32 %v885, %v886
  %v888 = vsel %vm473, %v782, 0.0
  %v889 = vadd.f32 %v887, %v888
  %v890 = vsel %vm473, %v783, 0.0
  %v891 = vadd.f32 %v889, %v890
  %v892 = vsel %vm473, %v784, 0.0
  %v893 = vadd.f32 %v891, %v892
  %v894 = vsel %vm473, %v785, 0.0
  %v895 = vadd.f32 %v893, %v894
  %v896 = vsel %vm473, %v786, 0.0
  %v897 = vadd.f32 %v895, %v896
  %v898 = vsel %vm473, %v787, 0.0
  %v899 = vadd.f32 %v897, %v898
  %v900 = vsel %vm473, %v788, 0.0
  %v901 = vadd.f32 %v899, %v900
  %v902 = vsel %vm473, %v789, 0.0
  %v903 = vadd.f32 %v901, %v902
  %v904 = vsel %vm473, %v790, 0.0
  %v905 = vadd.f32 %v903, %v904
  %v906 = vsel %vm473, %v791, 0.0
  %v907 = vadd.f32 %v905, %v906
  %v908 = vsel %vm473, %v792, 0.0
  %v909 = vadd.f32 %v907, %v908
  %v910 = vsel %vm473, %v793, 0.0
  %v911 = vadd.f32 %v909, %v910
  %v912 = vsel %vm473, %v794, 0.0
  %v913 = vadd.f32 %v911, %v912
  %v914 = vsel %vm473, %v795, 0.0
  %v915 = vadd.f32 %v913, %v914
  %v916 = vsel %vm473, %v796, 0.0
  %v917 = vadd.f32 %v915, %v916
  %v918 = vsel %vm473, %v797, 0.0
  %v919 = vadd.f32 %v917, %v918
  %v920 = vsel %vm473, %v798, 0.0
  %v921 = vadd.f32 %v919, %v920
  %v922 = vsel %vm473, %v799, 0.0
  %v923 = vadd.f32 %v921, %v922
  %v924 = vsel %vm473, %v800, 0.0
  %v925 = vadd.f32 %v923, %v924
  %v926 = vsel %vm473, %v801, 0.0
  %v927 = vadd.f32 %v925, %v926
  %v928 = vsel %vm473, %v802, 0.0
  %v929 = vadd.f32 %v927, %v928
  %v930 = vrot.slane %v929, 4
  %v931 = vadd.f32 %v929, %v930
  %v932 = vrot.slane %v931, 2
  %v933 = vadd.f32 %v931, %v932
  %v934 = vrot.slane %v933, 1
  %v935 = vadd.f32 %v933, %v934
  %v936 = vmul.f32 %v935, %v673
  %v937 = vadd.f32 %v936, 1e-05
  %v938 = vrsqrt.pop %v937
  %v939 = vmul.f32 %v675, %v938
  %v940 = vmul.f32 %v676, %v938
  %v941 = vmul.f32 %v677, %v938
  %v942 = vmul.f32 %v678, %v938
  %v943 = vmul.f32 %v679, %v938
  %v944 = vmul.f32 %v680, %v938
  %v945 = vmul.f32 %v681, %v938
  %v946 = vmul.f32 %v682, %v938
  %v947 = vmul.f32 %v683, %v938
  %v948 = vmul.f32 %v684, %v938
  %v949 = vmul.f32 %v685, %v938
  %v950 = vmul.f32 %v686, %v938
  %v951 = vmul.f32 %v687, %v938
  %v952 = vmul.f32 %v688, %v938
  %v953 = vmul.f32 %v689, %v938
  %v954 = vmul.f32 %v690, %v938
  %v955 = vmul.f32 %v691, %v938
  %v956 = vmul.f32 %v692, %v938
  %v957 = vmul.f32 %v693, %v938
  %v958 = vmul.f32 %v694, %v938
  %v959 = vmul.f32 %v695, %v938
  %v960 = vmul.f32 %v696, %v938
  %v961 = vmul.f32 %v697, %v938
  %v962 = vmul.f32 %v698, %v938
  %v963 = vmul.f32 %v699, %v938
  %v964 = vmul.f32 %v700, %v938
  %v965 = vmul.f32 %v701, %v938
  %v966 = vmul.f32 %v702, %v938
  %v967 = vmul.f32 %v703, %v938
  %v968 = vmul.f32 %v704, %v938
  %v969 = vmul.f32 %v705, %v938
  %v970 = vmul.f32 %v706, %v938
  %v971 = vmul.f32 %v707, %v938
  %v972 = vmul.f32 %v708, %v938
  %v973 = vmul.f32 %v709, %v938
  %v974 = vmul.f32 %v710, %v938
  %v975 = vmul.f32 %v711, %v938
  %v976 = vmul.f32 %v712, %v938
  %v977 = vmul.f32 %v713, %v938
  %v978 = vmul.f32 %v714, %v938
  %v979 = vmul.f32 %v715, %v938
  %v980 = vmul.f32 %v716, %v938
  %v981 = vmul.f32 %v717, %v938
  %v982 = vmul.f32 %v718, %v938
  %v983 = vmul.f32 %v719, %v938
  %v984 = vmul.f32 %v720, %v938
  %v985 = vmul.f32 %v721, %v938
  %v986 = vmul.f32 %v722, %v938
  %v987 = vmul.f32 %v723, %v938
  %v988 = vmul.f32 %v724, %v938
  %v989 = vmul.f32 %v725, %v938
  %v990 = vmul.f32 %v726, %v938
  %v991 = vmul.f32 %v727, %v938
  %v992 = vmul.f32 %v728, %v938
  %v993 = vmul.f32 %v729, %v938
  %v994 = vmul.f32 %v730, %v938
  %v995 = vmul.f32 %v731, %v938
  %v996 = vmul.f32 %v732, %v938
  %v997 = vmul.f32 %v733, %v938
  %v998 = vmul.f32 %v734, %v938
  %v999 = vmul.f32 %v735, %v938
  %v1000 = vmul.f32 %v736, %v938
  %v1001 = vmul.f32 %v737, %v938
  %v1002 = vmul.f32 %v738, %v938
  %v1004 = vlaneseq
  %v1005 = vshrl.u32 %v1004, 7
  %v1006 = vsub.s32 0, %v1005
  %v1007 = vrot.slane %v538, %v1006
  %v1009 = vmul.f32 %v939, %v1007
  %v1010 = vmul.f32 %v940, %v1007
  %v1011 = vmul.f32 %v941, %v1007
  %v1012 = vmul.f32 %v942, %v1007
  %v1013 = vmul.f32 %v943, %v1007
  %v1014 = vmul.f32 %v944, %v1007
  %v1015 = vmul.f32 %v945, %v1007
  %v1016 = vmul.f32 %v946, %v1007
  %v1017 = vmul.f32 %v947, %v1007
  %v1018 = vmul.f32 %v948, %v1007
  %v1019 = vmul.f32 %v949, %v1007
  %v1020 = vmul.f32 %v950, %v1007
  %v1021 = vmul.f32 %v951, %v1007
  %v1022 = vmul.f32 %v952, %v1007
  %v1023 = vmul.f32 %v953, %v1007
  %v1024 = vmul.f32 %v954, %v1007
  %v1025 = vmul.f32 %v955, %v1007
  %v1026 = vmul.f32 %v956, %v1007
  %v1027 = vmul.f32 %v957, %v1007
  %v1028 = vmul.f32 %v958, %v1007
  %v1029 = vmul.f32 %v959, %v1007
  %v1030 = vmul.f32 %v960, %v1007
  %v1031 = vmul.f32 %v961, %v1007
  %v1032 = vmul.f32 %v962, %v1007
  %v1033 = vmul.f32 %v963, %v1007
  %v1034 = vmul.f32 %v964, %v1007
  %v1035 = vmul.f32 %v965, %v1007
  %v1036 = vmul.f32 %v966, %v1007
  %v1037 = vmul.f32 %v967, %v1007
  %v1038 = vmul.f32 %v968, %v1007
  %v1039 = vmul.f32 %v969, %v1007
  %v1040 = vmul.f32 %v970, %v1007
  %v1041 = vmul.f32 %v971, %v1007
  %v1042 = vmul.f32 %v972, %v1007
  %v1043 = vmul.f32 %v973, %v1007
  %v1044 = vmul.f32 %v974, %v1007
  %v1045 = vmul.f32 %v975, %v1007
  %v1046 = vmul.f32 %v976, %v1007
  %v1047 = vmul.f32 %v977, %v1007
  %v1048 = vmul.f32 %v978, %v1007
  %v1049 = vmul.f32 %v979, %v1007
  %v1050 = vmul.f32 %v980, %v1007
  %v1051 = vmul.f32 %v981, %v1007
  %v1052 = vmul.f32 %v982, %v1007
  %v1053 = vmul.f32 %v983, %v1007
  %v1054 = vmul.f32 %v984, %v1007
  %v1055 = vmul.f32 %v985, %v1007
  %v1056 = vmul.f32 %v986, %v1007
  %v1057 = vmul.f32 %v987, %v1007
  %v1058 = vmul.f32 %v988, %v1007
  %v1059 = vmul.f32 %v989, %v1007
  %v1060 = vmul.f32 %v990, %v1007
  %v1061 = vmul.f32 %v991, %v1007
  %v1062 = vmul.f32 %v992, %v1007
  %v1063 = vmul.f32 %v993, %v1007
  %v1064 = vmul.f32 %v994, %v1007
  %v1065 = vmul.f32 %v995, %v1007
  %v1066 = vmul.f32 %v996, %v1007
  %v1067 = vmul.f32 %v997, %v1007
  %v1068 = vmul.f32 %v998, %v1007
  %v1069 = vmul.f32 %v999, %v1007
  %v1070 = vmul.f32 %v1000, %v1007
  %v1071 = vmul.f32 %v1001, %v1007
  %v1072 = vmul.f32 %v1002, %v1007
  %v1074 = vlaneseq
  %v1075 = vshrl.u32 %v1074, 7
  %v1076 = vsub.s32 0, %v1075
  %v1077 = vrot.slane %v539, %v1076
  %v1079 = vadd.f32 %v1009, %v1077
  %v1080 = vadd.f32 %v1010, %v1077
  %v1081 = vadd.f32 %v1011, %v1077
  %v1082 = vadd.f32 %v1012, %v1077
  %v1083 = vadd.f32 %v1013, %v1077
  %v1084 = vadd.f32 %v1014, %v1077
  %v1085 = vadd.f32 %v1015, %v1077
  %v1086 = vadd.f32 %v1016, %v1077
  %v1087 = vadd.f32 %v1017, %v1077
  %v1088 = vadd.f32 %v1018, %v1077
  %v1089 = vadd.f32 %v1019, %v1077
  %v1090 = vadd.f32 %v1020, %v1077
  %v1091 = vadd.f32 %v1021, %v1077
  %v1092 = vadd.f32 %v1022, %v1077
  %v1093 = vadd.f32 %v1023, %v1077
  %v1094 = vadd.f32 %v1024, %v1077
  %v1095 = vadd.f32 %v1025, %v1077
  %v1096 = vadd.f32 %v1026, %v1077
  %v1097 = vadd.f32 %v1027, %v1077
  %v1098 = vadd.f32 %v1028, %v1077
  %v1099 = vadd.f32 %v1029, %v1077
  %v1100 = vadd.f32 %v1030, %v1077
  %v1101 = vadd.f32 %v1031, %v1077
  %v1102 = vadd.f32 %v1032, %v1077
  %v1103 = vadd.f32 %v1033, %v1077
  %v1104 = vadd.f32 %v1034, %v1077
  %v1105 = vadd.f32 %v1035, %v1077
  %v1106 = vadd.f32 %v1036, %v1077
  %v1107 = vadd.f32 %v1037, %v1077
  %v1108 = vadd.f32 %v1038, %v1077
  %v1109 = vadd.f32 %v1039, %v1077
  %v1110 = vadd.f32 %v1040, %v1077
  %v1111 = vadd.f32 %v1041, %v1077
  %v1112 = vadd.f32 %v1042, %v1077
  %v1113 = vadd.f32 %v1043, %v1077
  %v1114 = vadd.f32 %v1044, %v1077
  %v1115 = vadd.f32 %v1045, %v1077
  %v1116 = vadd.f32 %v1046, %v1077
  %v1117 = vadd.f32 %v1047, %v1077
  %v1118 = vadd.f32 %v1048, %v1077
  %v1119 = vadd.f32 %v1049, %v1077
  %v1120 = vadd.f32 %v1050, %v1077
  %v1121 = vadd.f32 %v1051, %v1077
  %v1122 = vadd.f32 %v1052, %v1077
  %v1123 = vadd.f32 %v1053, %v1077
  %v1124 = vadd.f32 %v1054, %v1077
  %v1125 = vadd.f32 %v1055, %v1077
  %v1126 = vadd.f32 %v1056, %v1077
  %v1127 = vadd.f32 %v1057, %v1077
  %v1128 = vadd.f32 %v1058, %v1077
  %v1129 = vadd.f32 %v1059, %v1077
  %v1130 = vadd.f32 %v1060, %v1077
  %v1131 = vadd.f32 %v1061, %v1077
  %v1132 = vadd.f32 %v1062, %v1077
  %v1133 = vadd.f32 %v1063, %v1077
  %v1134 = vadd.f32 %v1064, %v1077
  %v1135 = vadd.f32 %v1065, %v1077
  %v1136 = vadd.f32 %v1066, %v1077
  %v1137 = vadd.f32 %v1067, %v1077
  %v1138 = vadd.f32 %v1068, %v1077
  %v1139 = vadd.f32 %v1069, %v1077
  %v1140 = vadd.f32 %v1070, %v1077
  %v1141 = vadd.f32 %v1071, %v1077
  %v1142 = vadd.f32 %v1072, %v1077
  %v1143 = vmax.f32 %v1079, 0.0
  %v1144 = vmax.f32 %v1080, 0.0
  %v1145 = vmax.f32 %v1081, 0.0
  %v1146 = vmax.f32 %v1082, 0.0
  %v1147 = vmax.f32 %v1083, 0.0
  %v1148 = vmax.f32 %v1084, 0.0
  %v1149 = vmax.f32 %v1085, 0.0
  %v1150 = vmax.f32 %v1086, 0.0
  %v1151 = vmax.f32 %v1087, 0.0
  %v1152 = vmax.f32 %v1088, 0.0
  %v1153 = vmax.f32 %v1089, 0.0
  %v1154 = vmax.f32 %v1090, 0.0
  %v1155 = vmax.f32 %v1091, 0.0
  %v1156 = vmax.f32 %v1092, 0.0
  %v1157 = vmax.f32 %v1093, 0.0
  %v1158 = vmax.f32 %v1094, 0.0
  %v1159 = vmax.f32 %v1095, 0.0
  %v1160 = vmax.f32 %v1096, 0.0
  %v1161 = vmax.f32 %v1097, 0.0
  %v1162 = vmax.f32 %v1098, 0.0
  %v1163 = vmax.f32 %v1099, 0.0
  %v1164 = vmax.f32 %v1100, 0.0
  %v1165 = vmax.f32 %v1101, 0.0
  %v1166 = vmax.f32 %v1102, 0.0
  %v1167 = vmax.f32 %v1103, 0.0
  %v1168 = vmax.f32 %v1104, 0.0
  %v1169 = vmax.f32 %v1105, 0.0
  %v1170 = vmax.f32 %v1106, 0.0
  %v1171 = vmax.f32 %v1107, 0.0
  %v1172 = vmax.f32 %v1108, 0.0
  %v1173 = vmax.f32 %v1109, 0.0
  %v1174 = vmax.f32 %v1110, 0.0
  %v1175 = vmax.f32 %v1111, 0.0
  %v1176 = vmax.f32 %v1112, 0.0
  %v1177 = vmax.f32 %v1113, 0.0
  %v1178 = vmax.f32 %v1114, 0.0
  %v1179 = vmax.f32 %v1115, 0.0
  %v1180 = vmax.f32 %v1116, 0.0
  %v1181 = vmax.f32 %v1117, 0.0
  %v1182 = vmax.f32 %v1118, 0.0
  %v1183 = vmax.f32 %v1119, 0.0
  %v1184 = vmax.f32 %v1120, 0.0
  %v1185 = vmax.f32 %v1121, 0.0
  %v1186 = vmax.f32 %v1122, 0.0
  %v1187 = vmax.f32 %v1123, 0.0
  %v1188 = vmax.f32 %v1124, 0.0
  %v1189 = vmax.f32 %v1125, 0.0
  %v1190 = vmax.f32 %v1126, 0.0
  %v1191 = vmax.f32 %v1127, 0.0
  %v1192 = vmax.f32 %v1128, 0.0
  %v1193 = vmax.f32 %v1129, 0.0
  %v1194 = vmax.f32 %v1130, 0.0
  %v1195 = vmax.f32 %v1131, 0.0
  %v1196 = vmax.f32 %v1132, 0.0
  %v1197 = vmax.f32 %v1133, 0.0
  %v1198 = vmax.f32 %v1134, 0.0
  %v1199 = vmax.f32 %v1135, 0.0
  %v1200 = vmax.f32 %v1136, 0.0
  %v1201 = vmax.f32 %v1137, 0.0
  %v1202 = vmax.f32 %v1138, 0.0
  %v1203 = vmax.f32 %v1139, 0.0
  %v1204 = vmax.f32 %v1140, 0.0
  %v1205 = vmax.f32 %v1141, 0.0
  %v1206 = vmax.f32 %v1142, 0.0
  %1207 = vst.msk [vmem:[%s7] sm:$0xff] %vm473, %v1143
  %1208 = vst.msk [vmem:[%s7 + $0x8] sm:$0xff] %vm473, %v1144
  %1209 = vst.msk [vmem:[%s7 + $0x10] sm:$0xff] %vm473, %v1145
  %1210 = vst.msk [vmem:[%s7 + $0x18] sm:$0xff] %vm473, %v1146
  %1211 = vst.msk [vmem:[%s7 + $0x20] sm:$0xff] %vm473, %v1147
  %1212 = vst.msk [vmem:[%s7 + $0x28] sm:$0xff] %vm473, %v1148
  %1213 = vst.msk [vmem:[%s7 + $0x30] sm:$0xff] %vm473, %v1149
  %1214 = vst.msk [vmem:[%s7 + $0x38] sm:$0xff] %vm473, %v1150
  %1215 = vst.msk [vmem:[%s7 + $0x40] sm:$0xff] %vm473, %v1151
  %1216 = vst.msk [vmem:[%s7 + $0x48] sm:$0xff] %vm473, %v1152
  %1217 = vst.msk [vmem:[%s7 + $0x50] sm:$0xff] %vm473, %v1153
  %1218 = vst.msk [vmem:[%s7 + $0x58] sm:$0xff] %vm473, %v1154
  %1219 = vst.msk [vmem:[%s7 + $0x60] sm:$0xff] %vm473, %v1155
  %1220 = vst.msk [vmem:[%s7 + $0x68] sm:$0xff] %vm473, %v1156
  %1221 = vst.msk [vmem:[%s7 + $0x70] sm:$0xff] %vm473, %v1157
  %1222 = vst.msk [vmem:[%s7 + $0x78] sm:$0xff] %vm473, %v1158
  %1223 = vst.msk [vmem:[%s7 + $0x80] sm:$0xff] %vm473, %v1159
  %1224 = vst.msk [vmem:[%s7 + $0x88] sm:$0xff] %vm473, %v1160
  %1225 = vst.msk [vmem:[%s7 + $0x90] sm:$0xff] %vm473, %v1161
  %1226 = vst.msk [vmem:[%s7 + $0x98] sm:$0xff] %vm473, %v1162
  %1227 = vst.msk [vmem:[%s7 + $0xa0] sm:$0xff] %vm473, %v1163
  %1228 = vst.msk [vmem:[%s7 + $0xa8] sm:$0xff] %vm473, %v1164
  %1229 = vst.msk [vmem:[%s7 + $0xb0] sm:$0xff] %vm473, %v1165
  %1230 = vst.msk [vmem:[%s7 + $0xb8] sm:$0xff] %vm473, %v1166
  %1231 = vst.msk [vmem:[%s7 + $0xc0] sm:$0xff] %vm473, %v1167
  %1232 = vst.msk [vmem:[%s7 + $0xc8] sm:$0xff] %vm473, %v1168
  %1233 = vst.msk [vmem:[%s7 + $0xd0] sm:$0xff] %vm473, %v1169
  %1234 = vst.msk [vmem:[%s7 + $0xd8] sm:$0xff] %vm473, %v1170
  %1235 = vst.msk [vmem:[%s7 + $0xe0] sm:$0xff] %vm473, %v1171
  %1236 = vst.msk [vmem:[%s7 + $0xe8] sm:$0xff] %vm473, %v1172
  %1237 = vst.msk [vmem:[%s7 + $0xf0] sm:$0xff] %vm473, %v1173
  %1238 = vst.msk [vmem:[%s7 + $0xf8] sm:$0xff] %vm473, %v1174
  %1239 = vst.msk [vmem:[%s7 + $0x100] sm:$0xff] %vm473, %v1175
  %1240 = vst.msk [vmem:[%s7 + $0x108] sm:$0xff] %vm473, %v1176
  %1241 = vst.msk [vmem:[%s7 + $0x110] sm:$0xff] %vm473, %v1177
  %1242 = vst.msk [vmem:[%s7 + $0x118] sm:$0xff] %vm473, %v1178
  %1243 = vst.msk [vmem:[%s7 + $0x120] sm:$0xff] %vm473, %v1179
  %1244 = vst.msk [vmem:[%s7 + $0x128] sm:$0xff] %vm473, %v1180
  %1245 = vst.msk [vmem:[%s7 + $0x130] sm:$0xff] %vm473, %v1181
  %1246 = vst.msk [vmem:[%s7 + $0x138] sm:$0xff] %vm473, %v1182
  %1247 = vst.msk [vmem:[%s7 + $0x140] sm:$0xff] %vm473, %v1183
  %1248 = vst.msk [vmem:[%s7 + $0x148] sm:$0xff] %vm473, %v1184
  %1249 = vst.msk [vmem:[%s7 + $0x150] sm:$0xff] %vm473, %v1185
  %1250 = vst.msk [vmem:[%s7 + $0x158] sm:$0xff] %vm473, %v1186
  %1251 = vst.msk [vmem:[%s7 + $0x160] sm:$0xff] %vm473, %v1187
  %1252 = vst.msk [vmem:[%s7 + $0x168] sm:$0xff] %vm473, %v1188
  %1253 = vst.msk [vmem:[%s7 + $0x170] sm:$0xff] %vm473, %v1189
  %1254 = vst.msk [vmem:[%s7 + $0x178] sm:$0xff] %vm473, %v1190
  %1255 = vst.msk [vmem:[%s7 + $0x180] sm:$0xff] %vm473, %v1191
  %1256 = vst.msk [vmem:[%s7 + $0x188] sm:$0xff] %vm473, %v1192
  %1257 = vst.msk [vmem:[%s7 + $0x190] sm:$0xff] %vm473, %v1193
  %1258 = vst.msk [vmem:[%s7 + $0x198] sm:$0xff] %vm473, %v1194
  %1259 = vst.msk [vmem:[%s7 + $0x1a0] sm:$0xff] %vm473, %v1195
  %1260 = vst.msk [vmem:[%s7 + $0x1a8] sm:$0xff] %vm473, %v1196
  %1261 = vst.msk [vmem:[%s7 + $0x1b0] sm:$0xff] %vm473, %v1197
  %1262 = vst.msk [vmem:[%s7 + $0x1b8] sm:$0xff] %vm473, %v1198
  %1263 = vst.msk [vmem:[%s7 + $0x1c0] sm:$0xff] %vm473, %v1199
  %1264 = vst.msk [vmem:[%s7 + $0x1c8] sm:$0xff] %vm473, %v1200
  %1265 = vst.msk [vmem:[%s7 + $0x1d0] sm:$0xff] %vm473, %v1201
  %1266 = vst.msk [vmem:[%s7 + $0x1d8] sm:$0xff] %vm473, %v1202
  %1267 = vst.msk [vmem:[%s7 + $0x1e0] sm:$0xff] %vm473, %v1203
  %1268 = vst.msk [vmem:[%s7 + $0x1e8] sm:$0xff] %vm473, %v1204
  %1269 = vst.msk [vmem:[%s7 + $0x1f0] sm:$0xff] %vm473, %v1205
  %1270 = vst.msk [vmem:[%s7 + $0x1f8] sm:$0xff] %vm473, %v1206
  // Predicated region
  $region26: #{dronet_forward.13} parent=0 // pred_check
    _
  $region27: #{dronet_forward.13} parent=0 // pred_check_branch
    %1272 = sbr.rel (0) target = $region29
  $region28: #{dronet_forward.13} parent=0 // pred_region
    _
  $region29: #{dronet_forward.13} parent=0 // pred_fallthru
    _
  // Predicated region
  $region30: #{dronet_forward.13} parent=0 // pred_check
    _
  $region31: #{dronet_forward.13} parent=0 // pred_check_branch
    %1274 = sbr.rel (0) target = $region33
  $region32: #{dronet_forward.13} parent=0 // pred_region
    _
  $region33: #{dronet_forward.13} parent=0 // pred_fallthru
    _
  // Predicated region
  $region34: #{dronet_forward.13} parent=0 // pred_check
    _
  $region35: #{dronet_forward.13} parent=0 // pred_check_branch
    %1276 = sbr.rel (0) target = $region37
  $region36: #{dronet_forward.13} parent=0 // pred_region
    _
  $region37: #{dronet_forward.13} parent=0 // pred_fallthru
    _
  // Predicated region
  $region38: #{dronet_forward.13} parent=0 // pred_check
    _
  $region39: #{dronet_forward.13} parent=0 // pred_check_branch
    %1278 = sbr.rel (0) target = $region41
  $region40: #{dronet_forward.13} parent=0 // pred_region
    _
  $region41: #{dronet_forward.13} parent=0 // pred_fallthru
    _

// kernel: dronet_forward.14
$region0: #{dronet_forward.14}
  #allocation0 [shape = 'u32[]', space=smem, size = 0x4, offset = 0x4, fixed_abs, tag = 'smem constant byte address 0x4 - core index']
  #allocation1 [shape = 'u32[144,128]{1,0:T(1,128)}', space=vmem, size = 0x12000, scoped, tag = 'internal scratch']
  %s0 = inlined_call_operand.vmem [shape: bf16[128,288], index: 0, kind: input, shape index: {}]
  %s1 = inlined_call_operand.vmem [shape: bf16[288,32], index: 1, kind: input, shape index: {}]
  %s2 = inlined_call_operand.vmem [shape: f32[1,32], index: 2, kind: input, shape index: {}]
  %s3 = inlined_call_operand.vmem [shape: f32[1,32], index: 3, kind: input, shape index: {}]
  %s4 = inlined_call_operand.vmem [shape: f32[128,32], index: 4, kind: output, shape index: {}]
  %s5 = sld [smem:[#allocation0]]
  $region26: #{dronet_forward.14} parent=0
    _
  %s7 = ssub.s32 1, %s5
  %s8 = scalar_select 0, %s7, %s5
  // Predicated region
  $region2: #{dronet_forward.14} parent=0 // pred_check
    _
  $region3: #{dronet_forward.14} parent=0 // pred_check_branch
    %10 = sbr.rel (0) target = $region5
  $region4: #{dronet_forward.14} parent=0 // pred_region
    _
  $region5: #{dronet_forward.14} parent=0 // pred_fallthru
    _
  // Predicated region
  $region6: #{dronet_forward.14} parent=0 // pred_check
    _
  $region7: #{dronet_forward.14} parent=0 // pred_check_branch
    %12 = sbr.rel (0) target = $region9
  $region8: #{dronet_forward.14} parent=0 // pred_region
    _
  $region9: #{dronet_forward.14} parent=0 // pred_fallthru
    _
  // Predicated region
  $region10: #{dronet_forward.14} parent=0 // pred_check
    _
  $region11: #{dronet_forward.14} parent=0 // pred_check_branch
    %14 = sbr.rel (0) target = $region13
  $region12: #{dronet_forward.14} parent=0 // pred_region
    _
  $region13: #{dronet_forward.14} parent=0 // pred_fallthru
    _
  // Predicated region
  $region14: #{dronet_forward.14} parent=0 // pred_check
    _
  $region15: #{dronet_forward.14} parent=0 // pred_check_branch
    %16 = sbr.rel (0) target = $region17
  $region16: #{dronet_forward.14} parent=0 // pred_region
    _
  $region17: #{dronet_forward.14} parent=0 // pred_fallthru
    _
  %v18 = vld [vmem:[%s0] sm:$0xff]
  %v19 = vld [vmem:[%s0 + $0x8] sm:$0xf]
  %v20 = vld [vmem:[%s0 + $0xc] sm:$0xff]
  %v21 = vld [vmem:[%s0 + $0x14] sm:$0xf]
  %v22 = vld [vmem:[%s0 + $0x18] sm:$0xff]
  %v23 = vld [vmem:[%s0 + $0x20] sm:$0xf]
  %v24 = vld [vmem:[%s0 + $0x24] sm:$0xff]
  %v25 = vld [vmem:[%s0 + $0x2c] sm:$0xf]
  %v26 = vld [vmem:[%s0 + $0x30] sm:$0xff]
  %v27 = vld [vmem:[%s0 + $0x38] sm:$0xf]
  %v28 = vld [vmem:[%s0 + $0x3c] sm:$0xff]
  %v29 = vld [vmem:[%s0 + $0x44] sm:$0xf]
  %v30 = vld [vmem:[%s0 + $0x48] sm:$0xff]
  %v31 = vld [vmem:[%s0 + $0x50] sm:$0xf]
  %v32 = vld [vmem:[%s0 + $0x54] sm:$0xff]
  %v33 = vld [vmem:[%s0 + $0x5c] sm:$0xf]
  %v34 = vld [vmem:[%s0 + $0x60] sm:$0xff]
  %v35 = vld [vmem:[%s0 + $0x68] sm:$0xf]
  %v36 = vld [vmem:[%s0 + $0x6c] sm:$0xff]
  %v37 = vld [vmem:[%s0 + $0x74] sm:$0xf]
  %v38 = vld [vmem:[%s0 + $0x78] sm:$0xff]
  %v39 = vld [vmem:[%s0 + $0x80] sm:$0xf]
  %v40 = vld [vmem:[%s0 + $0x84] sm:$0xff]
  %v41 = vld [vmem:[%s0 + $0x8c] sm:$0xf]
  %v42 = vld [vmem:[%s0 + $0x90] sm:$0xff]
  %v43 = vld [vmem:[%s0 + $0x98] sm:$0xf]
  %v44 = vld [vmem:[%s0 + $0x9c] sm:$0xff]
  %v45 = vld [vmem:[%s0 + $0xa4] sm:$0xf]
  %v46 = vld [vmem:[%s0 + $0xa8] sm:$0xff]
  %v47 = vld [vmem:[%s0 + $0xb0] sm:$0xf]
  %v48 = vld [vmem:[%s0 + $0xb4] sm:$0xff]
  %v49 = vld [vmem:[%s0 + $0xbc] sm:$0xf]
  %v50 = vld [vmem:[%s1] sm:$0xf]
  %v51 = vld [vmem:[%s1 + $0x4] sm:$0xf]
  %v52 = vld [vmem:[%s1 + $0x8] sm:$0xf]
  %v53 = vld [vmem:[%s1 + $0xc] sm:$0xf]
  %v54 = vld [vmem:[%s1 + $0x10] sm:$0xf]
  %v55 = vld [vmem:[%s1 + $0x14] sm:$0xf]
  %v56 = vld [vmem:[%s1 + $0x18] sm:$0xf]
  %v57 = vld [vmem:[%s1 + $0x1c] sm:$0xf]
  %v58 = vld [vmem:[%s1 + $0x20] sm:$0xf]
  %v59 = vld [vmem:[%s1 + $0x24] sm:$0xf]
  %v60 = vld [vmem:[%s1 + $0x28] sm:$0xf]
  %v61 = vld [vmem:[%s1 + $0x2c] sm:$0xf]
  %v62 = vld [vmem:[%s1 + $0x30] sm:$0xf]
  %v63 = vld [vmem:[%s1 + $0x34] sm:$0xf]
  %v64 = vld [vmem:[%s1 + $0x38] sm:$0xf]
  %v65 = vld [vmem:[%s1 + $0x3c] sm:$0xf]
  %v66 = vld [vmem:[%s1 + $0x40] sm:$0xf]
  %v67 = vld [vmem:[%s1 + $0x44] sm:$0xf]
  %v68 = vld [vmem:[%s1 + $0x48] sm:$0xf]
  %v69 = vld [vmem:[%s1 + $0x4c] sm:$0xf]
  %v70 = vld [vmem:[%s1 + $0x50] sm:$0xf]
  %v71 = vld [vmem:[%s1 + $0x54] sm:$0xf]
  %v72 = vld [vmem:[%s1 + $0x58] sm:$0xf]
  %v73 = vld [vmem:[%s1 + $0x5c] sm:$0xf]
  %v74 = vld [vmem:[%s1 + $0x60] sm:$0xf]
  %v75 = vld [vmem:[%s1 + $0x64] sm:$0xf]
  %v76 = vld [vmem:[%s1 + $0x68] sm:$0xf]
  %v77 = vld [vmem:[%s1 + $0x6c] sm:$0xf]
  %v78 = vld [vmem:[%s1 + $0x70] sm:$0xf]
  %v79 = vld [vmem:[%s1 + $0x74] sm:$0xf]
  %v80 = vld [vmem:[%s1 + $0x78] sm:$0xf]
  %v81 = vld [vmem:[%s1 + $0x7c] sm:$0xf]
  %v82 = vld [vmem:[%s1 + $0x80] sm:$0xf]
  %v83 = vld [vmem:[%s1 + $0x84] sm:$0xf]
  %v84 = vld [vmem:[%s1 + $0x88] sm:$0xf]
  %v85 = vld [vmem:[%s1 + $0x8c] sm:$0xf]
  %v118 = vunpack.c.l.b16 %v18
  %v119 = vunpack.c.h.b16 %v18
  %v120 = vunpack.c.l.b16 %v19
  %v121 = vunpack.c.l.b16 %v20
  %v122 = vunpack.c.h.b16 %v20
  %v123 = vunpack.c.l.b16 %v21
  %v124 = vunpack.c.l.b16 %v22
  %v125 = vunpack.c.h.b16 %v22
  %v126 = vunpack.c.l.b16 %v23
  %v127 = vunpack.c.l.b16 %v24
  %v128 = vunpack.c.h.b16 %v24
  %v129 = vunpack.c.l.b16 %v25
  %v130 = vunpack.c.l.b16 %v26
  %v131 = vunpack.c.h.b16 %v26
  %v132 = vunpack.c.l.b16 %v27
  %v133 = vunpack.c.l.b16 %v28
  %v134 = vunpack.c.h.b16 %v28
  %v135 = vunpack.c.l.b16 %v29
  %v136 = vunpack.c.l.b16 %v30
  %v137 = vunpack.c.h.b16 %v30
  %v138 = vunpack.c.l.b16 %v31
  %v139 = vunpack.c.l.b16 %v32
  %v140 = vunpack.c.h.b16 %v32
  %v141 = vunpack.c.l.b16 %v33
  %v142 = vunpack.c.l.b16 %v34
  %v143 = vunpack.c.h.b16 %v34
  %v144 = vunpack.c.l.b16 %v35
  %v145 = vunpack.c.l.b16 %v36
  %v146 = vunpack.c.h.b16 %v36
  %v147 = vunpack.c.l.b16 %v37
  %v148 = vunpack.c.l.b16 %v38
  %v149 = vunpack.c.h.b16 %v38
  %v150 = vunpack.c.l.b16 %v39
  %v151 = vunpack.c.l.b16 %v40
  %v152 = vunpack.c.h.b16 %v40
  %v153 = vunpack.c.l.b16 %v41
  %v154 = vunpack.c.l.b16 %v42
  %v155 = vunpack.c.h.b16 %v42
  %v156 = vunpack.c.l.b16 %v43
  %v157 = vunpack.c.l.b16 %v44
  %v158 = vunpack.c.h.b16 %v44
  %v159 = vunpack.c.l.b16 %v45
  %v160 = vunpack.c.l.b16 %v46
  %v161 = vunpack.c.h.b16 %v46
  %v162 = vunpack.c.l.b16 %v47
  %v163 = vunpack.c.l.b16 %v48
  %v164 = vunpack.c.h.b16 %v48
  %v165 = vunpack.c.l.b16 %v49
  %v166 = vpack.c.b16 %v121, %v118
  %v167 = vpack.c.b16 %v122, %v119
  %v168 = vpack.c.b16 %v123, %v120
  %v169 = vpack.c.b16 %v127, %v124
  %v170 = vpack.c.b16 %v128, %v125
  %v171 = vpack.c.b16 %v129, %v126
  %v172 = vpack.c.b16 %v133, %v130
  %v173 = vpack.c.b16 %v134, %v131
  %v174 = vpack.c.b16 %v135, %v132
  %v175 = vpack.c.b16 %v139, %v136
  %v176 = vpack.c.b16 %v140, %v137
  %v177 = vpack.c.b16 %v141, %v138
  %v178 = vpack.c.b16 %v145, %v142
  %v179 = vpack.c.b16 %v146, %v143
  %v180 = vpack.c.b16 %v147, %v144
  %v181 = vpack.c.b16 %v151, %v148
  %v182 = vpack.c.b16 %v152, %v149
  %v183 = vpack.c.b16 %v153, %v150
  %v184 = vpack.c.b16 %v157, %v154
  %v185 = vpack.c.b16 %v158, %v155
  %v186 = vpack.c.b16 %v159, %v156
  %v187 = vpack.c.b16 %v163, %v160
  %v188 = vpack.c.b16 %v164, %v161
  %v189 = vpack.c.b16 %v165, %v162
  %v242 = vunpack.c.l.b16 %v50
  %v243 = vunpack.c.l.b16 %v51
  %v244 = vunpack.c.l.b16 %v52
  %v245 = vunpack.c.l.b16 %v53
  %v246 = vunpack.c.l.b16 %v54
  %v247 = vunpack.c.l.b16 %v55
  %v248 = vunpack.c.l.b16 %v56
  %v249 = vunpack.c.l.b16 %v57
  %v250 = vunpack.c.l.b16 %v58
  %v251 = vunpack.c.l.b16 %v59
  %v252 = vunpack.c.l.b16 %v60
  %v253 = vunpack.c.l.b16 %v61
  %v254 = vunpack.c.l.b16 %v62
  %v255 = vunpack.c.l.b16 %v63
  %v256 = vunpack.c.l.b16 %v64
  %v257 = vunpack.c.l.b16 %v65
  %v258 = vunpack.c.l.b16 %v66
  %v259 = vunpack.c.l.b16 %v67
  %v260 = vunpack.c.l.b16 %v68
  %v261 = vunpack.c.l.b16 %v69
  %v262 = vunpack.c.l.b16 %v70
  %v263 = vunpack.c.l.b16 %v71
  %v264 = vunpack.c.l.b16 %v72
  %v265 = vunpack.c.l.b16 %v73
  %v266 = vunpack.c.l.b16 %v74
  %v267 = vunpack.c.l.b16 %v75
  %v268 = vunpack.c.l.b16 %v76
  %v269 = vunpack.c.l.b16 %v77
  %v270 = vunpack.c.l.b16 %v78
  %v271 = vunpack.c.l.b16 %v79
  %v272 = vunpack.c.l.b16 %v80
  %v273 = vunpack.c.l.b16 %v81
  %v274 = vunpack.c.l.b16 %v82
  %v275 = vunpack.c.l.b16 %v83
  %v276 = vunpack.c.l.b16 %v84
  %v277 = vunpack.c.l.b16 %v85
  %v278 = vpack.c.b16 %v243, %v242
  %v279 = vpack.c.b16 %v245, %v244
  %v280 = vpack.c.b16 %v247, %v246
  %v281 = vpack.c.b16 %v249, %v248
  %v282 = vpack.c.b16 %v251, %v250
  %v283 = vpack.c.b16 %v253, %v252
  %v284 = vpack.c.b16 %v255, %v254
  %v285 = vpack.c.b16 %v257, %v256
  %v286 = vpack.c.b16 %v259, %v258
  %v287 = vpack.c.b16 %v261, %v260
  %v288 = vpack.c.b16 %v263, %v262
  %v289 = vpack.c.b16 %v265, %v264
  %v290 = vpack.c.b16 %v267, %v266
  %v291 = vpack.c.b16 %v269, %v268
  %v292 = vpack.c.b16 %v271, %v270
  %v293 = vpack.c.b16 %v273, %v272
  %v294 = vpack.c.b16 %v275, %v274
  %v295 = vpack.c.b16 %v277, %v276
  %vm314 = vcmask 261120
  %v316 = vsel %vm314, %v168, 0
  %v319 = vsel %vm314, %v171, 0
  %v322 = vsel %vm314, %v174, 0
  %v325 = vsel %vm314, %v177, 0
  %v328 = vsel %vm314, %v180, 0
  %v331 = vsel %vm314, %v183, 0
  %v334 = vsel %vm314, %v186, 0
  %v337 = vsel %vm314, %v189, 0
  %339 = vmatprep.subr.bf16.mxu0 0
  %340 = vmatpush1.bf16.msra.mxu0 %v285
  %341 = vmatprep.subr.bf16.mxu0 0
  %342 = vmatpush1.bf16.msra.mxu0 %v284
  %343 = vmatprep.subr.bf16.mxu0 0
  %344 = vmatpush1.bf16.msra.mxu0 %v283
  %345 = vmatprep.subr.bf16.mxu0 0
  %346 = vmatpush1.bf16.msra.mxu0 %v282
  %347 = vmatprep.subr.bf16.mxu0 0
  %348 = vmatpush1.bf16.msra.mxu0 %v281
  %349 = vmatprep.subr.bf16.mxu0 0
  %350 = vmatpush1.bf16.msra.mxu0 %v280
  %351 = vmatprep.subr.bf16.mxu0 0
  %352 = vmatpush1.bf16.msra.mxu0 %v279
  %353 = vmatprep.subr.bf16.mxu0 0
  %354 = vmatpush1.bf16.msra.mxu0 %v278
  %355 = vmatprep.subr.bf16.mxu0 0
  %356 = vmatpush2.bf16.msra.mxu0 %v293
  %357 = vmatprep.subr.bf16.mxu0 0
  %358 = vmatpush2.bf16.msra.mxu0 %v292
  %359 = vmatprep.subr.bf16.mxu0 0
  %360 = vmatpush2.bf16.msra.mxu0 %v291
  %361 = vmatprep.subr.bf16.mxu0 0
  %362 = vmatpush2.bf16.msra.mxu0 %v290
  %363 = vmatprep.subr.bf16.mxu0 0
  %364 = vmatpush2.bf16.msra.mxu0 %v289
  %365 = vmatprep.subr.bf16.mxu0 0
  %366 = vmatpush2.bf16.msra.mxu0 %v288
  %367 = vmatprep.subr.bf16.mxu0 0
  %368 = vmatpush2.bf16.msra.mxu0 %v287
  %369 = vmatprep.subr.bf16.mxu0 0
  %370 = vmatpush2.bf16.msra.mxu0 %v286
  %371 = vmatprep.mubr.bf16.mxu0 %v167
  %372 = vmatmul.mubr.bf16.gmra.mxu0 %v166
  %v373 = vpop.f32.mrf.mxu0
  %v374 = vadd.f32 0.0, %v373
  %v375 = vpop.f32.mrf.mxu0
  %v376 = vpop.f32.mrf.mxu0
  %v377 = vadd.f32 0.0, %v376
  %v378 = vpop.f32.mrf.mxu0
  %379 = vmatprep.mubr.bf16.mxu0 %v170
  %380 = vmatmul.mubr.bf16.gmra.mxu0 %v169
  %v381 = vpop.f32.mrf.mxu0
  %v382 = vadd.f32 0.0, %v381
  %v383 = vpop.f32.mrf.mxu0
  %v384 = vpop.f32.mrf.mxu0
  %v385 = vadd.f32 0.0, %v384
  %v386 = vpop.f32.mrf.mxu0
  %387 = vmatprep.mubr.bf16.mxu0 %v173
  %388 = vmatmul.mubr.bf16.gmra.mxu0 %v172
  %v389 = vpop.f32.mrf.mxu0
  %v390 = vadd.f32 0.0, %v389
  %v391 = vpop.f32.mrf.mxu0
  %v392 = vpop.f32.mrf.mxu0
  %v393 = vadd.f32 0.0, %v392
  %v394 = vpop.f32.mrf.mxu0
  %395 = vmatprep.mubr.bf16.mxu0 %v176
  %396 = vmatmul.mubr.bf16.gmra.mxu0 %v175
  %v397 = vpop.f32.mrf.mxu0
  %v398 = vadd.f32 0.0, %v397
  %v399 = vpop.f32.mrf.mxu0
  %v400 = vpop.f32.mrf.mxu0
  %v401 = vadd.f32 0.0, %v400
  %v402 = vpop.f32.mrf.mxu0
  %403 = vmatprep.mubr.bf16.mxu0 %v179
  %404 = vmatmul.mubr.bf16.gmra.mxu0 %v178
  %v405 = vpop.f32.mrf.mxu0
  %v406 = vadd.f32 0.0, %v405
  %v407 = vpop.f32.mrf.mxu0
  %v408 = vpop.f32.mrf.mxu0
  %v409 = vadd.f32 0.0, %v408
  %v410 = vpop.f32.mrf.mxu0
  %411 = vmatprep.mubr.bf16.mxu0 %v182
  %412 = vmatmul.mubr.bf16.gmra.mxu0 %v181
  %v413 = vpop.f32.mrf.mxu0
  %v414 = vadd.f32 0.0, %v413
  %v415 = vpop.f32.mrf.mxu0
  %v416 = vpop.f32.mrf.mxu0
  %v417 = vadd.f32 0.0, %v416
  %v418 = vpop.f32.mrf.mxu0
  %419 = vmatprep.mubr.bf16.mxu0 %v185
  %420 = vmatmul.mubr.bf16.gmra.mxu0 %v184
  %v421 = vpop.f32.mrf.mxu0
  %v422 = vadd.f32 0.0, %v421
  %v423 = vpop.f32.mrf.mxu0
  %v424 = vpop.f32.mrf.mxu0
  %v425 = vadd.f32 0.0, %v424
  %v426 = vpop.f32.mrf.mxu0
  %427 = vmatprep.mubr.bf16.mxu0 %v188
  %428 = vmatmul.mubr.bf16.gmra.mxu0 %v187
  %v429 = vpop.f32.mrf.mxu0
  %v430 = vadd.f32 0.0, %v429
  %v431 = vpop.f32.mrf.mxu0
  %v432 = vpop.f32.mrf.mxu0
  %v433 = vadd.f32 0.0, %v432
  %v434 = vpop.f32.mrf.mxu0
  %435 = vdwg.mxu0
  %436 = vmatprep.subr.bf16.mxu0 0
  %437 = vmatpush1.bf16.msra.mxu0 0
  %438 = vmatprep.subr.bf16.mxu0 0
  %439 = vmatpush1.bf16.msra.mxu0 0
  %440 = vmatprep.subr.bf16.mxu0 0
  %441 = vmatpush1.bf16.msra.mxu0 0
  %442 = vmatprep.subr.bf16.mxu0 0
  %443 = vmatpush1.bf16.msra.mxu0 0
  %444 = vmatprep.subr.bf16.mxu0 0
  %445 = vmatpush1.bf16.msra.mxu0 0
  %446 = vmatprep.subr.bf16.mxu0 0
  %447 = vmatpush1.bf16.msra.mxu0 0
  %448 = vmatprep.subr.bf16.mxu0 0
  %449 = vmatpush1.bf16.msra.mxu0 %v295
  %450 = vmatprep.subr.bf16.mxu0 0
  %451 = vmatpush1.bf16.msra.mxu0 %v294
  %452 = vmatprep.subr.bf16.mxu0 0
  %453 = vmatpush2.bf16.msra.mxu0 0
  %454 = vmatprep.subr.bf16.mxu0 0
  %455 = vmatpush2.bf16.msra.mxu0 0
  %456 = vmatprep.subr.bf16.mxu0 0
  %457 = vmatpush2.bf16.msra.mxu0 0
  %458 = vmatprep.subr.bf16.mxu0 0
  %459 = vmatpush2.bf16.msra.mxu0 0
  %460 = vmatprep.subr.bf16.mxu0 0
  %461 = vmatpush2.bf16.msra.mxu0 0
  %462 = vmatprep.subr.bf16.mxu0 0
  %463 = vmatpush2.bf16.msra.mxu0 0
  %464 = vmatprep.subr.bf16.mxu0 0
  %465 = vmatpush2.bf16.msra.mxu0 0
  %466 = vmatprep.subr.bf16.mxu0 0
  %467 = vmatpush2.bf16.msra.mxu0 0
  %468 = vmatprep.mubr.bf16.mxu0 0
  %469 = vmatmul.mubr.bf16.gmra.mxu0 %v316
  %v470 = vpop.f32.mrf.mxu0
  %v471 = vadd.f32 %v374, %v470
  %v472 = vpop.f32.mrf.mxu0
  %v473 = vpop.f32.mrf.mxu0
  %v474 = vadd.f32 %v377, %v473
  %v475 = vpop.f32.mrf.mxu0
  %476 = vmatprep.mubr.bf16.mxu0 0
  %477 = vmatmul.mubr.bf16.gmra.mxu0 %v319
  %v478 = vpop.f32.mrf.mxu0
  %v479 = vadd.f32 %v382, %v478
  %v480 = vpop.f32.mrf.mxu0
  %v481 = vpop.f32.mrf.mxu0
  %v482 = vadd.f32 %v385, %v481
  %v483 = vpop.f32.mrf.mxu0
  %484 = vmatprep.mubr.bf16.mxu0 0
  %485 = vmatmul.mubr.bf16.gmra.mxu0 %v322
  %v486 = vpop.f32.mrf.mxu0
  %v487 = vadd.f32 %v390, %v486
  %v488 = vpop.f32.mrf.mxu0
  %v489 = vpop.f32.mrf.mxu0
  %v490 = vadd.f32 %v393, %v489
  %v491 = vpop.f32.mrf.mxu0
  %492 = vmatprep.mubr.bf16.mxu0 0
  %493 = vmatmul.mubr.bf16.gmra.mxu0 %v325
  %v494 = vpop.f32.mrf.mxu0
  %v495 = vadd.f32 %v398, %v494
  %v496 = vpop.f32.mrf.mxu0
  %v497 = vpop.f32.mrf.mxu0
  %v498 = vadd.f32 %v401, %v497
  %v499 = vpop.f32.mrf.mxu0
  %500 = vmatprep.mubr.bf16.mxu0 0
  %501 = vmatmul.mubr.bf16.gmra.mxu0 %v328
  %v502 = vpop.f32.mrf.mxu0
  %v503 = vadd.f32 %v406, %v502
  %v504 = vpop.f32.mrf.mxu0
  %v505 = vpop.f32.mrf.mxu0
  %v506 = vadd.f32 %v409, %v505
  %v507 = vpop.f32.mrf.mxu0
  %508 = vmatprep.mubr.bf16.mxu0 0
  %509 = vmatmul.mubr.bf16.gmra.mxu0 %v331
  %v510 = vpop.f32.mrf.mxu0
  %v511 = vadd.f32 %v414, %v510
  %v512 = vpop.f32.mrf.mxu0
  %v513 = vpop.f32.mrf.mxu0
  %v514 = vadd.f32 %v417, %v513
  %v515 = vpop.f32.mrf.mxu0
  %516 = vmatprep.mubr.bf16.mxu0 0
  %517 = vmatmul.mubr.bf16.gmra.mxu0 %v334
  %v518 = vpop.f32.mrf.mxu0
  %v519 = vadd.f32 %v422, %v518
  %v520 = vpop.f32.mrf.mxu0
  %v521 = vpop.f32.mrf.mxu0
  %v522 = vadd.f32 %v425, %v521
  %v523 = vpop.f32.mrf.mxu0
  %524 = vmatprep.mubr.bf16.mxu0 0
  %525 = vmatmul.mubr.bf16.gmra.mxu0 %v337
  %v526 = vpop.f32.mrf.mxu0
  %v527 = vadd.f32 %v430, %v526
  %v528 = vpop.f32.mrf.mxu0
  %v529 = vpop.f32.mrf.mxu0
  %v530 = vadd.f32 %v433, %v529
  %v531 = vpop.f32.mrf.mxu0
  %532 = vdwg.mxu0
  %v533 = vld [vmem:[%s2] sm:$0x1]
  %v534 = vld [vmem:[%s3] sm:$0x1]
  %v535 = vsel %vm314, %v471, 0.0
  %v536 = vsel %vm314, %v474, 0.0
  %v537 = vadd.f32 %v535, %v536
  %v538 = vsel %vm314, %v479, 0.0
  %v539 = vadd.f32 %v537, %v538
  %v540 = vsel %vm314, %v482, 0.0
  %v541 = vadd.f32 %v539, %v540
  %v542 = vsel %vm314, %v487, 0.0
  %v543 = vadd.f32 %v541, %v542
  %v544 = vsel %vm314, %v490, 0.0
  %v545 = vadd.f32 %v543, %v544
  %v546 = vsel %vm314, %v495, 0.0
  %v547 = vadd.f32 %v545, %v546
  %v548 = vsel %vm314, %v498, 0.0
  %v549 = vadd.f32 %v547, %v548
  %v550 = vsel %vm314, %v503, 0.0
  %v551 = vadd.f32 %v549, %v550
  %v552 = vsel %vm314, %v506, 0.0
  %v553 = vadd.f32 %v551, %v552
  %v554 = vsel %vm314, %v511, 0.0
  %v555 = vadd.f32 %v553, %v554
  %v556 = vsel %vm314, %v514, 0.0
  %v557 = vadd.f32 %v555, %v556
  %v558 = vsel %vm314, %v519, 0.0
  %v559 = vadd.f32 %v557, %v558
  %v560 = vsel %vm314, %v522, 0.0
  %v561 = vadd.f32 %v559, %v560
  %v562 = vsel %vm314, %v527, 0.0
  %v563 = vadd.f32 %v561, %v562
  %v564 = vsel %vm314, %v530, 0.0
  %v565 = vadd.f32 %v563, %v564
  %v566 = vrot.slane %v565, 4
  %v567 = vadd.f32 %v565, %v566
  %v568 = vrot.slane %v567, 2
  %v569 = vadd.f32 %v567, %v568
  %v570 = vrot.slane %v569, 1
  %v571 = vadd.f32 %v569, %v570
  %v572 = vrcp.pop 128.0
  %v573 = vmul.f32 %v571, %v572
  %v574 = vsub.f32 %v471, %v573
  %v575 = vsub.f32 %v474, %v573
  %v576 = vsub.f32 %v479, %v573
  %v577 = vsub.f32 %v482, %v573
  %v578 = vsub.f32 %v487, %v573
  %v579 = vsub.f32 %v490, %v573
  %v580 = vsub.f32 %v495, %v573
  %v581 = vsub.f32 %v498, %v573
  %v582 = vsub.f32 %v503, %v573
  %v583 = vsub.f32 %v506, %v573
  %v584 = vsub.f32 %v511, %v573
  %v585 = vsub.f32 %v514, %v573
  %v586 = vsub.f32 %v519, %v573
  %v587 = vsub.f32 %v522, %v573
  %v588 = vsub.f32 %v527, %v573
  %v589 = vsub.f32 %v530, %v573
  %v590 = vmul.f32 %v574, %v574
  %v591 = vmul.f32 %v575, %v575
  %v592 = vmul.f32 %v576, %v576
  %v593 = vmul.f32 %v577, %v577
  %v594 = vmul.f32 %v578, %v578
  %v595 = vmul.f32 %v579, %v579
  %v596 = vmul.f32 %v580, %v580
  %v597 = vmul.f32 %v581, %v581
  %v598 = vmul.f32 %v582, %v582
  %v599 = vmul.f32 %v583, %v583
  %v600 = vmul.f32 %v584, %v584
  %v601 = vmul.f32 %v585, %v585
  %v602 = vmul.f32 %v586, %v586
  %v603 = vmul.f32 %v587, %v587
  %v604 = vmul.f32 %v588, %v588
  %v605 = vmul.f32 %v589, %v589
  %v606 = vsel %vm314, %v590, 0.0
  %v607 = vsel %vm314, %v591, 0.0
  %v608 = vadd.f32 %v606, %v607
  %v609 = vsel %vm314, %v592, 0.0
  %v610 = vadd.f32 %v608, %v609
  %v611 = vsel %vm314, %v593, 0.0
  %v612 = vadd.f32 %v610, %v611
  %v613 = vsel %vm314, %v594, 0.0
  %v614 = vadd.f32 %v612, %v613
  %v615 = vsel %vm314, %v595, 0.0
  %v616 = vadd.f32 %v614, %v615
  %v617 = vsel %vm314, %v596, 0.0
  %v618 = vadd.f32 %v616, %v617
  %v619 = vsel %vm314, %v597, 0.0
  %v620 = vadd.f32 %v618, %v619
  %v621 = vsel %vm314, %v598, 0.0
  %v622 = vadd.f32 %v620, %v621
  %v623 = vsel %vm314, %v599, 0.0
  %v624 = vadd.f32 %v622, %v623
  %v625 = vsel %vm314, %v600, 0.0
  %v626 = vadd.f32 %v624, %v625
  %v627 = vsel %vm314, %v601, 0.0
  %v628 = vadd.f32 %v626, %v627
  %v629 = vsel %vm314, %v602, 0.0
  %v630 = vadd.f32 %v628, %v629
  %v631 = vsel %vm314, %v603, 0.0
  %v632 = vadd.f32 %v630, %v631
  %v633 = vsel %vm314, %v604, 0.0
  %v634 = vadd.f32 %v632, %v633
  %v635 = vsel %vm314, %v605, 0.0
  %v636 = vadd.f32 %v634, %v635
  %v637 = vrot.slane %v636, 4
  %v638 = vadd.f32 %v636, %v637
  %v639 = vrot.slane %v638, 2
  %v640 = vadd.f32 %v638, %v639
  %v641 = vrot.slane %v640, 1
  %v642 = vadd.f32 %v640, %v641
  %v643 = vmul.f32 %v642, %v572
  %v644 = vadd.f32 %v643, 1e-05
  %v645 = vrsqrt.pop %v644
  %v646 = vmul.f32 %v574, %v645
  %v647 = vmul.f32 %v575, %v645
  %v648 = vmul.f32 %v576, %v645
  %v649 = vmul.f32 %v577, %v645
  %v650 = vmul.f32 %v578, %v645
  %v651 = vmul.f32 %v579, %v645
  %v652 = vmul.f32 %v580, %v645
  %v653 = vmul.f32 %v581, %v645
  %v654 = vmul.f32 %v582, %v645
  %v655 = vmul.f32 %v583, %v645
  %v656 = vmul.f32 %v584, %v645
  %v657 = vmul.f32 %v585, %v645
  %v658 = vmul.f32 %v586, %v645
  %v659 = vmul.f32 %v587, %v645
  %v660 = vmul.f32 %v588, %v645
  %v661 = vmul.f32 %v589, %v645
  %v663 = vlaneseq
  %v664 = vshrl.u32 %v663, 7
  %v665 = vsub.s32 0, %v664
  %v666 = vrot.slane %v533, %v665
  %v668 = vmul.f32 %v646, %v666
  %v669 = vmul.f32 %v647, %v666
  %v670 = vmul.f32 %v648, %v666
  %v671 = vmul.f32 %v649, %v666
  %v672 = vmul.f32 %v650, %v666
  %v673 = vmul.f32 %v651, %v666
  %v674 = vmul.f32 %v652, %v666
  %v675 = vmul.f32 %v653, %v666
  %v676 = vmul.f32 %v654, %v666
  %v677 = vmul.f32 %v655, %v666
  %v678 = vmul.f32 %v656, %v666
  %v679 = vmul.f32 %v657, %v666
  %v680 = vmul.f32 %v658, %v666
  %v681 = vmul.f32 %v659, %v666
  %v682 = vmul.f32 %v660, %v666
  %v683 = vmul.f32 %v661, %v666
  %v685 = vlaneseq
  %v686 = vshrl.u32 %v685, 7
  %v687 = vsub.s32 0, %v686
  %v688 = vrot.slane %v534, %v687
  %v690 = vadd.f32 %v668, %v688
  %v691 = vadd.f32 %v669, %v688
  %v692 = vadd.f32 %v670, %v688
  %v693 = vadd.f32 %v671, %v688
  %v694 = vadd.f32 %v672, %v688
  %v695 = vadd.f32 %v673, %v688
  %v696 = vadd.f32 %v674, %v688
  %v697 = vadd.f32 %v675, %v688
  %v698 = vadd.f32 %v676, %v688
  %v699 = vadd.f32 %v677, %v688
  %v700 = vadd.f32 %v678, %v688
  %v701 = vadd.f32 %v679, %v688
  %v702 = vadd.f32 %v680, %v688
  %v703 = vadd.f32 %v681, %v688
  %v704 = vadd.f32 %v682, %v688
  %v705 = vadd.f32 %v683, %v688
  %v706 = vmax.f32 %v690, 0.0
  %v707 = vmax.f32 %v691, 0.0
  %v708 = vmax.f32 %v692, 0.0
  %v709 = vmax.f32 %v693, 0.0
  %v710 = vmax.f32 %v694, 0.0
  %v711 = vmax.f32 %v695, 0.0
  %v712 = vmax.f32 %v696, 0.0
  %v713 = vmax.f32 %v697, 0.0
  %v714 = vmax.f32 %v698, 0.0
  %v715 = vmax.f32 %v699, 0.0
  %v716 = vmax.f32 %v700, 0.0
  %v717 = vmax.f32 %v701, 0.0
  %v718 = vmax.f32 %v702, 0.0
  %v719 = vmax.f32 %v703, 0.0
  %v720 = vmax.f32 %v704, 0.0
  %v721 = vmax.f32 %v705, 0.0
  %722 = vst.msk [vmem:[%s4] sm:$0xff] %vm314, %v706
  %723 = vst.msk [vmem:[%s4 + $0x8] sm:$0xff] %vm314, %v707
  %724 = vst.msk [vmem:[%s4 + $0x10] sm:$0xff] %vm314, %v708
  %725 = vst.msk [vmem:[%s4 + $0x18] sm:$0xff] %vm314, %v709
  %726 = vst.msk [vmem:[%s4 + $0x20] sm:$0xff] %vm314, %v710
  %727 = vst.msk [vmem:[%s4 + $0x28] sm:$0xff] %vm314, %v711
  %728 = vst.msk [vmem:[%s4 + $0x30] sm:$0xff] %vm314, %v712
  %729 = vst.msk [vmem:[%s4 + $0x38] sm:$0xff] %vm314, %v713
  %730 = vst.msk [vmem:[%s4 + $0x40] sm:$0xff] %vm314, %v714
  %731 = vst.msk [vmem:[%s4 + $0x48] sm:$0xff] %vm314, %v715
  %732 = vst.msk [vmem:[%s4 + $0x50] sm:$0xff] %vm314, %v716
  %733 = vst.msk [vmem:[%s4 + $0x58] sm:$0xff] %vm314, %v717
  %734 = vst.msk [vmem:[%s4 + $0x60] sm:$0xff] %vm314, %v718
  %735 = vst.msk [vmem:[%s4 + $0x68] sm:$0xff] %vm314, %v719
  %736 = vst.msk [vmem:[%s4 + $0x70] sm:$0xff] %vm314, %v720
  %737 = vst.msk [vmem:[%s4 + $0x78] sm:$0xff] %vm314, %v721
  // Predicated region
  $region18: #{dronet_forward.14} parent=0 // pred_check
    _
  $region19: #{dronet_forward.14} parent=0 // pred_check_branch
    %739 = sbr.rel (0) target = $region21
  $region20: #{dronet_forward.14} parent=0 // pred_region
    _
  $region21: #{dronet_forward.14} parent=0 // pred_fallthru
    _
  // Predicated region
  $region22: #{dronet_forward.14} parent=0 // pred_check
    _
  $region23: #{dronet_forward.14} parent=0 // pred_check_branch
    %741 = sbr.rel (0) target = $region25
  $region24: #{dronet_forward.14} parent=0 // pred_region
    _
  $region25: #{dronet_forward.14} parent=0 // pred_fallthru
    _

// kernel: dronet_forward.15
$region0: #{dronet_forward.15}
  #allocation0 [shape = 'u32[]', space=smem, size = 0x4, offset = 0x4, fixed_abs, tag = 'smem constant byte address 0x4 - core index']
  #allocation1 [shape = 'u32[144,128]{1,0:T(1,128)}', space=vmem, size = 0x12000, scoped, tag = 'internal scratch']
  %s0 = inlined_call_operand.vmem [shape: bf16[128,288], index: 0, kind: input, shape index: {}]
  %s1 = inlined_call_operand.vmem [shape: bf16[288,32], index: 1, kind: input, shape index: {}]
  %s2 = inlined_call_operand.vmem [shape: f32[128,32], index: 2, kind: output, shape index: {}]
  %s3 = sld [smem:[#allocation0]]
  $region18: #{dronet_forward.15} parent=0
    _
  %s5 = ssub.s32 1, %s3
  %s6 = scalar_select 0, %s5, %s3
  // Predicated region
  $region2: #{dronet_forward.15} parent=0 // pred_check
    _
  $region3: #{dronet_forward.15} parent=0 // pred_check_branch
    %8 = sbr.rel (0) target = $region5
  $region4: #{dronet_forward.15} parent=0 // pred_region
    _
  $region5: #{dronet_forward.15} parent=0 // pred_fallthru
    _
  // Predicated region
  $region6: #{dronet_forward.15} parent=0 // pred_check
    _
  $region7: #{dronet_forward.15} parent=0 // pred_check_branch
    %10 = sbr.rel (0) target = $region9
  $region8: #{dronet_forward.15} parent=0 // pred_region
    _
  $region9: #{dronet_forward.15} parent=0 // pred_fallthru
    _
  %v12 = vld [vmem:[%s0] sm:$0xff]
  %v13 = vld [vmem:[%s0 + $0x8] sm:$0xf]
  %v14 = vld [vmem:[%s0 + $0xc] sm:$0xff]
  %v15 = vld [vmem:[%s0 + $0x14] sm:$0xf]
  %v16 = vld [vmem:[%s0 + $0x18] sm:$0xff]
  %v17 = vld [vmem:[%s0 + $0x20] sm:$0xf]
  %v18 = vld [vmem:[%s0 + $0x24] sm:$0xff]
  %v19 = vld [vmem:[%s0 + $0x2c] sm:$0xf]
  %v20 = vld [vmem:[%s0 + $0x30] sm:$0xff]
  %v21 = vld [vmem:[%s0 + $0x38] sm:$0xf]
  %v22 = vld [vmem:[%s0 + $0x3c] sm:$0xff]
  %v23 = vld [vmem:[%s0 + $0x44] sm:$0xf]
  %v24 = vld [vmem:[%s0 + $0x48] sm:$0xff]
  %v25 = vld [vmem:[%s0 + $0x50] sm:$0xf]
  %v26 = vld [vmem:[%s0 + $0x54] sm:$0xff]
  %v27 = vld [vmem:[%s0 + $0x5c] sm:$0xf]
  %v28 = vld [vmem:[%s0 + $0x60] sm:$0xff]
  %v29 = vld [vmem:[%s0 + $0x68] sm:$0xf]
  %v30 = vld [vmem:[%s0 + $0x6c] sm:$0xff]
  %v31 = vld [vmem:[%s0 + $0x74] sm:$0xf]
  %v32 = vld [vmem:[%s0 + $0x78] sm:$0xff]
  %v33 = vld [vmem:[%s0 + $0x80] sm:$0xf]
  %v34 = vld [vmem:[%s0 + $0x84] sm:$0xff]
  %v35 = vld [vmem:[%s0 + $0x8c] sm:$0xf]
  %v36 = vld [vmem:[%s0 + $0x90] sm:$0xff]
  %v37 = vld [vmem:[%s0 + $0x98] sm:$0xf]
  %v38 = vld [vmem:[%s0 + $0x9c] sm:$0xff]
  %v39 = vld [vmem:[%s0 + $0xa4] sm:$0xf]
  %v40 = vld [vmem:[%s0 + $0xa8] sm:$0xff]
  %v41 = vld [vmem:[%s0 + $0xb0] sm:$0xf]
  %v42 = vld [vmem:[%s0 + $0xb4] sm:$0xff]
  %v43 = vld [vmem:[%s0 + $0xbc] sm:$0xf]
  %v44 = vld [vmem:[%s1] sm:$0xf]
  %v45 = vld [vmem:[%s1 + $0x4] sm:$0xf]
  %v46 = vld [vmem:[%s1 + $0x8] sm:$0xf]
  %v47 = vld [vmem:[%s1 + $0xc] sm:$0xf]
  %v48 = vld [vmem:[%s1 + $0x10] sm:$0xf]
  %v49 = vld [vmem:[%s1 + $0x14] sm:$0xf]
  %v50 = vld [vmem:[%s1 + $0x18] sm:$0xf]
  %v51 = vld [vmem:[%s1 + $0x1c] sm:$0xf]
  %v52 = vld [vmem:[%s1 + $0x20] sm:$0xf]
  %v53 = vld [vmem:[%s1 + $0x24] sm:$0xf]
  %v54 = vld [vmem:[%s1 + $0x28] sm:$0xf]
  %v55 = vld [vmem:[%s1 + $0x2c] sm:$0xf]
  %v56 = vld [vmem:[%s1 + $0x30] sm:$0xf]
  %v57 = vld [vmem:[%s1 + $0x34] sm:$0xf]
  %v58 = vld [vmem:[%s1 + $0x38] sm:$0xf]
  %v59 = vld [vmem:[%s1 + $0x3c] sm:$0xf]
  %v60 = vld [vmem:[%s1 + $0x40] sm:$0xf]
  %v61 = vld [vmem:[%s1 + $0x44] sm:$0xf]
  %v62 = vld [vmem:[%s1 + $0x48] sm:$0xf]
  %v63 = vld [vmem:[%s1 + $0x4c] sm:$0xf]
  %v64 = vld [vmem:[%s1 + $0x50] sm:$0xf]
  %v65 = vld [vmem:[%s1 + $0x54] sm:$0xf]
  %v66 = vld [vmem:[%s1 + $0x58] sm:$0xf]
  %v67 = vld [vmem:[%s1 + $0x5c] sm:$0xf]
  %v68 = vld [vmem:[%s1 + $0x60] sm:$0xf]
  %v69 = vld [vmem:[%s1 + $0x64] sm:$0xf]
  %v70 = vld [vmem:[%s1 + $0x68] sm:$0xf]
  %v71 = vld [vmem:[%s1 + $0x6c] sm:$0xf]
  %v72 = vld [vmem:[%s1 + $0x70] sm:$0xf]
  %v73 = vld [vmem:[%s1 + $0x74] sm:$0xf]
  %v74 = vld [vmem:[%s1 + $0x78] sm:$0xf]
  %v75 = vld [vmem:[%s1 + $0x7c] sm:$0xf]
  %v76 = vld [vmem:[%s1 + $0x80] sm:$0xf]
  %v77 = vld [vmem:[%s1 + $0x84] sm:$0xf]
  %v78 = vld [vmem:[%s1 + $0x88] sm:$0xf]
  %v79 = vld [vmem:[%s1 + $0x8c] sm:$0xf]
  %v112 = vunpack.c.l.b16 %v12
  %v113 = vunpack.c.h.b16 %v12
  %v114 = vunpack.c.l.b16 %v13
  %v115 = vunpack.c.l.b16 %v14
  %v116 = vunpack.c.h.b16 %v14
  %v117 = vunpack.c.l.b16 %v15
  %v118 = vunpack.c.l.b16 %v16
  %v119 = vunpack.c.h.b16 %v16
  %v120 = vunpack.c.l.b16 %v17
  %v121 = vunpack.c.l.b16 %v18
  %v122 = vunpack.c.h.b16 %v18
  %v123 = vunpack.c.l.b16 %v19
  %v124 = vunpack.c.l.b16 %v20
  %v125 = vunpack.c.h.b16 %v20
  %v126 = vunpack.c.l.b16 %v21
  %v127 = vunpack.c.l.b16 %v22
  %v128 = vunpack.c.h.b16 %v22
  %v129 = vunpack.c.l.b16 %v23
  %v130 = vunpack.c.l.b16 %v24
  %v131 = vunpack.c.h.b16 %v24
  %v132 = vunpack.c.l.b16 %v25
  %v133 = vunpack.c.l.b16 %v26
  %v134 = vunpack.c.h.b16 %v26
  %v135 = vunpack.c.l.b16 %v27
  %v136 = vunpack.c.l.b16 %v28
  %v137 = vunpack.c.h.b16 %v28
  %v138 = vunpack.c.l.b16 %v29
  %v139 = vunpack.c.l.b16 %v30
  %v140 = vunpack.c.h.b16 %v30
  %v141 = vunpack.c.l.b16 %v31
  %v142 = vunpack.c.l.b16 %v32
  %v143 = vunpack.c.h.b16 %v32
  %v144 = vunpack.c.l.b16 %v33
  %v145 = vunpack.c.l.b16 %v34
  %v146 = vunpack.c.h.b16 %v34
  %v147 = vunpack.c.l.b16 %v35
  %v148 = vunpack.c.l.b16 %v36
  %v149 = vunpack.c.h.b16 %v36
  %v150 = vunpack.c.l.b16 %v37
  %v151 = vunpack.c.l.b16 %v38
  %v152 = vunpack.c.h.b16 %v38
  %v153 = vunpack.c.l.b16 %v39
  %v154 = vunpack.c.l.b16 %v40
  %v155 = vunpack.c.h.b16 %v40
  %v156 = vunpack.c.l.b16 %v41
  %v157 = vunpack.c.l.b16 %v42
  %v158 = vunpack.c.h.b16 %v42
  %v159 = vunpack.c.l.b16 %v43
  %v160 = vpack.c.b16 %v115, %v112
  %v161 = vpack.c.b16 %v116, %v113
  %v162 = vpack.c.b16 %v117, %v114
  %v163 = vpack.c.b16 %v121, %v118
  %v164 = vpack.c.b16 %v122, %v119
  %v165 = vpack.c.b16 %v123, %v120
  %v166 = vpack.c.b16 %v127, %v124
  %v167 = vpack.c.b16 %v128, %v125
  %v168 = vpack.c.b16 %v129, %v126
  %v169 = vpack.c.b16 %v133, %v130
  %v170 = vpack.c.b16 %v134, %v131
  %v171 = vpack.c.b16 %v135, %v132
  %v172 = vpack.c.b16 %v139, %v136
  %v173 = vpack.c.b16 %v140, %v137
  %v174 = vpack.c.b16 %v141, %v138
  %v175 = vpack.c.b16 %v145, %v142
  %v176 = vpack.c.b16 %v146, %v143
  %v177 = vpack.c.b16 %v147, %v144
  %v178 = vpack.c.b16 %v151, %v148
  %v179 = vpack.c.b16 %v152, %v149
  %v180 = vpack.c.b16 %v153, %v150
  %v181 = vpack.c.b16 %v157, %v154
  %v182 = vpack.c.b16 %v158, %v155
  %v183 = vpack.c.b16 %v159, %v156
  %v236 = vunpack.c.l.b16 %v44
  %v237 = vunpack.c.l.b16 %v45
  %v238 = vunpack.c.l.b16 %v46
  %v239 = vunpack.c.l.b16 %v47
  %v240 = vunpack.c.l.b16 %v48
  %v241 = vunpack.c.l.b16 %v49
  %v242 = vunpack.c.l.b16 %v50
  %v243 = vunpack.c.l.b16 %v51
  %v244 = vunpack.c.l.b16 %v52
  %v245 = vunpack.c.l.b16 %v53
  %v246 = vunpack.c.l.b16 %v54
  %v247 = vunpack.c.l.b16 %v55
  %v248 = vunpack.c.l.b16 %v56
  %v249 = vunpack.c.l.b16 %v57
  %v250 = vunpack.c.l.b16 %v58
  %v251 = vunpack.c.l.b16 %v59
  %v252 = vunpack.c.l.b16 %v60
  %v253 = vunpack.c.l.b16 %v61
  %v254 = vunpack.c.l.b16 %v62
  %v255 = vunpack.c.l.b16 %v63
  %v256 = vunpack.c.l.b16 %v64
  %v257 = vunpack.c.l.b16 %v65
  %v258 = vunpack.c.l.b16 %v66
  %v259 = vunpack.c.l.b16 %v67
  %v260 = vunpack.c.l.b16 %v68
  %v261 = vunpack.c.l.b16 %v69
  %v262 = vunpack.c.l.b16 %v70
  %v263 = vunpack.c.l.b16 %v71
  %v264 = vunpack.c.l.b16 %v72
  %v265 = vunpack.c.l.b16 %v73
  %v266 = vunpack.c.l.b16 %v74
  %v267 = vunpack.c.l.b16 %v75
  %v268 = vunpack.c.l.b16 %v76
  %v269 = vunpack.c.l.b16 %v77
  %v270 = vunpack.c.l.b16 %v78
  %v271 = vunpack.c.l.b16 %v79
  %v272 = vpack.c.b16 %v237, %v236
  %v273 = vpack.c.b16 %v239, %v238
  %v274 = vpack.c.b16 %v241, %v240
  %v275 = vpack.c.b16 %v243, %v242
  %v276 = vpack.c.b16 %v245, %v244
  %v277 = vpack.c.b16 %v247, %v246
  %v278 = vpack.c.b16 %v249, %v248
  %v279 = vpack.c.b16 %v251, %v250
  %v280 = vpack.c.b16 %v253, %v252
  %v281 = vpack.c.b16 %v255, %v254
  %v282 = vpack.c.b16 %v257, %v256
  %v283 = vpack.c.b16 %v259, %v258
  %v284 = vpack.c.b16 %v261, %v260
  %v285 = vpack.c.b16 %v263, %v262
  %v286 = vpack.c.b16 %v265, %v264
  %v287 = vpack.c.b16 %v267, %v266
  %v288 = vpack.c.b16 %v269, %v268
  %v289 = vpack.c.b16 %v271, %v270
  %vm308 = vcmask 261120
  %v310 = vsel %vm308, %v162, 0
  %v313 = vsel %vm308, %v165, 0
  %v316 = vsel %vm308, %v168, 0
  %v319 = vsel %vm308, %v171, 0
  %v322 = vsel %vm308, %v174, 0
  %v325 = vsel %vm308, %v177, 0
  %v328 = vsel %vm308, %v180, 0
  %v331 = vsel %vm308, %v183, 0
  %333 = vmatprep.subr.bf16.mxu0 0
  %334 = vmatpush1.bf16.msra.mxu0 %v279
  %335 = vmatprep.subr.bf16.mxu0 0
  %336 = vmatpush1.bf16.msra.mxu0 %v278
  %337 = vmatprep.subr.bf16.mxu0 0
  %338 = vmatpush1.bf16.msra.mxu0 %v277
  %339 = vmatprep.subr.bf16.mxu0 0
  %340 = vmatpush1.bf16.msra.mxu0 %v276
  %341 = vmatprep.subr.bf16.mxu0 0
  %342 = vmatpush1.bf16.msra.mxu0 %v275
  %343 = vmatprep.subr.bf16.mxu0 0
  %344 = vmatpush1.bf16.msra.mxu0 %v274
  %345 = vmatprep.subr.bf16.mxu0 0
  %346 = vmatpush1.bf16.msra.mxu0 %v273
  %347 = vmatprep.subr.bf16.mxu0 0
  %348 = vmatpush1.bf16.msra.mxu0 %v272
  %349 = vmatprep.subr.bf16.mxu0 0
  %350 = vmatpush2.bf16.msra.mxu0 %v287
  %351 = vmatprep.subr.bf16.mxu0 0
  %352 = vmatpush2.bf16.msra.mxu0 %v286
  %353 = vmatprep.subr.bf16.mxu0 0
  %354 = vmatpush2.bf16.msra.mxu0 %v285
  %355 = vmatprep.subr.bf16.mxu0 0
  %356 = vmatpush2.bf16.msra.mxu0 %v284
  %357 = vmatprep.subr.bf16.mxu0 0
  %358 = vmatpush2.bf16.msra.mxu0 %v283
  %359 = vmatprep.subr.bf16.mxu0 0
  %360 = vmatpush2.bf16.msra.mxu0 %v282
  %361 = vmatprep.subr.bf16.mxu0 0
  %362 = vmatpush2.bf16.msra.mxu0 %v281
  %363 = vmatprep.subr.bf16.mxu0 0
  %364 = vmatpush2.bf16.msra.mxu0 %v280
  %365 = vmatprep.mubr.bf16.mxu0 %v161
  %366 = vmatmul.mubr.bf16.gmra.mxu0 %v160
  %v367 = vpop.f32.mrf.mxu0
  %v368 = vadd.f32 0.0, %v367
  %v369 = vpop.f32.mrf.mxu0
  %v370 = vpop.f32.mrf.mxu0
  %v371 = vadd.f32 0.0, %v370
  %v372 = vpop.f32.mrf.mxu0
  %373 = vmatprep.mubr.bf16.mxu0 %v164
  %374 = vmatmul.mubr.bf16.gmra.mxu0 %v163
  %v375 = vpop.f32.mrf.mxu0
  %v376 = vadd.f32 0.0, %v375
  %v377 = vpop.f32.mrf.mxu0
  %v378 = vpop.f32.mrf.mxu0
  %v379 = vadd.f32 0.0, %v378
  %v380 = vpop.f32.mrf.mxu0
  %381 = vmatprep.mubr.bf16.mxu0 %v167
  %382 = vmatmul.mubr.bf16.gmra.mxu0 %v166
  %v383 = vpop.f32.mrf.mxu0
  %v384 = vadd.f32 0.0, %v383
  %v385 = vpop.f32.mrf.mxu0
  %v386 = vpop.f32.mrf.mxu0
  %v387 = vadd.f32 0.0, %v386
  %v388 = vpop.f32.mrf.mxu0
  %389 = vmatprep.mubr.bf16.mxu0 %v170
  %390 = vmatmul.mubr.bf16.gmra.mxu0 %v169
  %v391 = vpop.f32.mrf.mxu0
  %v392 = vadd.f32 0.0, %v391
  %v393 = vpop.f32.mrf.mxu0
  %v394 = vpop.f32.mrf.mxu0
  %v395 = vadd.f32 0.0, %v394
  %v396 = vpop.f32.mrf.mxu0
  %397 = vmatprep.mubr.bf16.mxu0 %v173
  %398 = vmatmul.mubr.bf16.gmra.mxu0 %v172
  %v399 = vpop.f32.mrf.mxu0
  %v400 = vadd.f32 0.0, %v399
  %v401 = vpop.f32.mrf.mxu0
  %v402 = vpop.f32.mrf.mxu0
  %v403 = vadd.f32 0.0, %v402
  %v404 = vpop.f32.mrf.mxu0
  %405 = vmatprep.mubr.bf16.mxu0 %v176
  %406 = vmatmul.mubr.bf16.gmra.mxu0 %v175
  %v407 = vpop.f32.mrf.mxu0
  %v408 = vadd.f32 0.0, %v407
  %v409 = vpop.f32.mrf.mxu0
  %v410 = vpop.f32.mrf.mxu0
  %v411 = vadd.f32 0.0, %v410
  %v412 = vpop.f32.mrf.mxu0
  %413 = vmatprep.mubr.bf16.mxu0 %v179
  %414 = vmatmul.mubr.bf16.gmra.mxu0 %v178
  %v415 = vpop.f32.mrf.mxu0
  %v416 = vadd.f32 0.0, %v415
  %v417 = vpop.f32.mrf.mxu0
  %v418 = vpop.f32.mrf.mxu0
  %v419 = vadd.f32 0.0, %v418
  %v420 = vpop.f32.mrf.mxu0
  %421 = vmatprep.mubr.bf16.mxu0 %v182
  %422 = vmatmul.mubr.bf16.gmra.mxu0 %v181
  %v423 = vpop.f32.mrf.mxu0
  %v424 = vadd.f32 0.0, %v423
  %v425 = vpop.f32.mrf.mxu0
  %v426 = vpop.f32.mrf.mxu0
  %v427 = vadd.f32 0.0, %v426
  %v428 = vpop.f32.mrf.mxu0
  %429 = vdwg.mxu0
  %430 = vmatprep.subr.bf16.mxu0 0
  %431 = vmatpush1.bf16.msra.mxu0 0
  %432 = vmatprep.subr.bf16.mxu0 0
  %433 = vmatpush1.bf16.msra.mxu0 0
  %434 = vmatprep.subr.bf16.mxu0 0
  %435 = vmatpush1.bf16.msra.mxu0 0
  %436 = vmatprep.subr.bf16.mxu0 0
  %437 = vmatpush1.bf16.msra.mxu0 0
  %438 = vmatprep.subr.bf16.mxu0 0
  %439 = vmatpush1.bf16.msra.mxu0 0
  %440 = vmatprep.subr.bf16.mxu0 0
  %441 = vmatpush1.bf16.msra.mxu0 0
  %442 = vmatprep.subr.bf16.mxu0 0
  %443 = vmatpush1.bf16.msra.mxu0 %v289
  %444 = vmatprep.subr.bf16.mxu0 0
  %445 = vmatpush1.bf16.msra.mxu0 %v288
  %446 = vmatprep.subr.bf16.mxu0 0
  %447 = vmatpush2.bf16.msra.mxu0 0
  %448 = vmatprep.subr.bf16.mxu0 0
  %449 = vmatpush2.bf16.msra.mxu0 0
  %450 = vmatprep.subr.bf16.mxu0 0
  %451 = vmatpush2.bf16.msra.mxu0 0
  %452 = vmatprep.subr.bf16.mxu0 0
  %453 = vmatpush2.bf16.msra.mxu0 0
  %454 = vmatprep.subr.bf16.mxu0 0
  %455 = vmatpush2.bf16.msra.mxu0 0
  %456 = vmatprep.subr.bf16.mxu0 0
  %457 = vmatpush2.bf16.msra.mxu0 0
  %458 = vmatprep.subr.bf16.mxu0 0
  %459 = vmatpush2.bf16.msra.mxu0 0
  %460 = vmatprep.subr.bf16.mxu0 0
  %461 = vmatpush2.bf16.msra.mxu0 0
  %462 = vmatprep.mubr.bf16.mxu0 0
  %463 = vmatmul.mubr.bf16.gmra.mxu0 %v310
  %v464 = vpop.f32.mrf.mxu0
  %v465 = vadd.f32 %v368, %v464
  %v466 = vpop.f32.mrf.mxu0
  %v467 = vpop.f32.mrf.mxu0
  %v468 = vadd.f32 %v371, %v467
  %v469 = vpop.f32.mrf.mxu0
  %470 = vmatprep.mubr.bf16.mxu0 0
  %471 = vmatmul.mubr.bf16.gmra.mxu0 %v313
  %v472 = vpop.f32.mrf.mxu0
  %v473 = vadd.f32 %v376, %v472
  %v474 = vpop.f32.mrf.mxu0
  %v475 = vpop.f32.mrf.mxu0
  %v476 = vadd.f32 %v379, %v475
  %v477 = vpop.f32.mrf.mxu0
  %478 = vmatprep.mubr.bf16.mxu0 0
  %479 = vmatmul.mubr.bf16.gmra.mxu0 %v316
  %v480 = vpop.f32.mrf.mxu0
  %v481 = vadd.f32 %v384, %v480
  %v482 = vpop.f32.mrf.mxu0
  %v483 = vpop.f32.mrf.mxu0
  %v484 = vadd.f32 %v387, %v483
  %v485 = vpop.f32.mrf.mxu0
  %486 = vmatprep.mubr.bf16.mxu0 0
  %487 = vmatmul.mubr.bf16.gmra.mxu0 %v319
  %v488 = vpop.f32.mrf.mxu0
  %v489 = vadd.f32 %v392, %v488
  %v490 = vpop.f32.mrf.mxu0
  %v491 = vpop.f32.mrf.mxu0
  %v492 = vadd.f32 %v395, %v491
  %v493 = vpop.f32.mrf.mxu0
  %494 = vmatprep.mubr.bf16.mxu0 0
  %495 = vmatmul.mubr.bf16.gmra.mxu0 %v322
  %v496 = vpop.f32.mrf.mxu0
  %v497 = vadd.f32 %v400, %v496
  %v498 = vpop.f32.mrf.mxu0
  %v499 = vpop.f32.mrf.mxu0
  %v500 = vadd.f32 %v403, %v499
  %v501 = vpop.f32.mrf.mxu0
  %502 = vmatprep.mubr.bf16.mxu0 0
  %503 = vmatmul.mubr.bf16.gmra.mxu0 %v325
  %v504 = vpop.f32.mrf.mxu0
  %v505 = vadd.f32 %v408, %v504
  %v506 = vpop.f32.mrf.mxu0
  %v507 = vpop.f32.mrf.mxu0
  %v508 = vadd.f32 %v411, %v507
  %v509 = vpop.f32.mrf.mxu0
  %510 = vmatprep.mubr.bf16.mxu0 0
  %511 = vmatmul.mubr.bf16.gmra.mxu0 %v328
  %v512 = vpop.f32.mrf.mxu0
  %v513 = vadd.f32 %v416, %v512
  %v514 = vpop.f32.mrf.mxu0
  %v515 = vpop.f32.mrf.mxu0
  %v516 = vadd.f32 %v419, %v515
  %v517 = vpop.f32.mrf.mxu0
  %518 = vmatprep.mubr.bf16.mxu0 0
  %519 = vmatmul.mubr.bf16.gmra.mxu0 %v331
  %v520 = vpop.f32.mrf.mxu0
  %v521 = vadd.f32 %v424, %v520
  %v522 = vpop.f32.mrf.mxu0
  %v523 = vpop.f32.mrf.mxu0
  %v524 = vadd.f32 %v427, %v523
  %v525 = vpop.f32.mrf.mxu0
  %526 = vdwg.mxu0
  %527 = vst.msk [vmem:[%s2] sm:$0xff] %vm308, %v465
  %528 = vst.msk [vmem:[%s2 + $0x8] sm:$0xff] %vm308, %v468
  %529 = vst.msk [vmem:[%s2 + $0x10] sm:$0xff] %vm308, %v473
  %530 = vst.msk [vmem:[%s2 + $0x18] sm:$0xff] %vm308, %v476
  %531 = vst.msk [vmem:[%s2 + $0x20] sm:$0xff] %vm308, %v481
  %532 = vst.msk [vmem:[%s2 + $0x28] sm:$0xff] %vm308, %v484
  %533 = vst.msk [vmem:[%s2 + $0x30] sm:$0xff] %vm308, %v489
  %534 = vst.msk [vmem:[%s2 + $0x38] sm:$0xff] %vm308, %v492
  %535 = vst.msk [vmem:[%s2 + $0x40] sm:$0xff] %vm308, %v497
  %536 = vst.msk [vmem:[%s2 + $0x48] sm:$0xff] %vm308, %v500
  %537 = vst.msk [vmem:[%s2 + $0x50] sm:$0xff] %vm308, %v505
  %538 = vst.msk [vmem:[%s2 + $0x58] sm:$0xff] %vm308, %v508
  %539 = vst.msk [vmem:[%s2 + $0x60] sm:$0xff] %vm308, %v513
  %540 = vst.msk [vmem:[%s2 + $0x68] sm:$0xff] %vm308, %v516
  %541 = vst.msk [vmem:[%s2 + $0x70] sm:$0xff] %vm308, %v521
  %542 = vst.msk [vmem:[%s2 + $0x78] sm:$0xff] %vm308, %v524
  // Predicated region
  $region10: #{dronet_forward.15} parent=0 // pred_check
    _
  $region11: #{dronet_forward.15} parent=0 // pred_check_branch
    %544 = sbr.rel (0) target = $region13
  $region12: #{dronet_forward.15} parent=0 // pred_region
    _
  $region13: #{dronet_forward.15} parent=0 // pred_fallthru
    _
  // Predicated region
  $region14: #{dronet_forward.15} parent=0 // pred_check
    _
  $region15: #{dronet_forward.15} parent=0 // pred_check_branch
    %546 = sbr.rel (0) target = $region17
  $region16: #{dronet_forward.15} parent=0 // pred_region
    _
  $region17: #{dronet_forward.15} parent=0 // pred_fallthru
    _

// kernel: dronet_forward.16
$region0: #{dronet_forward.16}
  #allocation0 [shape = 'u32[]', space=smem, size = 0x4, offset = 0x4, fixed_abs, tag = 'smem constant byte address 0x4 - core index']
  #allocation1 [shape = 'u32[144,128]{1,0:T(1,128)}', space=vmem, size = 0x12000, scoped, tag = 'internal scratch']
  %s0 = inlined_call_operand.vmem [shape: bf16[128,32], index: 0, kind: input, shape index: {}]
  %s1 = inlined_call_operand.vmem [shape: bf16[32,32], index: 1, kind: input, shape index: {}]
  %s2 = inlined_call_operand.vmem [shape: f32[1,32], index: 2, kind: input, shape index: {}]
  %s3 = inlined_call_operand.vmem [shape: f32[128,32], index: 3, kind: input, shape index: {}]
  %s4 = inlined_call_operand.vmem [shape: f32[1,32], index: 4, kind: input, shape index: {}]
  %s5 = inlined_call_operand.vmem [shape: f32[1,32], index: 5, kind: input, shape index: {}]
  %s6 = inlined_call_operand.vmem [shape: f32[128,32], index: 6, kind: output, shape index: {0}]
  %s7 = inlined_call_operand.vmem [shape: f32[128,32], index: 7, kind: output, shape index: {1}]
  %8 = xla_tuple %s6, %s7
  %s9 = sld [smem:[#allocation0]]
  $region42: #{dronet_forward.16} parent=0
    _
  %s11 = ssub.s32 1, %s9
  %s12 = scalar_select 0, %s11, %s9
  // Predicated region
  $region2: #{dronet_forward.16} parent=0 // pred_check
    _
  $region3: #{dronet_forward.16} parent=0 // pred_check_branch
    %14 = sbr.rel (0) target = $region5
  $region4: #{dronet_forward.16} parent=0 // pred_region
    _
  $region5: #{dronet_forward.16} parent=0 // pred_fallthru
    _
  // Predicated region
  $region6: #{dronet_forward.16} parent=0 // pred_check
    _
  $region7: #{dronet_forward.16} parent=0 // pred_check_branch
    %16 = sbr.rel (0) target = $region9
  $region8: #{dronet_forward.16} parent=0 // pred_region
    _
  $region9: #{dronet_forward.16} parent=0 // pred_fallthru
    _
  // Predicated region
  $region10: #{dronet_forward.16} parent=0 // pred_check
    _
  $region11: #{dronet_forward.16} parent=0 // pred_check_branch
    %18 = sbr.rel (0) target = $region13
  $region12: #{dronet_forward.16} parent=0 // pred_region
    _
  $region13: #{dronet_forward.16} parent=0 // pred_fallthru
    _
  // Predicated region
  $region14: #{dronet_forward.16} parent=0 // pred_check
    _
  $region15: #{dronet_forward.16} parent=0 // pred_check_branch
    %20 = sbr.rel (0) target = $region17
  $region16: #{dronet_forward.16} parent=0 // pred_region
    _
  $region17: #{dronet_forward.16} parent=0 // pred_fallthru
    _
  // Predicated region
  $region18: #{dronet_forward.16} parent=0 // pred_check
    _
  $region19: #{dronet_forward.16} parent=0 // pred_check_branch
    %22 = sbr.rel (0) target = $region21
  $region20: #{dronet_forward.16} parent=0 // pred_region
    _
  $region21: #{dronet_forward.16} parent=0 // pred_fallthru
    _
  // Predicated region
  $region22: #{dronet_forward.16} parent=0 // pred_check
    _
  $region23: #{dronet_forward.16} parent=0 // pred_check_branch
    %24 = sbr.rel (0) target = $region25
  $region24: #{dronet_forward.16} parent=0 // pred_region
    _
  $region25: #{dronet_forward.16} parent=0 // pred_fallthru
    _
  %v26 = vld [vmem:[%s0] sm:$0xf]
  %v27 = vld [vmem:[%s0 + $0x4] sm:$0xf]
  %v28 = vld [vmem:[%s0 + $0x8] sm:$0xf]
  %v29 = vld [vmem:[%s0 + $0xc] sm:$0xf]
  %v30 = vld [vmem:[%s0 + $0x10] sm:$0xf]
  %v31 = vld [vmem:[%s0 + $0x14] sm:$0xf]
  %v32 = vld [vmem:[%s0 + $0x18] sm:$0xf]
  %v33 = vld [vmem:[%s0 + $0x1c] sm:$0xf]
  %v34 = vld [vmem:[%s0 + $0x20] sm:$0xf]
  %v35 = vld [vmem:[%s0 + $0x24] sm:$0xf]
  %v36 = vld [vmem:[%s0 + $0x28] sm:$0xf]
  %v37 = vld [vmem:[%s0 + $0x2c] sm:$0xf]
  %v38 = vld [vmem:[%s0 + $0x30] sm:$0xf]
  %v39 = vld [vmem:[%s0 + $0x34] sm:$0xf]
  %v40 = vld [vmem:[%s0 + $0x38] sm:$0xf]
  %v41 = vld [vmem:[%s0 + $0x3c] sm:$0xf]
  %v42 = vld [vmem:[%s1] sm:$0xf]
  %v43 = vld [vmem:[%s1 + $0x4] sm:$0xf]
  %v44 = vld [vmem:[%s1 + $0x8] sm:$0xf]
  %v45 = vld [vmem:[%s1 + $0xc] sm:$0xf]
  %v46 = vld [vmem:[%s2] sm:$0x1]
  %v48 = vlaneseq
  %v49 = vshrl.u32 %v48, 7
  %v50 = vsub.s32 0, %v49
  %v51 = vrot.slane %v46, %v50
  %v69 = vunpack.c.l.b16 %v26
  %v70 = vunpack.c.l.b16 %v27
  %v71 = vunpack.c.l.b16 %v28
  %v72 = vunpack.c.l.b16 %v29
  %v73 = vunpack.c.l.b16 %v30
  %v74 = vunpack.c.l.b16 %v31
  %v75 = vunpack.c.l.b16 %v32
  %v76 = vunpack.c.l.b16 %v33
  %v77 = vunpack.c.l.b16 %v34
  %v78 = vunpack.c.l.b16 %v35
  %v79 = vunpack.c.l.b16 %v36
  %v80 = vunpack.c.l.b16 %v37
  %v81 = vunpack.c.l.b16 %v38
  %v82 = vunpack.c.l.b16 %v39
  %v83 = vunpack.c.l.b16 %v40
  %v84 = vunpack.c.l.b16 %v41
  %v85 = vpack.c.b16 %v70, %v69
  %v86 = vpack.c.b16 %v72, %v71
  %v87 = vpack.c.b16 %v74, %v73
  %v88 = vpack.c.b16 %v76, %v75
  %v89 = vpack.c.b16 %v78, %v77
  %v90 = vpack.c.b16 %v80, %v79
  %v91 = vpack.c.b16 %v82, %v81
  %v92 = vpack.c.b16 %v84, %v83
  %v97 = vunpack.c.l.b16 %v42
  %v98 = vunpack.c.l.b16 %v43
  %v99 = vunpack.c.l.b16 %v44
  %v100 = vunpack.c.l.b16 %v45
  %v101 = vpack.c.b16 %v98, %v97
  %v102 = vpack.c.b16 %v100, %v99
  %vm105 = vcmask 261120
  %v107 = vsel %vm105, %v85, 0
  %v110 = vsel %vm105, %v86, 0
  %v113 = vsel %vm105, %v87, 0
  %v116 = vsel %vm105, %v88, 0
  %v119 = vsel %vm105, %v89, 0
  %v122 = vsel %vm105, %v90, 0
  %v125 = vsel %vm105, %v91, 0
  %v128 = vsel %vm105, %v92, 0
  %130 = vmatprep.subr.bf16.mxu0 0
  %131 = vmatpush1.bf16.msra.mxu0 0
  %132 = vmatprep.subr.bf16.mxu0 0
  %133 = vmatpush1.bf16.msra.mxu0 0
  %134 = vmatprep.subr.bf16.mxu0 0
  %135 = vmatpush1.bf16.msra.mxu0 0
  %136 = vmatprep.subr.bf16.mxu0 0
  %137 = vmatpush1.bf16.msra.mxu0 0
  %138 = vmatprep.subr.bf16.mxu0 0
  %139 = vmatpush1.bf16.msra.mxu0 0
  %140 = vmatprep.subr.bf16.mxu0 0
  %141 = vmatpush1.bf16.msra.mxu0 0
  %142 = vmatprep.subr.bf16.mxu0 0
  %143 = vmatpush1.bf16.msra.mxu0 %v102
  %144 = vmatprep.subr.bf16.mxu0 0
  %145 = vmatpush1.bf16.msra.mxu0 %v101
  %146 = vmatprep.subr.bf16.mxu0 0
  %147 = vmatpush2.bf16.msra.mxu0 0
  %148 = vmatprep.subr.bf16.mxu0 0
  %149 = vmatpush2.bf16.msra.mxu0 0
  %150 = vmatprep.subr.bf16.mxu0 0
  %151 = vmatpush2.bf16.msra.mxu0 0
  %152 = vmatprep.subr.bf16.mxu0 0
  %153 = vmatpush2.bf16.msra.mxu0 0
  %154 = vmatprep.subr.bf16.mxu0 0
  %155 = vmatpush2.bf16.msra.mxu0 0
  %156 = vmatprep.subr.bf16.mxu0 0
  %157 = vmatpush2.bf16.msra.mxu0 0
  %158 = vmatprep.subr.bf16.mxu0 0
  %159 = vmatpush2.bf16.msra.mxu0 0
  %160 = vmatprep.subr.bf16.mxu0 0
  %161 = vmatpush2.bf16.msra.mxu0 0
  %162 = vmatprep.mubr.bf16.mxu0 0
  %163 = vmatmul.mubr.bf16.gmra.mxu0 %v107
  %v164 = vpop.f32.mrf.mxu0
  %v165 = vadd.f32 %v51, %v164
  %v166 = vpop.f32.mrf.mxu0
  %v167 = vpop.f32.mrf.mxu0
  %v168 = vadd.f32 %v51, %v167
  %v169 = vpop.f32.mrf.mxu0
  %170 = vmatprep.mubr.bf16.mxu0 0
  %171 = vmatmul.mubr.bf16.gmra.mxu0 %v110
  %v172 = vpop.f32.mrf.mxu0
  %v173 = vadd.f32 %v51, %v172
  %v174 = vpop.f32.mrf.mxu0
  %v175 = vpop.f32.mrf.mxu0
  %v176 = vadd.f32 %v51, %v175
  %v177 = vpop.f32.mrf.mxu0
  %178 = vmatprep.mubr.bf16.mxu0 0
  %179 = vmatmul.mubr.bf16.gmra.mxu0 %v113
  %v180 = vpop.f32.mrf.mxu0
  %v181 = vadd.f32 %v51, %v180
  %v182 = vpop.f32.mrf.mxu0
  %v183 = vpop.f32.mrf.mxu0
  %v184 = vadd.f32 %v51, %v183
  %v185 = vpop.f32.mrf.mxu0
  %186 = vmatprep.mubr.bf16.mxu0 0
  %187 = vmatmul.mubr.bf16.gmra.mxu0 %v116
  %v188 = vpop.f32.mrf.mxu0
  %v189 = vadd.f32 %v51, %v188
  %v190 = vpop.f32.mrf.mxu0
  %v191 = vpop.f32.mrf.mxu0
  %v192 = vadd.f32 %v51, %v191
  %v193 = vpop.f32.mrf.mxu0
  %194 = vmatprep.mubr.bf16.mxu0 0
  %195 = vmatmul.mubr.bf16.gmra.mxu0 %v119
  %v196 = vpop.f32.mrf.mxu0
  %v197 = vadd.f32 %v51, %v196
  %v198 = vpop.f32.mrf.mxu0
  %v199 = vpop.f32.mrf.mxu0
  %v200 = vadd.f32 %v51, %v199
  %v201 = vpop.f32.mrf.mxu0
  %202 = vmatprep.mubr.bf16.mxu0 0
  %203 = vmatmul.mubr.bf16.gmra.mxu0 %v122
  %v204 = vpop.f32.mrf.mxu0
  %v205 = vadd.f32 %v51, %v204
  %v206 = vpop.f32.mrf.mxu0
  %v207 = vpop.f32.mrf.mxu0
  %v208 = vadd.f32 %v51, %v207
  %v209 = vpop.f32.mrf.mxu0
  %210 = vmatprep.mubr.bf16.mxu0 0
  %211 = vmatmul.mubr.bf16.gmra.mxu0 %v125
  %v212 = vpop.f32.mrf.mxu0
  %v213 = vadd.f32 %v51, %v212
  %v214 = vpop.f32.mrf.mxu0
  %v215 = vpop.f32.mrf.mxu0
  %v216 = vadd.f32 %v51, %v215
  %v217 = vpop.f32.mrf.mxu0
  %218 = vmatprep.mubr.bf16.mxu0 0
  %219 = vmatmul.mubr.bf16.gmra.mxu0 %v128
  %v220 = vpop.f32.mrf.mxu0
  %v221 = vadd.f32 %v51, %v220
  %v222 = vpop.f32.mrf.mxu0
  %v223 = vpop.f32.mrf.mxu0
  %v224 = vadd.f32 %v51, %v223
  %v225 = vpop.f32.mrf.mxu0
  %226 = vdwg.mxu0
  %v227 = vld [vmem:[%s3] sm:$0xff]
  %v228 = vld [vmem:[%s3 + $0x8] sm:$0xff]
  %v229 = vld [vmem:[%s3 + $0x10] sm:$0xff]
  %v230 = vld [vmem:[%s3 + $0x18] sm:$0xff]
  %v231 = vld [vmem:[%s3 + $0x20] sm:$0xff]
  %v232 = vld [vmem:[%s3 + $0x28] sm:$0xff]
  %v233 = vld [vmem:[%s3 + $0x30] sm:$0xff]
  %v234 = vld [vmem:[%s3 + $0x38] sm:$0xff]
  %v235 = vld [vmem:[%s3 + $0x40] sm:$0xff]
  %v236 = vld [vmem:[%s3 + $0x48] sm:$0xff]
  %v237 = vld [vmem:[%s3 + $0x50] sm:$0xff]
  %v238 = vld [vmem:[%s3 + $0x58] sm:$0xff]
  %v239 = vld [vmem:[%s3 + $0x60] sm:$0xff]
  %v240 = vld [vmem:[%s3 + $0x68] sm:$0xff]
  %v241 = vld [vmem:[%s3 + $0x70] sm:$0xff]
  %v242 = vld [vmem:[%s3 + $0x78] sm:$0xff]
  %v243 = vadd.f32 %v165, %v227
  %v244 = vadd.f32 %v168, %v228
  %v245 = vadd.f32 %v173, %v229
  %v246 = vadd.f32 %v176, %v230
  %v247 = vadd.f32 %v181, %v231
  %v248 = vadd.f32 %v184, %v232
  %v249 = vadd.f32 %v189, %v233
  %v250 = vadd.f32 %v192, %v234
  %v251 = vadd.f32 %v197, %v235
  %v252 = vadd.f32 %v200, %v236
  %v253 = vadd.f32 %v205, %v237
  %v254 = vadd.f32 %v208, %v238
  %v255 = vadd.f32 %v213, %v239
  %v256 = vadd.f32 %v216, %v240
  %v257 = vadd.f32 %v221, %v241
  %v258 = vadd.f32 %v224, %v242
  %259 = vst.msk [vmem:[%s6] sm:$0xff] %vm105, %v243
  %260 = vst.msk [vmem:[%s6 + $0x8] sm:$0xff] %vm105, %v244
  %261 = vst.msk [vmem:[%s6 + $0x10] sm:$0xff] %vm105, %v245
  %262 = vst.msk [vmem:[%s6 + $0x18] sm:$0xff] %vm105, %v246
  %263 = vst.msk [vmem:[%s6 + $0x20] sm:$0xff] %vm105, %v247
  %264 = vst.msk [vmem:[%s6 + $0x28] sm:$0xff] %vm105, %v248
  %265 = vst.msk [vmem:[%s6 + $0x30] sm:$0xff] %vm105, %v249
  %266 = vst.msk [vmem:[%s6 + $0x38] sm:$0xff] %vm105, %v250
  %267 = vst.msk [vmem:[%s6 + $0x40] sm:$0xff] %vm105, %v251
  %268 = vst.msk [vmem:[%s6 + $0x48] sm:$0xff] %vm105, %v252
  %269 = vst.msk [vmem:[%s6 + $0x50] sm:$0xff] %vm105, %v253
  %270 = vst.msk [vmem:[%s6 + $0x58] sm:$0xff] %vm105, %v254
  %271 = vst.msk [vmem:[%s6 + $0x60] sm:$0xff] %vm105, %v255
  %272 = vst.msk [vmem:[%s6 + $0x68] sm:$0xff] %vm105, %v256
  %273 = vst.msk [vmem:[%s6 + $0x70] sm:$0xff] %vm105, %v257
  %274 = vst.msk [vmem:[%s6 + $0x78] sm:$0xff] %vm105, %v258
  %v275 = vld [vmem:[%s4] sm:$0x1]
  %v276 = vld [vmem:[%s5] sm:$0x1]
  %v277 = vsel %vm105, %v243, 0.0
  %v278 = vsel %vm105, %v244, 0.0
  %v279 = vadd.f32 %v277, %v278
  %v280 = vsel %vm105, %v245, 0.0
  %v281 = vadd.f32 %v279, %v280
  %v282 = vsel %vm105, %v246, 0.0
  %v283 = vadd.f32 %v281, %v282
  %v284 = vsel %vm105, %v247, 0.0
  %v285 = vadd.f32 %v283, %v284
  %v286 = vsel %vm105, %v248, 0.0
  %v287 = vadd.f32 %v285, %v286
  %v288 = vsel %vm105, %v249, 0.0
  %v289 = vadd.f32 %v287, %v288
  %v290 = vsel %vm105, %v250, 0.0
  %v291 = vadd.f32 %v289, %v290
  %v292 = vsel %vm105, %v251, 0.0
  %v293 = vadd.f32 %v291, %v292
  %v294 = vsel %vm105, %v252, 0.0
  %v295 = vadd.f32 %v293, %v294
  %v296 = vsel %vm105, %v253, 0.0
  %v297 = vadd.f32 %v295, %v296
  %v298 = vsel %vm105, %v254, 0.0
  %v299 = vadd.f32 %v297, %v298
  %v300 = vsel %vm105, %v255, 0.0
  %v301 = vadd.f32 %v299, %v300
  %v302 = vsel %vm105, %v256, 0.0
  %v303 = vadd.f32 %v301, %v302
  %v304 = vsel %vm105, %v257, 0.0
  %v305 = vadd.f32 %v303, %v304
  %v306 = vsel %vm105, %v258, 0.0
  %v307 = vadd.f32 %v305, %v306
  %v308 = vrot.slane %v307, 4
  %v309 = vadd.f32 %v307, %v308
  %v310 = vrot.slane %v309, 2
  %v311 = vadd.f32 %v309, %v310
  %v312 = vrot.slane %v311, 1
  %v313 = vadd.f32 %v311, %v312
  %v314 = vrcp.pop 128.0
  %v315 = vmul.f32 %v313, %v314
  %v316 = vsub.f32 %v243, %v315
  %v317 = vsub.f32 %v244, %v315
  %v318 = vsub.f32 %v245, %v315
  %v319 = vsub.f32 %v246, %v315
  %v320 = vsub.f32 %v247, %v315
  %v321 = vsub.f32 %v248, %v315
  %v322 = vsub.f32 %v249, %v315
  %v323 = vsub.f32 %v250, %v315
  %v324 = vsub.f32 %v251, %v315
  %v325 = vsub.f32 %v252, %v315
  %v326 = vsub.f32 %v253, %v315
  %v327 = vsub.f32 %v254, %v315
  %v328 = vsub.f32 %v255, %v315
  %v329 = vsub.f32 %v256, %v315
  %v330 = vsub.f32 %v257, %v315
  %v331 = vsub.f32 %v258, %v315
  %v332 = vmul.f32 %v316, %v316
  %v333 = vmul.f32 %v317, %v317
  %v334 = vmul.f32 %v318, %v318
  %v335 = vmul.f32 %v319, %v319
  %v336 = vmul.f32 %v320, %v320
  %v337 = vmul.f32 %v321, %v321
  %v338 = vmul.f32 %v322, %v322
  %v339 = vmul.f32 %v323, %v323
  %v340 = vmul.f32 %v324, %v324
  %v341 = vmul.f32 %v325, %v325
  %v342 = vmul.f32 %v326, %v326
  %v343 = vmul.f32 %v327, %v327
  %v344 = vmul.f32 %v328, %v328
  %v345 = vmul.f32 %v329, %v329
  %v346 = vmul.f32 %v330, %v330
  %v347 = vmul.f32 %v331, %v331
  %v348 = vsel %vm105, %v332, 0.0
  %v349 = vsel %vm105, %v333, 0.0
  %v350 = vadd.f32 %v348, %v349
  %v351 = vsel %vm105, %v334, 0.0
  %v352 = vadd.f32 %v350, %v351
  %v353 = vsel %vm105, %v335, 0.0
  %v354 = vadd.f32 %v352, %v353
  %v355 = vsel %vm105, %v336, 0.0
  %v356 = vadd.f32 %v354, %v355
  %v357 = vsel %vm105, %v337, 0.0
  %v358 = vadd.f32 %v356, %v357
  %v359 = vsel %vm105, %v338, 0.0
  %v360 = vadd.f32 %v358, %v359
  %v361 = vsel %vm105, %v339, 0.0
  %v362 = vadd.f32 %v360, %v361
  %v363 = vsel %vm105, %v340, 0.0
  %v364 = vadd.f32 %v362, %v363
  %v365 = vsel %vm105, %v341, 0.0
  %v366 = vadd.f32 %v364, %v365
  %v367 = vsel %vm105, %v342, 0.0
  %v368 = vadd.f32 %v366, %v367
  %v369 = vsel %vm105, %v343, 0.0
  %v370 = vadd.f32 %v368, %v369
  %v371 = vsel %vm105, %v344, 0.0
  %v372 = vadd.f32 %v370, %v371
  %v373 = vsel %vm105, %v345, 0.0
  %v374 = vadd.f32 %v372, %v373
  %v375 = vsel %vm105, %v346, 0.0
  %v376 = vadd.f32 %v374, %v375
  %v377 = vsel %vm105, %v347, 0.0
  %v378 = vadd.f32 %v376, %v377
  %v379 = vrot.slane %v378, 4
  %v380 = vadd.f32 %v378, %v379
  %v381 = vrot.slane %v380, 2
  %v382 = vadd.f32 %v380, %v381
  %v383 = vrot.slane %v382, 1
  %v384 = vadd.f32 %v382, %v383
  %v385 = vmul.f32 %v384, %v314
  %v386 = vadd.f32 %v385, 1e-05
  %v387 = vrsqrt.pop %v386
  %v388 = vmul.f32 %v316, %v387
  %v389 = vmul.f32 %v317, %v387
  %v390 = vmul.f32 %v318, %v387
  %v391 = vmul.f32 %v319, %v387
  %v392 = vmul.f32 %v320, %v387
  %v393 = vmul.f32 %v321, %v387
  %v394 = vmul.f32 %v322, %v387
  %v395 = vmul.f32 %v323, %v387
  %v396 = vmul.f32 %v324, %v387
  %v397 = vmul.f32 %v325, %v387
  %v398 = vmul.f32 %v326, %v387
  %v399 = vmul.f32 %v327, %v387
  %v400 = vmul.f32 %v328, %v387
  %v401 = vmul.f32 %v329, %v387
  %v402 = vmul.f32 %v330, %v387
  %v403 = vmul.f32 %v331, %v387
  %v405 = vlaneseq
  %v406 = vshrl.u32 %v405, 7
  %v407 = vsub.s32 0, %v406
  %v408 = vrot.slane %v275, %v407
  %v410 = vmul.f32 %v388, %v408
  %v411 = vmul.f32 %v389, %v408
  %v412 = vmul.f32 %v390, %v408
  %v413 = vmul.f32 %v391, %v408
  %v414 = vmul.f32 %v392, %v408
  %v415 = vmul.f32 %v393, %v408
  %v416 = vmul.f32 %v394, %v408
  %v417 = vmul.f32 %v395, %v408
  %v418 = vmul.f32 %v396, %v408
  %v419 = vmul.f32 %v397, %v408
  %v420 = vmul.f32 %v398, %v408
  %v421 = vmul.f32 %v399, %v408
  %v422 = vmul.f32 %v400, %v408
  %v423 = vmul.f32 %v401, %v408
  %v424 = vmul.f32 %v402, %v408
  %v425 = vmul.f32 %v403, %v408
  %v427 = vlaneseq
  %v428 = vshrl.u32 %v427, 7
  %v429 = vsub.s32 0, %v428
  %v430 = vrot.slane %v276, %v429
  %v432 = vadd.f32 %v410, %v430
  %v433 = vadd.f32 %v411, %v430
  %v434 = vadd.f32 %v412, %v430
  %v435 = vadd.f32 %v413, %v430
  %v436 = vadd.f32 %v414, %v430
  %v437 = vadd.f32 %v415, %v430
  %v438 = vadd.f32 %v416, %v430
  %v439 = vadd.f32 %v417, %v430
  %v440 = vadd.f32 %v418, %v430
  %v441 = vadd.f32 %v419, %v430
  %v442 = vadd.f32 %v420, %v430
  %v443 = vadd.f32 %v421, %v430
  %v444 = vadd.f32 %v422, %v430
  %v445 = vadd.f32 %v423, %v430
  %v446 = vadd.f32 %v424, %v430
  %v447 = vadd.f32 %v425, %v430
  %v448 = vmax.f32 %v432, 0.0
  %v449 = vmax.f32 %v433, 0.0
  %v450 = vmax.f32 %v434, 0.0
  %v451 = vmax.f32 %v435, 0.0
  %v452 = vmax.f32 %v436, 0.0
  %v453 = vmax.f32 %v437, 0.0
  %v454 = vmax.f32 %v438, 0.0
  %v455 = vmax.f32 %v439, 0.0
  %v456 = vmax.f32 %v440, 0.0
  %v457 = vmax.f32 %v441, 0.0
  %v458 = vmax.f32 %v442, 0.0
  %v459 = vmax.f32 %v443, 0.0
  %v460 = vmax.f32 %v444, 0.0
  %v461 = vmax.f32 %v445, 0.0
  %v462 = vmax.f32 %v446, 0.0
  %v463 = vmax.f32 %v447, 0.0
  %464 = vst.msk [vmem:[%s7] sm:$0xff] %vm105, %v448
  %465 = vst.msk [vmem:[%s7 + $0x8] sm:$0xff] %vm105, %v449
  %466 = vst.msk [vmem:[%s7 + $0x10] sm:$0xff] %vm105, %v450
  %467 = vst.msk [vmem:[%s7 + $0x18] sm:$0xff] %vm105, %v451
  %468 = vst.msk [vmem:[%s7 + $0x20] sm:$0xff] %vm105, %v452
  %469 = vst.msk [vmem:[%s7 + $0x28] sm:$0xff] %vm105, %v453
  %470 = vst.msk [vmem:[%s7 + $0x30] sm:$0xff] %vm105, %v454
  %471 = vst.msk [vmem:[%s7 + $0x38] sm:$0xff] %vm105, %v455
  %472 = vst.msk [vmem:[%s7 + $0x40] sm:$0xff] %vm105, %v456
  %473 = vst.msk [vmem:[%s7 + $0x48] sm:$0xff] %vm105, %v457
  %474 = vst.msk [vmem:[%s7 + $0x50] sm:$0xff] %vm105, %v458
  %475 = vst.msk [vmem:[%s7 + $0x58] sm:$0xff] %vm105, %v459
  %476 = vst.msk [vmem:[%s7 + $0x60] sm:$0xff] %vm105, %v460
  %477 = vst.msk [vmem:[%s7 + $0x68] sm:$0xff] %vm105, %v461
  %478 = vst.msk [vmem:[%s7 + $0x70] sm:$0xff] %vm105, %v462
  %479 = vst.msk [vmem:[%s7 + $0x78] sm:$0xff] %vm105, %v463
  // Predicated region
  $region26: #{dronet_forward.16} parent=0 // pred_check
    _
  $region27: #{dronet_forward.16} parent=0 // pred_check_branch
    %481 = sbr.rel (0) target = $region29
  $region28: #{dronet_forward.16} parent=0 // pred_region
    _
  $region29: #{dronet_forward.16} parent=0 // pred_fallthru
    _
  // Predicated region
  $region30: #{dronet_forward.16} parent=0 // pred_check
    _
  $region31: #{dronet_forward.16} parent=0 // pred_check_branch
    %483 = sbr.rel (0) target = $region33
  $region32: #{dronet_forward.16} parent=0 // pred_region
    _
  $region33: #{dronet_forward.16} parent=0 // pred_fallthru
    _
  // Predicated region
  $region34: #{dronet_forward.16} parent=0 // pred_check
    _
  $region35: #{dronet_forward.16} parent=0 // pred_check_branch
    %485 = sbr.rel (0) target = $region37
  $region36: #{dronet_forward.16} parent=0 // pred_region
    _
  $region37: #{dronet_forward.16} parent=0 // pred_fallthru
    _
  // Predicated region
  $region38: #{dronet_forward.16} parent=0 // pred_check
    _
  $region39: #{dronet_forward.16} parent=0 // pred_check_branch
    %487 = sbr.rel (0) target = $region41
  $region40: #{dronet_forward.16} parent=0 // pred_region
    _
  $region41: #{dronet_forward.16} parent=0 // pred_fallthru
    _

// kernel: dronet_forward.17
$region0: #{dronet_forward.17}
  #allocation0 [shape = 'u32[]', space=smem, size = 0x4, offset = 0x4, fixed_abs, tag = 'smem constant byte address 0x4 - core index']
  #allocation1 [shape = 'u32[144,128]{1,0:T(1,128)}', space=vmem, size = 0x12000, scoped, tag = 'internal scratch']
  %s0 = inlined_call_operand.vmem [shape: bf16[32,288], index: 0, kind: input, shape index: {}]
  %s1 = inlined_call_operand.vmem [shape: bf16[288,64], index: 1, kind: input, shape index: {}]
  %s2 = inlined_call_operand.vmem [shape: f32[1,64], index: 2, kind: input, shape index: {}]
  %s3 = inlined_call_operand.vmem [shape: f32[1,64], index: 3, kind: input, shape index: {}]
  %s4 = inlined_call_operand.vmem [shape: f32[32,64], index: 4, kind: output, shape index: {}]
  %s5 = sld [smem:[#allocation0]]
  $region26: #{dronet_forward.17} parent=0
    _
  %s7 = ssub.s32 1, %s5
  %s8 = scalar_select 0, %s7, %s5
  // Predicated region
  $region2: #{dronet_forward.17} parent=0 // pred_check
    _
  $region3: #{dronet_forward.17} parent=0 // pred_check_branch
    %10 = sbr.rel (0) target = $region5
  $region4: #{dronet_forward.17} parent=0 // pred_region
    _
  $region5: #{dronet_forward.17} parent=0 // pred_fallthru
    _
  // Predicated region
  $region6: #{dronet_forward.17} parent=0 // pred_check
    _
  $region7: #{dronet_forward.17} parent=0 // pred_check_branch
    %12 = sbr.rel (0) target = $region9
  $region8: #{dronet_forward.17} parent=0 // pred_region
    _
  $region9: #{dronet_forward.17} parent=0 // pred_fallthru
    _
  // Predicated region
  $region10: #{dronet_forward.17} parent=0 // pred_check
    _
  $region11: #{dronet_forward.17} parent=0 // pred_check_branch
    %14 = sbr.rel (0) target = $region13
  $region12: #{dronet_forward.17} parent=0 // pred_region
    _
  $region13: #{dronet_forward.17} parent=0 // pred_fallthru
    _
  // Predicated region
  $region14: #{dronet_forward.17} parent=0 // pred_check
    _
  $region15: #{dronet_forward.17} parent=0 // pred_check_branch
    %16 = sbr.rel (0) target = $region17
  $region16: #{dronet_forward.17} parent=0 // pred_region
    _
  $region17: #{dronet_forward.17} parent=0 // pred_fallthru
    _
  %v18 = vld [vmem:[%s0] sm:$0xff]
  %v19 = vld [vmem:[%s0 + $0x8] sm:$0xf]
  %v20 = vld [vmem:[%s0 + $0xc] sm:$0xff]
  %v21 = vld [vmem:[%s0 + $0x14] sm:$0xf]
  %v22 = vld [vmem:[%s0 + $0x18] sm:$0xff]
  %v23 = vld [vmem:[%s0 + $0x20] sm:$0xf]
  %v24 = vld [vmem:[%s0 + $0x24] sm:$0xff]
  %v25 = vld [vmem:[%s0 + $0x2c] sm:$0xf]
  %v26 = vld [vmem:[%s1] sm:$0xf]
  %v27 = vld [vmem:[%s1 + $0x4] sm:$0xf]
  %v28 = vld [vmem:[%s1 + $0x8] sm:$0xf]
  %v29 = vld [vmem:[%s1 + $0xc] sm:$0xf]
  %v30 = vld [vmem:[%s1 + $0x10] sm:$0xf]
  %v31 = vld [vmem:[%s1 + $0x14] sm:$0xf]
  %v32 = vld [vmem:[%s1 + $0x18] sm:$0xf]
  %v33 = vld [vmem:[%s1 + $0x1c] sm:$0xf]
  %v34 = vld [vmem:[%s1 + $0x20] sm:$0xf]
  %v35 = vld [vmem:[%s1 + $0x24] sm:$0xf]
  %v36 = vld [vmem:[%s1 + $0x28] sm:$0xf]
  %v37 = vld [vmem:[%s1 + $0x2c] sm:$0xf]
  %v38 = vld [vmem:[%s1 + $0x30] sm:$0xf]
  %v39 = vld [vmem:[%s1 + $0x34] sm:$0xf]
  %v40 = vld [vmem:[%s1 + $0x38] sm:$0xf]
  %v41 = vld [vmem:[%s1 + $0x3c] sm:$0xf]
  %v42 = vld [vmem:[%s1 + $0x40] sm:$0xf]
  %v43 = vld [vmem:[%s1 + $0x44] sm:$0xf]
  %v44 = vld [vmem:[%s1 + $0x48] sm:$0xf]
  %v45 = vld [vmem:[%s1 + $0x4c] sm:$0xf]
  %v46 = vld [vmem:[%s1 + $0x50] sm:$0xf]
  %v47 = vld [vmem:[%s1 + $0x54] sm:$0xf]
  %v48 = vld [vmem:[%s1 + $0x58] sm:$0xf]
  %v49 = vld [vmem:[%s1 + $0x5c] sm:$0xf]
  %v50 = vld [vmem:[%s1 + $0x60] sm:$0xf]
  %v51 = vld [vmem:[%s1 + $0x64] sm:$0xf]
  %v52 = vld [vmem:[%s1 + $0x68] sm:$0xf]
  %v53 = vld [vmem:[%s1 + $0x6c] sm:$0xf]
  %v54 = vld [vmem:[%s1 + $0x70] sm:$0xf]
  %v55 = vld [vmem:[%s1 + $0x74] sm:$0xf]
  %v56 = vld [vmem:[%s1 + $0x78] sm:$0xf]
  %v57 = vld [vmem:[%s1 + $0x7c] sm:$0xf]
  %v58 = vld [vmem:[%s1 + $0x80] sm:$0xf]
  %v59 = vld [vmem:[%s1 + $0x84] sm:$0xf]
  %v60 = vld [vmem:[%s1 + $0x88] sm:$0xf]
  %v61 = vld [vmem:[%s1 + $0x8c] sm:$0xf]
  %v70 = vunpack.c.l.b16 %v18
  %v71 = vunpack.c.h.b16 %v18
  %v72 = vunpack.c.l.b16 %v19
  %v73 = vunpack.c.l.b16 %v20
  %v74 = vunpack.c.h.b16 %v20
  %v75 = vunpack.c.l.b16 %v21
  %v76 = vunpack.c.l.b16 %v22
  %v77 = vunpack.c.h.b16 %v22
  %v78 = vunpack.c.l.b16 %v23
  %v79 = vunpack.c.l.b16 %v24
  %v80 = vunpack.c.h.b16 %v24
  %v81 = vunpack.c.l.b16 %v25
  %v82 = vpack.c.b16 %v73, %v70
  %v83 = vpack.c.b16 %v74, %v71
  %v84 = vpack.c.b16 %v75, %v72
  %v85 = vpack.c.b16 %v79, %v76
  %v86 = vpack.c.b16 %v80, %v77
  %v87 = vpack.c.b16 %v81, %v78
  %v128 = vunpack.c.l.b16 %v26
  %v129 = vunpack.c.l.b16 %v27
  %v130 = vunpack.c.l.b16 %v28
  %v131 = vunpack.c.l.b16 %v29
  %v132 = vunpack.c.l.b16 %v30
  %v133 = vunpack.c.l.b16 %v31
  %v134 = vunpack.c.l.b16 %v32
  %v135 = vunpack.c.l.b16 %v33
  %v136 = vunpack.c.l.b16 %v34
  %v137 = vunpack.c.l.b16 %v35
  %v138 = vunpack.c.l.b16 %v36
  %v139 = vunpack.c.l.b16 %v37
  %v140 = vunpack.c.l.b16 %v38
  %v141 = vunpack.c.l.b16 %v39
  %v142 = vunpack.c.l.b16 %v40
  %v143 = vunpack.c.l.b16 %v41
  %v144 = vunpack.c.l.b16 %v42
  %v145 = vunpack.c.l.b16 %v43
  %v146 = vunpack.c.l.b16 %v44
  %v147 = vunpack.c.l.b16 %v45
  %v148 = vunpack.c.l.b16 %v46
  %v149 = vunpack.c.l.b16 %v47
  %v150 = vunpack.c.l.b16 %v48
  %v151 = vunpack.c.l.b16 %v49
  %v152 = vunpack.c.l.b16 %v50
  %v153 = vunpack.c.l.b16 %v51
  %v154 = vunpack.c.l.b16 %v52
  %v155 = vunpack.c.l.b16 %v53
  %v156 = vunpack.c.l.b16 %v54
  %v157 = vunpack.c.l.b16 %v55
  %v158 = vunpack.c.l.b16 %v56
  %v159 = vunpack.c.l.b16 %v57
  %v160 = vunpack.c.l.b16 %v58
  %v161 = vunpack.c.l.b16 %v59
  %v162 = vunpack.c.l.b16 %v60
  %v163 = vunpack.c.l.b16 %v61
  %v164 = vpack.c.b16 %v129, %v128
  %v165 = vpack.c.b16 %v131, %v130
  %v166 = vpack.c.b16 %v133, %v132
  %v167 = vpack.c.b16 %v135, %v134
  %v168 = vpack.c.b16 %v137, %v136
  %v169 = vpack.c.b16 %v139, %v138
  %v170 = vpack.c.b16 %v141, %v140
  %v171 = vpack.c.b16 %v143, %v142
  %v172 = vpack.c.b16 %v145, %v144
  %v173 = vpack.c.b16 %v147, %v146
  %v174 = vpack.c.b16 %v149, %v148
  %v175 = vpack.c.b16 %v151, %v150
  %v176 = vpack.c.b16 %v153, %v152
  %v177 = vpack.c.b16 %v155, %v154
  %v178 = vpack.c.b16 %v157, %v156
  %v179 = vpack.c.b16 %v159, %v158
  %v180 = vpack.c.b16 %v161, %v160
  %v181 = vpack.c.b16 %v163, %v162
  %vm200 = vcmask 261120
  %v202 = vsel %vm200, %v84, 0
  %v205 = vsel %vm200, %v87, 0
  %207 = vmatprep.subr.bf16.mxu0 0
  %208 = vmatpush1.bf16.msra.mxu0 %v171
  %209 = vmatprep.subr.bf16.mxu0 0
  %210 = vmatpush1.bf16.msra.mxu0 %v170
  %211 = vmatprep.subr.bf16.mxu0 0
  %212 = vmatpush1.bf16.msra.mxu0 %v169
  %213 = vmatprep.subr.bf16.mxu0 0
  %214 = vmatpush1.bf16.msra.mxu0 %v168
  %215 = vmatprep.subr.bf16.mxu0 0
  %216 = vmatpush1.bf16.msra.mxu0 %v167
  %217 = vmatprep.subr.bf16.mxu0 0
  %218 = vmatpush1.bf16.msra.mxu0 %v166
  %219 = vmatprep.subr.bf16.mxu0 0
  %220 = vmatpush1.bf16.msra.mxu0 %v165
  %221 = vmatprep.subr.bf16.mxu0 0
  %222 = vmatpush1.bf16.msra.mxu0 %v164
  %223 = vmatprep.subr.bf16.mxu0 0
  %224 = vmatpush2.bf16.msra.mxu0 %v179
  %225 = vmatprep.subr.bf16.mxu0 0
  %226 = vmatpush2.bf16.msra.mxu0 %v178
  %227 = vmatprep.subr.bf16.mxu0 0
  %228 = vmatpush2.bf16.msra.mxu0 %v177
  %229 = vmatprep.subr.bf16.mxu0 0
  %230 = vmatpush2.bf16.msra.mxu0 %v176
  %231 = vmatprep.subr.bf16.mxu0 0
  %232 = vmatpush2.bf16.msra.mxu0 %v175
  %233 = vmatprep.subr.bf16.mxu0 0
  %234 = vmatpush2.bf16.msra.mxu0 %v174
  %235 = vmatprep.subr.bf16.mxu0 0
  %236 = vmatpush2.bf16.msra.mxu0 %v173
  %237 = vmatprep.subr.bf16.mxu0 0
  %238 = vmatpush2.bf16.msra.mxu0 %v172
  %239 = vmatprep.mubr.bf16.mxu0 %v83
  %240 = vmatmul.mubr.bf16.gmra.mxu0 %v82
  %v241 = vpop.f32.mrf.mxu0
  %v242 = vadd.f32 0.0, %v241
  %v243 = vpop.f32.mrf.mxu0
  %v244 = vpop.f32.mrf.mxu0
  %v245 = vadd.f32 0.0, %v244
  %v246 = vpop.f32.mrf.mxu0
  %247 = vmatprep.mubr.bf16.mxu0 %v86
  %248 = vmatmul.mubr.bf16.gmra.mxu0 %v85
  %v249 = vpop.f32.mrf.mxu0
  %v250 = vadd.f32 0.0, %v249
  %v251 = vpop.f32.mrf.mxu0
  %v252 = vpop.f32.mrf.mxu0
  %v253 = vadd.f32 0.0, %v252
  %v254 = vpop.f32.mrf.mxu0
  %255 = vdwg.mxu0
  %256 = vmatprep.subr.bf16.mxu0 0
  %257 = vmatpush1.bf16.msra.mxu0 0
  %258 = vmatprep.subr.bf16.mxu0 0
  %259 = vmatpush1.bf16.msra.mxu0 0
  %260 = vmatprep.subr.bf16.mxu0 0
  %261 = vmatpush1.bf16.msra.mxu0 0
  %262 = vmatprep.subr.bf16.mxu0 0
  %263 = vmatpush1.bf16.msra.mxu0 0
  %264 = vmatprep.subr.bf16.mxu0 0
  %265 = vmatpush1.bf16.msra.mxu0 0
  %266 = vmatprep.subr.bf16.mxu0 0
  %267 = vmatpush1.bf16.msra.mxu0 0
  %268 = vmatprep.subr.bf16.mxu0 0
  %269 = vmatpush1.bf16.msra.mxu0 %v181
  %270 = vmatprep.subr.bf16.mxu0 0
  %271 = vmatpush1.bf16.msra.mxu0 %v180
  %272 = vmatprep.subr.bf16.mxu0 0
  %273 = vmatpush2.bf16.msra.mxu0 0
  %274 = vmatprep.subr.bf16.mxu0 0
  %275 = vmatpush2.bf16.msra.mxu0 0
  %276 = vmatprep.subr.bf16.mxu0 0
  %277 = vmatpush2.bf16.msra.mxu0 0
  %278 = vmatprep.subr.bf16.mxu0 0
  %279 = vmatpush2.bf16.msra.mxu0 0
  %280 = vmatprep.subr.bf16.mxu0 0
  %281 = vmatpush2.bf16.msra.mxu0 0
  %282 = vmatprep.subr.bf16.mxu0 0
  %283 = vmatpush2.bf16.msra.mxu0 0
  %284 = vmatprep.subr.bf16.mxu0 0
  %285 = vmatpush2.bf16.msra.mxu0 0
  %286 = vmatprep.subr.bf16.mxu0 0
  %287 = vmatpush2.bf16.msra.mxu0 0
  %288 = vmatprep.mubr.bf16.mxu0 0
  %289 = vmatmul.mubr.bf16.gmra.mxu0 %v202
  %v290 = vpop.f32.mrf.mxu0
  %v291 = vadd.f32 %v242, %v290
  %v292 = vpop.f32.mrf.mxu0
  %v293 = vpop.f32.mrf.mxu0
  %v294 = vadd.f32 %v245, %v293
  %v295 = vpop.f32.mrf.mxu0
  %296 = vmatprep.mubr.bf16.mxu0 0
  %297 = vmatmul.mubr.bf16.gmra.mxu0 %v205
  %v298 = vpop.f32.mrf.mxu0
  %v299 = vadd.f32 %v250, %v298
  %v300 = vpop.f32.mrf.mxu0
  %v301 = vpop.f32.mrf.mxu0
  %v302 = vadd.f32 %v253, %v301
  %v303 = vpop.f32.mrf.mxu0
  %304 = vdwg.mxu0
  %v305 = vld [vmem:[%s2] sm:$0x1]
  %v306 = vld [vmem:[%s3] sm:$0x1]
  %vm307 = vcmask 523264
  %v308 = vsel %vm307, %v291, 0.0
  %v309 = vsel %vm307, %v294, 0.0
  %v310 = vadd.f32 %v308, %v309
  %v311 = vsel %vm307, %v299, 0.0
  %v312 = vadd.f32 %v310, %v311
  %v313 = vsel %vm307, %v302, 0.0
  %v314 = vadd.f32 %v312, %v313
  %v315 = vrot.slane %v314, 4
  %v316 = vadd.f32 %v314, %v315
  %v317 = vrot.slane %v316, 2
  %v318 = vadd.f32 %v316, %v317
  %v319 = vrot.slane %v318, 1
  %v320 = vadd.f32 %v318, %v319
  %v321 = vrcp.pop 32.0
  %v322 = vmul.f32 %v320, %v321
  %v323 = vsub.f32 %v291, %v322
  %v324 = vsub.f32 %v294, %v322
  %v325 = vsub.f32 %v299, %v322
  %v326 = vsub.f32 %v302, %v322
  %v327 = vmul.f32 %v323, %v323
  %v328 = vmul.f32 %v324, %v324
  %v329 = vmul.f32 %v325, %v325
  %v330 = vmul.f32 %v326, %v326
  %v331 = vsel %vm307, %v327, 0.0
  %v332 = vsel %vm307, %v328, 0.0
  %v333 = vadd.f32 %v331, %v332
  %v334 = vsel %vm307, %v329, 0.0
  %v335 = vadd.f32 %v333, %v334
  %v336 = vsel %vm307, %v330, 0.0
  %v337 = vadd.f32 %v335, %v336
  %v338 = vrot.slane %v337, 4
  %v339 = vadd.f32 %v337, %v338
  %v340 = vrot.slane %v339, 2
  %v341 = vadd.f32 %v339, %v340
  %v342 = vrot.slane %v341, 1
  %v343 = vadd.f32 %v341, %v342
  %v344 = vmul.f32 %v343, %v321
  %v345 = vadd.f32 %v344, 1e-05
  %v346 = vrsqrt.pop %v345
  %v347 = vmul.f32 %v323, %v346
  %v348 = vmul.f32 %v324, %v346
  %v349 = vmul.f32 %v325, %v346
  %v350 = vmul.f32 %v326, %v346
  %v352 = vlaneseq
  %v353 = vshrl.u32 %v352, 7
  %v354 = vsub.s32 0, %v353
  %v355 = vrot.slane %v305, %v354
  %v357 = vmul.f32 %v347, %v355
  %v358 = vmul.f32 %v348, %v355
  %v359 = vmul.f32 %v349, %v355
  %v360 = vmul.f32 %v350, %v355
  %v362 = vlaneseq
  %v363 = vshrl.u32 %v362, 7
  %v364 = vsub.s32 0, %v363
  %v365 = vrot.slane %v306, %v364
  %v367 = vadd.f32 %v357, %v365
  %v368 = vadd.f32 %v358, %v365
  %v369 = vadd.f32 %v359, %v365
  %v370 = vadd.f32 %v360, %v365
  %v371 = vmax.f32 %v367, 0.0
  %v372 = vmax.f32 %v368, 0.0
  %v373 = vmax.f32 %v369, 0.0
  %v374 = vmax.f32 %v370, 0.0
  %375 = vst.msk [vmem:[%s4] sm:$0xff] %vm307, %v371
  %376 = vst.msk [vmem:[%s4 + $0x8] sm:$0xff] %vm307, %v372
  %377 = vst.msk [vmem:[%s4 + $0x10] sm:$0xff] %vm307, %v373
  %378 = vst.msk [vmem:[%s4 + $0x18] sm:$0xff] %vm307, %v374
  // Predicated region
  $region18: #{dronet_forward.17} parent=0 // pred_check
    _
  $region19: #{dronet_forward.17} parent=0 // pred_check_branch
    %380 = sbr.rel (0) target = $region21
  $region20: #{dronet_forward.17} parent=0 // pred_region
    _
  $region21: #{dronet_forward.17} parent=0 // pred_fallthru
    _
  // Predicated region
  $region22: #{dronet_forward.17} parent=0 // pred_check
    _
  $region23: #{dronet_forward.17} parent=0 // pred_check_branch
    %382 = sbr.rel (0) target = $region25
  $region24: #{dronet_forward.17} parent=0 // pred_region
    _
  $region25: #{dronet_forward.17} parent=0 // pred_fallthru
    _

// kernel: dronet_forward.18
$region0: #{dronet_forward.18}
  #allocation0 [shape = 'u32[]', space=smem, size = 0x4, offset = 0x4, fixed_abs, tag = 'smem constant byte address 0x4 - core index']
  #allocation1 [shape = 'u32[144,128]{1,0:T(1,128)}', space=vmem, size = 0x12000, scoped, tag = 'internal scratch']
  %s0 = inlined_call_operand.vmem [shape: bf16[32,576], index: 0, kind: input, shape index: {}]
  %s1 = inlined_call_operand.vmem [shape: bf16[576,64], index: 1, kind: input, shape index: {}]
  %s2 = inlined_call_operand.vmem [shape: f32[32,64], index: 2, kind: output, shape index: {}]
  %s3 = sld [smem:[#allocation0]]
  $region18: #{dronet_forward.18} parent=0
    _
  %s5 = ssub.s32 1, %s3
  %s6 = scalar_select 0, %s5, %s3
  // Predicated region
  $region2: #{dronet_forward.18} parent=0 // pred_check
    _
  $region3: #{dronet_forward.18} parent=0 // pred_check_branch
    %8 = sbr.rel (0) target = $region5
  $region4: #{dronet_forward.18} parent=0 // pred_region
    _
  $region5: #{dronet_forward.18} parent=0 // pred_fallthru
    _
  // Predicated region
  $region6: #{dronet_forward.18} parent=0 // pred_check
    _
  $region7: #{dronet_forward.18} parent=0 // pred_check_branch
    %10 = sbr.rel (0) target = $region9
  $region8: #{dronet_forward.18} parent=0 // pred_region
    _
  $region9: #{dronet_forward.18} parent=0 // pred_fallthru
    _
  %v12 = vld [vmem:[%s0] sm:$0xff]
  %v13 = vld [vmem:[%s0 + $0x8] sm:$0xff]
  %v14 = vld [vmem:[%s0 + $0x10] sm:$0xf]
  %v15 = vld [vmem:[%s0 + $0x14] sm:$0xff]
  %v16 = vld [vmem:[%s0 + $0x1c] sm:$0xff]
  %v17 = vld [vmem:[%s0 + $0x24] sm:$0xf]
  %v18 = vld [vmem:[%s0 + $0x28] sm:$0xff]
  %v19 = vld [vmem:[%s0 + $0x30] sm:$0xff]
  %v20 = vld [vmem:[%s0 + $0x38] sm:$0xf]
  %v21 = vld [vmem:[%s0 + $0x3c] sm:$0xff]
  %v22 = vld [vmem:[%s0 + $0x44] sm:$0xff]
  %v23 = vld [vmem:[%s0 + $0x4c] sm:$0xf]
  %v24 = vld [vmem:[%s1] sm:$0xf]
  %v25 = vld [vmem:[%s1 + $0x4] sm:$0xf]
  %v26 = vld [vmem:[%s1 + $0x8] sm:$0xf]
  %v27 = vld [vmem:[%s1 + $0xc] sm:$0xf]
  %v28 = vld [vmem:[%s1 + $0x10] sm:$0xf]
  %v29 = vld [vmem:[%s1 + $0x14] sm:$0xf]
  %v30 = vld [vmem:[%s1 + $0x18] sm:$0xf]
  %v31 = vld [vmem:[%s1 + $0x1c] sm:$0xf]
  %v32 = vld [vmem:[%s1 + $0x20] sm:$0xf]
  %v33 = vld [vmem:[%s1 + $0x24] sm:$0xf]
  %v34 = vld [vmem:[%s1 + $0x28] sm:$0xf]
  %v35 = vld [vmem:[%s1 + $0x2c] sm:$0xf]
  %v36 = vld [vmem:[%s1 + $0x30] sm:$0xf]
  %v37 = vld [vmem:[%s1 + $0x34] sm:$0xf]
  %v38 = vld [vmem:[%s1 + $0x38] sm:$0xf]
  %v39 = vld [vmem:[%s1 + $0x3c] sm:$0xf]
  %v40 = vld [vmem:[%s1 + $0x40] sm:$0xf]
  %v41 = vld [vmem:[%s1 + $0x44] sm:$0xf]
  %v42 = vld [vmem:[%s1 + $0x48] sm:$0xf]
  %v43 = vld [vmem:[%s1 + $0x4c] sm:$0xf]
  %v44 = vld [vmem:[%s1 + $0x50] sm:$0xf]
  %v45 = vld [vmem:[%s1 + $0x54] sm:$0xf]
  %v46 = vld [vmem:[%s1 + $0x58] sm:$0xf]
  %v47 = vld [vmem:[%s1 + $0x5c] sm:$0xf]
  %v48 = vld [vmem:[%s1 + $0x60] sm:$0xf]
  %v49 = vld [vmem:[%s1 + $0x64] sm:$0xf]
  %v50 = vld [vmem:[%s1 + $0x68] sm:$0xf]
  %v51 = vld [vmem:[%s1 + $0x6c] sm:$0xf]
  %v52 = vld [vmem:[%s1 + $0x70] sm:$0xf]
  %v53 = vld [vmem:[%s1 + $0x74] sm:$0xf]
  %v54 = vld [vmem:[%s1 + $0x78] sm:$0xf]
  %v55 = vld [vmem:[%s1 + $0x7c] sm:$0xf]
  %v56 = vld [vmem:[%s1 + $0x80] sm:$0xf]
  %v57 = vld [vmem:[%s1 + $0x84] sm:$0xf]
  %v58 = vld [vmem:[%s1 + $0x88] sm:$0xf]
  %v59 = vld [vmem:[%s1 + $0x8c] sm:$0xf]
  %v60 = vld [vmem:[%s1 + $0x90] sm:$0xf]
  %v61 = vld [vmem:[%s1 + $0x94] sm:$0xf]
  %v62 = vld [vmem:[%s1 + $0x98] sm:$0xf]
  %v63 = vld [vmem:[%s1 + $0x9c] sm:$0xf]
  %v64 = vld [vmem:[%s1 + $0xa0] sm:$0xf]
  %v65 = vld [vmem:[%s1 + $0xa4] sm:$0xf]
  %v66 = vld [vmem:[%s1 + $0xa8] sm:$0xf]
  %v67 = vld [vmem:[%s1 + $0xac] sm:$0xf]
  %v68 = vld [vmem:[%s1 + $0xb0] sm:$0xf]
  %v69 = vld [vmem:[%s1 + $0xb4] sm:$0xf]
  %v70 = vld [vmem:[%s1 + $0xb8] sm:$0xf]
  %v71 = vld [vmem:[%s1 + $0xbc] sm:$0xf]
  %v72 = vld [vmem:[%s1 + $0xc0] sm:$0xf]
  %v73 = vld [vmem:[%s1 + $0xc4] sm:$0xf]
  %v74 = vld [vmem:[%s1 + $0xc8] sm:$0xf]
  %v75 = vld [vmem:[%s1 + $0xcc] sm:$0xf]
  %v76 = vld [vmem:[%s1 + $0xd0] sm:$0xf]
  %v77 = vld [vmem:[%s1 + $0xd4] sm:$0xf]
  %v78 = vld [vmem:[%s1 + $0xd8] sm:$0xf]
  %v79 = vld [vmem:[%s1 + $0xdc] sm:$0xf]
  %v80 = vld [vmem:[%s1 + $0xe0] sm:$0xf]
  %v81 = vld [vmem:[%s1 + $0xe4] sm:$0xf]
  %v82 = vld [vmem:[%s1 + $0xe8] sm:$0xf]
  %v83 = vld [vmem:[%s1 + $0xec] sm:$0xf]
  %v84 = vld [vmem:[%s1 + $0xf0] sm:$0xf]
  %v85 = vld [vmem:[%s1 + $0xf4] sm:$0xf]
  %v86 = vld [vmem:[%s1 + $0xf8] sm:$0xf]
  %v87 = vld [vmem:[%s1 + $0xfc] sm:$0xf]
  %v88 = vld [vmem:[%s1 + $0x100] sm:$0xf]
  %v89 = vld [vmem:[%s1 + $0x104] sm:$0xf]
  %v90 = vld [vmem:[%s1 + $0x108] sm:$0xf]
  %v91 = vld [vmem:[%s1 + $0x10c] sm:$0xf]
  %v92 = vld [vmem:[%s1 + $0x110] sm:$0xf]
  %v93 = vld [vmem:[%s1 + $0x114] sm:$0xf]
  %v94 = vld [vmem:[%s1 + $0x118] sm:$0xf]
  %v95 = vld [vmem:[%s1 + $0x11c] sm:$0xf]
  %v108 = vunpack.c.l.b16 %v12
  %v109 = vunpack.c.h.b16 %v12
  %v110 = vunpack.c.l.b16 %v13
  %v111 = vunpack.c.h.b16 %v13
  %v112 = vunpack.c.l.b16 %v14
  %v113 = vunpack.c.l.b16 %v15
  %v114 = vunpack.c.h.b16 %v15
  %v115 = vunpack.c.l.b16 %v16
  %v116 = vunpack.c.h.b16 %v16
  %v117 = vunpack.c.l.b16 %v17
  %v118 = vunpack.c.l.b16 %v18
  %v119 = vunpack.c.h.b16 %v18
  %v120 = vunpack.c.l.b16 %v19
  %v121 = vunpack.c.h.b16 %v19
  %v122 = vunpack.c.l.b16 %v20
  %v123 = vunpack.c.l.b16 %v21
  %v124 = vunpack.c.h.b16 %v21
  %v125 = vunpack.c.l.b16 %v22
  %v126 = vunpack.c.h.b16 %v22
  %v127 = vunpack.c.l.b16 %v23
  %v128 = vpack.c.b16 %v113, %v108
  %v129 = vpack.c.b16 %v114, %v109
  %v130 = vpack.c.b16 %v115, %v110
  %v131 = vpack.c.b16 %v116, %v111
  %v132 = vpack.c.b16 %v117, %v112
  %v133 = vpack.c.b16 %v123, %v118
  %v134 = vpack.c.b16 %v124, %v119
  %v135 = vpack.c.b16 %v125, %v120
  %v136 = vpack.c.b16 %v126, %v121
  %v137 = vpack.c.b16 %v127, %v122
  %v218 = vunpack.c.l.b16 %v24
  %v219 = vunpack.c.l.b16 %v25
  %v220 = vunpack.c.l.b16 %v26
  %v221 = vunpack.c.l.b16 %v27
  %v222 = vunpack.c.l.b16 %v28
  %v223 = vunpack.c.l.b16 %v29
  %v224 = vunpack.c.l.b16 %v30
  %v225 = vunpack.c.l.b16 %v31
  %v226 = vunpack.c.l.b16 %v32
  %v227 = vunpack.c.l.b16 %v33
  %v228 = vunpack.c.l.b16 %v34
  %v229 = vunpack.c.l.b16 %v35
  %v230 = vunpack.c.l.b16 %v36
  %v231 = vunpack.c.l.b16 %v37
  %v232 = vunpack.c.l.b16 %v38
  %v233 = vunpack.c.l.b16 %v39
  %v234 = vunpack.c.l.b16 %v40
  %v235 = vunpack.c.l.b16 %v41
  %v236 = vunpack.c.l.b16 %v42
  %v237 = vunpack.c.l.b16 %v43
  %v238 = vunpack.c.l.b16 %v44
  %v239 = vunpack.c.l.b16 %v45
  %v240 = vunpack.c.l.b16 %v46
  %v241 = vunpack.c.l.b16 %v47
  %v242 = vunpack.c.l.b16 %v48
  %v243 = vunpack.c.l.b16 %v49
  %v244 = vunpack.c.l.b16 %v50
  %v245 = vunpack.c.l.b16 %v51
  %v246 = vunpack.c.l.b16 %v52
  %v247 = vunpack.c.l.b16 %v53
  %v248 = vunpack.c.l.b16 %v54
  %v249 = vunpack.c.l.b16 %v55
  %v250 = vunpack.c.l.b16 %v56
  %v251 = vunpack.c.l.b16 %v57
  %v252 = vunpack.c.l.b16 %v58
  %v253 = vunpack.c.l.b16 %v59
  %v254 = vunpack.c.l.b16 %v60
  %v255 = vunpack.c.l.b16 %v61
  %v256 = vunpack.c.l.b16 %v62
  %v257 = vunpack.c.l.b16 %v63
  %v258 = vunpack.c.l.b16 %v64
  %v259 = vunpack.c.l.b16 %v65
  %v260 = vunpack.c.l.b16 %v66
  %v261 = vunpack.c.l.b16 %v67
  %v262 = vunpack.c.l.b16 %v68
  %v263 = vunpack.c.l.b16 %v69
  %v264 = vunpack.c.l.b16 %v70
  %v265 = vunpack.c.l.b16 %v71
  %v266 = vunpack.c.l.b16 %v72
  %v267 = vunpack.c.l.b16 %v73
  %v268 = vunpack.c.l.b16 %v74
  %v269 = vunpack.c.l.b16 %v75
  %v270 = vunpack.c.l.b16 %v76
  %v271 = vunpack.c.l.b16 %v77
  %v272 = vunpack.c.l.b16 %v78
  %v273 = vunpack.c.l.b16 %v79
  %v274 = vunpack.c.l.b16 %v80
  %v275 = vunpack.c.l.b16 %v81
  %v276 = vunpack.c.l.b16 %v82
  %v277 = vunpack.c.l.b16 %v83
  %v278 = vunpack.c.l.b16 %v84
  %v279 = vunpack.c.l.b16 %v85
  %v280 = vunpack.c.l.b16 %v86
  %v281 = vunpack.c.l.b16 %v87
  %v282 = vunpack.c.l.b16 %v88
  %v283 = vunpack.c.l.b16 %v89
  %v284 = vunpack.c.l.b16 %v90
  %v285 = vunpack.c.l.b16 %v91
  %v286 = vunpack.c.l.b16 %v92
  %v287 = vunpack.c.l.b16 %v93
  %v288 = vunpack.c.l.b16 %v94
  %v289 = vunpack.c.l.b16 %v95
  %v290 = vpack.c.b16 %v219, %v218
  %v291 = vpack.c.b16 %v221, %v220
  %v292 = vpack.c.b16 %v223, %v222
  %v293 = vpack.c.b16 %v225, %v224
  %v294 = vpack.c.b16 %v227, %v226
  %v295 = vpack.c.b16 %v229, %v228
  %v296 = vpack.c.b16 %v231, %v230
  %v297 = vpack.c.b16 %v233, %v232
  %v298 = vpack.c.b16 %v235, %v234
  %v299 = vpack.c.b16 %v237, %v236
  %v300 = vpack.c.b16 %v239, %v238
  %v301 = vpack.c.b16 %v241, %v240
  %v302 = vpack.c.b16 %v243, %v242
  %v303 = vpack.c.b16 %v245, %v244
  %v304 = vpack.c.b16 %v247, %v246
  %v305 = vpack.c.b16 %v249, %v248
  %v306 = vpack.c.b16 %v251, %v250
  %v307 = vpack.c.b16 %v253, %v252
  %v308 = vpack.c.b16 %v255, %v254
  %v309 = vpack.c.b16 %v257, %v256
  %v310 = vpack.c.b16 %v259, %v258
  %v311 = vpack.c.b16 %v261, %v260
  %v312 = vpack.c.b16 %v263, %v262
  %v313 = vpack.c.b16 %v265, %v264
  %v314 = vpack.c.b16 %v267, %v266
  %v315 = vpack.c.b16 %v269, %v268
  %v316 = vpack.c.b16 %v271, %v270
  %v317 = vpack.c.b16 %v273, %v272
  %v318 = vpack.c.b16 %v275, %v274
  %v319 = vpack.c.b16 %v277, %v276
  %v320 = vpack.c.b16 %v279, %v278
  %v321 = vpack.c.b16 %v281, %v280
  %v322 = vpack.c.b16 %v283, %v282
  %v323 = vpack.c.b16 %v285, %v284
  %v324 = vpack.c.b16 %v287, %v286
  %v325 = vpack.c.b16 %v289, %v288
  %vm362 = vcmask 523264
  %v364 = vsel %vm362, %v132, 0
  %v367 = vsel %vm362, %v137, 0
  %369 = vmatprep.subr.bf16.mxu0 0
  %370 = vmatpush1.bf16.msra.mxu0 %v297
  %371 = vmatprep.subr.bf16.mxu0 0
  %372 = vmatpush1.bf16.msra.mxu0 %v296
  %373 = vmatprep.subr.bf16.mxu0 0
  %374 = vmatpush1.bf16.msra.mxu0 %v295
  %375 = vmatprep.subr.bf16.mxu0 0
  %376 = vmatpush1.bf16.msra.mxu0 %v294
  %377 = vmatprep.subr.bf16.mxu0 0
  %378 = vmatpush1.bf16.msra.mxu0 %v293
  %379 = vmatprep.subr.bf16.mxu0 0
  %380 = vmatpush1.bf16.msra.mxu0 %v292
  %381 = vmatprep.subr.bf16.mxu0 0
  %382 = vmatpush1.bf16.msra.mxu0 %v291
  %383 = vmatprep.subr.bf16.mxu0 0
  %384 = vmatpush1.bf16.msra.mxu0 %v290
  %385 = vmatprep.subr.bf16.mxu0 0
  %386 = vmatpush2.bf16.msra.mxu0 %v305
  %387 = vmatprep.subr.bf16.mxu0 0
  %388 = vmatpush2.bf16.msra.mxu0 %v304
  %389 = vmatprep.subr.bf16.mxu0 0
  %390 = vmatpush2.bf16.msra.mxu0 %v303
  %391 = vmatprep.subr.bf16.mxu0 0
  %392 = vmatpush2.bf16.msra.mxu0 %v302
  %393 = vmatprep.subr.bf16.mxu0 0
  %394 = vmatpush2.bf16.msra.mxu0 %v301
  %395 = vmatprep.subr.bf16.mxu0 0
  %396 = vmatpush2.bf16.msra.mxu0 %v300
  %397 = vmatprep.subr.bf16.mxu0 0
  %398 = vmatpush2.bf16.msra.mxu0 %v299
  %399 = vmatprep.subr.bf16.mxu0 0
  %400 = vmatpush2.bf16.msra.mxu0 %v298
  %401 = vmatprep.mubr.bf16.mxu0 %v129
  %402 = vmatmul.mubr.bf16.gmra.mxu0 %v128
  %v403 = vpop.f32.mrf.mxu0
  %v404 = vadd.f32 0.0, %v403
  %v405 = vpop.f32.mrf.mxu0
  %v406 = vpop.f32.mrf.mxu0
  %v407 = vadd.f32 0.0, %v406
  %v408 = vpop.f32.mrf.mxu0
  %409 = vmatprep.mubr.bf16.mxu0 %v134
  %410 = vmatmul.mubr.bf16.gmra.mxu0 %v133
  %v411 = vpop.f32.mrf.mxu0
  %v412 = vadd.f32 0.0, %v411
  %v413 = vpop.f32.mrf.mxu0
  %v414 = vpop.f32.mrf.mxu0
  %v415 = vadd.f32 0.0, %v414
  %v416 = vpop.f32.mrf.mxu0
  %417 = vdwg.mxu0
  %418 = vmatprep.subr.bf16.mxu0 0
  %419 = vmatpush1.bf16.msra.mxu0 %v313
  %420 = vmatprep.subr.bf16.mxu0 0
  %421 = vmatpush1.bf16.msra.mxu0 %v312
  %422 = vmatprep.subr.bf16.mxu0 0
  %423 = vmatpush1.bf16.msra.mxu0 %v311
  %424 = vmatprep.subr.bf16.mxu0 0
  %425 = vmatpush1.bf16.msra.mxu0 %v310
  %426 = vmatprep.subr.bf16.mxu0 0
  %427 = vmatpush1.bf16.msra.mxu0 %v309
  %428 = vmatprep.subr.bf16.mxu0 0
  %429 = vmatpush1.bf16.msra.mxu0 %v308
  %430 = vmatprep.subr.bf16.mxu0 0
  %431 = vmatpush1.bf16.msra.mxu0 %v307
  %432 = vmatprep.subr.bf16.mxu0 0
  %433 = vmatpush1.bf16.msra.mxu0 %v306
  %434 = vmatprep.subr.bf16.mxu0 0
  %435 = vmatpush2.bf16.msra.mxu0 %v321
  %436 = vmatprep.subr.bf16.mxu0 0
  %437 = vmatpush2.bf16.msra.mxu0 %v320
  %438 = vmatprep.subr.bf16.mxu0 0
  %439 = vmatpush2.bf16.msra.mxu0 %v319
  %440 = vmatprep.subr.bf16.mxu0 0
  %441 = vmatpush2.bf16.msra.mxu0 %v318
  %442 = vmatprep.subr.bf16.mxu0 0
  %443 = vmatpush2.bf16.msra.mxu0 %v317
  %444 = vmatprep.subr.bf16.mxu0 0
  %445 = vmatpush2.bf16.msra.mxu0 %v316
  %446 = vmatprep.subr.bf16.mxu0 0
  %447 = vmatpush2.bf16.msra.mxu0 %v315
  %448 = vmatprep.subr.bf16.mxu0 0
  %449 = vmatpush2.bf16.msra.mxu0 %v314
  %450 = vmatprep.mubr.bf16.mxu0 %v131
  %451 = vmatmul.mubr.bf16.gmra.mxu0 %v130
  %v452 = vpop.f32.mrf.mxu0
  %v453 = vadd.f32 %v404, %v452
  %v454 = vpop.f32.mrf.mxu0
  %v455 = vpop.f32.mrf.mxu0
  %v456 = vadd.f32 %v407, %v455
  %v457 = vpop.f32.mrf.mxu0
  %458 = vmatprep.mubr.bf16.mxu0 %v136
  %459 = vmatmul.mubr.bf16.gmra.mxu0 %v135
  %v460 = vpop.f32.mrf.mxu0
  %v461 = vadd.f32 %v412, %v460
  %v462 = vpop.f32.mrf.mxu0
  %v463 = vpop.f32.mrf.mxu0
  %v464 = vadd.f32 %v415, %v463
  %v465 = vpop.f32.mrf.mxu0
  %466 = vdwg.mxu0
  %467 = vmatprep.subr.bf16.mxu0 0
  %468 = vmatpush1.bf16.msra.mxu0 0
  %469 = vmatprep.subr.bf16.mxu0 0
  %470 = vmatpush1.bf16.msra.mxu0 0
  %471 = vmatprep.subr.bf16.mxu0 0
  %472 = vmatpush1.bf16.msra.mxu0 0
  %473 = vmatprep.subr.bf16.mxu0 0
  %474 = vmatpush1.bf16.msra.mxu0 0
  %475 = vmatprep.subr.bf16.mxu0 0
  %476 = vmatpush1.bf16.msra.mxu0 %v325
  %477 = vmatprep.subr.bf16.mxu0 0
  %478 = vmatpush1.bf16.msra.mxu0 %v324
  %479 = vmatprep.subr.bf16.mxu0 0
  %480 = vmatpush1.bf16.msra.mxu0 %v323
  %481 = vmatprep.subr.bf16.mxu0 0
  %482 = vmatpush1.bf16.msra.mxu0 %v322
  %483 = vmatprep.subr.bf16.mxu0 0
  %484 = vmatpush2.bf16.msra.mxu0 0
  %485 = vmatprep.subr.bf16.mxu0 0
  %486 = vmatpush2.bf16.msra.mxu0 0
  %487 = vmatprep.subr.bf16.mxu0 0
  %488 = vmatpush2.bf16.msra.mxu0 0
  %489 = vmatprep.subr.bf16.mxu0 0
  %490 = vmatpush2.bf16.msra.mxu0 0
  %491 = vmatprep.subr.bf16.mxu0 0
  %492 = vmatpush2.bf16.msra.mxu0 0
  %493 = vmatprep.subr.bf16.mxu0 0
  %494 = vmatpush2.bf16.msra.mxu0 0
  %495 = vmatprep.subr.bf16.mxu0 0
  %496 = vmatpush2.bf16.msra.mxu0 0
  %497 = vmatprep.subr.bf16.mxu0 0
  %498 = vmatpush2.bf16.msra.mxu0 0
  %499 = vmatprep.mubr.bf16.mxu0 0
  %500 = vmatmul.mubr.bf16.gmra.mxu0 %v364
  %v501 = vpop.f32.mrf.mxu0
  %v502 = vadd.f32 %v453, %v501
  %v503 = vpop.f32.mrf.mxu0
  %v504 = vpop.f32.mrf.mxu0
  %v505 = vadd.f32 %v456, %v504
  %v506 = vpop.f32.mrf.mxu0
  %507 = vmatprep.mubr.bf16.mxu0 0
  %508 = vmatmul.mubr.bf16.gmra.mxu0 %v367
  %v509 = vpop.f32.mrf.mxu0
  %v510 = vadd.f32 %v461, %v509
  %v511 = vpop.f32.mrf.mxu0
  %v512 = vpop.f32.mrf.mxu0
  %v513 = vadd.f32 %v464, %v512
  %v514 = vpop.f32.mrf.mxu0
  %515 = vdwg.mxu0
  %516 = vst.msk [vmem:[%s2] sm:$0xff] %vm362, %v502
  %517 = vst.msk [vmem:[%s2 + $0x8] sm:$0xff] %vm362, %v505
  %518 = vst.msk [vmem:[%s2 + $0x10] sm:$0xff] %vm362, %v510
  %519 = vst.msk [vmem:[%s2 + $0x18] sm:$0xff] %vm362, %v513
  // Predicated region
  $region10: #{dronet_forward.18} parent=0 // pred_check
    _
  $region11: #{dronet_forward.18} parent=0 // pred_check_branch
    %521 = sbr.rel (0) target = $region13
  $region12: #{dronet_forward.18} parent=0 // pred_region
    _
  $region13: #{dronet_forward.18} parent=0 // pred_fallthru
    _
  // Predicated region
  $region14: #{dronet_forward.18} parent=0 // pred_check
    _
  $region15: #{dronet_forward.18} parent=0 // pred_check_branch
    %523 = sbr.rel (0) target = $region17
  $region16: #{dronet_forward.18} parent=0 // pred_region
    _
  $region17: #{dronet_forward.18} parent=0 // pred_fallthru
    _

// kernel: dronet_forward.19
$region0: #{dronet_forward.19}
  #allocation0 [shape = 'u32[]', space=smem, size = 0x4, offset = 0x4, fixed_abs, tag = 'smem constant byte address 0x4 - core index']
  #allocation1 [shape = 'u32[144,128]{1,0:T(1,128)}', space=vmem, size = 0x12000, scoped, tag = 'internal scratch']
  %s0 = inlined_call_operand.vmem [shape: bf16[32,32], index: 0, kind: input, shape index: {}]
  %s1 = inlined_call_operand.vmem [shape: bf16[32,64], index: 1, kind: input, shape index: {}]
  %s2 = inlined_call_operand.vmem [shape: f32[1,64], index: 2, kind: input, shape index: {}]
  %s3 = inlined_call_operand.vmem [shape: f32[32,64], index: 3, kind: input, shape index: {}]
  %s4 = inlined_call_operand.vmem [shape: f32[1,64], index: 4, kind: input, shape index: {}]
  %s5 = inlined_call_operand.vmem [shape: f32[1,64], index: 5, kind: input, shape index: {}]
  %s6 = inlined_call_operand.vmem [shape: f32[32,64], index: 6, kind: output, shape index: {0}]
  %s7 = inlined_call_operand.vmem [shape: f32[32,64], index: 7, kind: output, shape index: {1}]
  %8 = xla_tuple %s6, %s7
  %s9 = sld [smem:[#allocation0]]
  $region42: #{dronet_forward.19} parent=0
    _
  %s11 = ssub.s32 1, %s9
  %s12 = scalar_select 0, %s11, %s9
  // Predicated region
  $region2: #{dronet_forward.19} parent=0 // pred_check
    _
  $region3: #{dronet_forward.19} parent=0 // pred_check_branch
    %14 = sbr.rel (0) target = $region5
  $region4: #{dronet_forward.19} parent=0 // pred_region
    _
  $region5: #{dronet_forward.19} parent=0 // pred_fallthru
    _
  // Predicated region
  $region6: #{dronet_forward.19} parent=0 // pred_check
    _
  $region7: #{dronet_forward.19} parent=0 // pred_check_branch
    %16 = sbr.rel (0) target = $region9
  $region8: #{dronet_forward.19} parent=0 // pred_region
    _
  $region9: #{dronet_forward.19} parent=0 // pred_fallthru
    _
  // Predicated region
  $region10: #{dronet_forward.19} parent=0 // pred_check
    _
  $region11: #{dronet_forward.19} parent=0 // pred_check_branch
    %18 = sbr.rel (0) target = $region13
  $region12: #{dronet_forward.19} parent=0 // pred_region
    _
  $region13: #{dronet_forward.19} parent=0 // pred_fallthru
    _
  // Predicated region
  $region14: #{dronet_forward.19} parent=0 // pred_check
    _
  $region15: #{dronet_forward.19} parent=0 // pred_check_branch
    %20 = sbr.rel (0) target = $region17
  $region16: #{dronet_forward.19} parent=0 // pred_region
    _
  $region17: #{dronet_forward.19} parent=0 // pred_fallthru
    _
  // Predicated region
  $region18: #{dronet_forward.19} parent=0 // pred_check
    _
  $region19: #{dronet_forward.19} parent=0 // pred_check_branch
    %22 = sbr.rel (0) target = $region21
  $region20: #{dronet_forward.19} parent=0 // pred_region
    _
  $region21: #{dronet_forward.19} parent=0 // pred_fallthru
    _
  // Predicated region
  $region22: #{dronet_forward.19} parent=0 // pred_check
    _
  $region23: #{dronet_forward.19} parent=0 // pred_check_branch
    %24 = sbr.rel (0) target = $region25
  $region24: #{dronet_forward.19} parent=0 // pred_region
    _
  $region25: #{dronet_forward.19} parent=0 // pred_fallthru
    _
  %v26 = vld [vmem:[%s0] sm:$0xf]
  %v27 = vld [vmem:[%s0 + $0x4] sm:$0xf]
  %v28 = vld [vmem:[%s0 + $0x8] sm:$0xf]
  %v29 = vld [vmem:[%s0 + $0xc] sm:$0xf]
  %v30 = vld [vmem:[%s1] sm:$0xf]
  %v31 = vld [vmem:[%s1 + $0x4] sm:$0xf]
  %v32 = vld [vmem:[%s1 + $0x8] sm:$0xf]
  %v33 = vld [vmem:[%s1 + $0xc] sm:$0xf]
  %v34 = vld [vmem:[%s2] sm:$0x1]
  %v36 = vlaneseq
  %v37 = vshrl.u32 %v36, 7
  %v38 = vsub.s32 0, %v37
  %v39 = vrot.slane %v34, %v38
  %v45 = vunpack.c.l.b16 %v26
  %v46 = vunpack.c.l.b16 %v27
  %v47 = vunpack.c.l.b16 %v28
  %v48 = vunpack.c.l.b16 %v29
  %v49 = vpack.c.b16 %v46, %v45
  %v50 = vpack.c.b16 %v48, %v47
  %v55 = vunpack.c.l.b16 %v30
  %v56 = vunpack.c.l.b16 %v31
  %v57 = vunpack.c.l.b16 %v32
  %v58 = vunpack.c.l.b16 %v33
  %v59 = vpack.c.b16 %v56, %v55
  %v60 = vpack.c.b16 %v58, %v57
  %vm63 = vcmask 261120
  %v65 = vsel %vm63, %v49, 0
  %v68 = vsel %vm63, %v50, 0
  %70 = vmatprep.subr.bf16.mxu0 0
  %71 = vmatpush1.bf16.msra.mxu0 0
  %72 = vmatprep.subr.bf16.mxu0 0
  %73 = vmatpush1.bf16.msra.mxu0 0
  %74 = vmatprep.subr.bf16.mxu0 0
  %75 = vmatpush1.bf16.msra.mxu0 0
  %76 = vmatprep.subr.bf16.mxu0 0
  %77 = vmatpush1.bf16.msra.mxu0 0
  %78 = vmatprep.subr.bf16.mxu0 0
  %79 = vmatpush1.bf16.msra.mxu0 0
  %80 = vmatprep.subr.bf16.mxu0 0
  %81 = vmatpush1.bf16.msra.mxu0 0
  %82 = vmatprep.subr.bf16.mxu0 0
  %83 = vmatpush1.bf16.msra.mxu0 %v60
  %84 = vmatprep.subr.bf16.mxu0 0
  %85 = vmatpush1.bf16.msra.mxu0 %v59
  %86 = vmatprep.subr.bf16.mxu0 0
  %87 = vmatpush2.bf16.msra.mxu0 0
  %88 = vmatprep.subr.bf16.mxu0 0
  %89 = vmatpush2.bf16.msra.mxu0 0
  %90 = vmatprep.subr.bf16.mxu0 0
  %91 = vmatpush2.bf16.msra.mxu0 0
  %92 = vmatprep.subr.bf16.mxu0 0
  %93 = vmatpush2.bf16.msra.mxu0 0
  %94 = vmatprep.subr.bf16.mxu0 0
  %95 = vmatpush2.bf16.msra.mxu0 0
  %96 = vmatprep.subr.bf16.mxu0 0
  %97 = vmatpush2.bf16.msra.mxu0 0
  %98 = vmatprep.subr.bf16.mxu0 0
  %99 = vmatpush2.bf16.msra.mxu0 0
  %100 = vmatprep.subr.bf16.mxu0 0
  %101 = vmatpush2.bf16.msra.mxu0 0
  %102 = vmatprep.mubr.bf16.mxu0 0
  %103 = vmatmul.mubr.bf16.gmra.mxu0 %v65
  %v104 = vpop.f32.mrf.mxu0
  %v105 = vadd.f32 %v39, %v104
  %v106 = vpop.f32.mrf.mxu0
  %v107 = vpop.f32.mrf.mxu0
  %v108 = vadd.f32 %v39, %v107
  %v109 = vpop.f32.mrf.mxu0
  %110 = vmatprep.mubr.bf16.mxu0 0
  %111 = vmatmul.mubr.bf16.gmra.mxu0 %v68
  %v112 = vpop.f32.mrf.mxu0
  %v113 = vadd.f32 %v39, %v112
  %v114 = vpop.f32.mrf.mxu0
  %v115 = vpop.f32.mrf.mxu0
  %v116 = vadd.f32 %v39, %v115
  %v117 = vpop.f32.mrf.mxu0
  %118 = vdwg.mxu0
  %v119 = vld [vmem:[%s3] sm:$0xff]
  %v120 = vld [vmem:[%s3 + $0x8] sm:$0xff]
  %v121 = vld [vmem:[%s3 + $0x10] sm:$0xff]
  %v122 = vld [vmem:[%s3 + $0x18] sm:$0xff]
  %v123 = vadd.f32 %v105, %v119
  %v124 = vadd.f32 %v108, %v120
  %v125 = vadd.f32 %v113, %v121
  %v126 = vadd.f32 %v116, %v122
  %vm127 = vcmask 523264
  %128 = vst.msk [vmem:[%s6] sm:$0xff] %vm127, %v123
  %129 = vst.msk [vmem:[%s6 + $0x8] sm:$0xff] %vm127, %v124
  %130 = vst.msk [vmem:[%s6 + $0x10] sm:$0xff] %vm127, %v125
  %131 = vst.msk [vmem:[%s6 + $0x18] sm:$0xff] %vm127, %v126
  %v132 = vld [vmem:[%s4] sm:$0x1]
  %v133 = vld [vmem:[%s5] sm:$0x1]
  %v134 = vsel %vm127, %v123, 0.0
  %v135 = vsel %vm127, %v124, 0.0
  %v136 = vadd.f32 %v134, %v135
  %v137 = vsel %vm127, %v125, 0.0
  %v138 = vadd.f32 %v136, %v137
  %v139 = vsel %vm127, %v126, 0.0
  %v140 = vadd.f32 %v138, %v139
  %v141 = vrot.slane %v140, 4
  %v142 = vadd.f32 %v140, %v141
  %v143 = vrot.slane %v142, 2
  %v144 = vadd.f32 %v142, %v143
  %v145 = vrot.slane %v144, 1
  %v146 = vadd.f32 %v144, %v145
  %v147 = vrcp.pop 32.0
  %v148 = vmul.f32 %v146, %v147
  %v149 = vsub.f32 %v123, %v148
  %v150 = vsub.f32 %v124, %v148
  %v151 = vsub.f32 %v125, %v148
  %v152 = vsub.f32 %v126, %v148
  %v153 = vmul.f32 %v149, %v149
  %v154 = vmul.f32 %v150, %v150
  %v155 = vmul.f32 %v151, %v151
  %v156 = vmul.f32 %v152, %v152
  %v157 = vsel %vm127, %v153, 0.0
  %v158 = vsel %vm127, %v154, 0.0
  %v159 = vadd.f32 %v157, %v158
  %v160 = vsel %vm127, %v155, 0.0
  %v161 = vadd.f32 %v159, %v160
  %v162 = vsel %vm127, %v156, 0.0
  %v163 = vadd.f32 %v161, %v162
  %v164 = vrot.slane %v163, 4
  %v165 = vadd.f32 %v163, %v164
  %v166 = vrot.slane %v165, 2
  %v167 = vadd.f32 %v165, %v166
  %v168 = vrot.slane %v167, 1
  %v169 = vadd.f32 %v167, %v168
  %v170 = vmul.f32 %v169, %v147
  %v171 = vadd.f32 %v170, 1e-05
  %v172 = vrsqrt.pop %v171
  %v173 = vmul.f32 %v149, %v172
  %v174 = vmul.f32 %v150, %v172
  %v175 = vmul.f32 %v151, %v172
  %v176 = vmul.f32 %v152, %v172
  %v178 = vlaneseq
  %v179 = vshrl.u32 %v178, 7
  %v180 = vsub.s32 0, %v179
  %v181 = vrot.slane %v132, %v180
  %v183 = vmul.f32 %v173, %v181
  %v184 = vmul.f32 %v174, %v181
  %v185 = vmul.f32 %v175, %v181
  %v186 = vmul.f32 %v176, %v181
  %v188 = vlaneseq
  %v189 = vshrl.u32 %v188, 7
  %v190 = vsub.s32 0, %v189
  %v191 = vrot.slane %v133, %v190
  %v193 = vadd.f32 %v183, %v191
  %v194 = vadd.f32 %v184, %v191
  %v195 = vadd.f32 %v185, %v191
  %v196 = vadd.f32 %v186, %v191
  %v197 = vmax.f32 %v193, 0.0
  %v198 = vmax.f32 %v194, 0.0
  %v199 = vmax.f32 %v195, 0.0
  %v200 = vmax.f32 %v196, 0.0
  %201 = vst.msk [vmem:[%s7] sm:$0xff] %vm127, %v197
  %202 = vst.msk [vmem:[%s7 + $0x8] sm:$0xff] %vm127, %v198
  %203 = vst.msk [vmem:[%s7 + $0x10] sm:$0xff] %vm127, %v199
  %204 = vst.msk [vmem:[%s7 + $0x18] sm:$0xff] %vm127, %v200
  // Predicated region
  $region26: #{dronet_forward.19} parent=0 // pred_check
    _
  $region27: #{dronet_forward.19} parent=0 // pred_check_branch
    %206 = sbr.rel (0) target = $region29
  $region28: #{dronet_forward.19} parent=0 // pred_region
    _
  $region29: #{dronet_forward.19} parent=0 // pred_fallthru
    _
  // Predicated region
  $region30: #{dronet_forward.19} parent=0 // pred_check
    _
  $region31: #{dronet_forward.19} parent=0 // pred_check_branch
    %208 = sbr.rel (0) target = $region33
  $region32: #{dronet_forward.19} parent=0 // pred_region
    _
  $region33: #{dronet_forward.19} parent=0 // pred_fallthru
    _
  // Predicated region
  $region34: #{dronet_forward.19} parent=0 // pred_check
    _
  $region35: #{dronet_forward.19} parent=0 // pred_check_branch
    %210 = sbr.rel (0) target = $region37
  $region36: #{dronet_forward.19} parent=0 // pred_region
    _
  $region37: #{dronet_forward.19} parent=0 // pred_fallthru
    _
  // Predicated region
  $region38: #{dronet_forward.19} parent=0 // pred_check
    _
  $region39: #{dronet_forward.19} parent=0 // pred_check_branch
    %212 = sbr.rel (0) target = $region41
  $region40: #{dronet_forward.19} parent=0 // pred_region
    _
  $region41: #{dronet_forward.19} parent=0 // pred_fallthru
    _

// kernel: dronet_forward.20
$region0: #{dronet_forward.20}
  #allocation0 [shape = 'u32[]', space=smem, size = 0x4, offset = 0x4, fixed_abs, tag = 'smem constant byte address 0x4 - core index']
  #allocation1 [shape = 'u32[144,128]{1,0:T(1,128)}', space=vmem, size = 0x12000, scoped, tag = 'internal scratch']
  %s0 = inlined_call_operand.vmem [shape: bf16[8,576], index: 0, kind: input, shape index: {}]
  %s1 = inlined_call_operand.vmem [shape: bf16[576,128], index: 1, kind: input, shape index: {}]
  %s2 = inlined_call_operand.vmem [shape: f32[1,128], index: 2, kind: input, shape index: {}]
  %s3 = inlined_call_operand.vmem [shape: f32[1,128], index: 3, kind: input, shape index: {}]
  %s4 = inlined_call_operand.vmem [shape: f32[8,128], index: 4, kind: output, shape index: {}]
  %s5 = sld [smem:[#allocation0]]
  $region26: #{dronet_forward.20} parent=0
    _
  %s7 = ssub.s32 1, %s5
  %s8 = scalar_select 0, %s7, %s5
  // Predicated region
  $region2: #{dronet_forward.20} parent=0 // pred_check
    _
  $region3: #{dronet_forward.20} parent=0 // pred_check_branch
    %10 = sbr.rel (0) target = $region5
  $region4: #{dronet_forward.20} parent=0 // pred_region
    _
  $region5: #{dronet_forward.20} parent=0 // pred_fallthru
    _
  // Predicated region
  $region6: #{dronet_forward.20} parent=0 // pred_check
    _
  $region7: #{dronet_forward.20} parent=0 // pred_check_branch
    %12 = sbr.rel (0) target = $region9
  $region8: #{dronet_forward.20} parent=0 // pred_region
    _
  $region9: #{dronet_forward.20} parent=0 // pred_fallthru
    _
  // Predicated region
  $region10: #{dronet_forward.20} parent=0 // pred_check
    _
  $region11: #{dronet_forward.20} parent=0 // pred_check_branch
    %14 = sbr.rel (0) target = $region13
  $region12: #{dronet_forward.20} parent=0 // pred_region
    _
  $region13: #{dronet_forward.20} parent=0 // pred_fallthru
    _
  // Predicated region
  $region14: #{dronet_forward.20} parent=0 // pred_check
    _
  $region15: #{dronet_forward.20} parent=0 // pred_check_branch
    %16 = sbr.rel (0) target = $region17
  $region16: #{dronet_forward.20} parent=0 // pred_region
    _
  $region17: #{dronet_forward.20} parent=0 // pred_fallthru
    _
  %v18 = vld [vmem:[%s0] sm:$0xff]
  %v19 = vld [vmem:[%s0 + $0x8] sm:$0xff]
  %v20 = vld [vmem:[%s0 + $0x10] sm:$0xf]
  %v21 = vld [vmem:[%s1] sm:$0xf]
  %v22 = vld [vmem:[%s1 + $0x4] sm:$0xf]
  %v23 = vld [vmem:[%s1 + $0x8] sm:$0xf]
  %v24 = vld [vmem:[%s1 + $0xc] sm:$0xf]
  %v25 = vld [vmem:[%s1 + $0x10] sm:$0xf]
  %v26 = vld [vmem:[%s1 + $0x14] sm:$0xf]
  %v27 = vld [vmem:[%s1 + $0x18] sm:$0xf]
  %v28 = vld [vmem:[%s1 + $0x1c] sm:$0xf]
  %v29 = vld [vmem:[%s1 + $0x20] sm:$0xf]
  %v30 = vld [vmem:[%s1 + $0x24] sm:$0xf]
  %v31 = vld [vmem:[%s1 + $0x28] sm:$0xf]
  %v32 = vld [vmem:[%s1 + $0x2c] sm:$0xf]
  %v33 = vld [vmem:[%s1 + $0x30] sm:$0xf]
  %v34 = vld [vmem:[%s1 + $0x34] sm:$0xf]
  %v35 = vld [vmem:[%s1 + $0x38] sm:$0xf]
  %v36 = vld [vmem:[%s1 + $0x3c] sm:$0xf]
  %v37 = vld [vmem:[%s1 + $0x40] sm:$0xf]
  %v38 = vld [vmem:[%s1 + $0x44] sm:$0xf]
  %v39 = vld [vmem:[%s1 + $0x48] sm:$0xf]
  %v40 = vld [vmem:[%s1 + $0x4c] sm:$0xf]
  %v41 = vld [vmem:[%s1 + $0x50] sm:$0xf]
  %v42 = vld [vmem:[%s1 + $0x54] sm:$0xf]
  %v43 = vld [vmem:[%s1 + $0x58] sm:$0xf]
  %v44 = vld [vmem:[%s1 + $0x5c] sm:$0xf]
  %v45 = vld [vmem:[%s1 + $0x60] sm:$0xf]
  %v46 = vld [vmem:[%s1 + $0x64] sm:$0xf]
  %v47 = vld [vmem:[%s1 + $0x68] sm:$0xf]
  %v48 = vld [vmem:[%s1 + $0x6c] sm:$0xf]
  %v49 = vld [vmem:[%s1 + $0x70] sm:$0xf]
  %v50 = vld [vmem:[%s1 + $0x74] sm:$0xf]
  %v51 = vld [vmem:[%s1 + $0x78] sm:$0xf]
  %v52 = vld [vmem:[%s1 + $0x7c] sm:$0xf]
  %v53 = vld [vmem:[%s1 + $0x80] sm:$0xf]
  %v54 = vld [vmem:[%s1 + $0x84] sm:$0xf]
  %v55 = vld [vmem:[%s1 + $0x88] sm:$0xf]
  %v56 = vld [vmem:[%s1 + $0x8c] sm:$0xf]
  %v57 = vld [vmem:[%s1 + $0x90] sm:$0xf]
  %v58 = vld [vmem:[%s1 + $0x94] sm:$0xf]
  %v59 = vld [vmem:[%s1 + $0x98] sm:$0xf]
  %v60 = vld [vmem:[%s1 + $0x9c] sm:$0xf]
  %v61 = vld [vmem:[%s1 + $0xa0] sm:$0xf]
  %v62 = vld [vmem:[%s1 + $0xa4] sm:$0xf]
  %v63 = vld [vmem:[%s1 + $0xa8] sm:$0xf]
  %v64 = vld [vmem:[%s1 + $0xac] sm:$0xf]
  %v65 = vld [vmem:[%s1 + $0xb0] sm:$0xf]
  %v66 = vld [vmem:[%s1 + $0xb4] sm:$0xf]
  %v67 = vld [vmem:[%s1 + $0xb8] sm:$0xf]
  %v68 = vld [vmem:[%s1 + $0xbc] sm:$0xf]
  %v69 = vld [vmem:[%s1 + $0xc0] sm:$0xf]
  %v70 = vld [vmem:[%s1 + $0xc4] sm:$0xf]
  %v71 = vld [vmem:[%s1 + $0xc8] sm:$0xf]
  %v72 = vld [vmem:[%s1 + $0xcc] sm:$0xf]
  %v73 = vld [vmem:[%s1 + $0xd0] sm:$0xf]
  %v74 = vld [vmem:[%s1 + $0xd4] sm:$0xf]
  %v75 = vld [vmem:[%s1 + $0xd8] sm:$0xf]
  %v76 = vld [vmem:[%s1 + $0xdc] sm:$0xf]
  %v77 = vld [vmem:[%s1 + $0xe0] sm:$0xf]
  %v78 = vld [vmem:[%s1 + $0xe4] sm:$0xf]
  %v79 = vld [vmem:[%s1 + $0xe8] sm:$0xf]
  %v80 = vld [vmem:[%s1 + $0xec] sm:$0xf]
  %v81 = vld [vmem:[%s1 + $0xf0] sm:$0xf]
  %v82 = vld [vmem:[%s1 + $0xf4] sm:$0xf]
  %v83 = vld [vmem:[%s1 + $0xf8] sm:$0xf]
  %v84 = vld [vmem:[%s1 + $0xfc] sm:$0xf]
  %v85 = vld [vmem:[%s1 + $0x100] sm:$0xf]
  %v86 = vld [vmem:[%s1 + $0x104] sm:$0xf]
  %v87 = vld [vmem:[%s1 + $0x108] sm:$0xf]
  %v88 = vld [vmem:[%s1 + $0x10c] sm:$0xf]
  %v89 = vld [vmem:[%s1 + $0x110] sm:$0xf]
  %v90 = vld [vmem:[%s1 + $0x114] sm:$0xf]
  %v91 = vld [vmem:[%s1 + $0x118] sm:$0xf]
  %v92 = vld [vmem:[%s1 + $0x11c] sm:$0xf]
  %v96 = vunpack.c.l.b16 %v18
  %v97 = vunpack.c.h.b16 %v18
  %v98 = vunpack.c.l.b16 %v19
  %v99 = vunpack.c.h.b16 %v19
  %v100 = vunpack.c.l.b16 %v20
  %v101 = vpack.c.b16 %v96, %v96
  %v102 = vpack.c.b16 %v97, %v97
  %v103 = vpack.c.b16 %v98, %v98
  %v104 = vpack.c.b16 %v99, %v99
  %v105 = vpack.c.b16 %v100, %v100
  %v182 = vunpack.c.l.b16 %v21
  %v183 = vunpack.c.l.b16 %v22
  %v184 = vunpack.c.l.b16 %v23
  %v185 = vunpack.c.l.b16 %v24
  %v186 = vunpack.c.l.b16 %v25
  %v187 = vunpack.c.l.b16 %v26
  %v188 = vunpack.c.l.b16 %v27
  %v189 = vunpack.c.l.b16 %v28
  %v190 = vunpack.c.l.b16 %v29
  %v191 = vunpack.c.l.b16 %v30
  %v192 = vunpack.c.l.b16 %v31
  %v193 = vunpack.c.l.b16 %v32
  %v194 = vunpack.c.l.b16 %v33
  %v195 = vunpack.c.l.b16 %v34
  %v196 = vunpack.c.l.b16 %v35
  %v197 = vunpack.c.l.b16 %v36
  %v198 = vunpack.c.l.b16 %v37
  %v199 = vunpack.c.l.b16 %v38
  %v200 = vunpack.c.l.b16 %v39
  %v201 = vunpack.c.l.b16 %v40
  %v202 = vunpack.c.l.b16 %v41
  %v203 = vunpack.c.l.b16 %v42
  %v204 = vunpack.c.l.b16 %v43
  %v205 = vunpack.c.l.b16 %v44
  %v206 = vunpack.c.l.b16 %v45
  %v207 = vunpack.c.l.b16 %v46
  %v208 = vunpack.c.l.b16 %v47
  %v209 = vunpack.c.l.b16 %v48
  %v210 = vunpack.c.l.b16 %v49
  %v211 = vunpack.c.l.b16 %v50
  %v212 = vunpack.c.l.b16 %v51
  %v213 = vunpack.c.l.b16 %v52
  %v214 = vunpack.c.l.b16 %v53
  %v215 = vunpack.c.l.b16 %v54
  %v216 = vunpack.c.l.b16 %v55
  %v217 = vunpack.c.l.b16 %v56
  %v218 = vunpack.c.l.b16 %v57
  %v219 = vunpack.c.l.b16 %v58
  %v220 = vunpack.c.l.b16 %v59
  %v221 = vunpack.c.l.b16 %v60
  %v222 = vunpack.c.l.b16 %v61
  %v223 = vunpack.c.l.b16 %v62
  %v224 = vunpack.c.l.b16 %v63
  %v225 = vunpack.c.l.b16 %v64
  %v226 = vunpack.c.l.b16 %v65
  %v227 = vunpack.c.l.b16 %v66
  %v228 = vunpack.c.l.b16 %v67
  %v229 = vunpack.c.l.b16 %v68
  %v230 = vunpack.c.l.b16 %v69
  %v231 = vunpack.c.l.b16 %v70
  %v232 = vunpack.c.l.b16 %v71
  %v233 = vunpack.c.l.b16 %v72
  %v234 = vunpack.c.l.b16 %v73
  %v235 = vunpack.c.l.b16 %v74
  %v236 = vunpack.c.l.b16 %v75
  %v237 = vunpack.c.l.b16 %v76
  %v238 = vunpack.c.l.b16 %v77
  %v239 = vunpack.c.l.b16 %v78
  %v240 = vunpack.c.l.b16 %v79
  %v241 = vunpack.c.l.b16 %v80
  %v242 = vunpack.c.l.b16 %v81
  %v243 = vunpack.c.l.b16 %v82
  %v244 = vunpack.c.l.b16 %v83
  %v245 = vunpack.c.l.b16 %v84
  %v246 = vunpack.c.l.b16 %v85
  %v247 = vunpack.c.l.b16 %v86
  %v248 = vunpack.c.l.b16 %v87
  %v249 = vunpack.c.l.b16 %v88
  %v250 = vunpack.c.l.b16 %v89
  %v251 = vunpack.c.l.b16 %v90
  %v252 = vunpack.c.l.b16 %v91
  %v253 = vunpack.c.l.b16 %v92
  %v254 = vpack.c.b16 %v183, %v182
  %v255 = vpack.c.b16 %v185, %v184
  %v256 = vpack.c.b16 %v187, %v186
  %v257 = vpack.c.b16 %v189, %v188
  %v258 = vpack.c.b16 %v191, %v190
  %v259 = vpack.c.b16 %v193, %v192
  %v260 = vpack.c.b16 %v195, %v194
  %v261 = vpack.c.b16 %v197, %v196
  %v262 = vpack.c.b16 %v199, %v198
  %v263 = vpack.c.b16 %v201, %v200
  %v264 = vpack.c.b16 %v203, %v202
  %v265 = vpack.c.b16 %v205, %v204
  %v266 = vpack.c.b16 %v207, %v206
  %v267 = vpack.c.b16 %v209, %v208
  %v268 = vpack.c.b16 %v211, %v210
  %v269 = vpack.c.b16 %v213, %v212
  %v270 = vpack.c.b16 %v215, %v214
  %v271 = vpack.c.b16 %v217, %v216
  %v272 = vpack.c.b16 %v219, %v218
  %v273 = vpack.c.b16 %v221, %v220
  %v274 = vpack.c.b16 %v223, %v222
  %v275 = vpack.c.b16 %v225, %v224
  %v276 = vpack.c.b16 %v227, %v226
  %v277 = vpack.c.b16 %v229, %v228
  %v278 = vpack.c.b16 %v231, %v230
  %v279 = vpack.c.b16 %v233, %v232
  %v280 = vpack.c.b16 %v235, %v234
  %v281 = vpack.c.b16 %v237, %v236
  %v282 = vpack.c.b16 %v239, %v238
  %v283 = vpack.c.b16 %v241, %v240
  %v284 = vpack.c.b16 %v243, %v242
  %v285 = vpack.c.b16 %v245, %v244
  %v286 = vpack.c.b16 %v247, %v246
  %v287 = vpack.c.b16 %v249, %v248
  %v288 = vpack.c.b16 %v251, %v250
  %v289 = vpack.c.b16 %v253, %v252
  %vm326 = vcmask 523264
  %v328 = vsel %vm326, %v105, 0
  %330 = vmatprep.subr.bf16.mxu0 0
  %331 = vmatpush1.bf16.msra.mxu0 %v261
  %332 = vmatprep.subr.bf16.mxu0 0
  %333 = vmatpush1.bf16.msra.mxu0 %v260
  %334 = vmatprep.subr.bf16.mxu0 0
  %335 = vmatpush1.bf16.msra.mxu0 %v259
  %336 = vmatprep.subr.bf16.mxu0 0
  %337 = vmatpush1.bf16.msra.mxu0 %v258
  %338 = vmatprep.subr.bf16.mxu0 0
  %339 = vmatpush1.bf16.msra.mxu0 %v257
  %340 = vmatprep.subr.bf16.mxu0 0
  %341 = vmatpush1.bf16.msra.mxu0 %v256
  %342 = vmatprep.subr.bf16.mxu0 0
  %343 = vmatpush1.bf16.msra.mxu0 %v255
  %344 = vmatprep.subr.bf16.mxu0 0
  %345 = vmatpush1.bf16.msra.mxu0 %v254
  %346 = vmatprep.subr.bf16.mxu0 0
  %347 = vmatpush2.bf16.msra.mxu0 %v269
  %348 = vmatprep.subr.bf16.mxu0 0
  %349 = vmatpush2.bf16.msra.mxu0 %v268
  %350 = vmatprep.subr.bf16.mxu0 0
  %351 = vmatpush2.bf16.msra.mxu0 %v267
  %352 = vmatprep.subr.bf16.mxu0 0
  %353 = vmatpush2.bf16.msra.mxu0 %v266
  %354 = vmatprep.subr.bf16.mxu0 0
  %355 = vmatpush2.bf16.msra.mxu0 %v265
  %356 = vmatprep.subr.bf16.mxu0 0
  %357 = vmatpush2.bf16.msra.mxu0 %v264
  %358 = vmatprep.subr.bf16.mxu0 0
  %359 = vmatpush2.bf16.msra.mxu0 %v263
  %360 = vmatprep.subr.bf16.mxu0 0
  %361 = vmatpush2.bf16.msra.mxu0 %v262
  %362 = vmatprep.mubr.bf16.mxu0 %v102
  %363 = vmatmul.mubr.bf16.gmra.mxu0 %v101
  %v364 = vpop.f32.mrf.mxu0
  %v365 = vadd.f32 0.0, %v364
  %v366 = vpop.f32.mrf.mxu0
  %v367 = vpop.f32.mrf.mxu0
  %v368 = vpop.f32.mrf.mxu0
  %369 = vdwg.mxu0
  %370 = vmatprep.subr.bf16.mxu0 0
  %371 = vmatpush1.bf16.msra.mxu0 %v277
  %372 = vmatprep.subr.bf16.mxu0 0
  %373 = vmatpush1.bf16.msra.mxu0 %v276
  %374 = vmatprep.subr.bf16.mxu0 0
  %375 = vmatpush1.bf16.msra.mxu0 %v275
  %376 = vmatprep.subr.bf16.mxu0 0
  %377 = vmatpush1.bf16.msra.mxu0 %v274
  %378 = vmatprep.subr.bf16.mxu0 0
  %379 = vmatpush1.bf16.msra.mxu0 %v273
  %380 = vmatprep.subr.bf16.mxu0 0
  %381 = vmatpush1.bf16.msra.mxu0 %v272
  %382 = vmatprep.subr.bf16.mxu0 0
  %383 = vmatpush1.bf16.msra.mxu0 %v271
  %384 = vmatprep.subr.bf16.mxu0 0
  %385 = vmatpush1.bf16.msra.mxu0 %v270
  %386 = vmatprep.subr.bf16.mxu0 0
  %387 = vmatpush2.bf16.msra.mxu0 %v285
  %388 = vmatprep.subr.bf16.mxu0 0
  %389 = vmatpush2.bf16.msra.mxu0 %v284
  %390 = vmatprep.subr.bf16.mxu0 0
  %391 = vmatpush2.bf16.msra.mxu0 %v283
  %392 = vmatprep.subr.bf16.mxu0 0
  %393 = vmatpush2.bf16.msra.mxu0 %v282
  %394 = vmatprep.subr.bf16.mxu0 0
  %395 = vmatpush2.bf16.msra.mxu0 %v281
  %396 = vmatprep.subr.bf16.mxu0 0
  %397 = vmatpush2.bf16.msra.mxu0 %v280
  %398 = vmatprep.subr.bf16.mxu0 0
  %399 = vmatpush2.bf16.msra.mxu0 %v279
  %400 = vmatprep.subr.bf16.mxu0 0
  %401 = vmatpush2.bf16.msra.mxu0 %v278
  %402 = vmatprep.mubr.bf16.mxu0 %v104
  %403 = vmatmul.mubr.bf16.gmra.mxu0 %v103
  %v404 = vpop.f32.mrf.mxu0
  %v405 = vadd.f32 %v365, %v404
  %v406 = vpop.f32.mrf.mxu0
  %v407 = vpop.f32.mrf.mxu0
  %v408 = vpop.f32.mrf.mxu0
  %409 = vdwg.mxu0
  %410 = vmatprep.subr.bf16.mxu0 0
  %411 = vmatpush1.bf16.msra.mxu0 0
  %412 = vmatprep.subr.bf16.mxu0 0
  %413 = vmatpush1.bf16.msra.mxu0 0
  %414 = vmatprep.subr.bf16.mxu0 0
  %415 = vmatpush1.bf16.msra.mxu0 0
  %416 = vmatprep.subr.bf16.mxu0 0
  %417 = vmatpush1.bf16.msra.mxu0 0
  %418 = vmatprep.subr.bf16.mxu0 0
  %419 = vmatpush1.bf16.msra.mxu0 %v289
  %420 = vmatprep.subr.bf16.mxu0 0
  %421 = vmatpush1.bf16.msra.mxu0 %v288
  %422 = vmatprep.subr.bf16.mxu0 0
  %423 = vmatpush1.bf16.msra.mxu0 %v287
  %424 = vmatprep.subr.bf16.mxu0 0
  %425 = vmatpush1.bf16.msra.mxu0 %v286
  %426 = vmatprep.subr.bf16.mxu0 0
  %427 = vmatpush2.bf16.msra.mxu0 0
  %428 = vmatprep.subr.bf16.mxu0 0
  %429 = vmatpush2.bf16.msra.mxu0 0
  %430 = vmatprep.subr.bf16.mxu0 0
  %431 = vmatpush2.bf16.msra.mxu0 0
  %432 = vmatprep.subr.bf16.mxu0 0
  %433 = vmatpush2.bf16.msra.mxu0 0
  %434 = vmatprep.subr.bf16.mxu0 0
  %435 = vmatpush2.bf16.msra.mxu0 0
  %436 = vmatprep.subr.bf16.mxu0 0
  %437 = vmatpush2.bf16.msra.mxu0 0
  %438 = vmatprep.subr.bf16.mxu0 0
  %439 = vmatpush2.bf16.msra.mxu0 0
  %440 = vmatprep.subr.bf16.mxu0 0
  %441 = vmatpush2.bf16.msra.mxu0 0
  %442 = vmatprep.mubr.bf16.mxu0 0
  %443 = vmatmul.mubr.bf16.gmra.mxu0 %v328
  %v444 = vpop.f32.mrf.mxu0
  %v445 = vadd.f32 %v405, %v444
  %v446 = vpop.f32.mrf.mxu0
  %v447 = vpop.f32.mrf.mxu0
  %v448 = vpop.f32.mrf.mxu0
  %449 = vdwg.mxu0
  %v450 = vld [vmem:[%s2] sm:$0x1]
  %v451 = vld [vmem:[%s3] sm:$0x1]
  %v452 = vrot.slane %v445, 4
  %v453 = vadd.f32 %v445, %v452
  %v454 = vrot.slane %v453, 2
  %v455 = vadd.f32 %v453, %v454
  %v456 = vrot.slane %v455, 1
  %v457 = vadd.f32 %v455, %v456
  %v458 = vrcp.pop 8.0
  %v459 = vmul.f32 %v457, %v458
  %v460 = vsub.f32 %v445, %v459
  %v461 = vmul.f32 %v460, %v460
  %v462 = vrot.slane %v461, 4
  %v463 = vadd.f32 %v461, %v462
  %v464 = vrot.slane %v463, 2
  %v465 = vadd.f32 %v463, %v464
  %v466 = vrot.slane %v465, 1
  %v467 = vadd.f32 %v465, %v466
  %v468 = vmul.f32 %v467, %v458
  %v469 = vadd.f32 %v468, 1e-05
  %v470 = vrsqrt.pop %v469
  %v471 = vmul.f32 %v460, %v470
  %v473 = vlaneseq
  %v474 = vshrl.u32 %v473, 7
  %v475 = vsub.s32 0, %v474
  %v476 = vrot.slane %v450, %v475
  %v478 = vmul.f32 %v471, %v476
  %v480 = vlaneseq
  %v481 = vshrl.u32 %v480, 7
  %v482 = vsub.s32 0, %v481
  %v483 = vrot.slane %v451, %v482
  %v485 = vadd.f32 %v478, %v483
  %v486 = vmax.f32 %v485, 0.0
  %487 = vst [vmem:[%s4] sm:$0xff] %v486
  // Predicated region
  $region18: #{dronet_forward.20} parent=0 // pred_check
    _
  $region19: #{dronet_forward.20} parent=0 // pred_check_branch
    %489 = sbr.rel (0) target = $region21
  $region20: #{dronet_forward.20} parent=0 // pred_region
    _
  $region21: #{dronet_forward.20} parent=0 // pred_fallthru
    _
  // Predicated region
  $region22: #{dronet_forward.20} parent=0 // pred_check
    _
  $region23: #{dronet_forward.20} parent=0 // pred_check_branch
    %491 = sbr.rel (0) target = $region25
  $region24: #{dronet_forward.20} parent=0 // pred_region
    _
  $region25: #{dronet_forward.20} parent=0 // pred_fallthru
    _

// kernel: dronet_forward.22
$region0: #{dronet_forward.22}
  #allocation0 [shape = 'u32[]', space=smem, size = 0x4, offset = 0x4, fixed_abs, tag = 'smem constant byte address 0x4 - core index']
  #allocation1 [shape = 'u32[144,128]{1,0:T(1,128)}', space=vmem, size = 0x12000, scoped, tag = 'internal scratch']
  %s0 = inlined_call_operand.vmem [shape: bf16[8,64], index: 0, kind: input, shape index: {}]
  %s1 = inlined_call_operand.vmem [shape: bf16[64,128], index: 1, kind: input, shape index: {}]
  %s2 = inlined_call_operand.vmem [shape: f32[1,128], index: 2, kind: input, shape index: {}]
  %s3 = inlined_call_operand.vmem [shape: f32[8,128], index: 3, kind: input, shape index: {}]
  %s4 = inlined_call_operand.vmem [shape: f32[8,128], index: 4, kind: output, shape index: {}]
  %s5 = sld [smem:[#allocation0]]
  $region26: #{dronet_forward.22} parent=0
    _
  %s7 = ssub.s32 1, %s5
  %s8 = scalar_select 0, %s7, %s5
  // Predicated region
  $region2: #{dronet_forward.22} parent=0 // pred_check
    _
  $region3: #{dronet_forward.22} parent=0 // pred_check_branch
    %10 = sbr.rel (0) target = $region5
  $region4: #{dronet_forward.22} parent=0 // pred_region
    _
  $region5: #{dronet_forward.22} parent=0 // pred_fallthru
    _
  // Predicated region
  $region6: #{dronet_forward.22} parent=0 // pred_check
    _
  $region7: #{dronet_forward.22} parent=0 // pred_check_branch
    %12 = sbr.rel (0) target = $region9
  $region8: #{dronet_forward.22} parent=0 // pred_region
    _
  $region9: #{dronet_forward.22} parent=0 // pred_fallthru
    _
  // Predicated region
  $region10: #{dronet_forward.22} parent=0 // pred_check
    _
  $region11: #{dronet_forward.22} parent=0 // pred_check_branch
    %14 = sbr.rel (0) target = $region13
  $region12: #{dronet_forward.22} parent=0 // pred_region
    _
  $region13: #{dronet_forward.22} parent=0 // pred_fallthru
    _
  // Predicated region
  $region14: #{dronet_forward.22} parent=0 // pred_check
    _
  $region15: #{dronet_forward.22} parent=0 // pred_check_branch
    %16 = sbr.rel (0) target = $region17
  $region16: #{dronet_forward.22} parent=0 // pred_region
    _
  $region17: #{dronet_forward.22} parent=0 // pred_fallthru
    _
  %v18 = vld [vmem:[%s0] sm:$0xf]
  %v19 = vld [vmem:[%s1] sm:$0xf]
  %v20 = vld [vmem:[%s1 + $0x4] sm:$0xf]
  %v21 = vld [vmem:[%s1 + $0x8] sm:$0xf]
  %v22 = vld [vmem:[%s1 + $0xc] sm:$0xf]
  %v23 = vld [vmem:[%s1 + $0x10] sm:$0xf]
  %v24 = vld [vmem:[%s1 + $0x14] sm:$0xf]
  %v25 = vld [vmem:[%s1 + $0x18] sm:$0xf]
  %v26 = vld [vmem:[%s1 + $0x1c] sm:$0xf]
  %v27 = vld [vmem:[%s2] sm:$0x1]
  %v29 = vlaneseq
  %v30 = vshrl.u32 %v29, 7
  %v31 = vsub.s32 0, %v30
  %v32 = vrot.slane %v27, %v31
  %v42 = vunpack.c.l.b16 %v19
  %v43 = vunpack.c.l.b16 %v20
  %v44 = vunpack.c.l.b16 %v21
  %v45 = vunpack.c.l.b16 %v22
  %v46 = vunpack.c.l.b16 %v23
  %v47 = vunpack.c.l.b16 %v24
  %v48 = vunpack.c.l.b16 %v25
  %v49 = vunpack.c.l.b16 %v26
  %v50 = vpack.c.b16 %v43, %v42
  %v51 = vpack.c.b16 %v45, %v44
  %v52 = vpack.c.b16 %v47, %v46
  %v53 = vpack.c.b16 %v49, %v48
  %vm58 = vcmask 523264
  %v60 = vsel %vm58, %v18, 0
  %62 = vmatprep.subr.bf16.mxu0 0
  %63 = vmatpush1.bf16.msra.mxu0 0
  %64 = vmatprep.subr.bf16.mxu0 0
  %65 = vmatpush1.bf16.msra.mxu0 0
  %66 = vmatprep.subr.bf16.mxu0 0
  %67 = vmatpush1.bf16.msra.mxu0 0
  %68 = vmatprep.subr.bf16.mxu0 0
  %69 = vmatpush1.bf16.msra.mxu0 0
  %70 = vmatprep.subr.bf16.mxu0 0
  %71 = vmatpush1.bf16.msra.mxu0 %v53
  %72 = vmatprep.subr.bf16.mxu0 0
  %73 = vmatpush1.bf16.msra.mxu0 %v52
  %74 = vmatprep.subr.bf16.mxu0 0
  %75 = vmatpush1.bf16.msra.mxu0 %v51
  %76 = vmatprep.subr.bf16.mxu0 0
  %77 = vmatpush1.bf16.msra.mxu0 %v50
  %78 = vmatprep.subr.bf16.mxu0 0
  %79 = vmatpush2.bf16.msra.mxu0 0
  %80 = vmatprep.subr.bf16.mxu0 0
  %81 = vmatpush2.bf16.msra.mxu0 0
  %82 = vmatprep.subr.bf16.mxu0 0
  %83 = vmatpush2.bf16.msra.mxu0 0
  %84 = vmatprep.subr.bf16.mxu0 0
  %85 = vmatpush2.bf16.msra.mxu0 0
  %86 = vmatprep.subr.bf16.mxu0 0
  %87 = vmatpush2.bf16.msra.mxu0 0
  %88 = vmatprep.subr.bf16.mxu0 0
  %89 = vmatpush2.bf16.msra.mxu0 0
  %90 = vmatprep.subr.bf16.mxu0 0
  %91 = vmatpush2.bf16.msra.mxu0 0
  %92 = vmatprep.subr.bf16.mxu0 0
  %93 = vmatpush2.bf16.msra.mxu0 0
  %94 = vmatprep.mubr.bf16.mxu0 0
  %95 = vmatmul.mubr.bf16.gmra.mxu0 %v60
  %v96 = vpop.f32.mrf.mxu0
  %v97 = vadd.f32 %v32, %v96
  %v98 = vpop.f32.mrf.mxu0
  %v99 = vpop.f32.mrf.mxu0
  %v100 = vpop.f32.mrf.mxu0
  %101 = vdwg.mxu0
  %v102 = vld [vmem:[%s3] sm:$0xff]
  %v103 = vadd.f32 %v97, %v102
  %104 = vst [vmem:[%s4] sm:$0xff] %v103
  // Predicated region
  $region18: #{dronet_forward.22} parent=0 // pred_check
    _
  $region19: #{dronet_forward.22} parent=0 // pred_check_branch
    %106 = sbr.rel (0) target = $region21
  $region20: #{dronet_forward.22} parent=0 // pred_region
    _
  $region21: #{dronet_forward.22} parent=0 // pred_fallthru
    _
  // Predicated region
  $region22: #{dronet_forward.22} parent=0 // pred_check
    _
  $region23: #{dronet_forward.22} parent=0 // pred_check_branch
    %108 = sbr.rel (0) target = $region25
  $region24: #{dronet_forward.22} parent=0 // pred_region
    _
  $region25: #{dronet_forward.22} parent=0 // pred_fallthru
    _

// kernel: dronet_forward.21
$region0: #{dronet_forward.21}
  #allocation0 [shape = 'u32[]', space=smem, size = 0x4, offset = 0x4, fixed_abs, tag = 'smem constant byte address 0x4 - core index']
  #allocation1 [shape = 'u32[144,128]{1,0:T(1,128)}', space=vmem, size = 0x12000, scoped, tag = 'internal scratch']
  %s0 = inlined_call_operand.vmem [shape: bf16[8,1152], index: 0, kind: input, shape index: {}]
  %s1 = inlined_call_operand.vmem [shape: bf16[1152,128], index: 1, kind: input, shape index: {}]
  %s2 = inlined_call_operand.vmem [shape: f32[8,128], index: 2, kind: output, shape index: {}]
  %s3 = sld [smem:[#allocation0]]
  $region18: #{dronet_forward.21} parent=0
    _
  %s5 = ssub.s32 1, %s3
  %s6 = scalar_select 0, %s5, %s3
  // Predicated region
  $region2: #{dronet_forward.21} parent=0 // pred_check
    _
  $region3: #{dronet_forward.21} parent=0 // pred_check_branch
    %8 = sbr.rel (0) target = $region5
  $region4: #{dronet_forward.21} parent=0 // pred_region
    _
  $region5: #{dronet_forward.21} parent=0 // pred_fallthru
    _
  // Predicated region
  $region6: #{dronet_forward.21} parent=0 // pred_check
    _
  $region7: #{dronet_forward.21} parent=0 // pred_check_branch
    %10 = sbr.rel (0) target = $region9
  $region8: #{dronet_forward.21} parent=0 // pred_region
    _
  $region9: #{dronet_forward.21} parent=0 // pred_fallthru
    _
  %v12 = vld [vmem:[%s0] sm:$0xff]
  %v13 = vld [vmem:[%s0 + $0x8] sm:$0xff]
  %v14 = vld [vmem:[%s0 + $0x10] sm:$0xff]
  %v15 = vld [vmem:[%s0 + $0x18] sm:$0xff]
  %v16 = vld [vmem:[%s0 + $0x20] sm:$0xf]
  %v17 = vld [vmem:[%s1] sm:$0xf]
  %v18 = vld [vmem:[%s1 + $0x4] sm:$0xf]
  %v19 = vld [vmem:[%s1 + $0x8] sm:$0xf]
  %v20 = vld [vmem:[%s1 + $0xc] sm:$0xf]
  %v21 = vld [vmem:[%s1 + $0x10] sm:$0xf]
  %v22 = vld [vmem:[%s1 + $0x14] sm:$0xf]
  %v23 = vld [vmem:[%s1 + $0x18] sm:$0xf]
  %v24 = vld [vmem:[%s1 + $0x1c] sm:$0xf]
  %v25 = vld [vmem:[%s1 + $0x20] sm:$0xf]
  %v26 = vld [vmem:[%s1 + $0x24] sm:$0xf]
  %v27 = vld [vmem:[%s1 + $0x28] sm:$0xf]
  %v28 = vld [vmem:[%s1 + $0x2c] sm:$0xf]
  %v29 = vld [vmem:[%s1 + $0x30] sm:$0xf]
  %v30 = vld [vmem:[%s1 + $0x34] sm:$0xf]
  %v31 = vld [vmem:[%s1 + $0x38] sm:$0xf]
  %v32 = vld [vmem:[%s1 + $0x3c] sm:$0xf]
  %v33 = vld [vmem:[%s1 + $0x40] sm:$0xf]
  %v34 = vld [vmem:[%s1 + $0x44] sm:$0xf]
  %v35 = vld [vmem:[%s1 + $0x48] sm:$0xf]
  %v36 = vld [vmem:[%s1 + $0x4c] sm:$0xf]
  %v37 = vld [vmem:[%s1 + $0x50] sm:$0xf]
  %v38 = vld [vmem:[%s1 + $0x54] sm:$0xf]
  %v39 = vld [vmem:[%s1 + $0x58] sm:$0xf]
  %v40 = vld [vmem:[%s1 + $0x5c] sm:$0xf]
  %v41 = vld [vmem:[%s1 + $0x60] sm:$0xf]
  %v42 = vld [vmem:[%s1 + $0x64] sm:$0xf]
  %v43 = vld [vmem:[%s1 + $0x68] sm:$0xf]
  %v44 = vld [vmem:[%s1 + $0x6c] sm:$0xf]
  %v45 = vld [vmem:[%s1 + $0x70] sm:$0xf]
  %v46 = vld [vmem:[%s1 + $0x74] sm:$0xf]
  %v47 = vld [vmem:[%s1 + $0x78] sm:$0xf]
  %v48 = vld [vmem:[%s1 + $0x7c] sm:$0xf]
  %v49 = vld [vmem:[%s1 + $0x80] sm:$0xf]
  %v50 = vld [vmem:[%s1 + $0x84] sm:$0xf]
  %v51 = vld [vmem:[%s1 + $0x88] sm:$0xf]
  %v52 = vld [vmem:[%s1 + $0x8c] sm:$0xf]
  %v53 = vld [vmem:[%s1 + $0x90] sm:$0xf]
  %v54 = vld [vmem:[%s1 + $0x94] sm:$0xf]
  %v55 = vld [vmem:[%s1 + $0x98] sm:$0xf]
  %v56 = vld [vmem:[%s1 + $0x9c] sm:$0xf]
  %v57 = vld [vmem:[%s1 + $0xa0] sm:$0xf]
  %v58 = vld [vmem:[%s1 + $0xa4] sm:$0xf]
  %v59 = vld [vmem:[%s1 + $0xa8] sm:$0xf]
  %v60 = vld [vmem:[%s1 + $0xac] sm:$0xf]
  %v61 = vld [vmem:[%s1 + $0xb0] sm:$0xf]
  %v62 = vld [vmem:[%s1 + $0xb4] sm:$0xf]
  %v63 = vld [vmem:[%s1 + $0xb8] sm:$0xf]
  %v64 = vld [vmem:[%s1 + $0xbc] sm:$0xf]
  %v65 = vld [vmem:[%s1 + $0xc0] sm:$0xf]
  %v66 = vld [vmem:[%s1 + $0xc4] sm:$0xf]
  %v67 = vld [vmem:[%s1 + $0xc8] sm:$0xf]
  %v68 = vld [vmem:[%s1 + $0xcc] sm:$0xf]
  %v69 = vld [vmem:[%s1 + $0xd0] sm:$0xf]
  %v70 = vld [vmem:[%s1 + $0xd4] sm:$0xf]
  %v71 = vld [vmem:[%s1 + $0xd8] sm:$0xf]
  %v72 = vld [vmem:[%s1 + $0xdc] sm:$0xf]
  %v73 = vld [vmem:[%s1 + $0xe0] sm:$0xf]
  %v74 = vld [vmem:[%s1 + $0xe4] sm:$0xf]
  %v75 = vld [vmem:[%s1 + $0xe8] sm:$0xf]
  %v76 = vld [vmem:[%s1 + $0xec] sm:$0xf]
  %v77 = vld [vmem:[%s1 + $0xf0] sm:$0xf]
  %v78 = vld [vmem:[%s1 + $0xf4] sm:$0xf]
  %v79 = vld [vmem:[%s1 + $0xf8] sm:$0xf]
  %v80 = vld [vmem:[%s1 + $0xfc] sm:$0xf]
  %v81 = vld [vmem:[%s1 + $0x100] sm:$0xf]
  %v82 = vld [vmem:[%s1 + $0x104] sm:$0xf]
  %v83 = vld [vmem:[%s1 + $0x108] sm:$0xf]
  %v84 = vld [vmem:[%s1 + $0x10c] sm:$0xf]
  %v85 = vld [vmem:[%s1 + $0x110] sm:$0xf]
  %v86 = vld [vmem:[%s1 + $0x114] sm:$0xf]
  %v87 = vld [vmem:[%s1 + $0x118] sm:$0xf]
  %v88 = vld [vmem:[%s1 + $0x11c] sm:$0xf]
  %v89 = vld [vmem:[%s1 + $0x120] sm:$0xf]
  %v90 = vld [vmem:[%s1 + $0x124] sm:$0xf]
  %v91 = vld [vmem:[%s1 + $0x128] sm:$0xf]
  %v92 = vld [vmem:[%s1 + $0x12c] sm:$0xf]
  %v93 = vld [vmem:[%s1 + $0x130] sm:$0xf]
  %v94 = vld [vmem:[%s1 + $0x134] sm:$0xf]
  %v95 = vld [vmem:[%s1 + $0x138] sm:$0xf]
  %v96 = vld [vmem:[%s1 + $0x13c] sm:$0xf]
  %v97 = vld [vmem:[%s1 + $0x140] sm:$0xf]
  %v98 = vld [vmem:[%s1 + $0x144] sm:$0xf]
  %v99 = vld [vmem:[%s1 + $0x148] sm:$0xf]
  %v100 = vld [vmem:[%s1 + $0x14c] sm:$0xf]
  %v101 = vld [vmem:[%s1 + $0x150] sm:$0xf]
  %v102 = vld [vmem:[%s1 + $0x154] sm:$0xf]
  %v103 = vld [vmem:[%s1 + $0x158] sm:$0xf]
  %v104 = vld [vmem:[%s1 + $0x15c] sm:$0xf]
  %v105 = vld [vmem:[%s1 + $0x160] sm:$0xf]
  %v106 = vld [vmem:[%s1 + $0x164] sm:$0xf]
  %v107 = vld [vmem:[%s1 + $0x168] sm:$0xf]
  %v108 = vld [vmem:[%s1 + $0x16c] sm:$0xf]
  %v109 = vld [vmem:[%s1 + $0x170] sm:$0xf]
  %v110 = vld [vmem:[%s1 + $0x174] sm:$0xf]
  %v111 = vld [vmem:[%s1 + $0x178] sm:$0xf]
  %v112 = vld [vmem:[%s1 + $0x17c] sm:$0xf]
  %v113 = vld [vmem:[%s1 + $0x180] sm:$0xf]
  %v114 = vld [vmem:[%s1 + $0x184] sm:$0xf]
  %v115 = vld [vmem:[%s1 + $0x188] sm:$0xf]
  %v116 = vld [vmem:[%s1 + $0x18c] sm:$0xf]
  %v117 = vld [vmem:[%s1 + $0x190] sm:$0xf]
  %v118 = vld [vmem:[%s1 + $0x194] sm:$0xf]
  %v119 = vld [vmem:[%s1 + $0x198] sm:$0xf]
  %v120 = vld [vmem:[%s1 + $0x19c] sm:$0xf]
  %v121 = vld [vmem:[%s1 + $0x1a0] sm:$0xf]
  %v122 = vld [vmem:[%s1 + $0x1a4] sm:$0xf]
  %v123 = vld [vmem:[%s1 + $0x1a8] sm:$0xf]
  %v124 = vld [vmem:[%s1 + $0x1ac] sm:$0xf]
  %v125 = vld [vmem:[%s1 + $0x1b0] sm:$0xf]
  %v126 = vld [vmem:[%s1 + $0x1b4] sm:$0xf]
  %v127 = vld [vmem:[%s1 + $0x1b8] sm:$0xf]
  %v128 = vld [vmem:[%s1 + $0x1bc] sm:$0xf]
  %v129 = vld [vmem:[%s1 + $0x1c0] sm:$0xf]
  %v130 = vld [vmem:[%s1 + $0x1c4] sm:$0xf]
  %v131 = vld [vmem:[%s1 + $0x1c8] sm:$0xf]
  %v132 = vld [vmem:[%s1 + $0x1cc] sm:$0xf]
  %v133 = vld [vmem:[%s1 + $0x1d0] sm:$0xf]
  %v134 = vld [vmem:[%s1 + $0x1d4] sm:$0xf]
  %v135 = vld [vmem:[%s1 + $0x1d8] sm:$0xf]
  %v136 = vld [vmem:[%s1 + $0x1dc] sm:$0xf]
  %v137 = vld [vmem:[%s1 + $0x1e0] sm:$0xf]
  %v138 = vld [vmem:[%s1 + $0x1e4] sm:$0xf]
  %v139 = vld [vmem:[%s1 + $0x1e8] sm:$0xf]
  %v140 = vld [vmem:[%s1 + $0x1ec] sm:$0xf]
  %v141 = vld [vmem:[%s1 + $0x1f0] sm:$0xf]
  %v142 = vld [vmem:[%s1 + $0x1f4] sm:$0xf]
  %v143 = vld [vmem:[%s1 + $0x1f8] sm:$0xf]
  %v144 = vld [vmem:[%s1 + $0x1fc] sm:$0xf]
  %v145 = vld [vmem:[%s1 + $0x200] sm:$0xf]
  %v146 = vld [vmem:[%s1 + $0x204] sm:$0xf]
  %v147 = vld [vmem:[%s1 + $0x208] sm:$0xf]
  %v148 = vld [vmem:[%s1 + $0x20c] sm:$0xf]
  %v149 = vld [vmem:[%s1 + $0x210] sm:$0xf]
  %v150 = vld [vmem:[%s1 + $0x214] sm:$0xf]
  %v151 = vld [vmem:[%s1 + $0x218] sm:$0xf]
  %v152 = vld [vmem:[%s1 + $0x21c] sm:$0xf]
  %v153 = vld [vmem:[%s1 + $0x220] sm:$0xf]
  %v154 = vld [vmem:[%s1 + $0x224] sm:$0xf]
  %v155 = vld [vmem:[%s1 + $0x228] sm:$0xf]
  %v156 = vld [vmem:[%s1 + $0x22c] sm:$0xf]
  %v157 = vld [vmem:[%s1 + $0x230] sm:$0xf]
  %v158 = vld [vmem:[%s1 + $0x234] sm:$0xf]
  %v159 = vld [vmem:[%s1 + $0x238] sm:$0xf]
  %v160 = vld [vmem:[%s1 + $0x23c] sm:$0xf]
  %v166 = vunpack.c.l.b16 %v12
  %v167 = vunpack.c.h.b16 %v12
  %v168 = vunpack.c.l.b16 %v13
  %v169 = vunpack.c.h.b16 %v13
  %v170 = vunpack.c.l.b16 %v14
  %v171 = vunpack.c.h.b16 %v14
  %v172 = vunpack.c.l.b16 %v15
  %v173 = vunpack.c.h.b16 %v15
  %v174 = vunpack.c.l.b16 %v16
  %v175 = vpack.c.b16 %v166, %v166
  %v176 = vpack.c.b16 %v167, %v167
  %v177 = vpack.c.b16 %v168, %v168
  %v178 = vpack.c.b16 %v169, %v169
  %v179 = vpack.c.b16 %v170, %v170
  %v180 = vpack.c.b16 %v171, %v171
  %v181 = vpack.c.b16 %v172, %v172
  %v182 = vpack.c.b16 %v173, %v173
  %v183 = vpack.c.b16 %v174, %v174
  %v337 = vunpack.c.l.b16 %v17
  %v338 = vunpack.c.l.b16 %v18
  %v339 = vunpack.c.l.b16 %v19
  %v340 = vunpack.c.l.b16 %v20
  %v341 = vunpack.c.l.b16 %v21
  %v342 = vunpack.c.l.b16 %v22
  %v343 = vunpack.c.l.b16 %v23
  %v344 = vunpack.c.l.b16 %v24
  %v345 = vunpack.c.l.b16 %v25
  %v346 = vunpack.c.l.b16 %v26
  %v347 = vunpack.c.l.b16 %v27
  %v348 = vunpack.c.l.b16 %v28
  %v349 = vunpack.c.l.b16 %v29
  %v350 = vunpack.c.l.b16 %v30
  %v351 = vunpack.c.l.b16 %v31
  %v352 = vunpack.c.l.b16 %v32
  %v353 = vunpack.c.l.b16 %v33
  %v354 = vunpack.c.l.b16 %v34
  %v355 = vunpack.c.l.b16 %v35
  %v356 = vunpack.c.l.b16 %v36
  %v357 = vunpack.c.l.b16 %v37
  %v358 = vunpack.c.l.b16 %v38
  %v359 = vunpack.c.l.b16 %v39
  %v360 = vunpack.c.l.b16 %v40
  %v361 = vunpack.c.l.b16 %v41
  %v362 = vunpack.c.l.b16 %v42
  %v363 = vunpack.c.l.b16 %v43
  %v364 = vunpack.c.l.b16 %v44
  %v365 = vunpack.c.l.b16 %v45
  %v366 = vunpack.c.l.b16 %v46
  %v367 = vunpack.c.l.b16 %v47
  %v368 = vunpack.c.l.b16 %v48
  %v369 = vunpack.c.l.b16 %v49
  %v370 = vunpack.c.l.b16 %v50
  %v371 = vunpack.c.l.b16 %v51
  %v372 = vunpack.c.l.b16 %v52
  %v373 = vunpack.c.l.b16 %v53
  %v374 = vunpack.c.l.b16 %v54
  %v375 = vunpack.c.l.b16 %v55
  %v376 = vunpack.c.l.b16 %v56
  %v377 = vunpack.c.l.b16 %v57
  %v378 = vunpack.c.l.b16 %v58
  %v379 = vunpack.c.l.b16 %v59
  %v380 = vunpack.c.l.b16 %v60
  %v381 = vunpack.c.l.b16 %v61
  %v382 = vunpack.c.l.b16 %v62
  %v383 = vunpack.c.l.b16 %v63
  %v384 = vunpack.c.l.b16 %v64
  %v385 = vunpack.c.l.b16 %v65
  %v386 = vunpack.c.l.b16 %v66
  %v387 = vunpack.c.l.b16 %v67
  %v388 = vunpack.c.l.b16 %v68
  %v389 = vunpack.c.l.b16 %v69
  %v390 = vunpack.c.l.b16 %v70
  %v391 = vunpack.c.l.b16 %v71
  %v392 = vunpack.c.l.b16 %v72
  %v393 = vunpack.c.l.b16 %v73
  %v394 = vunpack.c.l.b16 %v74
  %v395 = vunpack.c.l.b16 %v75
  %v396 = vunpack.c.l.b16 %v76
  %v397 = vunpack.c.l.b16 %v77
  %v398 = vunpack.c.l.b16 %v78
  %v399 = vunpack.c.l.b16 %v79
  %v400 = vunpack.c.l.b16 %v80
  %v401 = vunpack.c.l.b16 %v81
  %v402 = vunpack.c.l.b16 %v82
  %v403 = vunpack.c.l.b16 %v83
  %v404 = vunpack.c.l.b16 %v84
  %v405 = vunpack.c.l.b16 %v85
  %v406 = vunpack.c.l.b16 %v86
  %v407 = vunpack.c.l.b16 %v87
  %v408 = vunpack.c.l.b16 %v88
  %v409 = vunpack.c.l.b16 %v89
  %v410 = vunpack.c.l.b16 %v90
  %v411 = vunpack.c.l.b16 %v91
  %v412 = vunpack.c.l.b16 %v92
  %v413 = vunpack.c.l.b16 %v93
  %v414 = vunpack.c.l.b16 %v94
  %v415 = vunpack.c.l.b16 %v95
  %v416 = vunpack.c.l.b16 %v96
  %v417 = vunpack.c.l.b16 %v97
  %v418 = vunpack.c.l.b16 %v98
  %v419 = vunpack.c.l.b16 %v99
  %v420 = vunpack.c.l.b16 %v100
  %v421 = vunpack.c.l.b16 %v101
  %v422 = vunpack.c.l.b16 %v102
  %v423 = vunpack.c.l.b16 %v103
  %v424 = vunpack.c.l.b16 %v104
  %v425 = vunpack.c.l.b16 %v105
  %v426 = vunpack.c.l.b16 %v106
  %v427 = vunpack.c.l.b16 %v107
  %v428 = vunpack.c.l.b16 %v108
  %v429 = vunpack.c.l.b16 %v109
  %v430 = vunpack.c.l.b16 %v110
  %v431 = vunpack.c.l.b16 %v111
  %v432 = vunpack.c.l.b16 %v112
  %v433 = vunpack.c.l.b16 %v113
  %v434 = vunpack.c.l.b16 %v114
  %v435 = vunpack.c.l.b16 %v115
  %v436 = vunpack.c.l.b16 %v116
  %v437 = vunpack.c.l.b16 %v117
  %v438 = vunpack.c.l.b16 %v118
  %v439 = vunpack.c.l.b16 %v119
  %v440 = vunpack.c.l.b16 %v120
  %v441 = vunpack.c.l.b16 %v121
  %v442 = vunpack.c.l.b16 %v122
  %v443 = vunpack.c.l.b16 %v123
  %v444 = vunpack.c.l.b16 %v124
  %v445 = vunpack.c.l.b16 %v125
  %v446 = vunpack.c.l.b16 %v126
  %v447 = vunpack.c.l.b16 %v127
  %v448 = vunpack.c.l.b16 %v128
  %v449 = vunpack.c.l.b16 %v129
  %v450 = vunpack.c.l.b16 %v130
  %v451 = vunpack.c.l.b16 %v131
  %v452 = vunpack.c.l.b16 %v132
  %v453 = vunpack.c.l.b16 %v133
  %v454 = vunpack.c.l.b16 %v134
  %v455 = vunpack.c.l.b16 %v135
  %v456 = vunpack.c.l.b16 %v136
  %v457 = vunpack.c.l.b16 %v137
  %v458 = vunpack.c.l.b16 %v138
  %v459 = vunpack.c.l.b16 %v139
  %v460 = vunpack.c.l.b16 %v140
  %v461 = vunpack.c.l.b16 %v141
  %v462 = vunpack.c.l.b16 %v142
  %v463 = vunpack.c.l.b16 %v143
  %v464 = vunpack.c.l.b16 %v144
  %v465 = vunpack.c.l.b16 %v145
  %v466 = vunpack.c.l.b16 %v146
  %v467 = vunpack.c.l.b16 %v147
  %v468 = vunpack.c.l.b16 %v148
  %v469 = vunpack.c.l.b16 %v149
  %v470 = vunpack.c.l.b16 %v150
  %v471 = vunpack.c.l.b16 %v151
  %v472 = vunpack.c.l.b16 %v152
  %v473 = vunpack.c.l.b16 %v153
  %v474 = vunpack.c.l.b16 %v154
  %v475 = vunpack.c.l.b16 %v155
  %v476 = vunpack.c.l.b16 %v156
  %v477 = vunpack.c.l.b16 %v157
  %v478 = vunpack.c.l.b16 %v158
  %v479 = vunpack.c.l.b16 %v159
  %v480 = vunpack.c.l.b16 %v160
  %v481 = vpack.c.b16 %v338, %v337
  %v482 = vpack.c.b16 %v340, %v339
  %v483 = vpack.c.b16 %v342, %v341
  %v484 = vpack.c.b16 %v344, %v343
  %v485 = vpack.c.b16 %v346, %v345
  %v486 = vpack.c.b16 %v348, %v347
  %v487 = vpack.c.b16 %v350, %v349
  %v488 = vpack.c.b16 %v352, %v351
  %v489 = vpack.c.b16 %v354, %v353
  %v490 = vpack.c.b16 %v356, %v355
  %v491 = vpack.c.b16 %v358, %v357
  %v492 = vpack.c.b16 %v360, %v359
  %v493 = vpack.c.b16 %v362, %v361
  %v494 = vpack.c.b16 %v364, %v363
  %v495 = vpack.c.b16 %v366, %v365
  %v496 = vpack.c.b16 %v368, %v367
  %v497 = vpack.c.b16 %v370, %v369
  %v498 = vpack.c.b16 %v372, %v371
  %v499 = vpack.c.b16 %v374, %v373
  %v500 = vpack.c.b16 %v376, %v375
  %v501 = vpack.c.b16 %v378, %v377
  %v502 = vpack.c.b16 %v380, %v379
  %v503 = vpack.c.b16 %v382, %v381
  %v504 = vpack.c.b16 %v384, %v383
  %v505 = vpack.c.b16 %v386, %v385
  %v506 = vpack.c.b16 %v388, %v387
  %v507 = vpack.c.b16 %v390, %v389
  %v508 = vpack.c.b16 %v392, %v391
  %v509 = vpack.c.b16 %v394, %v393
  %v510 = vpack.c.b16 %v396, %v395
  %v511 = vpack.c.b16 %v398, %v397
  %v512 = vpack.c.b16 %v400, %v399
  %v513 = vpack.c.b16 %v402, %v401
  %v514 = vpack.c.b16 %v404, %v403
  %v515 = vpack.c.b16 %v406, %v405
  %v516 = vpack.c.b16 %v408, %v407
  %v517 = vpack.c.b16 %v410, %v409
  %v518 = vpack.c.b16 %v412, %v411
  %v519 = vpack.c.b16 %v414, %v413
  %v520 = vpack.c.b16 %v416, %v415
  %v521 = vpack.c.b16 %v418, %v417
  %v522 = vpack.c.b16 %v420, %v419
  %v523 = vpack.c.b16 %v422, %v421
  %v524 = vpack.c.b16 %v424, %v423
  %v525 = vpack.c.b16 %v426, %v425
  %v526 = vpack.c.b16 %v428, %v427
  %v527 = vpack.c.b16 %v430, %v429
  %v528 = vpack.c.b16 %v432, %v431
  %v529 = vpack.c.b16 %v434, %v433
  %v530 = vpack.c.b16 %v436, %v435
  %v531 = vpack.c.b16 %v438, %v437
  %v532 = vpack.c.b16 %v440, %v439
  %v533 = vpack.c.b16 %v442, %v441
  %v534 = vpack.c.b16 %v444, %v443
  %v535 = vpack.c.b16 %v446, %v445
  %v536 = vpack.c.b16 %v448, %v447
  %v537 = vpack.c.b16 %v450, %v449
  %v538 = vpack.c.b16 %v452, %v451
  %v539 = vpack.c.b16 %v454, %v453
  %v540 = vpack.c.b16 %v456, %v455
  %v541 = vpack.c.b16 %v458, %v457
  %v542 = vpack.c.b16 %v460, %v459
  %v543 = vpack.c.b16 %v462, %v461
  %v544 = vpack.c.b16 %v464, %v463
  %v545 = vpack.c.b16 %v466, %v465
  %v546 = vpack.c.b16 %v468, %v467
  %v547 = vpack.c.b16 %v470, %v469
  %v548 = vpack.c.b16 %v472, %v471
  %v549 = vpack.c.b16 %v474, %v473
  %v550 = vpack.c.b16 %v476, %v475
  %v551 = vpack.c.b16 %v478, %v477
  %v552 = vpack.c.b16 %v480, %v479
  %625 = vmatprep.subr.bf16.mxu0 0
  %626 = vmatpush1.bf16.msra.mxu0 %v488
  %627 = vmatprep.subr.bf16.mxu0 0
  %628 = vmatpush1.bf16.msra.mxu0 %v487
  %629 = vmatprep.subr.bf16.mxu0 0
  %630 = vmatpush1.bf16.msra.mxu0 %v486
  %631 = vmatprep.subr.bf16.mxu0 0
  %632 = vmatpush1.bf16.msra.mxu0 %v485
  %633 = vmatprep.subr.bf16.mxu0 0
  %634 = vmatpush1.bf16.msra.mxu0 %v484
  %635 = vmatprep.subr.bf16.mxu0 0
  %636 = vmatpush1.bf16.msra.mxu0 %v483
  %637 = vmatprep.subr.bf16.mxu0 0
  %638 = vmatpush1.bf16.msra.mxu0 %v482
  %639 = vmatprep.subr.bf16.mxu0 0
  %640 = vmatpush1.bf16.msra.mxu0 %v481
  %641 = vmatprep.subr.bf16.mxu0 0
  %642 = vmatpush2.bf16.msra.mxu0 %v496
  %643 = vmatprep.subr.bf16.mxu0 0
  %644 = vmatpush2.bf16.msra.mxu0 %v495
  %645 = vmatprep.subr.bf16.mxu0 0
  %646 = vmatpush2.bf16.msra.mxu0 %v494
  %647 = vmatprep.subr.bf16.mxu0 0
  %648 = vmatpush2.bf16.msra.mxu0 %v493
  %649 = vmatprep.subr.bf16.mxu0 0
  %650 = vmatpush2.bf16.msra.mxu0 %v492
  %651 = vmatprep.subr.bf16.mxu0 0
  %652 = vmatpush2.bf16.msra.mxu0 %v491
  %653 = vmatprep.subr.bf16.mxu0 0
  %654 = vmatpush2.bf16.msra.mxu0 %v490
  %655 = vmatprep.subr.bf16.mxu0 0
  %656 = vmatpush2.bf16.msra.mxu0 %v489
  %657 = vmatprep.mubr.bf16.mxu0 %v176
  %658 = vmatmul.mubr.bf16.gmra.mxu0 %v175
  %v659 = vpop.f32.mrf.mxu0
  %v660 = vadd.f32 0.0, %v659
  %v661 = vpop.f32.mrf.mxu0
  %v662 = vpop.f32.mrf.mxu0
  %v663 = vpop.f32.mrf.mxu0
  %664 = vdwg.mxu0
  %665 = vmatprep.subr.bf16.mxu0 0
  %666 = vmatpush1.bf16.msra.mxu0 %v504
  %667 = vmatprep.subr.bf16.mxu0 0
  %668 = vmatpush1.bf16.msra.mxu0 %v503
  %669 = vmatprep.subr.bf16.mxu0 0
  %670 = vmatpush1.bf16.msra.mxu0 %v502
  %671 = vmatprep.subr.bf16.mxu0 0
  %672 = vmatpush1.bf16.msra.mxu0 %v501
  %673 = vmatprep.subr.bf16.mxu0 0
  %674 = vmatpush1.bf16.msra.mxu0 %v500
  %675 = vmatprep.subr.bf16.mxu0 0
  %676 = vmatpush1.bf16.msra.mxu0 %v499
  %677 = vmatprep.subr.bf16.mxu0 0
  %678 = vmatpush1.bf16.msra.mxu0 %v498
  %679 = vmatprep.subr.bf16.mxu0 0
  %680 = vmatpush1.bf16.msra.mxu0 %v497
  %681 = vmatprep.subr.bf16.mxu0 0
  %682 = vmatpush2.bf16.msra.mxu0 %v512
  %683 = vmatprep.subr.bf16.mxu0 0
  %684 = vmatpush2.bf16.msra.mxu0 %v511
  %685 = vmatprep.subr.bf16.mxu0 0
  %686 = vmatpush2.bf16.msra.mxu0 %v510
  %687 = vmatprep.subr.bf16.mxu0 0
  %688 = vmatpush2.bf16.msra.mxu0 %v509
  %689 = vmatprep.subr.bf16.mxu0 0
  %690 = vmatpush2.bf16.msra.mxu0 %v508
  %691 = vmatprep.subr.bf16.mxu0 0
  %692 = vmatpush2.bf16.msra.mxu0 %v507
  %693 = vmatprep.subr.bf16.mxu0 0
  %694 = vmatpush2.bf16.msra.mxu0 %v506
  %695 = vmatprep.subr.bf16.mxu0 0
  %696 = vmatpush2.bf16.msra.mxu0 %v505
  %697 = vmatprep.mubr.bf16.mxu0 %v178
  %698 = vmatmul.mubr.bf16.gmra.mxu0 %v177
  %v699 = vpop.f32.mrf.mxu0
  %v700 = vadd.f32 %v660, %v699
  %v701 = vpop.f32.mrf.mxu0
  %v702 = vpop.f32.mrf.mxu0
  %v703 = vpop.f32.mrf.mxu0
  %704 = vdwg.mxu0
  %705 = vmatprep.subr.bf16.mxu0 0
  %706 = vmatpush1.bf16.msra.mxu0 %v520
  %707 = vmatprep.subr.bf16.mxu0 0
  %708 = vmatpush1.bf16.msra.mxu0 %v519
  %709 = vmatprep.subr.bf16.mxu0 0
  %710 = vmatpush1.bf16.msra.mxu0 %v518
  %711 = vmatprep.subr.bf16.mxu0 0
  %712 = vmatpush1.bf16.msra.mxu0 %v517
  %713 = vmatprep.subr.bf16.mxu0 0
  %714 = vmatpush1.bf16.msra.mxu0 %v516
  %715 = vmatprep.subr.bf16.mxu0 0
  %716 = vmatpush1.bf16.msra.mxu0 %v515
  %717 = vmatprep.subr.bf16.mxu0 0
  %718 = vmatpush1.bf16.msra.mxu0 %v514
  %719 = vmatprep.subr.bf16.mxu0 0
  %720 = vmatpush1.bf16.msra.mxu0 %v513
  %721 = vmatprep.subr.bf16.mxu0 0
  %722 = vmatpush2.bf16.msra.mxu0 %v528
  %723 = vmatprep.subr.bf16.mxu0 0
  %724 = vmatpush2.bf16.msra.mxu0 %v527
  %725 = vmatprep.subr.bf16.mxu0 0
  %726 = vmatpush2.bf16.msra.mxu0 %v526
  %727 = vmatprep.subr.bf16.mxu0 0
  %728 = vmatpush2.bf16.msra.mxu0 %v525
  %729 = vmatprep.subr.bf16.mxu0 0
  %730 = vmatpush2.bf16.msra.mxu0 %v524
  %731 = vmatprep.subr.bf16.mxu0 0
  %732 = vmatpush2.bf16.msra.mxu0 %v523
  %733 = vmatprep.subr.bf16.mxu0 0
  %734 = vmatpush2.bf16.msra.mxu0 %v522
  %735 = vmatprep.subr.bf16.mxu0 0
  %736 = vmatpush2.bf16.msra.mxu0 %v521
  %737 = vmatprep.mubr.bf16.mxu0 %v180
  %738 = vmatmul.mubr.bf16.gmra.mxu0 %v179
  %v739 = vpop.f32.mrf.mxu0
  %v740 = vadd.f32 %v700, %v739
  %v741 = vpop.f32.mrf.mxu0
  %v742 = vpop.f32.mrf.mxu0
  %v743 = vpop.f32.mrf.mxu0
  %744 = vdwg.mxu0
  %745 = vmatprep.subr.bf16.mxu0 0
  %746 = vmatpush1.bf16.msra.mxu0 %v536
  %747 = vmatprep.subr.bf16.mxu0 0
  %748 = vmatpush1.bf16.msra.mxu0 %v535
  %749 = vmatprep.subr.bf16.mxu0 0
  %750 = vmatpush1.bf16.msra.mxu0 %v534
  %751 = vmatprep.subr.bf16.mxu0 0
  %752 = vmatpush1.bf16.msra.mxu0 %v533
  %753 = vmatprep.subr.bf16.mxu0 0
  %754 = vmatpush1.bf16.msra.mxu0 %v532
  %755 = vmatprep.subr.bf16.mxu0 0
  %756 = vmatpush1.bf16.msra.mxu0 %v531
  %757 = vmatprep.subr.bf16.mxu0 0
  %758 = vmatpush1.bf16.msra.mxu0 %v530
  %759 = vmatprep.subr.bf16.mxu0 0
  %760 = vmatpush1.bf16.msra.mxu0 %v529
  %761 = vmatprep.subr.bf16.mxu0 0
  %762 = vmatpush2.bf16.msra.mxu0 %v544
  %763 = vmatprep.subr.bf16.mxu0 0
  %764 = vmatpush2.bf16.msra.mxu0 %v543
  %765 = vmatprep.subr.bf16.mxu0 0
  %766 = vmatpush2.bf16.msra.mxu0 %v542
  %767 = vmatprep.subr.bf16.mxu0 0
  %768 = vmatpush2.bf16.msra.mxu0 %v541
  %769 = vmatprep.subr.bf16.mxu0 0
  %770 = vmatpush2.bf16.msra.mxu0 %v540
  %771 = vmatprep.subr.bf16.mxu0 0
  %772 = vmatpush2.bf16.msra.mxu0 %v539
  %773 = vmatprep.subr.bf16.mxu0 0
  %774 = vmatpush2.bf16.msra.mxu0 %v538
  %775 = vmatprep.subr.bf16.mxu0 0
  %776 = vmatpush2.bf16.msra.mxu0 %v537
  %777 = vmatprep.mubr.bf16.mxu0 %v182
  %778 = vmatmul.mubr.bf16.gmra.mxu0 %v181
  %v779 = vpop.f32.mrf.mxu0
  %v780 = vadd.f32 %v740, %v779
  %v781 = vpop.f32.mrf.mxu0
  %v782 = vpop.f32.mrf.mxu0
  %v783 = vpop.f32.mrf.mxu0
  %784 = vdwg.mxu0
  %785 = vmatprep.subr.bf16.mxu0 0
  %786 = vmatpush1.bf16.msra.mxu0 %v552
  %787 = vmatprep.subr.bf16.mxu0 0
  %788 = vmatpush1.bf16.msra.mxu0 %v551
  %789 = vmatprep.subr.bf16.mxu0 0
  %790 = vmatpush1.bf16.msra.mxu0 %v550
  %791 = vmatprep.subr.bf16.mxu0 0
  %792 = vmatpush1.bf16.msra.mxu0 %v549
  %793 = vmatprep.subr.bf16.mxu0 0
  %794 = vmatpush1.bf16.msra.mxu0 %v548
  %795 = vmatprep.subr.bf16.mxu0 0
  %796 = vmatpush1.bf16.msra.mxu0 %v547
  %797 = vmatprep.subr.bf16.mxu0 0
  %798 = vmatpush1.bf16.msra.mxu0 %v546
  %799 = vmatprep.subr.bf16.mxu0 0
  %800 = vmatpush1.bf16.msra.mxu0 %v545
  %801 = vmatprep.subr.bf16.mxu0 0
  %802 = vmatpush2.bf16.msra.mxu0 0
  %803 = vmatprep.subr.bf16.mxu0 0
  %804 = vmatpush2.bf16.msra.mxu0 0
  %805 = vmatprep.subr.bf16.mxu0 0
  %806 = vmatpush2.bf16.msra.mxu0 0
  %807 = vmatprep.subr.bf16.mxu0 0
  %808 = vmatpush2.bf16.msra.mxu0 0
  %809 = vmatprep.subr.bf16.mxu0 0
  %810 = vmatpush2.bf16.msra.mxu0 0
  %811 = vmatprep.subr.bf16.mxu0 0
  %812 = vmatpush2.bf16.msra.mxu0 0
  %813 = vmatprep.subr.bf16.mxu0 0
  %814 = vmatpush2.bf16.msra.mxu0 0
  %815 = vmatprep.subr.bf16.mxu0 0
  %816 = vmatpush2.bf16.msra.mxu0 0
  %817 = vmatprep.mubr.bf16.mxu0 0
  %818 = vmatmul.mubr.bf16.gmra.mxu0 %v183
  %v819 = vpop.f32.mrf.mxu0
  %v820 = vadd.f32 %v780, %v819
  %v821 = vpop.f32.mrf.mxu0
  %v822 = vpop.f32.mrf.mxu0
  %v823 = vpop.f32.mrf.mxu0
  %824 = vdwg.mxu0
  %825 = vst [vmem:[%s2] sm:$0xff] %v820
  // Predicated region
  $region10: #{dronet_forward.21} parent=0 // pred_check
    _
  $region11: #{dronet_forward.21} parent=0 // pred_check_branch
    %827 = sbr.rel (0) target = $region13
  $region12: #{dronet_forward.21} parent=0 // pred_region
    _
  $region13: #{dronet_forward.21} parent=0 // pred_fallthru
    _
  // Predicated region
  $region14: #{dronet_forward.21} parent=0 // pred_check
    _
  $region15: #{dronet_forward.21} parent=0 // pred_check_branch
    %829 = sbr.rel (0) target = $region17
  $region16: #{dronet_forward.21} parent=0 // pred_region
    _
  $region17: #{dronet_forward.21} parent=0 // pred_fallthru
    _

// kernel: dronet_forward.23
$region0: #{dronet_forward.23}
  #allocation0 [shape = 'u32[]', space=smem, size = 0x4, offset = 0x4, fixed_abs, tag = 'smem constant byte address 0x4 - core index']
  #allocation1 [shape = 'u32[144,128]{1,0:T(1,128)}', space=vmem, size = 0x12000, scoped, tag = 'internal scratch']
  %s0 = inlined_call_operand.vmem [shape: f32[8,512], index: 0, kind: input, shape index: {}]
  %s1 = inlined_call_operand.vmem [shape: f32[8,512], index: 1, kind: input, shape index: {}]
  %s2 = inlined_call_operand.vmem [shape: bf16[512,256], index: 2, kind: input, shape index: {}]
  %s3 = inlined_call_operand.vmem [shape: f32[1,256], index: 3, kind: input, shape index: {}]
  %s4 = inlined_call_operand.vmem [shape: f32[8,256], index: 4, kind: output, shape index: {}]
  %s5 = sld [smem:[#allocation0]]
  $region26: #{dronet_forward.23} parent=0
    _
  %s7 = ssub.s32 1, %s5
  %s8 = scalar_select 0, %s7, %s5
  // Predicated region
  $region2: #{dronet_forward.23} parent=0 // pred_check
    _
  $region3: #{dronet_forward.23} parent=0 // pred_check_branch
    %10 = sbr.rel (0) target = $region5
  $region4: #{dronet_forward.23} parent=0 // pred_region
    _
  $region5: #{dronet_forward.23} parent=0 // pred_fallthru
    _
  // Predicated region
  $region6: #{dronet_forward.23} parent=0 // pred_check
    _
  $region7: #{dronet_forward.23} parent=0 // pred_check_branch
    %12 = sbr.rel (0) target = $region9
  $region8: #{dronet_forward.23} parent=0 // pred_region
    _
  $region9: #{dronet_forward.23} parent=0 // pred_fallthru
    _
  // Predicated region
  $region10: #{dronet_forward.23} parent=0 // pred_check
    _
  $region11: #{dronet_forward.23} parent=0 // pred_check_branch
    %14 = sbr.rel (0) target = $region13
  $region12: #{dronet_forward.23} parent=0 // pred_region
    _
  $region13: #{dronet_forward.23} parent=0 // pred_fallthru
    _
  // Predicated region
  $region14: #{dronet_forward.23} parent=0 // pred_check
    _
  $region15: #{dronet_forward.23} parent=0 // pred_check_branch
    %16 = sbr.rel (0) target = $region17
  $region16: #{dronet_forward.23} parent=0 // pred_region
    _
  $region17: #{dronet_forward.23} parent=0 // pred_fallthru
    _
  %v17 = vld [vmem:[%s0] sm:$0xff]
  %v18 = vld [vmem:[%s0 + $0x8] sm:$0xff]
  %v19 = vld [vmem:[%s0 + $0x10] sm:$0xff]
  %v20 = vld [vmem:[%s0 + $0x18] sm:$0xff]
  %v21 = vmax.f32 %v17, 0.0
  %v22 = vmax.f32 %v18, 0.0
  %v23 = vmax.f32 %v19, 0.0
  %v24 = vmax.f32 %v20, 0.0
  %v25 = vld [vmem:[%s1] sm:$0xff]
  %v26 = vld [vmem:[%s1 + $0x8] sm:$0xff]
  %v27 = vld [vmem:[%s1 + $0x10] sm:$0xff]
  %v28 = vld [vmem:[%s1 + $0x18] sm:$0xff]
  %v29 = vmul.f32 %v21, %v25
  %v30 = vmul.f32 %v22, %v26
  %v31 = vmul.f32 %v23, %v27
  %v32 = vmul.f32 %v24, %v28
  %v33 = vmul.f32 %v29, 2.0
  %v34 = vmul.f32 %v30, 2.0
  %v35 = vmul.f32 %v31, 2.0
  %v36 = vmul.f32 %v32, 2.0
  %v37 = vpack.c.bf16 %v33, %v33
  %v38 = vpack.c.bf16 %v34, %v34
  %v39 = vpack.c.bf16 %v35, %v35
  %v40 = vpack.c.bf16 %v36, %v36
  %v41 = vld [vmem:[%s2] sm:$0xff]
  %v42 = vld [vmem:[%s2 + $0x8] sm:$0xff]
  %v43 = vld [vmem:[%s2 + $0x10] sm:$0xff]
  %v44 = vld [vmem:[%s2 + $0x18] sm:$0xff]
  %v45 = vld [vmem:[%s2 + $0x20] sm:$0xff]
  %v46 = vld [vmem:[%s2 + $0x28] sm:$0xff]
  %v47 = vld [vmem:[%s2 + $0x30] sm:$0xff]
  %v48 = vld [vmem:[%s2 + $0x38] sm:$0xff]
  %v49 = vld [vmem:[%s2 + $0x40] sm:$0xff]
  %v50 = vld [vmem:[%s2 + $0x48] sm:$0xff]
  %v51 = vld [vmem:[%s2 + $0x50] sm:$0xff]
  %v52 = vld [vmem:[%s2 + $0x58] sm:$0xff]
  %v53 = vld [vmem:[%s2 + $0x60] sm:$0xff]
  %v54 = vld [vmem:[%s2 + $0x68] sm:$0xff]
  %v55 = vld [vmem:[%s2 + $0x70] sm:$0xff]
  %v56 = vld [vmem:[%s2 + $0x78] sm:$0xff]
  %v57 = vld [vmem:[%s2 + $0x80] sm:$0xff]
  %v58 = vld [vmem:[%s2 + $0x88] sm:$0xff]
  %v59 = vld [vmem:[%s2 + $0x90] sm:$0xff]
  %v60 = vld [vmem:[%s2 + $0x98] sm:$0xff]
  %v61 = vld [vmem:[%s2 + $0xa0] sm:$0xff]
  %v62 = vld [vmem:[%s2 + $0xa8] sm:$0xff]
  %v63 = vld [vmem:[%s2 + $0xb0] sm:$0xff]
  %v64 = vld [vmem:[%s2 + $0xb8] sm:$0xff]
  %v65 = vld [vmem:[%s2 + $0xc0] sm:$0xff]
  %v66 = vld [vmem:[%s2 + $0xc8] sm:$0xff]
  %v67 = vld [vmem:[%s2 + $0xd0] sm:$0xff]
  %v68 = vld [vmem:[%s2 + $0xd8] sm:$0xff]
  %v69 = vld [vmem:[%s2 + $0xe0] sm:$0xff]
  %v70 = vld [vmem:[%s2 + $0xe8] sm:$0xff]
  %v71 = vld [vmem:[%s2 + $0xf0] sm:$0xff]
  %v72 = vld [vmem:[%s2 + $0xf8] sm:$0xff]
  %v73 = vld [vmem:[%s2 + $0x100] sm:$0xff]
  %v74 = vld [vmem:[%s2 + $0x108] sm:$0xff]
  %v75 = vld [vmem:[%s2 + $0x110] sm:$0xff]
  %v76 = vld [vmem:[%s2 + $0x118] sm:$0xff]
  %v77 = vld [vmem:[%s2 + $0x120] sm:$0xff]
  %v78 = vld [vmem:[%s2 + $0x128] sm:$0xff]
  %v79 = vld [vmem:[%s2 + $0x130] sm:$0xff]
  %v80 = vld [vmem:[%s2 + $0x138] sm:$0xff]
  %v81 = vld [vmem:[%s2 + $0x140] sm:$0xff]
  %v82 = vld [vmem:[%s2 + $0x148] sm:$0xff]
  %v83 = vld [vmem:[%s2 + $0x150] sm:$0xff]
  %v84 = vld [vmem:[%s2 + $0x158] sm:$0xff]
  %v85 = vld [vmem:[%s2 + $0x160] sm:$0xff]
  %v86 = vld [vmem:[%s2 + $0x168] sm:$0xff]
  %v87 = vld [vmem:[%s2 + $0x170] sm:$0xff]
  %v88 = vld [vmem:[%s2 + $0x178] sm:$0xff]
  %v89 = vld [vmem:[%s2 + $0x180] sm:$0xff]
  %v90 = vld [vmem:[%s2 + $0x188] sm:$0xff]
  %v91 = vld [vmem:[%s2 + $0x190] sm:$0xff]
  %v92 = vld [vmem:[%s2 + $0x198] sm:$0xff]
  %v93 = vld [vmem:[%s2 + $0x1a0] sm:$0xff]
  %v94 = vld [vmem:[%s2 + $0x1a8] sm:$0xff]
  %v95 = vld [vmem:[%s2 + $0x1b0] sm:$0xff]
  %v96 = vld [vmem:[%s2 + $0x1b8] sm:$0xff]
  %v97 = vld [vmem:[%s2 + $0x1c0] sm:$0xff]
  %v98 = vld [vmem:[%s2 + $0x1c8] sm:$0xff]
  %v99 = vld [vmem:[%s2 + $0x1d0] sm:$0xff]
  %v100 = vld [vmem:[%s2 + $0x1d8] sm:$0xff]
  %v101 = vld [vmem:[%s2 + $0x1e0] sm:$0xff]
  %v102 = vld [vmem:[%s2 + $0x1e8] sm:$0xff]
  %v103 = vld [vmem:[%s2 + $0x1f0] sm:$0xff]
  %v104 = vld [vmem:[%s2 + $0x1f8] sm:$0xff]
  %v105 = vld [vmem:[%s3] sm:$0x3]
  %v107 = vlaneseq
  %v108 = vshrl.u32 %v107, 7
  %v109 = vsub.s32 0, %v108
  %v110 = vrot.slane %v105, %v109
  %v111 = vlaneseq
  %v112 = vshrl.u32 %v111, 7
  %v113 = vsub.s32 1, %v112
  %v114 = vrot.slane %v105, %v113
  %v181 = vunpack.c.l.b16 %v41
  %v182 = vunpack.c.h.b16 %v41
  %v183 = vunpack.c.l.b16 %v42
  %v184 = vunpack.c.h.b16 %v42
  %v185 = vunpack.c.l.b16 %v43
  %v186 = vunpack.c.h.b16 %v43
  %v187 = vunpack.c.l.b16 %v44
  %v188 = vunpack.c.h.b16 %v44
  %v189 = vunpack.c.l.b16 %v45
  %v190 = vunpack.c.h.b16 %v45
  %v191 = vunpack.c.l.b16 %v46
  %v192 = vunpack.c.h.b16 %v46
  %v193 = vunpack.c.l.b16 %v47
  %v194 = vunpack.c.h.b16 %v47
  %v195 = vunpack.c.l.b16 %v48
  %v196 = vunpack.c.h.b16 %v48
  %v197 = vunpack.c.l.b16 %v49
  %v198 = vunpack.c.h.b16 %v49
  %v199 = vunpack.c.l.b16 %v50
  %v200 = vunpack.c.h.b16 %v50
  %v201 = vunpack.c.l.b16 %v51
  %v202 = vunpack.c.h.b16 %v51
  %v203 = vunpack.c.l.b16 %v52
  %v204 = vunpack.c.h.b16 %v52
  %v205 = vunpack.c.l.b16 %v53
  %v206 = vunpack.c.h.b16 %v53
  %v207 = vunpack.c.l.b16 %v54
  %v208 = vunpack.c.h.b16 %v54
  %v209 = vunpack.c.l.b16 %v55
  %v210 = vunpack.c.h.b16 %v55
  %v211 = vunpack.c.l.b16 %v56
  %v212 = vunpack.c.h.b16 %v56
  %v213 = vunpack.c.l.b16 %v57
  %v214 = vunpack.c.h.b16 %v57
  %v215 = vunpack.c.l.b16 %v58
  %v216 = vunpack.c.h.b16 %v58
  %v217 = vunpack.c.l.b16 %v59
  %v218 = vunpack.c.h.b16 %v59
  %v219 = vunpack.c.l.b16 %v60
  %v220 = vunpack.c.h.b16 %v60
  %v221 = vunpack.c.l.b16 %v61
  %v222 = vunpack.c.h.b16 %v61
  %v223 = vunpack.c.l.b16 %v62
  %v224 = vunpack.c.h.b16 %v62
  %v225 = vunpack.c.l.b16 %v63
  %v226 = vunpack.c.h.b16 %v63
  %v227 = vunpack.c.l.b16 %v64
  %v228 = vunpack.c.h.b16 %v64
  %v229 = vunpack.c.l.b16 %v65
  %v230 = vunpack.c.h.b16 %v65
  %v231 = vunpack.c.l.b16 %v66
  %v232 = vunpack.c.h.b16 %v66
  %v233 = vunpack.c.l.b16 %v67
  %v234 = vunpack.c.h.b16 %v67
  %v235 = vunpack.c.l.b16 %v68
  %v236 = vunpack.c.h.b16 %v68
  %v237 = vunpack.c.l.b16 %v69
  %v238 = vunpack.c.h.b16 %v69
  %v239 = vunpack.c.l.b16 %v70
  %v240 = vunpack.c.h.b16 %v70
  %v241 = vunpack.c.l.b16 %v71
  %v242 = vunpack.c.h.b16 %v71
  %v243 = vunpack.c.l.b16 %v72
  %v244 = vunpack.c.h.b16 %v72
  %v245 = vunpack.c.l.b16 %v73
  %v246 = vunpack.c.h.b16 %v73
  %v247 = vunpack.c.l.b16 %v74
  %v248 = vunpack.c.h.b16 %v74
  %v249 = vunpack.c.l.b16 %v75
  %v250 = vunpack.c.h.b16 %v75
  %v251 = vunpack.c.l.b16 %v76
  %v252 = vunpack.c.h.b16 %v76
  %v253 = vunpack.c.l.b16 %v77
  %v254 = vunpack.c.h.b16 %v77
  %v255 = vunpack.c.l.b16 %v78
  %v256 = vunpack.c.h.b16 %v78
  %v257 = vunpack.c.l.b16 %v79
  %v258 = vunpack.c.h.b16 %v79
  %v259 = vunpack.c.l.b16 %v80
  %v260 = vunpack.c.h.b16 %v80
  %v261 = vunpack.c.l.b16 %v81
  %v262 = vunpack.c.h.b16 %v81
  %v263 = vunpack.c.l.b16 %v82
  %v264 = vunpack.c.h.b16 %v82
  %v265 = vunpack.c.l.b16 %v83
  %v266 = vunpack.c.h.b16 %v83
  %v267 = vunpack.c.l.b16 %v84
  %v268 = vunpack.c.h.b16 %v84
  %v269 = vunpack.c.l.b16 %v85
  %v270 = vunpack.c.h.b16 %v85
  %v271 = vunpack.c.l.b16 %v86
  %v272 = vunpack.c.h.b16 %v86
  %v273 = vunpack.c.l.b16 %v87
  %v274 = vunpack.c.h.b16 %v87
  %v275 = vunpack.c.l.b16 %v88
  %v276 = vunpack.c.h.b16 %v88
  %v277 = vunpack.c.l.b16 %v89
  %v278 = vunpack.c.h.b16 %v89
  %v279 = vunpack.c.l.b16 %v90
  %v280 = vunpack.c.h.b16 %v90
  %v281 = vunpack.c.l.b16 %v91
  %v282 = vunpack.c.h.b16 %v91
  %v283 = vunpack.c.l.b16 %v92
  %v284 = vunpack.c.h.b16 %v92
  %v285 = vunpack.c.l.b16 %v93
  %v286 = vunpack.c.h.b16 %v93
  %v287 = vunpack.c.l.b16 %v94
  %v288 = vunpack.c.h.b16 %v94
  %v289 = vunpack.c.l.b16 %v95
  %v290 = vunpack.c.h.b16 %v95
  %v291 = vunpack.c.l.b16 %v96
  %v292 = vunpack.c.h.b16 %v96
  %v293 = vunpack.c.l.b16 %v97
  %v294 = vunpack.c.h.b16 %v97
  %v295 = vunpack.c.l.b16 %v98
  %v296 = vunpack.c.h.b16 %v98
  %v297 = vunpack.c.l.b16 %v99
  %v298 = vunpack.c.h.b16 %v99
  %v299 = vunpack.c.l.b16 %v100
  %v300 = vunpack.c.h.b16 %v100
  %v301 = vunpack.c.l.b16 %v101
  %v302 = vunpack.c.h.b16 %v101
  %v303 = vunpack.c.l.b16 %v102
  %v304 = vunpack.c.h.b16 %v102
  %v305 = vunpack.c.l.b16 %v103
  %v306 = vunpack.c.h.b16 %v103
  %v307 = vunpack.c.l.b16 %v104
  %v308 = vunpack.c.h.b16 %v104
  %v309 = vpack.c.b16 %v183, %v181
  %v310 = vpack.c.b16 %v184, %v182
  %v311 = vpack.c.b16 %v187, %v185
  %v312 = vpack.c.b16 %v188, %v186
  %v313 = vpack.c.b16 %v191, %v189
  %v314 = vpack.c.b16 %v192, %v190
  %v315 = vpack.c.b16 %v195, %v193
  %v316 = vpack.c.b16 %v196, %v194
  %v317 = vpack.c.b16 %v199, %v197
  %v318 = vpack.c.b16 %v200, %v198
  %v319 = vpack.c.b16 %v203, %v201
  %v320 = vpack.c.b16 %v204, %v202
  %v321 = vpack.c.b16 %v207, %v205
  %v322 = vpack.c.b16 %v208, %v206
  %v323 = vpack.c.b16 %v211, %v209
  %v324 = vpack.c.b16 %v212, %v210
  %v325 = vpack.c.b16 %v215, %v213
  %v326 = vpack.c.b16 %v216, %v214
  %v327 = vpack.c.b16 %v219, %v217
  %v328 = vpack.c.b16 %v220, %v218
  %v329 = vpack.c.b16 %v223, %v221
  %v330 = vpack.c.b16 %v224, %v222
  %v331 = vpack.c.b16 %v227, %v225
  %v332 = vpack.c.b16 %v228, %v226
  %v333 = vpack.c.b16 %v231, %v229
  %v334 = vpack.c.b16 %v232, %v230
  %v335 = vpack.c.b16 %v235, %v233
  %v336 = vpack.c.b16 %v236, %v234
  %v337 = vpack.c.b16 %v239, %v237
  %v338 = vpack.c.b16 %v240, %v238
  %v339 = vpack.c.b16 %v243, %v241
  %v340 = vpack.c.b16 %v244, %v242
  %v341 = vpack.c.b16 %v247, %v245
  %v342 = vpack.c.b16 %v248, %v246
  %v343 = vpack.c.b16 %v251, %v249
  %v344 = vpack.c.b16 %v252, %v250
  %v345 = vpack.c.b16 %v255, %v253
  %v346 = vpack.c.b16 %v256, %v254
  %v347 = vpack.c.b16 %v259, %v257
  %v348 = vpack.c.b16 %v260, %v258
  %v349 = vpack.c.b16 %v263, %v261
  %v350 = vpack.c.b16 %v264, %v262
  %v351 = vpack.c.b16 %v267, %v265
  %v352 = vpack.c.b16 %v268, %v266
  %v353 = vpack.c.b16 %v271, %v269
  %v354 = vpack.c.b16 %v272, %v270
  %v355 = vpack.c.b16 %v275, %v273
  %v356 = vpack.c.b16 %v276, %v274
  %v357 = vpack.c.b16 %v279, %v277
  %v358 = vpack.c.b16 %v280, %v278
  %v359 = vpack.c.b16 %v283, %v281
  %v360 = vpack.c.b16 %v284, %v282
  %v361 = vpack.c.b16 %v287, %v285
  %v362 = vpack.c.b16 %v288, %v286
  %v363 = vpack.c.b16 %v291, %v289
  %v364 = vpack.c.b16 %v292, %v290
  %v365 = vpack.c.b16 %v295, %v293
  %v366 = vpack.c.b16 %v296, %v294
  %v367 = vpack.c.b16 %v299, %v297
  %v368 = vpack.c.b16 %v300, %v298
  %v369 = vpack.c.b16 %v303, %v301
  %v370 = vpack.c.b16 %v304, %v302
  %v371 = vpack.c.b16 %v307, %v305
  %v372 = vpack.c.b16 %v308, %v306
  %437 = vmatprep.subr.bf16.mxu0 %v324
  %438 = vmatpush1.bf16.msra.mxu0 %v323
  %439 = vmatprep.subr.bf16.mxu0 %v322
  %440 = vmatpush1.bf16.msra.mxu0 %v321
  %441 = vmatprep.subr.bf16.mxu0 %v320
  %442 = vmatpush1.bf16.msra.mxu0 %v319
  %443 = vmatprep.subr.bf16.mxu0 %v318
  %444 = vmatpush1.bf16.msra.mxu0 %v317
  %445 = vmatprep.subr.bf16.mxu0 %v316
  %446 = vmatpush1.bf16.msra.mxu0 %v315
  %447 = vmatprep.subr.bf16.mxu0 %v314
  %448 = vmatpush1.bf16.msra.mxu0 %v313
  %449 = vmatprep.subr.bf16.mxu0 %v312
  %450 = vmatpush1.bf16.msra.mxu0 %v311
  %451 = vmatprep.subr.bf16.mxu0 %v310
  %452 = vmatpush1.bf16.msra.mxu0 %v309
  %453 = vmatprep.subr.bf16.mxu0 %v340
  %454 = vmatpush2.bf16.msra.mxu0 %v339
  %455 = vmatprep.subr.bf16.mxu0 %v338
  %456 = vmatpush2.bf16.msra.mxu0 %v337
  %457 = vmatprep.subr.bf16.mxu0 %v336
  %458 = vmatpush2.bf16.msra.mxu0 %v335
  %459 = vmatprep.subr.bf16.mxu0 %v334
  %460 = vmatpush2.bf16.msra.mxu0 %v333
  %461 = vmatprep.subr.bf16.mxu0 %v332
  %462 = vmatpush2.bf16.msra.mxu0 %v331
  %463 = vmatprep.subr.bf16.mxu0 %v330
  %464 = vmatpush2.bf16.msra.mxu0 %v329
  %465 = vmatprep.subr.bf16.mxu0 %v328
  %466 = vmatpush2.bf16.msra.mxu0 %v327
  %467 = vmatprep.subr.bf16.mxu0 %v326
  %468 = vmatpush2.bf16.msra.mxu0 %v325
  %469 = vmatprep.mubr.bf16.mxu0 %v38
  %470 = vmatmul.mubr.bf16.gmra.mxu0 %v37
  %v471 = vpop.f32.mrf.mxu0
  %v472 = vadd.f32 %v110, %v471
  %v473 = vpop.f32.mrf.mxu0
  %v474 = vadd.f32 %v114, %v473
  %v475 = vpop.f32.mrf.mxu0
  %v476 = vpop.f32.mrf.mxu0
  %477 = vdwg.mxu0
  %478 = vmatprep.subr.bf16.mxu0 %v356
  %479 = vmatpush1.bf16.msra.mxu0 %v355
  %480 = vmatprep.subr.bf16.mxu0 %v354
  %481 = vmatpush1.bf16.msra.mxu0 %v353
  %482 = vmatprep.subr.bf16.mxu0 %v352
  %483 = vmatpush1.bf16.msra.mxu0 %v351
  %484 = vmatprep.subr.bf16.mxu0 %v350
  %485 = vmatpush1.bf16.msra.mxu0 %v349
  %486 = vmatprep.subr.bf16.mxu0 %v348
  %487 = vmatpush1.bf16.msra.mxu0 %v347
  %488 = vmatprep.subr.bf16.mxu0 %v346
  %489 = vmatpush1.bf16.msra.mxu0 %v345
  %490 = vmatprep.subr.bf16.mxu0 %v344
  %491 = vmatpush1.bf16.msra.mxu0 %v343
  %492 = vmatprep.subr.bf16.mxu0 %v342
  %493 = vmatpush1.bf16.msra.mxu0 %v341
  %494 = vmatprep.subr.bf16.mxu0 %v372
  %495 = vmatpush2.bf16.msra.mxu0 %v371
  %496 = vmatprep.subr.bf16.mxu0 %v370
  %497 = vmatpush2.bf16.msra.mxu0 %v369
  %498 = vmatprep.subr.bf16.mxu0 %v368
  %499 = vmatpush2.bf16.msra.mxu0 %v367
  %500 = vmatprep.subr.bf16.mxu0 %v366
  %501 = vmatpush2.bf16.msra.mxu0 %v365
  %502 = vmatprep.subr.bf16.mxu0 %v364
  %503 = vmatpush2.bf16.msra.mxu0 %v363
  %504 = vmatprep.subr.bf16.mxu0 %v362
  %505 = vmatpush2.bf16.msra.mxu0 %v361
  %506 = vmatprep.subr.bf16.mxu0 %v360
  %507 = vmatpush2.bf16.msra.mxu0 %v359
  %508 = vmatprep.subr.bf16.mxu0 %v358
  %509 = vmatpush2.bf16.msra.mxu0 %v357
  %510 = vmatprep.mubr.bf16.mxu0 %v40
  %511 = vmatmul.mubr.bf16.gmra.mxu0 %v39
  %v512 = vpop.f32.mrf.mxu0
  %v513 = vadd.f32 %v472, %v512
  %v514 = vpop.f32.mrf.mxu0
  %v515 = vadd.f32 %v474, %v514
  %v516 = vpop.f32.mrf.mxu0
  %v517 = vpop.f32.mrf.mxu0
  %518 = vdwg.mxu0
  %519 = vst [vmem:[%s4] sm:$0xff] %v513
  %520 = vst [vmem:[%s4 + $0x8] sm:$0xff] %v515
  // Predicated region
  $region18: #{dronet_forward.23} parent=0 // pred_check
    _
  $region19: #{dronet_forward.23} parent=0 // pred_check_branch
    %522 = sbr.rel (0) target = $region21
  $region20: #{dronet_forward.23} parent=0 // pred_region
    _
  $region21: #{dronet_forward.23} parent=0 // pred_fallthru
    _
  // Predicated region
  $region22: #{dronet_forward.23} parent=0 // pred_check
    _
  $region23: #{dronet_forward.23} parent=0 // pred_check_branch
    %524 = sbr.rel (0) target = $region25
  $region24: #{dronet_forward.23} parent=0 // pred_region
    _
  $region25: #{dronet_forward.23} parent=0 // pred_fallthru
    _

</llo_original>
